<compile_context>
chip_gen: v7x
topology: tpu7x:2x2x1
jax: 0.10.0
libtpu: 0.0.40
codegen_flags: <defaults>
</compile_context>

<pallas_src>
import functools

import jax
import jax.numpy as jnp
from jax.experimental import pallas as pl
from jax.experimental.pallas import tpu as pltpu

EPS = 1e-5
LANE = 128
COL0 = 8  # 8-aligned scratch column where the padded-tile interior starts.


def _round_up(x, m):
    return (x + m - 1) // m * m


# ------------------------------ Pallas kernel --------------------------------
def _fused_residual_kernel(x_ref, w1_ref, b1_ref, w2_ref, b2_ref, o_ref,
                           pad_ref, *, H, W):
    Cp = o_ref.shape[-1]
    HW = H * W
    inv_hw = 1.0 / float(HW)

    def write_reflect_pad(src):
        # src: (H, W, Cp) value.  Interior lives at scratch columns
        # [COL0, COL0 + W); the 1-pixel reflect ring sits at COL0-1 / COL0+W
        # and rows 0 / H+1.  COL0=8 keeps the bulk stores sublane-aligned.
        pad_ref[1:H + 1, COL0:COL0 + W, :] = src                        # interior
        pad_ref[0:1, COL0:COL0 + W, :] = src[1:2, :, :]                 # top row
        pad_ref[H + 1:H + 2, COL0:COL0 + W, :] = src[H - 2:H - 1, :, :]  # bottom
        # Left / right columns (corners included, since rows 0..H+1 are set).
        pad_ref[:, COL0 - 1:COL0, :] = pad_ref[:, COL0 + 1:COL0 + 2, :]
        pad_ref[:, COL0 + W:COL0 + W + 1, :] = pad_ref[:, COL0 + W - 2:COL0 + W - 1, :]

    def conv3x3(w_ref, b_ref):
        # 3x3 conv as 9 shifted matmuls; both MXU dims are Cp (lane-dense).
        acc = None
        for kh in range(3):
            for kw in range(3):
                col = COL0 - 1 + kw
                patch = pad_ref[kh:kh + H, col:col + W, :].reshape(HW, Cp)
                part = jnp.dot(patch, w_ref[kh * 3 + kw],
                               preferred_element_type=jnp.float32)
                acc = part if acc is None else acc + part
        return acc + b_ref[...]

    def instance_norm(y):
        # Single-pass statistics: E[y] and E[y^2] over the spatial (HW) axis.
        s = jnp.sum(y, axis=0, keepdims=True)
        ss = jnp.sum(y * y, axis=0, keepdims=True)
        mean = s * inv_hw
        var = ss * inv_hw - mean * mean
        return (y - mean) * jax.lax.rsqrt(var + EPS)

    # ---- ConvBlock 1: reflect-pad (in VMEM) + conv + IN + ReLU ----
    write_reflect_pad(x_ref[0])
    h = jnp.maximum(instance_norm(conv3x3(w1_ref, b1_ref)), 0.0)   # (HW, Cp)

    # ---- ConvBlock 2: reuse the same scratch for padded h, conv + IN ----
    write_reflect_pad(h.reshape(H, W, Cp))
    y2 = instance_norm(conv3x3(w2_ref, b2_ref))

    # ---- residual add (x is reloaded here, not kept live across the convs) --
    o_ref[0] = x_ref[0] + y2.reshape(H, W, Cp)


# ------------------------------- JAX wrapper ---------------------------------
def residual_block(x, params):
    """ResidualBlock.forward: x + block(x).  x: (N, C, H, W) f32 (NCHW)."""
    N, C, H, W = x.shape
    Cp = _round_up(max(C, LANE), LANE)
    HW = H * W

    # Channels-last; zero-pad channels to a lane-dense width.  Spatial reflect
    # padding is done inside the kernel (saves an HBM round trip).
    x_nhwc = jnp.transpose(x, (0, 2, 3, 1))
    x_nhwc = jnp.pad(x_nhwc, ((0, 0), (0, 0), (0, 0), (0, Cp - C)))

    def prep_w(w):   # (Cout, Cin, 3, 3) -> (9, Cp_in, Cp_out), zero-padded
        wm = jnp.transpose(w, (2, 3, 1, 0)).reshape(9, C, C)
        return jnp.pad(wm, ((0, 0), (0, Cp - C), (0, Cp - C)))

    def prep_b(b):   # (C,) -> (1, Cp), zero-padded
        return jnp.pad(b.reshape(1, C), ((0, 0), (0, Cp - C)))

    w1, b1 = prep_w(params["w1"]), prep_b(params["b1"])
    w2, b2 = prep_w(params["w2"]), prep_b(params["b2"])

    kernel = functools.partial(_fused_residual_kernel, H=H, W=W)

    flops = 2 * (2 * 9 * N * HW * Cp * Cp)          # two convs, 9 matmuls each
    bytes_accessed = 4 * (2 * N * HW * Cp + w1.size + w2.size + b1.size + b2.size)

    # TODO(synk): for production CycleGAN sizes (e.g. C=256, 64x64+) tile HW
    # across the grid with a two-pass InstanceNorm so blocks fit v7x's 64 MiB
    # VMEM; at these shapes one sample per grid step fits comfortably.
    out = pl.pallas_call(
        kernel,
        out_shape=jax.ShapeDtypeStruct((N, H, W, Cp), jnp.float32),
        grid=(N,),
        in_specs=[
            pl.BlockSpec((1, H, W, Cp), lambda n: (n, 0, 0, 0)),   # x (NHWC)
            pl.BlockSpec((9, Cp, Cp), lambda n: (0, 0, 0)),        # w1
            pl.BlockSpec((1, Cp), lambda n: (0, 0)),               # b1
            pl.BlockSpec((9, Cp, Cp), lambda n: (0, 0, 0)),        # w2
            pl.BlockSpec((1, Cp), lambda n: (0, 0)),               # b2
        ],
        out_specs=pl.BlockSpec((1, H, W, Cp), lambda n: (n, 0, 0, 0)),
        scratch_shapes=[pltpu.VMEM((H + 2, W + 2 * COL0, Cp), jnp.float32)],
        compiler_params=pltpu.CompilerParams(
            dimension_semantics=("parallel",)),
        cost_estimate=pl.CostEstimate(
            flops=flops, transcendentals=2 * N * Cp,
            bytes_accessed=bytes_accessed),
    )(x_nhwc, w1, b1, w2, b2)

    # Drop channel padding and return to NCHW only at the module boundary.
    return jnp.transpose(out[..., :C], (0, 3, 1, 2))


# ----------------------------- pure-JAX reference ----------------------------
def _ref_conv_block(x, weight, bias, use_act):
    xp = jnp.pad(x, ((0, 0), (0, 0), (1, 1), (1, 1)), mode="reflect")
    y = jax.lax.conv_general_dilated(
        xp, weight, window_strides=(1, 1), padding="VALID",
        dimension_numbers=("NCHW", "OIHW", "NCHW"),
    ) + bias.reshape(1, -1, 1, 1)
    mean = jnp.mean(y, axis=(2, 3), keepdims=True)
    var = jnp.mean(jnp.square(y - mean), axis=(2, 3), keepdims=True)
    y = (y - mean) * jax.lax.rsqrt(var + EPS)
    return jnp.maximum(y, 0.0) if use_act else y


def _ref_residual_block(x, params):
    h = _ref_conv_block(x, params["w1"], params["b1"], True)
    return x + _ref_conv_block(h, params["w2"], params["b2"], False)


# ---------------------------------- main --------------------------------------
if __name__ == "__main__":
    N, C, H, W = 2, 4, 16, 16

    key = jax.random.PRNGKey(0)
    kx, kw1, kb1, kw2, kb2 = jax.random.split(key, 5)

    x = jax.random.normal(kx, (N, C, H, W), dtype=jnp.float32)
    fan_in = C * 3 * 3
    params = {
        "w1": jax.random.normal(kw1, (C, C, 3, 3), jnp.float32) / jnp.sqrt(fan_in),
        "b1": jax.random.normal(kb1, (C,), jnp.float32) * 0.1,
        "w2": jax.random.normal(kw2, (C, C, 3, 3), jnp.float32) / jnp.sqrt(fan_in),
        "b2": jax.random.normal(kb2, (C,), jnp.float32) * 0.1,
    }

    out = jax.block_until_ready(jax.jit(residual_block)(x, params))
    ref = jax.block_until_ready(_ref_residual_block(x, params))

    assert out.shape == (N, C, H, W)
    err = float(jnp.max(jnp.abs(out - ref)))
    assert err < 5e-4, f"mismatch vs reference: max abs err = {err}"
    print("KERNEL_OK")
</pallas_src>

<mosaic_0001>
module attributes {stable_mosaic.version = 11 : i64} {
  func.func @_fused_residual_kernel(%arg0: i32, %arg1: memref<1x16x16x128xf32, #tpu.memory_space<vmem>>, %arg2: memref<9x128x128xf32, #tpu.memory_space<vmem>>, %arg3: memref<1x128xf32, #tpu.memory_space<vmem>>, %arg4: memref<9x128x128xf32, #tpu.memory_space<vmem>>, %arg5: memref<1x128xf32, #tpu.memory_space<vmem>>, %arg6: memref<1x16x16x128xf32, #tpu.memory_space<vmem>>, %arg7: memref<18x32x128xf32, #tpu.memory_space<vmem>>) attributes {dimension_semantics = [#tpu.dimension_semantics<parallel>], iteration_bounds = array<i64: 2>, scalar_prefetch = 0 : i64, scratch_operands = 1 : i64, tpu.core_type = #tpu.core_type<tc>, window_params = [{transform_indices = @transform_0, window_bounds = array<i64: 1, 16, 16, 128>}, {pipeline_mode = #tpu.pipeline_mode<synchronous>, transform_indices = @transform_1, window_bounds = array<i64: 9, 128, 128>}, {pipeline_mode = #tpu.pipeline_mode<synchronous>, transform_indices = @transform_2, window_bounds = array<i64: 1, 128>}, {pipeline_mode = #tpu.pipeline_mode<synchronous>, transform_indices = @transform_3, window_bounds = array<i64: 9, 128, 128>}, {pipeline_mode = #tpu.pipeline_mode<synchronous>, transform_indices = @transform_4, window_bounds = array<i64: 1, 128>}, {transform_indices = @transform_5, window_bounds = array<i64: 1, 16, 16, 128>}]} {
    %c0 = arith.constant 0 : index
    %c0_0 = arith.constant 0 : index
    %c0_1 = arith.constant 0 : index
    %c0_2 = arith.constant 0 : index
    %0 = vector.load %arg1[%c0, %c0_0, %c0_1, %c0_2] : memref<1x16x16x128xf32, #tpu.memory_space<vmem>>, vector<1x16x16x128xf32>
    %1 = vector.shape_cast %0 : vector<1x16x16x128xf32> to vector<16x16x128xf32>
    %c1 = arith.constant 1 : index
    %c8 = arith.constant 8 : index
    %c0_3 = arith.constant 0 : index
    %2 = vector.load %arg7[%c1, %c8, %c0_3] : memref<18x32x128xf32, #tpu.memory_space<vmem>>, vector<16x16x128xf32>
    tpu.vector_store %arg7[%c1, %c8, %c0_3], %1 {strides = array<i32>} : memref<18x32x128xf32, #tpu.memory_space<vmem>>, vector<16x16x128xf32>,
    %3 = vector.extract_strided_slice %1 {offsets = [1, 0, 0], sizes = [1, 16, 128], strides = [1, 1, 1]} : vector<16x16x128xf32> to vector<1x16x128xf32>
    %c0_4 = arith.constant 0 : index
    %c8_5 = arith.constant 8 : index
    %c0_6 = arith.constant 0 : index
    %4 = vector.load %arg7[%c0_4, %c8_5, %c0_6] : memref<18x32x128xf32, #tpu.memory_space<vmem>>, vector<1x16x128xf32>
    tpu.vector_store %arg7[%c0_4, %c8_5, %c0_6], %3 {strides = array<i32>} : memref<18x32x128xf32, #tpu.memory_space<vmem>>, vector<1x16x128xf32>,
    %5 = vector.extract_strided_slice %1 {offsets = [14, 0, 0], sizes = [1, 16, 128], strides = [1, 1, 1]} : vector<16x16x128xf32> to vector<1x16x128xf32>
    %c17 = arith.constant 17 : index
    %c8_7 = arith.constant 8 : index
    %c0_8 = arith.constant 0 : index
    %6 = vector.load %arg7[%c17, %c8_7, %c0_8] : memref<18x32x128xf32, #tpu.memory_space<vmem>>, vector<1x16x128xf32>
    tpu.vector_store %arg7[%c17, %c8_7, %c0_8], %5 {strides = array<i32>} : memref<18x32x128xf32, #tpu.memory_space<vmem>>, vector<1x16x128xf32>,
    %c0_9 = arith.constant 0 : index
    %c9 = arith.constant 9 : index
    %c0_10 = arith.constant 0 : index
    %7 = vector.load %arg7[%c0_9, %c9, %c0_10] : memref<18x32x128xf32, #tpu.memory_space<vmem>>, vector<18x1x128xf32>
    %c0_11 = arith.constant 0 : index
    %c7 = arith.constant 7 : index
    %c0_12 = arith.constant 0 : index
    %8 = vector.load %arg7[%c0_11, %c7, %c0_12] : memref<18x32x128xf32, #tpu.memory_space<vmem>>, vector<18x1x128xf32>
    tpu.vector_store %arg7[%c0_11, %c7, %c0_12], %7 {strides = array<i32>} : memref<18x32x128xf32, #tpu.memory_space<vmem>>, vector<18x1x128xf32>,
    %c0_13 = arith.constant 0 : index
    %c22 = arith.constant 22 : index
    %c0_14 = arith.constant 0 : index
    %9 = vector.load %arg7[%c0_13, %c22, %c0_14] : memref<18x32x128xf32, #tpu.memory_space<vmem>>, vector<18x1x128xf32>
    %c0_15 = arith.constant 0 : index
    %c24 = arith.constant 24 : index
    %c0_16 = arith.constant 0 : index
    %10 = vector.load %arg7[%c0_15, %c24, %c0_16] : memref<18x32x128xf32, #tpu.memory_space<vmem>>, vector<18x1x128xf32>
    tpu.vector_store %arg7[%c0_15, %c24, %c0_16], %9 {strides = array<i32>} : memref<18x32x128xf32, #tpu.memory_space<vmem>>, vector<18x1x128xf32>,
    %c0_17 = arith.constant 0 : index
    %c7_18 = arith.constant 7 : index
    %c0_19 = arith.constant 0 : index
    %11 = vector.load %arg7[%c0_17, %c7_18, %c0_19] : memref<18x32x128xf32, #tpu.memory_space<vmem>>, vector<16x16x128xf32>
    %12 = vector.shape_cast %11 : vector<16x16x128xf32> to vector<256x128xf32>
    %c0_20 = arith.constant 0 : index
    %c0_21 = arith.constant 0 : index
    %c0_22 = arith.constant 0 : index
    %13 = vector.load %arg2[%c0_20, %c0_21, %c0_22] : memref<9x128x128xf32, #tpu.memory_space<vmem>>, vector<1x128x128xf32>
    %14 = vector.shape_cast %13 : vector<1x128x128xf32> to vector<128x128xf32>
    %cst = arith.constant dense<0.000000e+00> : vector<256x128xf32>
    %15 = tpu.matmul %12, %14, %cst {dimension_numbers = #tpu.dot_dimension_numbers<[1], [0], [0], [1], [0, 0, 1, 1], [], []>} : vector<256x128xf32>, vector<128x128xf32>, vector<256x128xf32> -> vector<256x128xf32>
    %c0_23 = arith.constant 0 : index
    %c8_24 = arith.constant 8 : index
    %c0_25 = arith.constant 0 : index
    %16 = vector.load %arg7[%c0_23, %c8_24, %c0_25] : memref<18x32x128xf32, #tpu.memory_space<vmem>>, vector<16x16x128xf32>
    %17 = vector.shape_cast %16 : vector<16x16x128xf32> to vector<256x128xf32>
    %c1_26 = arith.constant 1 : index
    %c0_27 = arith.constant 0 : index
    %c0_28 = arith.constant 0 : index
    %18 = vector.load %arg2[%c1_26, %c0_27, %c0_28] : memref<9x128x128xf32, #tpu.memory_space<vmem>>, vector<1x128x128xf32>
    %19 = vector.shape_cast %18 : vector<1x128x128xf32> to vector<128x128xf32>
    %cst_29 = arith.constant dense<0.000000e+00> : vector<256x128xf32>
    %20 = tpu.matmul %17, %19, %cst_29 {dimension_numbers = #tpu.dot_dimension_numbers<[1], [0], [0], [1], [0, 0, 1, 1], [], []>} : vector<256x128xf32>, vector<128x128xf32>, vector<256x128xf32> -> vector<256x128xf32>
    %21 = arith.addf %15, %20 : vector<256x128xf32>
    %c0_30 = arith.constant 0 : index
    %c9_31 = arith.constant 9 : index
    %c0_32 = arith.constant 0 : index
    %22 = vector.load %arg7[%c0_30, %c9_31, %c0_32] : memref<18x32x128xf32, #tpu.memory_space<vmem>>, vector<16x16x128xf32>
    %23 = vector.shape_cast %22 : vector<16x16x128xf32> to vector<256x128xf32>
    %c2 = arith.constant 2 : index
    %c0_33 = arith.constant 0 : index
    %c0_34 = arith.constant 0 : index
    %24 = vector.load %arg2[%c2, %c0_33, %c0_34] : memref<9x128x128xf32, #tpu.memory_space<vmem>>, vector<1x128x128xf32>
    %25 = vector.shape_cast %24 : vector<1x128x128xf32> to vector<128x128xf32>
    %cst_35 = arith.constant dense<0.000000e+00> : vector<256x128xf32>
    %26 = tpu.matmul %23, %25, %cst_35 {dimension_numbers = #tpu.dot_dimension_numbers<[1], [0], [0], [1], [0, 0, 1, 1], [], []>} : vector<256x128xf32>, vector<128x128xf32>, vector<256x128xf32> -> vector<256x128xf32>
    %27 = arith.addf %21, %26 : vector<256x128xf32>
    %c1_36 = arith.constant 1 : index
    %c7_37 = arith.constant 7 : index
    %c0_38 = arith.constant 0 : index
    %28 = vector.load %arg7[%c1_36, %c7_37, %c0_38] : memref<18x32x128xf32, #tpu.memory_space<vmem>>, vector<16x16x128xf32>
    %29 = vector.shape_cast %28 : vector<16x16x128xf32> to vector<256x128xf32>
    %c3 = arith.constant 3 : index
    %c0_39 = arith.constant 0 : index
    %c0_40 = arith.constant 0 : index
    %30 = vector.load %arg2[%c3, %c0_39, %c0_40] : memref<9x128x128xf32, #tpu.memory_space<vmem>>, vector<1x128x128xf32>
    %31 = vector.shape_cast %30 : vector<1x128x128xf32> to vector<128x128xf32>
    %cst_41 = arith.constant dense<0.000000e+00> : vector<256x128xf32>
    %32 = tpu.matmul %29, %31, %cst_41 {dimension_numbers = #tpu.dot_dimension_numbers<[1], [0], [0], [1], [0, 0, 1, 1], [], []>} : vector<256x128xf32>, vector<128x128xf32>, vector<256x128xf32> -> vector<256x128xf32>
    %33 = arith.addf %27, %32 : vector<256x128xf32>
    %c1_42 = arith.constant 1 : index
    %c8_43 = arith.constant 8 : index
    %c0_44 = arith.constant 0 : index
    %34 = vector.load %arg7[%c1_42, %c8_43, %c0_44] : memref<18x32x128xf32, #tpu.memory_space<vmem>>, vector<16x16x128xf32>
    %35 = vector.shape_cast %34 : vector<16x16x128xf32> to vector<256x128xf32>
    %c4 = arith.constant 4 : index
    %c0_45 = arith.constant 0 : index
    %c0_46 = arith.constant 0 : index
    %36 = vector.load %arg2[%c4, %c0_45, %c0_46] : memref<9x128x128xf32, #tpu.memory_space<vmem>>, vector<1x128x128xf32>
    %37 = vector.shape_cast %36 : vector<1x128x128xf32> to vector<128x128xf32>
    %cst_47 = arith.constant dense<0.000000e+00> : vector<256x128xf32>
    %38 = tpu.matmul %35, %37, %cst_47 {dimension_numbers = #tpu.dot_dimension_numbers<[1], [0], [0], [1], [0, 0, 1, 1], [], []>} : vector<256x128xf32>, vector<128x128xf32>, vector<256x128xf32> -> vector<256x128xf32>
    %39 = arith.addf %33, %38 : vector<256x128xf32>
    %c1_48 = arith.constant 1 : index
    %c9_49 = arith.constant 9 : index
    %c0_50 = arith.constant 0 : index
    %40 = vector.load %arg7[%c1_48, %c9_49, %c0_50] : memref<18x32x128xf32, #tpu.memory_space<vmem>>, vector<16x16x128xf32>
    %41 = vector.shape_cast %40 : vector<16x16x128xf32> to vector<256x128xf32>
    %c5 = arith.constant 5 : index
    %c0_51 = arith.constant 0 : index
    %c0_52 = arith.constant 0 : index
    %42 = vector.load %arg2[%c5, %c0_51, %c0_52] : memref<9x128x128xf32, #tpu.memory_space<vmem>>, vector<1x128x128xf32>
    %43 = vector.shape_cast %42 : vector<1x128x128xf32> to vector<128x128xf32>
    %cst_53 = arith.constant dense<0.000000e+00> : vector<256x128xf32>
    %44 = tpu.matmul %41, %43, %cst_53 {dimension_numbers = #tpu.dot_dimension_numbers<[1], [0], [0], [1], [0, 0, 1, 1], [], []>} : vector<256x128xf32>, vector<128x128xf32>, vector<256x128xf32> -> vector<256x128xf32>
    %45 = arith.addf %39, %44 : vector<256x128xf32>
    %c2_54 = arith.constant 2 : index
    %c7_55 = arith.constant 7 : index
    %c0_56 = arith.constant 0 : index
    %46 = vector.load %arg7[%c2_54, %c7_55, %c0_56] : memref<18x32x128xf32, #tpu.memory_space<vmem>>, vector<16x16x128xf32>
    %47 = vector.shape_cast %46 : vector<16x16x128xf32> to vector<256x128xf32>
    %c6 = arith.constant 6 : index
    %c0_57 = arith.constant 0 : index
    %c0_58 = arith.constant 0 : index
    %48 = vector.load %arg2[%c6, %c0_57, %c0_58] : memref<9x128x128xf32, #tpu.memory_space<vmem>>, vector<1x128x128xf32>
    %49 = vector.shape_cast %48 : vector<1x128x128xf32> to vector<128x128xf32>
    %cst_59 = arith.constant dense<0.000000e+00> : vector<256x128xf32>
    %50 = tpu.matmul %47, %49, %cst_59 {dimension_numbers = #tpu.dot_dimension_numbers<[1], [0], [0], [1], [0, 0, 1, 1], [], []>} : vector<256x128xf32>, vector<128x128xf32>, vector<256x128xf32> -> vector<256x128xf32>
    %51 = arith.addf %45, %50 : vector<256x128xf32>
    %c2_60 = arith.constant 2 : index
    %c8_61 = arith.constant 8 : index
    %c0_62 = arith.constant 0 : index
    %52 = vector.load %arg7[%c2_60, %c8_61, %c0_62] : memref<18x32x128xf32, #tpu.memory_space<vmem>>, vector<16x16x128xf32>
    %53 = vector.shape_cast %52 : vector<16x16x128xf32> to vector<256x128xf32>
    %c7_63 = arith.constant 7 : index
    %c0_64 = arith.constant 0 : index
    %c0_65 = arith.constant 0 : index
    %54 = vector.load %arg2[%c7_63, %c0_64, %c0_65] : memref<9x128x128xf32, #tpu.memory_space<vmem>>, vector<1x128x128xf32>
    %55 = vector.shape_cast %54 : vector<1x128x128xf32> to vector<128x128xf32>
    %cst_66 = arith.constant dense<0.000000e+00> : vector<256x128xf32>
    %56 = tpu.matmul %53, %55, %cst_66 {dimension_numbers = #tpu.dot_dimension_numbers<[1], [0], [0], [1], [0, 0, 1, 1], [], []>} : vector<256x128xf32>, vector<128x128xf32>, vector<256x128xf32> -> vector<256x128xf32>
    %57 = arith.addf %51, %56 : vector<256x128xf32>
    %c2_67 = arith.constant 2 : index
    %c9_68 = arith.constant 9 : index
    %c0_69 = arith.constant 0 : index
    %58 = vector.load %arg7[%c2_67, %c9_68, %c0_69] : memref<18x32x128xf32, #tpu.memory_space<vmem>>, vector<16x16x128xf32>
    %59 = vector.shape_cast %58 : vector<16x16x128xf32> to vector<256x128xf32>
    %c8_70 = arith.constant 8 : index
    %c0_71 = arith.constant 0 : index
    %c0_72 = arith.constant 0 : index
    %60 = vector.load %arg2[%c8_70, %c0_71, %c0_72] : memref<9x128x128xf32, #tpu.memory_space<vmem>>, vector<1x128x128xf32>
    %61 = vector.shape_cast %60 : vector<1x128x128xf32> to vector<128x128xf32>
    %cst_73 = arith.constant dense<0.000000e+00> : vector<256x128xf32>
    %62 = tpu.matmul %59, %61, %cst_73 {dimension_numbers = #tpu.dot_dimension_numbers<[1], [0], [0], [1], [0, 0, 1, 1], [], []>} : vector<256x128xf32>, vector<128x128xf32>, vector<256x128xf32> -> vector<256x128xf32>
    %63 = arith.addf %57, %62 : vector<256x128xf32>
    %c0_74 = arith.constant 0 : index
    %c0_75 = arith.constant 0 : index
    %64 = vector.load %arg3[%c0_74, %c0_75] : memref<1x128xf32, #tpu.memory_space<vmem>>, vector<1x128xf32>
    %65 = vector.broadcast %64 : vector<1x128xf32> to vector<256x128xf32>
    %66 = arith.addf %63, %65 : vector<256x128xf32>
    %cst_76 = arith.constant dense<0.000000e+00> : vector<128xf32>
    %67 = vector.multi_reduction <add>, %66, %cst_76 [0] : vector<256x128xf32> to vector<128xf32>
    %68 = vector.shape_cast %67 : vector<128xf32> to vector<1x128xf32>
    %69 = arith.mulf %66, %66 : vector<256x128xf32>
    %cst_77 = arith.constant dense<0.000000e+00> : vector<128xf32>
    %70 = vector.multi_reduction <add>, %69, %cst_77 [0] : vector<256x128xf32> to vector<128xf32>
    %71 = vector.shape_cast %70 : vector<128xf32> to vector<1x128xf32>
    %cst_78 = arith.constant 3.906250e-03 : f32
    %72 = vector.broadcast %cst_78 : f32 to vector<1x128xf32>
    %73 = arith.mulf %68, %72 : vector<1x128xf32>
    %cst_79 = arith.constant 3.906250e-03 : f32
    %74 = vector.broadcast %cst_79 : f32 to vector<1x128xf32>
    %75 = arith.mulf %71, %74 : vector<1x128xf32>
    %76 = arith.mulf %73, %73 : vector<1x128xf32>
    %77 = arith.subf %75, %76 : vector<1x128xf32>
    %78 = vector.broadcast %73 : vector<1x128xf32> to vector<256x128xf32>
    %79 = arith.subf %66, %78 : vector<256x128xf32>
    %cst_80 = arith.constant 9.99999974E-6 : f32
    %80 = vector.broadcast %cst_80 : f32 to vector<1x128xf32>
    %81 = arith.addf %77, %80 : vector<1x128xf32>
    %82 = math.rsqrt %81 : vector<1x128xf32>
    %83 = vector.broadcast %82 : vector<1x128xf32> to vector<256x128xf32>
    %84 = arith.mulf %79, %83 : vector<256x128xf32>
    %cst_81 = arith.constant 0.000000e+00 : f32
    %85 = vector.broadcast %cst_81 : f32 to vector<256x128xf32>
    %86 = arith.maximumf %84, %85 : vector<256x128xf32>
    %87 = vector.shape_cast %86 : vector<256x128xf32> to vector<16x16x128xf32>
    %c1_82 = arith.constant 1 : index
    %c8_83 = arith.constant 8 : index
    %c0_84 = arith.constant 0 : index
    %88 = vector.load %arg7[%c1_82, %c8_83, %c0_84] : memref<18x32x128xf32, #tpu.memory_space<vmem>>, vector<16x16x128xf32>
    tpu.vector_store %arg7[%c1_82, %c8_83, %c0_84], %87 {strides = array<i32>} : memref<18x32x128xf32, #tpu.memory_space<vmem>>, vector<16x16x128xf32>,
    %89 = vector.extract_strided_slice %87 {offsets = [1, 0, 0], sizes = [1, 16, 128], strides = [1, 1, 1]} : vector<16x16x128xf32> to vector<1x16x128xf32>
    %c0_85 = arith.constant 0 : index
    %c8_86 = arith.constant 8 : index
    %c0_87 = arith.constant 0 : index
    %90 = vector.load %arg7[%c0_85, %c8_86, %c0_87] : memref<18x32x128xf32, #tpu.memory_space<vmem>>, vector<1x16x128xf32>
    tpu.vector_store %arg7[%c0_85, %c8_86, %c0_87], %89 {strides = array<i32>} : memref<18x32x128xf32, #tpu.memory_space<vmem>>, vector<1x16x128xf32>,
    %91 = vector.extract_strided_slice %87 {offsets = [14, 0, 0], sizes = [1, 16, 128], strides = [1, 1, 1]} : vector<16x16x128xf32> to vector<1x16x128xf32>
    %c17_88 = arith.constant 17 : index
    %c8_89 = arith.constant 8 : index
    %c0_90 = arith.constant 0 : index
    %92 = vector.load %arg7[%c17_88, %c8_89, %c0_90] : memref<18x32x128xf32, #tpu.memory_space<vmem>>, vector<1x16x128xf32>
    tpu.vector_store %arg7[%c17_88, %c8_89, %c0_90], %91 {strides = array<i32>} : memref<18x32x128xf32, #tpu.memory_space<vmem>>, vector<1x16x128xf32>,
    %c0_91 = arith.constant 0 : index
    %c9_92 = arith.constant 9 : index
    %c0_93 = arith.constant 0 : index
    %93 = vector.load %arg7[%c0_91, %c9_92, %c0_93] : memref<18x32x128xf32, #tpu.memory_space<vmem>>, vector<18x1x128xf32>
    %c0_94 = arith.constant 0 : index
    %c7_95 = arith.constant 7 : index
    %c0_96 = arith.constant 0 : index
    %94 = vector.load %arg7[%c0_94, %c7_95, %c0_96] : memref<18x32x128xf32, #tpu.memory_space<vmem>>, vector<18x1x128xf32>
    tpu.vector_store %arg7[%c0_94, %c7_95, %c0_96], %93 {strides = array<i32>} : memref<18x32x128xf32, #tpu.memory_space<vmem>>, vector<18x1x128xf32>,
    %c0_97 = arith.constant 0 : index
    %c22_98 = arith.constant 22 : index
    %c0_99 = arith.constant 0 : index
    %95 = vector.load %arg7[%c0_97, %c22_98, %c0_99] : memref<18x32x128xf32, #tpu.memory_space<vmem>>, vector<18x1x128xf32>
    %c0_100 = arith.constant 0 : index
    %c24_101 = arith.constant 24 : index
    %c0_102 = arith.constant 0 : index
    %96 = vector.load %arg7[%c0_100, %c24_101, %c0_102] : memref<18x32x128xf32, #tpu.memory_space<vmem>>, vector<18x1x128xf32>
    tpu.vector_store %arg7[%c0_100, %c24_101, %c0_102], %95 {strides = array<i32>} : memref<18x32x128xf32, #tpu.memory_space<vmem>>, vector<18x1x128xf32>,
    %c0_103 = arith.constant 0 : index
    %c7_104 = arith.constant 7 : index
    %c0_105 = arith.constant 0 : index
    %97 = vector.load %arg7[%c0_103, %c7_104, %c0_105] : memref<18x32x128xf32, #tpu.memory_space<vmem>>, vector<16x16x128xf32>
    %98 = vector.shape_cast %97 : vector<16x16x128xf32> to vector<256x128xf32>
    %c0_106 = arith.constant 0 : index
    %c0_107 = arith.constant 0 : index
    %c0_108 = arith.constant 0 : index
    %99 = vector.load %arg4[%c0_106, %c0_107, %c0_108] : memref<9x128x128xf32, #tpu.memory_space<vmem>>, vector<1x128x128xf32>
    %100 = vector.shape_cast %99 : vector<1x128x128xf32> to vector<128x128xf32>
    %cst_109 = arith.constant dense<0.000000e+00> : vector<256x128xf32>
    %101 = tpu.matmul %98, %100, %cst_109 {dimension_numbers = #tpu.dot_dimension_numbers<[1], [0], [0], [1], [0, 0, 1, 1], [], []>} : vector<256x128xf32>, vector<128x128xf32>, vector<256x128xf32> -> vector<256x128xf32>
    %c0_110 = arith.constant 0 : index
    %c8_111 = arith.constant 8 : index
    %c0_112 = arith.constant 0 : index
    %102 = vector.load %arg7[%c0_110, %c8_111, %c0_112] : memref<18x32x128xf32, #tpu.memory_space<vmem>>, vector<16x16x128xf32>
    %103 = vector.shape_cast %102 : vector<16x16x128xf32> to vector<256x128xf32>
    %c1_113 = arith.constant 1 : index
    %c0_114 = arith.constant 0 : index
    %c0_115 = arith.constant 0 : index
    %104 = vector.load %arg4[%c1_113, %c0_114, %c0_115] : memref<9x128x128xf32, #tpu.memory_space<vmem>>, vector<1x128x128xf32>
    %105 = vector.shape_cast %104 : vector<1x128x128xf32> to vector<128x128xf32>
    %cst_116 = arith.constant dense<0.000000e+00> : vector<256x128xf32>
    %106 = tpu.matmul %103, %105, %cst_116 {dimension_numbers = #tpu.dot_dimension_numbers<[1], [0], [0], [1], [0, 0, 1, 1], [], []>} : vector<256x128xf32>, vector<128x128xf32>, vector<256x128xf32> -> vector<256x128xf32>
    %107 = arith.addf %101, %106 : vector<256x128xf32>
    %c0_117 = arith.constant 0 : index
    %c9_118 = arith.constant 9 : index
    %c0_119 = arith.constant 0 : index
    %108 = vector.load %arg7[%c0_117, %c9_118, %c0_119] : memref<18x32x128xf32, #tpu.memory_space<vmem>>, vector<16x16x128xf32>
    %109 = vector.shape_cast %108 : vector<16x16x128xf32> to vector<256x128xf32>
    %c2_120 = arith.constant 2 : index
    %c0_121 = arith.constant 0 : index
    %c0_122 = arith.constant 0 : index
    %110 = vector.load %arg4[%c2_120, %c0_121, %c0_122] : memref<9x128x128xf32, #tpu.memory_space<vmem>>, vector<1x128x128xf32>
    %111 = vector.shape_cast %110 : vector<1x128x128xf32> to vector<128x128xf32>
    %cst_123 = arith.constant dense<0.000000e+00> : vector<256x128xf32>
    %112 = tpu.matmul %109, %111, %cst_123 {dimension_numbers = #tpu.dot_dimension_numbers<[1], [0], [0], [1], [0, 0, 1, 1], [], []>} : vector<256x128xf32>, vector<128x128xf32>, vector<256x128xf32> -> vector<256x128xf32>
    %113 = arith.addf %107, %112 : vector<256x128xf32>
    %c1_124 = arith.constant 1 : index
    %c7_125 = arith.constant 7 : index
    %c0_126 = arith.constant 0 : index
    %114 = vector.load %arg7[%c1_124, %c7_125, %c0_126] : memref<18x32x128xf32, #tpu.memory_space<vmem>>, vector<16x16x128xf32>
    %115 = vector.shape_cast %114 : vector<16x16x128xf32> to vector<256x128xf32>
    %c3_127 = arith.constant 3 : index
    %c0_128 = arith.constant 0 : index
    %c0_129 = arith.constant 0 : index
    %116 = vector.load %arg4[%c3_127, %c0_128, %c0_129] : memref<9x128x128xf32, #tpu.memory_space<vmem>>, vector<1x128x128xf32>
    %117 = vector.shape_cast %116 : vector<1x128x128xf32> to vector<128x128xf32>
    %cst_130 = arith.constant dense<0.000000e+00> : vector<256x128xf32>
    %118 = tpu.matmul %115, %117, %cst_130 {dimension_numbers = #tpu.dot_dimension_numbers<[1], [0], [0], [1], [0, 0, 1, 1], [], []>} : vector<256x128xf32>, vector<128x128xf32>, vector<256x128xf32> -> vector<256x128xf32>
    %119 = arith.addf %113, %118 : vector<256x128xf32>
    %c1_131 = arith.constant 1 : index
    %c8_132 = arith.constant 8 : index
    %c0_133 = arith.constant 0 : index
    %120 = vector.load %arg7[%c1_131, %c8_132, %c0_133] : memref<18x32x128xf32, #tpu.memory_space<vmem>>, vector<16x16x128xf32>
    %121 = vector.shape_cast %120 : vector<16x16x128xf32> to vector<256x128xf32>
    %c4_134 = arith.constant 4 : index
    %c0_135 = arith.constant 0 : index
    %c0_136 = arith.constant 0 : index
    %122 = vector.load %arg4[%c4_134, %c0_135, %c0_136] : memref<9x128x128xf32, #tpu.memory_space<vmem>>, vector<1x128x128xf32>
    %123 = vector.shape_cast %122 : vector<1x128x128xf32> to vector<128x128xf32>
    %cst_137 = arith.constant dense<0.000000e+00> : vector<256x128xf32>
    %124 = tpu.matmul %121, %123, %cst_137 {dimension_numbers = #tpu.dot_dimension_numbers<[1], [0], [0], [1], [0, 0, 1, 1], [], []>} : vector<256x128xf32>, vector<128x128xf32>, vector<256x128xf32> -> vector<256x128xf32>
    %125 = arith.addf %119, %124 : vector<256x128xf32>
    %c1_138 = arith.constant 1 : index
    %c9_139 = arith.constant 9 : index
    %c0_140 = arith.constant 0 : index
    %126 = vector.load %arg7[%c1_138, %c9_139, %c0_140] : memref<18x32x128xf32, #tpu.memory_space<vmem>>, vector<16x16x128xf32>
    %127 = vector.shape_cast %126 : vector<16x16x128xf32> to vector<256x128xf32>
    %c5_141 = arith.constant 5 : index
    %c0_142 = arith.constant 0 : index
    %c0_143 = arith.constant 0 : index
    %128 = vector.load %arg4[%c5_141, %c0_142, %c0_143] : memref<9x128x128xf32, #tpu.memory_space<vmem>>, vector<1x128x128xf32>
    %129 = vector.shape_cast %128 : vector<1x128x128xf32> to vector<128x128xf32>
    %cst_144 = arith.constant dense<0.000000e+00> : vector<256x128xf32>
    %130 = tpu.matmul %127, %129, %cst_144 {dimension_numbers = #tpu.dot_dimension_numbers<[1], [0], [0], [1], [0, 0, 1, 1], [], []>} : vector<256x128xf32>, vector<128x128xf32>, vector<256x128xf32> -> vector<256x128xf32>
    %131 = arith.addf %125, %130 : vector<256x128xf32>
    %c2_145 = arith.constant 2 : index
    %c7_146 = arith.constant 7 : index
    %c0_147 = arith.constant 0 : index
    %132 = vector.load %arg7[%c2_145, %c7_146, %c0_147] : memref<18x32x128xf32, #tpu.memory_space<vmem>>, vector<16x16x128xf32>
    %133 = vector.shape_cast %132 : vector<16x16x128xf32> to vector<256x128xf32>
    %c6_148 = arith.constant 6 : index
    %c0_149 = arith.constant 0 : index
    %c0_150 = arith.constant 0 : index
    %134 = vector.load %arg4[%c6_148, %c0_149, %c0_150] : memref<9x128x128xf32, #tpu.memory_space<vmem>>, vector<1x128x128xf32>
    %135 = vector.shape_cast %134 : vector<1x128x128xf32> to vector<128x128xf32>
    %cst_151 = arith.constant dense<0.000000e+00> : vector<256x128xf32>
    %136 = tpu.matmul %133, %135, %cst_151 {dimension_numbers = #tpu.dot_dimension_numbers<[1], [0], [0], [1], [0, 0, 1, 1], [], []>} : vector<256x128xf32>, vector<128x128xf32>, vector<256x128xf32> -> vector<256x128xf32>
    %137 = arith.addf %131, %136 : vector<256x128xf32>
    %c2_152 = arith.constant 2 : index
    %c8_153 = arith.constant 8 : index
    %c0_154 = arith.constant 0 : index
    %138 = vector.load %arg7[%c2_152, %c8_153, %c0_154] : memref<18x32x128xf32, #tpu.memory_space<vmem>>, vector<16x16x128xf32>
    %139 = vector.shape_cast %138 : vector<16x16x128xf32> to vector<256x128xf32>
    %c7_155 = arith.constant 7 : index
    %c0_156 = arith.constant 0 : index
    %c0_157 = arith.constant 0 : index
    %140 = vector.load %arg4[%c7_155, %c0_156, %c0_157] : memref<9x128x128xf32, #tpu.memory_space<vmem>>, vector<1x128x128xf32>
    %141 = vector.shape_cast %140 : vector<1x128x128xf32> to vector<128x128xf32>
    %cst_158 = arith.constant dense<0.000000e+00> : vector<256x128xf32>
    %142 = tpu.matmul %139, %141, %cst_158 {dimension_numbers = #tpu.dot_dimension_numbers<[1], [0], [0], [1], [0, 0, 1, 1], [], []>} : vector<256x128xf32>, vector<128x128xf32>, vector<256x128xf32> -> vector<256x128xf32>
    %143 = arith.addf %137, %142 : vector<256x128xf32>
    %c2_159 = arith.constant 2 : index
    %c9_160 = arith.constant 9 : index
    %c0_161 = arith.constant 0 : index
    %144 = vector.load %arg7[%c2_159, %c9_160, %c0_161] : memref<18x32x128xf32, #tpu.memory_space<vmem>>, vector<16x16x128xf32>
    %145 = vector.shape_cast %144 : vector<16x16x128xf32> to vector<256x128xf32>
    %c8_162 = arith.constant 8 : index
    %c0_163 = arith.constant 0 : index
    %c0_164 = arith.constant 0 : index
    %146 = vector.load %arg4[%c8_162, %c0_163, %c0_164] : memref<9x128x128xf32, #tpu.memory_space<vmem>>, vector<1x128x128xf32>
    %147 = vector.shape_cast %146 : vector<1x128x128xf32> to vector<128x128xf32>
    %cst_165 = arith.constant dense<0.000000e+00> : vector<256x128xf32>
    %148 = tpu.matmul %145, %147, %cst_165 {dimension_numbers = #tpu.dot_dimension_numbers<[1], [0], [0], [1], [0, 0, 1, 1], [], []>} : vector<256x128xf32>, vector<128x128xf32>, vector<256x128xf32> -> vector<256x128xf32>
    %149 = arith.addf %143, %148 : vector<256x128xf32>
    %c0_166 = arith.constant 0 : index
    %c0_167 = arith.constant 0 : index
    %150 = vector.load %arg5[%c0_166, %c0_167] : memref<1x128xf32, #tpu.memory_space<vmem>>, vector<1x128xf32>
    %151 = vector.broadcast %150 : vector<1x128xf32> to vector<256x128xf32>
    %152 = arith.addf %149, %151 : vector<256x128xf32>
    %cst_168 = arith.constant dense<0.000000e+00> : vector<128xf32>
    %153 = vector.multi_reduction <add>, %152, %cst_168 [0] : vector<256x128xf32> to vector<128xf32>
    %154 = vector.shape_cast %153 : vector<128xf32> to vector<1x128xf32>
    %155 = arith.mulf %152, %152 : vector<256x128xf32>
    %cst_169 = arith.constant dense<0.000000e+00> : vector<128xf32>
    %156 = vector.multi_reduction <add>, %155, %cst_169 [0] : vector<256x128xf32> to vector<128xf32>
    %157 = vector.shape_cast %156 : vector<128xf32> to vector<1x128xf32>
    %cst_170 = arith.constant 3.906250e-03 : f32
    %158 = vector.broadcast %cst_170 : f32 to vector<1x128xf32>
    %159 = arith.mulf %154, %158 : vector<1x128xf32>
    %cst_171 = arith.constant 3.906250e-03 : f32
    %160 = vector.broadcast %cst_171 : f32 to vector<1x128xf32>
    %161 = arith.mulf %157, %160 : vector<1x128xf32>
    %162 = arith.mulf %159, %159 : vector<1x128xf32>
    %163 = arith.subf %161, %162 : vector<1x128xf32>
    %164 = vector.broadcast %159 : vector<1x128xf32> to vector<256x128xf32>
    %165 = arith.subf %152, %164 : vector<256x128xf32>
    %cst_172 = arith.constant 9.99999974E-6 : f32
    %166 = vector.broadcast %cst_172 : f32 to vector<1x128xf32>
    %167 = arith.addf %163, %166 : vector<1x128xf32>
    %168 = math.rsqrt %167 : vector<1x128xf32>
    %169 = vector.broadcast %168 : vector<1x128xf32> to vector<256x128xf32>
    %170 = arith.mulf %165, %169 : vector<256x128xf32>
    %c0_173 = arith.constant 0 : index
    %c0_174 = arith.constant 0 : index
    %c0_175 = arith.constant 0 : index
    %c0_176 = arith.constant 0 : index
    %171 = vector.load %arg1[%c0_173, %c0_174, %c0_175, %c0_176] : memref<1x16x16x128xf32, #tpu.memory_space<vmem>>, vector<1x16x16x128xf32>
    %172 = vector.shape_cast %171 : vector<1x16x16x128xf32> to vector<16x16x128xf32>
    %173 = vector.shape_cast %170 : vector<256x128xf32> to vector<16x16x128xf32>
    %174 = arith.addf %172, %173 : vector<16x16x128xf32>
    %c0_177 = arith.constant 0 : index
    %c0_178 = arith.constant 0 : index
    %c0_179 = arith.constant 0 : index
    %c0_180 = arith.constant 0 : index
    %175 = vector.load %arg6[%c0_177, %c0_178, %c0_179, %c0_180] : memref<1x16x16x128xf32, #tpu.memory_space<vmem>>, vector<1x16x16x128xf32>
    %176 = vector.shape_cast %175 : vector<1x16x16x128xf32> to vector<16x16x128xf32>
    %177 = vector.shape_cast %174 : vector<16x16x128xf32> to vector<1x16x16x128xf32>
    tpu.vector_store %arg6[%c0_177, %c0_178, %c0_179, %c0_180], %177 {strides = array<i32>} : memref<1x16x16x128xf32, #tpu.memory_space<vmem>>, vector<1x16x16x128xf32>,
    return
  }
  func.func @transform_0(%arg0: i32) -> (i32, i32, i32, i32) {
    %c0_i32 = arith.constant 0 : i32
    %c0_i32_0 = arith.constant 0 : i32
    %c0_i32_1 = arith.constant 0 : i32
    %c0_i32_2 = arith.constant 0 : i32
    return %arg0, %c0_i32, %c0_i32_0, %c0_i32_1 : i32, i32, i32, i32
  }
  func.func @transform_1(%arg0: i32) -> (i32, i32, i32) {
    %c0_i32 = arith.constant 0 : i32
    %c0_i32_0 = arith.constant 0 : i32
    %c0_i32_1 = arith.constant 0 : i32
    %c0_i32_2 = arith.constant 0 : i32
    return %c0_i32, %c0_i32_0, %c0_i32_1 : i32, i32, i32
  }
  func.func @transform_2(%arg0: i32) -> (i32, i32) {
    %c0_i32 = arith.constant 0 : i32
    %c0_i32_0 = arith.constant 0 : i32
    %c0_i32_1 = arith.constant 0 : i32
    return %c0_i32, %c0_i32_0 : i32, i32
  }
  func.func @transform_3(%arg0: i32) -> (i32, i32, i32) {
    %c0_i32 = arith.constant 0 : i32
    %c0_i32_0 = arith.constant 0 : i32
    %c0_i32_1 = arith.constant 0 : i32
    %c0_i32_2 = arith.constant 0 : i32
    return %c0_i32, %c0_i32_0, %c0_i32_1 : i32, i32, i32
  }
  func.func @transform_4(%arg0: i32) -> (i32, i32) {
    %c0_i32 = arith.constant 0 : i32
    %c0_i32_0 = arith.constant 0 : i32
    %c0_i32_1 = arith.constant 0 : i32
    return %c0_i32, %c0_i32_0 : i32, i32
  }
  func.func @transform_5(%arg0: i32) -> (i32, i32, i32, i32) {
    %c0_i32 = arith.constant 0 : i32
    %c0_i32_0 = arith.constant 0 : i32
    %c0_i32_1 = arith.constant 0 : i32
    %c0_i32_2 = arith.constant 0 : i32
    return %arg0, %c0_i32, %c0_i32_0, %c0_i32_1 : i32, i32, i32, i32
  }
}

</mosaic_0001>

<llo_original>
// kernel: residual_block.1
$region0: #{residual_block.1}
  #allocation0 [shape = 'u32[]', space=smem, size = 0x4, offset = 0x4, fixed_abs, tag = 'smem constant byte address 0x4 - core index']
  #allocation1 [shape = 'u32[144,128]{1,0:T(1,128)}', space=vmem, size = 0x12000, scoped, tag = 'internal scratch']
  #allocation2 [shape = 'f32[18,32,128]{2,1,0:T(8,128)}', space=vmem, size = 0x48000, scoped, tag = 'scratch operand']
  %s0 = inlined_call_operand.vmem [shape: f32[2,16,16,128], index: 0, kind: input, shape index: {}]
  %s1 = inlined_call_operand.vmem [shape: f32[9,128,128], index: 1, kind: input, shape index: {}]
  %s2 = inlined_call_operand.vmem [shape: f32[1,128], index: 2, kind: input, shape index: {}]
  %s3 = inlined_call_operand.vmem [shape: f32[9,128,128], index: 3, kind: input, shape index: {}]
  %s4 = inlined_call_operand.vmem [shape: f32[1,128], index: 4, kind: input, shape index: {}]
  %s5 = inlined_call_operand.vmem [shape: f32[2,16,16,128], index: 5, kind: output, shape index: {}]
  %s6 = sld [smem:[#allocation0]]
  $region53: #{residual_block.1} parent=0
    _
  %s8 = ssub.s32 1, %s6
  %s9 = scalar_select 0, %s8, %s6
  loop: start=0, step=1, limit=4
  $region2: #{residual_block.1} parent=0 // loop_pre_header
    _
  $region3: #{residual_block.1} parent=0 // loop_header
    %s11 = sphi 0, %s15
    %p12 = scmp.ge.s32.totalorder %s11, 4
    %s21 = sphi 0, %s23
    %s24 = sphi 0, %s21
    %s25 = sphi 0, %s24
    %s41 = sphi 0, %s25
    %s45 = sphi 0, %s45
    %s47 = sphi 0, %s45
    %s48 = sphi 0, %s47
    %s62 = sphi 0, %s48
    %s66 = sphi 0, %s66
    %s68 = sphi 0, %s66
    %s69 = sphi 0, %s68
    %s83 = sphi 0, %s69
    %s87 = sphi 0, %s87
    %s89 = sphi 0, %s87
    %s90 = sphi 0, %s89
    %s104 = sphi 0, %s90
    %s108 = sphi 0, %s108
    %s110 = sphi 0, %s108
    %s111 = sphi 0, %s110
    %s125 = sphi 0, %s111
    %s131 = sphi 0, %s133
    %s134 = sphi 0, %s131
    %s135 = sphi 0, %s134
    %s151 = sphi 0, %s135
  $region4: #{residual_block.1} parent=0 // loop_header_branch
    %14 = sbr.rel (%p12) target = $region8
  $region5: #{residual_block.1} parent=0 // loop_body
    %s16 = ssub.s32 %s11, 1
    %s17 = ssub.s32 %s11, 2
    %s18 = sadd.s32 %s11, 1
    %s19 = ssub.s32 %s11, %s18
    %p20 = scmp.eq.s32.totalorder %s19, 0
    %s22 = sadd.s32 %s21, 1
    %s23 = scalar_select %p20, %s21, %s22
    %p26 = pneg %p20
    %p27 = scmp.eq.s32.totalorder %s11, 1
    %p28 = por %p26, %p27
    %p29 = scmp.ne.s32.totalorder %s21, %s24
    %p30 = scmp.eq.s32.totalorder %s11, 0
    %p31 = por %p29, %p30
    %p32 = scmp.ne.s32.totalorder %s21, %s24
    %p33 = scmp.eq.s32.totalorder %s16, 1
    %p34 = por %p32, %p33
    %p35 = scmp.ne.s32.totalorder %s24, %s25
    %p36 = scmp.eq.s32.totalorder %s16, 0
    %p37 = por %p35, %p36
    %p38 = scmp.ne.s32.totalorder %s24, %s25
    %p39 = scmp.eq.s32.totalorder %s17, 1
    %p40 = por %p38, %p39
    %p42 = scmp.ne.s32.totalorder %s25, %s41
    %p43 = scmp.eq.s32.totalorder %s17, 0
    %p44 = por %p42, %p43
    %s46 = sadd.s32 %s45, 1
    %p49 = scmp.eq.s32.totalorder %s11, 1
    %p50 = scmp.ne.s32.totalorder %s45, %s47
    %p51 = scmp.eq.s32.totalorder %s11, 0
    %p52 = por %p50, %p51
    %p53 = scmp.ne.s32.totalorder %s45, %s47
    %p54 = scmp.eq.s32.totalorder %s16, 1
    %p55 = por %p53, %p54
    %p56 = scmp.ne.s32.totalorder %s47, %s48
    %p57 = scmp.eq.s32.totalorder %s16, 0
    %p58 = por %p56, %p57
    %p59 = scmp.ne.s32.totalorder %s47, %s48
    %p60 = scmp.eq.s32.totalorder %s17, 1
    %p61 = por %p59, %p60
    %p63 = scmp.ne.s32.totalorder %s48, %s62
    %p64 = scmp.eq.s32.totalorder %s17, 0
    %p65 = por %p63, %p64
    %s67 = sadd.s32 %s66, 1
    %p70 = scmp.eq.s32.totalorder %s11, 1
    %p71 = scmp.ne.s32.totalorder %s66, %s68
    %p72 = scmp.eq.s32.totalorder %s11, 0
    %p73 = por %p71, %p72
    %p74 = scmp.ne.s32.totalorder %s66, %s68
    %p75 = scmp.eq.s32.totalorder %s16, 1
    %p76 = por %p74, %p75
    %p77 = scmp.ne.s32.totalorder %s68, %s69
    %p78 = scmp.eq.s32.totalorder %s16, 0
    %p79 = por %p77, %p78
    %p80 = scmp.ne.s32.totalorder %s68, %s69
    %p81 = scmp.eq.s32.totalorder %s17, 1
    %p82 = por %p80, %p81
    %p84 = scmp.ne.s32.totalorder %s69, %s83
    %p85 = scmp.eq.s32.totalorder %s17, 0
    %p86 = por %p84, %p85
    %s88 = sadd.s32 %s87, 1
    %p91 = scmp.eq.s32.totalorder %s11, 1
    %p92 = scmp.ne.s32.totalorder %s87, %s89
    %p93 = scmp.eq.s32.totalorder %s11, 0
    %p94 = por %p92, %p93
    %p95 = scmp.ne.s32.totalorder %s87, %s89
    %p96 = scmp.eq.s32.totalorder %s16, 1
    %p97 = por %p95, %p96
    %p98 = scmp.ne.s32.totalorder %s89, %s90
    %p99 = scmp.eq.s32.totalorder %s16, 0
    %p100 = por %p98, %p99
    %p101 = scmp.ne.s32.totalorder %s89, %s90
    %p102 = scmp.eq.s32.totalorder %s17, 1
    %p103 = por %p101, %p102
    %p105 = scmp.ne.s32.totalorder %s90, %s104
    %p106 = scmp.eq.s32.totalorder %s17, 0
    %p107 = por %p105, %p106
    %s109 = sadd.s32 %s108, 1
    %p112 = scmp.eq.s32.totalorder %s11, 1
    %p113 = scmp.ne.s32.totalorder %s108, %s110
    %p114 = scmp.eq.s32.totalorder %s11, 0
    %p115 = por %p113, %p114
    %p116 = scmp.ne.s32.totalorder %s108, %s110
    %p117 = scmp.eq.s32.totalorder %s16, 1
    %p118 = por %p116, %p117
    %p119 = scmp.ne.s32.totalorder %s110, %s111
    %p120 = scmp.eq.s32.totalorder %s16, 0
    %p121 = por %p119, %p120
    %p122 = scmp.ne.s32.totalorder %s110, %s111
    %p123 = scmp.eq.s32.totalorder %s17, 1
    %p124 = por %p122, %p123
    %p126 = scmp.ne.s32.totalorder %s111, %s125
    %p127 = scmp.eq.s32.totalorder %s17, 0
    %p128 = por %p126, %p127
    %s129 = ssub.s32 %s11, %s18
    %p130 = scmp.eq.s32.totalorder %s129, 0
    %s132 = sadd.s32 %s131, 1
    %s133 = scalar_select %p130, %s131, %s132
    %p136 = pneg %p130
    %p137 = scmp.eq.s32.totalorder %s11, 1
    %p138 = por %p136, %p137
    %p139 = scmp.ne.s32.totalorder %s131, %s134
    %p140 = scmp.eq.s32.totalorder %s11, 0
    %p141 = por %p139, %p140
    %p142 = scmp.ne.s32.totalorder %s131, %s134
    %p143 = scmp.eq.s32.totalorder %s16, 1
    %p144 = por %p142, %p143
    %p145 = scmp.ne.s32.totalorder %s134, %s135
    %p146 = scmp.eq.s32.totalorder %s16, 0
    %p147 = por %p145, %p146
    %p148 = scmp.ne.s32.totalorder %s134, %s135
    %p149 = scmp.eq.s32.totalorder %s17, 1
    %p150 = por %p148, %p149
    %p152 = scmp.ne.s32.totalorder %s135, %s151
    %p153 = scmp.eq.s32.totalorder %s17, 0
    %p154 = por %p152, %p153
    %p155 = scmp.le.s32.totalorder 1, %s11
    %p156 = scmp.lt.s32.totalorder %s11, 3
    %p157 = pnand %p155, %p156
    %p158 = pneg %p157
    // Predicated region
    $region9: #{residual_block.1} parent=5 // pred_check
      _
    $region10: #{residual_block.1} parent=5 // pred_check_branch
      %160 = sbr.rel (%p157) target = $region12
    $region11: #{residual_block.1} parent=5 // pred_region
      %s161 = ssub.s32 %s11, 1
      // Predicated region
      $region13: #{residual_block.1} parent=11 // pred_check
        %p162 = pneg %p58
      $region14: #{residual_block.1} parent=11 // pred_check_branch
        %164 = sbr.rel (%p162) target = $region16
      $region15: #{residual_block.1} parent=11 // pred_region
        _
      $region16: #{residual_block.1} parent=11 // pred_fallthru
        _
      // Predicated region
      $region17: #{residual_block.1} parent=11 // pred_check
        %p165 = pneg %p79
      $region18: #{residual_block.1} parent=11 // pred_check_branch
        %167 = sbr.rel (%p165) target = $region20
      $region19: #{residual_block.1} parent=11 // pred_region
        _
      $region20: #{residual_block.1} parent=11 // pred_fallthru
        _
      // Predicated region
      $region21: #{residual_block.1} parent=11 // pred_check
        %p168 = pneg %p100
      $region22: #{residual_block.1} parent=11 // pred_check_branch
        %170 = sbr.rel (%p168) target = $region24
      $region23: #{residual_block.1} parent=11 // pred_region
        _
      $region24: #{residual_block.1} parent=11 // pred_fallthru
        _
      // Predicated region
      $region25: #{residual_block.1} parent=11 // pred_check
        %p171 = pneg %p121
      $region26: #{residual_block.1} parent=11 // pred_check_branch
        %173 = sbr.rel (%p171) target = $region28
      $region27: #{residual_block.1} parent=11 // pred_region
        _
      $region28: #{residual_block.1} parent=11 // pred_fallthru
        _
    $region12: #{residual_block.1} parent=5 // pred_fallthru
      _
    %p174 = scmp.lt.s32.totalorder %s11, 2
    // Predicated region
    $region29: #{residual_block.1} parent=5 // pred_check
      %p175 = pneg %p174
    $region30: #{residual_block.1} parent=5 // pred_check_branch
      %177 = sbr.rel (%p175) target = $region32
    $region31: #{residual_block.1} parent=5 // pred_region
      // Predicated region
      $region33: #{residual_block.1} parent=31 // pred_check
        %p178 = pneg %p31
      $region34: #{residual_block.1} parent=31 // pred_check_branch
        %180 = sbr.rel (%p178) target = $region36
      $region35: #{residual_block.1} parent=31 // pred_region
        %p181 = scmp.lt.s32.totalorder %s11, 1
        %s182 = scalar_select %p181, %s11, 1
        %s183 = smul.addr %s182, 32
        %s184 = smul.addr %s183, 8
        %s185 = scalar_lea.vmem %s0, %s184
      $region36: #{residual_block.1} parent=31 // pred_fallthru
        _
    $region32: #{residual_block.1} parent=5 // pred_fallthru
      _
    %p186 = scmp.le.s32.totalorder 1, %s11
    %p187 = scmp.lt.s32.totalorder %s11, 3
    %p188 = pnand %p186, %p187
    %p189 = pneg %p188
    // Predicated region
    $region37: #{residual_block.1} parent=5 // pred_check
      _
    $region38: #{residual_block.1} parent=5 // pred_check_branch
      %191 = sbr.rel (%p188) target = $region40
    $region39: #{residual_block.1} parent=5 // pred_region
      %s192 = ssub.s32 %s11, 1
      %p193 = scmp.lt.s32.totalorder %s16, 1
      %s194 = scalar_select %p193, %s16, 1
      %s195 = smul.addr %s194, 32
      %s196 = smul.addr %s195, 8
      %s197 = scalar_lea.vmem %s0, %s196
      %p198 = pneg %p37
      %p199 = pneg %p34
      %p200 = pneg %p58
      %p201 = pneg %p55
      %p202 = pneg %p79
      %p203 = pneg %p76
      %p204 = pneg %p100
      %p205 = pneg %p97
      %p206 = pneg %p121
      %p207 = pneg %p118
      %p208 = pneg %p147
      %p209 = pneg %p144
      %p210 = scmp.lt.s32.totalorder %s16, 1
      %s211 = scalar_select %p210, %s16, 1
      %s212 = smul.addr %s211, 32
      %s213 = smul.addr %s212, 8
      %s214 = scalar_lea.vmem %s5, %s213
      %p215 = scmp.lt.s32.totalorder %s16, 1
      %s216 = scalar_select %p215, %s16, 1
      %s217 = smul.addr %s216, 32
      %s218 = smul.addr %s217, 8
      %s219 = scalar_lea.vmem %s0, %s218
      %p220 = scmp.lt.s32.totalorder %s16, 1
      %s221 = scalar_select %p220, %s16, 1
      %s222 = smul.addr %s221, 32
      %s223 = smul.addr %s222, 8
      %s224 = scalar_lea.vmem %s5, %s223
      %v225 = vld [vmem:[%s219] sm:$0xff]
      %v226 = vld [vmem:[%s219 + $0x8] sm:$0xff]
      %v227 = vld [vmem:[%s219 + $0x10] sm:$0xff]
      %v228 = vld [vmem:[%s219 + $0x18] sm:$0xff]
      %v229 = vld [vmem:[%s219 + $0x20] sm:$0xff]
      %v230 = vld [vmem:[%s219 + $0x28] sm:$0xff]
      %v231 = vld [vmem:[%s219 + $0x30] sm:$0xff]
      %v232 = vld [vmem:[%s219 + $0x38] sm:$0xff]
      %v233 = vld [vmem:[%s219 + $0x40] sm:$0xff]
      %v234 = vld [vmem:[%s219 + $0x48] sm:$0xff]
      %v235 = vld [vmem:[%s219 + $0x50] sm:$0xff]
      %v236 = vld [vmem:[%s219 + $0x58] sm:$0xff]
      %v237 = vld [vmem:[%s219 + $0x60] sm:$0xff]
      %v238 = vld [vmem:[%s219 + $0x68] sm:$0xff]
      %v239 = vld [vmem:[%s219 + $0x70] sm:$0xff]
      %v240 = vld [vmem:[%s219 + $0x78] sm:$0xff]
      %v241 = vld [vmem:[%s219 + $0x80] sm:$0xff]
      %v242 = vld [vmem:[%s219 + $0x88] sm:$0xff]
      %v243 = vld [vmem:[%s219 + $0x90] sm:$0xff]
      %v244 = vld [vmem:[%s219 + $0x98] sm:$0xff]
      %v245 = vld [vmem:[%s219 + $0xa0] sm:$0xff]
      %v246 = vld [vmem:[%s219 + $0xa8] sm:$0xff]
      %v247 = vld [vmem:[%s219 + $0xb0] sm:$0xff]
      %v248 = vld [vmem:[%s219 + $0xb8] sm:$0xff]
      %v249 = vld [vmem:[%s219 + $0xc0] sm:$0xff]
      %v250 = vld [vmem:[%s219 + $0xc8] sm:$0xff]
      %v251 = vld [vmem:[%s219 + $0xd0] sm:$0xff]
      %v252 = vld [vmem:[%s219 + $0xd8] sm:$0xff]
      %v253 = vld [vmem:[%s219 + $0xe0] sm:$0xff]
      %v254 = vld [vmem:[%s219 + $0xe8] sm:$0xff]
      %v255 = vld [vmem:[%s219 + $0xf0] sm:$0xff]
      %v256 = vld [vmem:[%s219 + $0xf8] sm:$0xff]
      %s257 = scalar_lea.vmem [#allocation2], 32
      %258 = vst [vmem:[%s257 + $0x8] sm:$0xff] %v225
      %259 = vst [vmem:[%s257 + $0x10] sm:$0xff] %v226
      %260 = vst [vmem:[%s257 + $0x28] sm:$0xff] %v227
      %261 = vst [vmem:[%s257 + $0x30] sm:$0xff] %v228
      %262 = vst [vmem:[%s257 + $0x48] sm:$0xff] %v229
      %263 = vst [vmem:[%s257 + $0x50] sm:$0xff] %v230
      %264 = vst [vmem:[%s257 + $0x68] sm:$0xff] %v231
      %265 = vst [vmem:[%s257 + $0x70] sm:$0xff] %v232
      %266 = vst [vmem:[%s257 + $0x88] sm:$0xff] %v233
      %267 = vst [vmem:[%s257 + $0x90] sm:$0xff] %v234
      %268 = vst [vmem:[%s257 + $0xa8] sm:$0xff] %v235
      %269 = vst [vmem:[%s257 + $0xb0] sm:$0xff] %v236
      %270 = vst [vmem:[%s257 + $0xc8] sm:$0xff] %v237
      %271 = vst [vmem:[%s257 + $0xd0] sm:$0xff] %v238
      %272 = vst [vmem:[%s257 + $0xe8] sm:$0xff] %v239
      %273 = vst [vmem:[%s257 + $0xf0] sm:$0xff] %v240
      %274 = vst [vmem:[%s257 + $0x108] sm:$0xff] %v241
      %275 = vst [vmem:[%s257 + $0x110] sm:$0xff] %v242
      %276 = vst [vmem:[%s257 + $0x128] sm:$0xff] %v243
      %277 = vst [vmem:[%s257 + $0x130] sm:$0xff] %v244
      %278 = vst [vmem:[%s257 + $0x148] sm:$0xff] %v245
      %279 = vst [vmem:[%s257 + $0x150] sm:$0xff] %v246
      %280 = vst [vmem:[%s257 + $0x168] sm:$0xff] %v247
      %281 = vst [vmem:[%s257 + $0x170] sm:$0xff] %v248
      %282 = vst [vmem:[%s257 + $0x188] sm:$0xff] %v249
      %283 = vst [vmem:[%s257 + $0x190] sm:$0xff] %v250
      %284 = vst [vmem:[%s257 + $0x1a8] sm:$0xff] %v251
      %285 = vst [vmem:[%s257 + $0x1b0] sm:$0xff] %v252
      %286 = vst [vmem:[%s257 + $0x1c8] sm:$0xff] %v253
      %287 = vst [vmem:[%s257 + $0x1d0] sm:$0xff] %v254
      %288 = vst [vmem:[%s257 + $0x1e8] sm:$0xff] %v255
      %289 = vst [vmem:[%s257 + $0x1f0] sm:$0xff] %v256
      %290 = vst [vmem:[#allocation2 + $0x8] sm:$0xff] %v227
      %291 = vst [vmem:[#allocation2 + $0x10] sm:$0xff] %v228
      %s292 = scalar_lea.vmem [#allocation2], 544
      %293 = vst [vmem:[%s292 + $0x8] sm:$0xff] %v253
      %294 = vst [vmem:[%s292 + $0x10] sm:$0xff] %v254
      %v295 = vld [vmem:[#allocation2 + $0x9] sm:$0x1]
      %v296 = vld [vmem:[#allocation2 + $0x29] sm:$0x1]
      %v297 = vld [vmem:[#allocation2 + $0x49] sm:$0x1]
      %v298 = vld [vmem:[#allocation2 + $0x69] sm:$0x1]
      %v299 = vld [vmem:[#allocation2 + $0x89] sm:$0x1]
      %v300 = vld [vmem:[#allocation2 + $0xa9] sm:$0x1]
      %v301 = vld [vmem:[#allocation2 + $0xc9] sm:$0x1]
      %v302 = vld [vmem:[#allocation2 + $0xe9] sm:$0x1]
      %v303 = vld [vmem:[#allocation2 + $0x109] sm:$0x1]
      %v304 = vld [vmem:[#allocation2 + $0x129] sm:$0x1]
      %v305 = vld [vmem:[#allocation2 + $0x149] sm:$0x1]
      %v306 = vld [vmem:[#allocation2 + $0x169] sm:$0x1]
      %v307 = vld [vmem:[#allocation2 + $0x189] sm:$0x1]
      %v308 = vld [vmem:[#allocation2 + $0x1a9] sm:$0x1]
      %v309 = vld [vmem:[#allocation2 + $0x1c9] sm:$0x1]
      %v310 = vld [vmem:[#allocation2 + $0x1e9] sm:$0x1]
      %v311 = vld [vmem:[#allocation2 + $0x209] sm:$0x1]
      %v312 = vld [vmem:[#allocation2 + $0x229] sm:$0x1]
      %313 = vst [vmem:[#allocation2 + $0x7] sm:$0x1] %v295
      %314 = vst [vmem:[#allocation2 + $0x27] sm:$0x1] %v296
      %315 = vst [vmem:[#allocation2 + $0x47] sm:$0x1] %v297
      %316 = vst [vmem:[#allocation2 + $0x67] sm:$0x1] %v298
      %317 = vst [vmem:[#allocation2 + $0x87] sm:$0x1] %v299
      %318 = vst [vmem:[#allocation2 + $0xa7] sm:$0x1] %v300
      %319 = vst [vmem:[#allocation2 + $0xc7] sm:$0x1] %v301
      %320 = vst [vmem:[#allocation2 + $0xe7] sm:$0x1] %v302
      %321 = vst [vmem:[#allocation2 + $0x107] sm:$0x1] %v303
      %322 = vst [vmem:[#allocation2 + $0x127] sm:$0x1] %v304
      %323 = vst [vmem:[#allocation2 + $0x147] sm:$0x1] %v305
      %324 = vst [vmem:[#allocation2 + $0x167] sm:$0x1] %v306
      %325 = vst [vmem:[#allocation2 + $0x187] sm:$0x1] %v307
      %326 = vst [vmem:[#allocation2 + $0x1a7] sm:$0x1] %v308
      %327 = vst [vmem:[#allocation2 + $0x1c7] sm:$0x1] %v309
      %328 = vst [vmem:[#allocation2 + $0x1e7] sm:$0x1] %v310
      %329 = vst [vmem:[#allocation2 + $0x207] sm:$0x1] %v311
      %330 = vst [vmem:[#allocation2 + $0x227] sm:$0x1] %v312
      %v331 = vld [vmem:[#allocation2 + $0x16] sm:$0x1]
      %v332 = vld [vmem:[#allocation2 + $0x36] sm:$0x1]
      %v333 = vld [vmem:[#allocation2 + $0x56] sm:$0x1]
      %v334 = vld [vmem:[#allocation2 + $0x76] sm:$0x1]
      %v335 = vld [vmem:[#allocation2 + $0x96] sm:$0x1]
      %v336 = vld [vmem:[#allocation2 + $0xb6] sm:$0x1]
      %v337 = vld [vmem:[#allocation2 + $0xd6] sm:$0x1]
      %v338 = vld [vmem:[#allocation2 + $0xf6] sm:$0x1]
      %v339 = vld [vmem:[#allocation2 + $0x116] sm:$0x1]
      %v340 = vld [vmem:[#allocation2 + $0x136] sm:$0x1]
      %v341 = vld [vmem:[#allocation2 + $0x156] sm:$0x1]
      %v342 = vld [vmem:[#allocation2 + $0x176] sm:$0x1]
      %v343 = vld [vmem:[#allocation2 + $0x196] sm:$0x1]
      %v344 = vld [vmem:[#allocation2 + $0x1b6] sm:$0x1]
      %v345 = vld [vmem:[#allocation2 + $0x1d6] sm:$0x1]
      %v346 = vld [vmem:[#allocation2 + $0x1f6] sm:$0x1]
      %v347 = vld [vmem:[#allocation2 + $0x216] sm:$0x1]
      %v348 = vld [vmem:[#allocation2 + $0x236] sm:$0x1]
      %349 = vst [vmem:[#allocation2 + $0x18] sm:$0x1] %v331
      %350 = vst [vmem:[#allocation2 + $0x38] sm:$0x1] %v332
      %351 = vst [vmem:[#allocation2 + $0x58] sm:$0x1] %v333
      %352 = vst [vmem:[#allocation2 + $0x78] sm:$0x1] %v334
      %353 = vst [vmem:[#allocation2 + $0x98] sm:$0x1] %v335
      %354 = vst [vmem:[#allocation2 + $0xb8] sm:$0x1] %v336
      %355 = vst [vmem:[#allocation2 + $0xd8] sm:$0x1] %v337
      %356 = vst [vmem:[#allocation2 + $0xf8] sm:$0x1] %v338
      %357 = vst [vmem:[#allocation2 + $0x118] sm:$0x1] %v339
      %358 = vst [vmem:[#allocation2 + $0x138] sm:$0x1] %v340
      %359 = vst [vmem:[#allocation2 + $0x158] sm:$0x1] %v341
      %360 = vst [vmem:[#allocation2 + $0x178] sm:$0x1] %v342
      %361 = vst [vmem:[#allocation2 + $0x198] sm:$0x1] %v343
      %362 = vst [vmem:[#allocation2 + $0x1b8] sm:$0x1] %v344
      %363 = vst [vmem:[#allocation2 + $0x1d8] sm:$0x1] %v345
      %364 = vst [vmem:[#allocation2 + $0x1f8] sm:$0x1] %v346
      %365 = vst [vmem:[#allocation2 + $0x218] sm:$0x1] %v347
      %366 = vst [vmem:[#allocation2 + $0x238] sm:$0x1] %v348
      %v367 = vld [vmem:[#allocation2 + $0x7] sm:$0xff]
      %v368 = vld [vmem:[#allocation2 + $0xf] sm:$0xff]
      %v369 = vld [vmem:[#allocation2 + $0x27] sm:$0xff]
      %v370 = vld [vmem:[#allocation2 + $0x2f] sm:$0xff]
      %v371 = vld [vmem:[#allocation2 + $0x47] sm:$0xff]
      %v372 = vld [vmem:[#allocation2 + $0x4f] sm:$0xff]
      %v373 = vld [vmem:[#allocation2 + $0x67] sm:$0xff]
      %v374 = vld [vmem:[#allocation2 + $0x6f] sm:$0xff]
      %v375 = vld [vmem:[#allocation2 + $0x87] sm:$0xff]
      %v376 = vld [vmem:[#allocation2 + $0x8f] sm:$0xff]
      %v377 = vld [vmem:[#allocation2 + $0xa7] sm:$0xff]
      %v378 = vld [vmem:[#allocation2 + $0xaf] sm:$0xff]
      %v379 = vld [vmem:[#allocation2 + $0xc7] sm:$0xff]
      %v380 = vld [vmem:[#allocation2 + $0xcf] sm:$0xff]
      %v381 = vld [vmem:[#allocation2 + $0xe7] sm:$0xff]
      %v382 = vld [vmem:[#allocation2 + $0xef] sm:$0xff]
      %v383 = vld [vmem:[#allocation2 + $0x107] sm:$0xff]
      %v384 = vld [vmem:[#allocation2 + $0x10f] sm:$0xff]
      %v385 = vld [vmem:[#allocation2 + $0x127] sm:$0xff]
      %v386 = vld [vmem:[#allocation2 + $0x12f] sm:$0xff]
      %v387 = vld [vmem:[#allocation2 + $0x147] sm:$0xff]
      %v388 = vld [vmem:[#allocation2 + $0x14f] sm:$0xff]
      %v389 = vld [vmem:[#allocation2 + $0x167] sm:$0xff]
      %v390 = vld [vmem:[#allocation2 + $0x16f] sm:$0xff]
      %v391 = vld [vmem:[#allocation2 + $0x187] sm:$0xff]
      %v392 = vld [vmem:[#allocation2 + $0x18f] sm:$0xff]
      %v393 = vld [vmem:[#allocation2 + $0x1a7] sm:$0xff]
      %v394 = vld [vmem:[#allocation2 + $0x1af] sm:$0xff]
      %v395 = vld [vmem:[#allocation2 + $0x1c7] sm:$0xff]
      %v396 = vld [vmem:[#allocation2 + $0x1cf] sm:$0xff]
      %v397 = vld [vmem:[#allocation2 + $0x1e7] sm:$0xff]
      %v398 = vld [vmem:[#allocation2 + $0x1ef] sm:$0xff]
      %v399 = vld [vmem:[%s1] sm:$0xff]
      %v400 = vld [vmem:[%s1 + $0x8] sm:$0xff]
      %v401 = vld [vmem:[%s1 + $0x10] sm:$0xff]
      %v402 = vld [vmem:[%s1 + $0x18] sm:$0xff]
      %v403 = vld [vmem:[%s1 + $0x20] sm:$0xff]
      %v404 = vld [vmem:[%s1 + $0x28] sm:$0xff]
      %v405 = vld [vmem:[%s1 + $0x30] sm:$0xff]
      %v406 = vld [vmem:[%s1 + $0x38] sm:$0xff]
      %v407 = vld [vmem:[%s1 + $0x40] sm:$0xff]
      %v408 = vld [vmem:[%s1 + $0x48] sm:$0xff]
      %v409 = vld [vmem:[%s1 + $0x50] sm:$0xff]
      %v410 = vld [vmem:[%s1 + $0x58] sm:$0xff]
      %v411 = vld [vmem:[%s1 + $0x60] sm:$0xff]
      %v412 = vld [vmem:[%s1 + $0x68] sm:$0xff]
      %v413 = vld [vmem:[%s1 + $0x70] sm:$0xff]
      %v414 = vld [vmem:[%s1 + $0x78] sm:$0xff]
      %v415 = vld [vmem:[#allocation2 + $0x8] sm:$0xff]
      %v416 = vld [vmem:[#allocation2 + $0x10] sm:$0xff]
      %v417 = vld [vmem:[#allocation2 + $0x28] sm:$0xff]
      %v418 = vld [vmem:[#allocation2 + $0x30] sm:$0xff]
      %v419 = vld [vmem:[#allocation2 + $0x48] sm:$0xff]
      %v420 = vld [vmem:[#allocation2 + $0x50] sm:$0xff]
      %v421 = vld [vmem:[#allocation2 + $0x68] sm:$0xff]
      %v422 = vld [vmem:[#allocation2 + $0x70] sm:$0xff]
      %v423 = vld [vmem:[#allocation2 + $0x88] sm:$0xff]
      %v424 = vld [vmem:[#allocation2 + $0x90] sm:$0xff]
      %v425 = vld [vmem:[#allocation2 + $0xa8] sm:$0xff]
      %v426 = vld [vmem:[#allocation2 + $0xb0] sm:$0xff]
      %v427 = vld [vmem:[#allocation2 + $0xc8] sm:$0xff]
      %v428 = vld [vmem:[#allocation2 + $0xd0] sm:$0xff]
      %v429 = vld [vmem:[#allocation2 + $0xe8] sm:$0xff]
      %v430 = vld [vmem:[#allocation2 + $0xf0] sm:$0xff]
      %v431 = vld [vmem:[#allocation2 + $0x108] sm:$0xff]
      %v432 = vld [vmem:[#allocation2 + $0x110] sm:$0xff]
      %v433 = vld [vmem:[#allocation2 + $0x128] sm:$0xff]
      %v434 = vld [vmem:[#allocation2 + $0x130] sm:$0xff]
      %v435 = vld [vmem:[#allocation2 + $0x148] sm:$0xff]
      %v436 = vld [vmem:[#allocation2 + $0x150] sm:$0xff]
      %v437 = vld [vmem:[#allocation2 + $0x168] sm:$0xff]
      %v438 = vld [vmem:[#allocation2 + $0x170] sm:$0xff]
      %v439 = vld [vmem:[#allocation2 + $0x188] sm:$0xff]
      %v440 = vld [vmem:[#allocation2 + $0x190] sm:$0xff]
      %v441 = vld [vmem:[#allocation2 + $0x1a8] sm:$0xff]
      %v442 = vld [vmem:[#allocation2 + $0x1b0] sm:$0xff]
      %v443 = vld [vmem:[#allocation2 + $0x1c8] sm:$0xff]
      %v444 = vld [vmem:[#allocation2 + $0x1d0] sm:$0xff]
      %v445 = vld [vmem:[#allocation2 + $0x1e8] sm:$0xff]
      %v446 = vld [vmem:[#allocation2 + $0x1f0] sm:$0xff]
      %s447 = scalar_lea.vmem %s1, 128
      %v448 = vld [vmem:[%s447] sm:$0xff]
      %v449 = vld [vmem:[%s447 + $0x8] sm:$0xff]
      %v450 = vld [vmem:[%s447 + $0x10] sm:$0xff]
      %v451 = vld [vmem:[%s447 + $0x18] sm:$0xff]
      %v452 = vld [vmem:[%s447 + $0x20] sm:$0xff]
      %v453 = vld [vmem:[%s447 + $0x28] sm:$0xff]
      %v454 = vld [vmem:[%s447 + $0x30] sm:$0xff]
      %v455 = vld [vmem:[%s447 + $0x38] sm:$0xff]
      %v456 = vld [vmem:[%s447 + $0x40] sm:$0xff]
      %v457 = vld [vmem:[%s447 + $0x48] sm:$0xff]
      %v458 = vld [vmem:[%s447 + $0x50] sm:$0xff]
      %v459 = vld [vmem:[%s447 + $0x58] sm:$0xff]
      %v460 = vld [vmem:[%s447 + $0x60] sm:$0xff]
      %v461 = vld [vmem:[%s447 + $0x68] sm:$0xff]
      %v462 = vld [vmem:[%s447 + $0x70] sm:$0xff]
      %v463 = vld [vmem:[%s447 + $0x78] sm:$0xff]
      %464 = vmatprep.subr.mxu0 0.0
      %465 = vmatpush1.msra.mxu0 %v448
      %466 = vmatprep.subr.mxu0 0.0
      %467 = vmatpush1.msra.mxu0 %v449
      %468 = vmatprep.subr.mxu0 0.0
      %469 = vmatpush1.msra.mxu0 %v450
      %470 = vmatprep.subr.mxu0 0.0
      %471 = vmatpush1.msra.mxu0 %v451
      %472 = vmatprep.subr.mxu0 0.0
      %473 = vmatpush1.msra.mxu0 %v452
      %474 = vmatprep.subr.mxu0 0.0
      %475 = vmatpush1.msra.mxu0 %v453
      %476 = vmatprep.subr.mxu0 0.0
      %477 = vmatpush1.msra.mxu0 %v454
      %478 = vmatprep.subr.mxu0 0.0
      %479 = vmatpush1.msra.mxu0 %v455
      %480 = vmatprep.subr.mxu0 0.0
      %481 = vmatpush1.msra.mxu0 %v456
      %482 = vmatprep.subr.mxu0 0.0
      %483 = vmatpush1.msra.mxu0 %v457
      %484 = vmatprep.subr.mxu0 0.0
      %485 = vmatpush1.msra.mxu0 %v458
      %486 = vmatprep.subr.mxu0 0.0
      %487 = vmatpush1.msra.mxu0 %v459
      %488 = vmatprep.subr.mxu0 0.0
      %489 = vmatpush1.msra.mxu0 %v460
      %490 = vmatprep.subr.mxu0 0.0
      %491 = vmatpush1.msra.mxu0 %v461
      %492 = vmatprep.subr.mxu0 0.0
      %493 = vmatpush1.msra.mxu0 %v462
      %494 = vmatprep.subr.mxu0 0.0
      %495 = vmatpush1.msra.mxu0 %v463
      %496 = vmatprep.subr.mxu0 0.0
      %497 = vmatpush1.msra.mxu0 0.0
      %498 = vmatprep.subr.mxu0 0.0
      %499 = vmatpush1.msra.mxu0 0.0
      %500 = vmatprep.subr.mxu0 0.0
      %501 = vmatpush1.msra.mxu0 0.0
      %502 = vmatprep.subr.mxu0 0.0
      %503 = vmatpush1.msra.mxu0 0.0
      %504 = vmatprep.subr.mxu0 0.0
      %505 = vmatpush1.msra.mxu0 0.0
      %506 = vmatprep.subr.mxu0 0.0
      %507 = vmatpush1.msra.mxu0 0.0
      %508 = vmatprep.subr.mxu0 0.0
      %509 = vmatpush1.msra.mxu0 0.0
      %510 = vmatprep.subr.mxu0 0.0
      %511 = vmatpush1.msra.mxu0 0.0
      %512 = vmatprep.subr.mxu0 0.0
      %513 = vmatpush1.msra.mxu0 0.0
      %514 = vmatprep.subr.mxu0 0.0
      %515 = vmatpush1.msra.mxu0 0.0
      %516 = vmatprep.subr.mxu0 0.0
      %517 = vmatpush1.msra.mxu0 0.0
      %518 = vmatprep.subr.mxu0 0.0
      %519 = vmatpush1.msra.mxu0 0.0
      %520 = vmatprep.subr.mxu0 0.0
      %521 = vmatpush1.msra.mxu0 0.0
      %522 = vmatprep.subr.mxu0 0.0
      %523 = vmatpush1.msra.mxu0 0.0
      %524 = vmatprep.subr.mxu0 0.0
      %525 = vmatpush1.msra.mxu0 0.0
      %526 = vmatprep.subr.mxu0 0.0
      %527 = vmatpush1.msra.mxu0 0.0
      %528 = vmatprep.mubr.f32.mxu0 0.0
      %529 = vmatmul.mubr.f32.gmra.mrb[0].mxu0 %v415
      %v530 = vpop.f32.mrb[0].mxu0
      %v531 = vadd.f32 0.0, %v530
      %v532 = vpop.f32.mrb[0].mxu0
      %533 = vmatprep.mubr.f32.mxu0 0.0
      %534 = vmatmul.mubr.f32.gmra.mrb[0].mxu0 %v416
      %v535 = vpop.f32.mrb[0].mxu0
      %v536 = vadd.f32 0.0, %v535
      %v537 = vpop.f32.mrb[0].mxu0
      %538 = vmatprep.mubr.f32.mxu0 0.0
      %539 = vmatmul.mubr.f32.gmra.mrb[0].mxu0 %v417
      %v540 = vpop.f32.mrb[0].mxu0
      %v541 = vadd.f32 0.0, %v540
      %v542 = vpop.f32.mrb[0].mxu0
      %543 = vmatprep.mubr.f32.mxu0 0.0
      %544 = vmatmul.mubr.f32.gmra.mrb[0].mxu0 %v418
      %v545 = vpop.f32.mrb[0].mxu0
      %v546 = vadd.f32 0.0, %v545
      %v547 = vpop.f32.mrb[0].mxu0
      %548 = vmatprep.mubr.f32.mxu0 0.0
      %549 = vmatmul.mubr.f32.gmra.mrb[0].mxu0 %v419
      %v550 = vpop.f32.mrb[0].mxu0
      %v551 = vadd.f32 0.0, %v550
      %v552 = vpop.f32.mrb[0].mxu0
      %553 = vmatprep.mubr.f32.mxu0 0.0
      %554 = vmatmul.mubr.f32.gmra.mrb[0].mxu0 %v420
      %v555 = vpop.f32.mrb[0].mxu0
      %v556 = vadd.f32 0.0, %v555
      %v557 = vpop.f32.mrb[0].mxu0
      %558 = vmatprep.mubr.f32.mxu0 0.0
      %559 = vmatmul.mubr.f32.gmra.mrb[0].mxu0 %v421
      %v560 = vpop.f32.mrb[0].mxu0
      %v561 = vadd.f32 0.0, %v560
      %v562 = vpop.f32.mrb[0].mxu0
      %563 = vmatprep.mubr.f32.mxu0 0.0
      %564 = vmatmul.mubr.f32.gmra.mrb[0].mxu0 %v422
      %v565 = vpop.f32.mrb[0].mxu0
      %v566 = vadd.f32 0.0, %v565
      %v567 = vpop.f32.mrb[0].mxu0
      %568 = vmatprep.mubr.f32.mxu0 0.0
      %569 = vmatmul.mubr.f32.gmra.mrb[0].mxu0 %v423
      %v570 = vpop.f32.mrb[0].mxu0
      %v571 = vadd.f32 0.0, %v570
      %v572 = vpop.f32.mrb[0].mxu0
      %573 = vmatprep.mubr.f32.mxu0 0.0
      %574 = vmatmul.mubr.f32.gmra.mrb[0].mxu0 %v424
      %v575 = vpop.f32.mrb[0].mxu0
      %v576 = vadd.f32 0.0, %v575
      %v577 = vpop.f32.mrb[0].mxu0
      %578 = vmatprep.mubr.f32.mxu0 0.0
      %579 = vmatmul.mubr.f32.gmra.mrb[0].mxu0 %v425
      %v580 = vpop.f32.mrb[0].mxu0
      %v581 = vadd.f32 0.0, %v580
      %v582 = vpop.f32.mrb[0].mxu0
      %583 = vmatprep.mubr.f32.mxu0 0.0
      %584 = vmatmul.mubr.f32.gmra.mrb[0].mxu0 %v426
      %v585 = vpop.f32.mrb[0].mxu0
      %v586 = vadd.f32 0.0, %v585
      %v587 = vpop.f32.mrb[0].mxu0
      %588 = vmatprep.mubr.f32.mxu0 0.0
      %589 = vmatmul.mubr.f32.gmra.mrb[0].mxu0 %v427
      %v590 = vpop.f32.mrb[0].mxu0
      %v591 = vadd.f32 0.0, %v590
      %v592 = vpop.f32.mrb[0].mxu0
      %593 = vmatprep.mubr.f32.mxu0 0.0
      %594 = vmatmul.mubr.f32.gmra.mrb[0].mxu0 %v428
      %v595 = vpop.f32.mrb[0].mxu0
      %v596 = vadd.f32 0.0, %v595
      %v597 = vpop.f32.mrb[0].mxu0
      %598 = vmatprep.mubr.f32.mxu0 0.0
      %599 = vmatmul.mubr.f32.gmra.mrb[0].mxu0 %v429
      %v600 = vpop.f32.mrb[0].mxu0
      %v601 = vadd.f32 0.0, %v600
      %v602 = vpop.f32.mrb[0].mxu0
      %603 = vmatprep.mubr.f32.mxu0 0.0
      %604 = vmatmul.mubr.f32.gmra.mrb[0].mxu0 %v430
      %v605 = vpop.f32.mrb[0].mxu0
      %v606 = vadd.f32 0.0, %v605
      %v607 = vpop.f32.mrb[0].mxu0
      %608 = vmatprep.mubr.f32.mxu0 0.0
      %609 = vmatmul.mubr.f32.gmra.mrb[0].mxu0 %v431
      %v610 = vpop.f32.mrb[0].mxu0
      %v611 = vadd.f32 0.0, %v610
      %v612 = vpop.f32.mrb[0].mxu0
      %613 = vmatprep.mubr.f32.mxu0 0.0
      %614 = vmatmul.mubr.f32.gmra.mrb[0].mxu0 %v432
      %v615 = vpop.f32.mrb[0].mxu0
      %v616 = vadd.f32 0.0, %v615
      %v617 = vpop.f32.mrb[0].mxu0
      %618 = vmatprep.mubr.f32.mxu0 0.0
      %619 = vmatmul.mubr.f32.gmra.mrb[0].mxu0 %v433
      %v620 = vpop.f32.mrb[0].mxu0
      %v621 = vadd.f32 0.0, %v620
      %v622 = vpop.f32.mrb[0].mxu0
      %623 = vmatprep.mubr.f32.mxu0 0.0
      %624 = vmatmul.mubr.f32.gmra.mrb[0].mxu0 %v434
      %v625 = vpop.f32.mrb[0].mxu0
      %v626 = vadd.f32 0.0, %v625
      %v627 = vpop.f32.mrb[0].mxu0
      %628 = vmatprep.mubr.f32.mxu0 0.0
      %629 = vmatmul.mubr.f32.gmra.mrb[0].mxu0 %v435
      %v630 = vpop.f32.mrb[0].mxu0
      %v631 = vadd.f32 0.0, %v630
      %v632 = vpop.f32.mrb[0].mxu0
      %633 = vmatprep.mubr.f32.mxu0 0.0
      %634 = vmatmul.mubr.f32.gmra.mrb[0].mxu0 %v436
      %v635 = vpop.f32.mrb[0].mxu0
      %v636 = vadd.f32 0.0, %v635
      %v637 = vpop.f32.mrb[0].mxu0
      %638 = vmatprep.mubr.f32.mxu0 0.0
      %639 = vmatmul.mubr.f32.gmra.mrb[0].mxu0 %v437
      %v640 = vpop.f32.mrb[0].mxu0
      %v641 = vadd.f32 0.0, %v640
      %v642 = vpop.f32.mrb[0].mxu0
      %643 = vmatprep.mubr.f32.mxu0 0.0
      %644 = vmatmul.mubr.f32.gmra.mrb[0].mxu0 %v438
      %v645 = vpop.f32.mrb[0].mxu0
      %v646 = vadd.f32 0.0, %v645
      %v647 = vpop.f32.mrb[0].mxu0
      %648 = vmatprep.mubr.f32.mxu0 0.0
      %649 = vmatmul.mubr.f32.gmra.mrb[0].mxu0 %v439
      %v650 = vpop.f32.mrb[0].mxu0
      %v651 = vadd.f32 0.0, %v650
      %v652 = vpop.f32.mrb[0].mxu0
      %653 = vmatprep.mubr.f32.mxu0 0.0
      %654 = vmatmul.mubr.f32.gmra.mrb[0].mxu0 %v440
      %v655 = vpop.f32.mrb[0].mxu0
      %v656 = vadd.f32 0.0, %v655
      %v657 = vpop.f32.mrb[0].mxu0
      %658 = vmatprep.mubr.f32.mxu0 0.0
      %659 = vmatmul.mubr.f32.gmra.mrb[0].mxu0 %v441
      %v660 = vpop.f32.mrb[0].mxu0
      %v661 = vadd.f32 0.0, %v660
      %v662 = vpop.f32.mrb[0].mxu0
      %663 = vmatprep.mubr.f32.mxu0 0.0
      %664 = vmatmul.mubr.f32.gmra.mrb[0].mxu0 %v442
      %v665 = vpop.f32.mrb[0].mxu0
      %v666 = vadd.f32 0.0, %v665
      %v667 = vpop.f32.mrb[0].mxu0
      %668 = vmatprep.mubr.f32.mxu0 0.0
      %669 = vmatmul.mubr.f32.gmra.mrb[0].mxu0 %v443
      %v670 = vpop.f32.mrb[0].mxu0
      %v671 = vadd.f32 0.0, %v670
      %v672 = vpop.f32.mrb[0].mxu0
      %673 = vmatprep.mubr.f32.mxu0 0.0
      %674 = vmatmul.mubr.f32.gmra.mrb[0].mxu0 %v444
      %v675 = vpop.f32.mrb[0].mxu0
      %v676 = vadd.f32 0.0, %v675
      %v677 = vpop.f32.mrb[0].mxu0
      %678 = vmatprep.mubr.f32.mxu0 0.0
      %679 = vmatmul.mubr.f32.gmra.mrb[0].mxu0 %v445
      %v680 = vpop.f32.mrb[0].mxu0
      %v681 = vadd.f32 0.0, %v680
      %v682 = vpop.f32.mrb[0].mxu0
      %683 = vmatprep.mubr.f32.mxu0 0.0
      %684 = vmatmul.mubr.f32.gmra.mrb[0].mxu0 %v446
      %v685 = vpop.f32.mrb[0].mxu0
      %v686 = vadd.f32 0.0, %v685
      %v687 = vpop.f32.mrb[0].mxu0
      %688 = vdwg.mxu0
      %689 = vmatprep.subr.mxu0 0.0
      %690 = vmatpush1.msra.mxu0 %v399
      %691 = vmatprep.subr.mxu0 0.0
      %692 = vmatpush1.msra.mxu0 %v400
      %693 = vmatprep.subr.mxu0 0.0
      %694 = vmatpush1.msra.mxu0 %v401
      %695 = vmatprep.subr.mxu0 0.0
      %696 = vmatpush1.msra.mxu0 %v402
      %697 = vmatprep.subr.mxu0 0.0
      %698 = vmatpush1.msra.mxu0 %v403
      %699 = vmatprep.subr.mxu0 0.0
      %700 = vmatpush1.msra.mxu0 %v404
      %701 = vmatprep.subr.mxu0 0.0
      %702 = vmatpush1.msra.mxu0 %v405
      %703 = vmatprep.subr.mxu0 0.0
      %704 = vmatpush1.msra.mxu0 %v406
      %705 = vmatprep.subr.mxu0 0.0
      %706 = vmatpush1.msra.mxu0 %v407
      %707 = vmatprep.subr.mxu0 0.0
      %708 = vmatpush1.msra.mxu0 %v408
      %709 = vmatprep.subr.mxu0 0.0
      %710 = vmatpush1.msra.mxu0 %v409
      %711 = vmatprep.subr.mxu0 0.0
      %712 = vmatpush1.msra.mxu0 %v410
      %713 = vmatprep.subr.mxu0 0.0
      %714 = vmatpush1.msra.mxu0 %v411
      %715 = vmatprep.subr.mxu0 0.0
      %716 = vmatpush1.msra.mxu0 %v412
      %717 = vmatprep.subr.mxu0 0.0
      %718 = vmatpush1.msra.mxu0 %v413
      %719 = vmatprep.subr.mxu0 0.0
      %720 = vmatpush1.msra.mxu0 %v414
      %721 = vmatprep.subr.mxu0 0.0
      %722 = vmatpush1.msra.mxu0 0.0
      %723 = vmatprep.subr.mxu0 0.0
      %724 = vmatpush1.msra.mxu0 0.0
      %725 = vmatprep.subr.mxu0 0.0
      %726 = vmatpush1.msra.mxu0 0.0
      %727 = vmatprep.subr.mxu0 0.0
      %728 = vmatpush1.msra.mxu0 0.0
      %729 = vmatprep.subr.mxu0 0.0
      %730 = vmatpush1.msra.mxu0 0.0
      %731 = vmatprep.subr.mxu0 0.0
      %732 = vmatpush1.msra.mxu0 0.0
      %733 = vmatprep.subr.mxu0 0.0
      %734 = vmatpush1.msra.mxu0 0.0
      %735 = vmatprep.subr.mxu0 0.0
      %736 = vmatpush1.msra.mxu0 0.0
      %737 = vmatprep.subr.mxu0 0.0
      %738 = vmatpush1.msra.mxu0 0.0
      %739 = vmatprep.subr.mxu0 0.0
      %740 = vmatpush1.msra.mxu0 0.0
      %741 = vmatprep.subr.mxu0 0.0
      %742 = vmatpush1.msra.mxu0 0.0
      %743 = vmatprep.subr.mxu0 0.0
      %744 = vmatpush1.msra.mxu0 0.0
      %745 = vmatprep.subr.mxu0 0.0
      %746 = vmatpush1.msra.mxu0 0.0
      %747 = vmatprep.subr.mxu0 0.0
      %748 = vmatpush1.msra.mxu0 0.0
      %749 = vmatprep.subr.mxu0 0.0
      %750 = vmatpush1.msra.mxu0 0.0
      %751 = vmatprep.subr.mxu0 0.0
      %752 = vmatpush1.msra.mxu0 0.0
      %753 = vmatprep.mubr.f32.mxu0 0.0
      %754 = vmatmul.mubr.f32.gmra.mrb[0].mxu0 %v367
      %v755 = vpop.f32.mrb[0].mxu0
      %v756 = vadd.f32 %v531, %v755
      %v757 = vpop.f32.mrb[0].mxu0
      %758 = vmatprep.mubr.f32.mxu0 0.0
      %759 = vmatmul.mubr.f32.gmra.mrb[0].mxu0 %v368
      %v760 = vpop.f32.mrb[0].mxu0
      %v761 = vadd.f32 %v536, %v760
      %v762 = vpop.f32.mrb[0].mxu0
      %763 = vmatprep.mubr.f32.mxu0 0.0
      %764 = vmatmul.mubr.f32.gmra.mrb[0].mxu0 %v369
      %v765 = vpop.f32.mrb[0].mxu0
      %v766 = vadd.f32 %v541, %v765
      %v767 = vpop.f32.mrb[0].mxu0
      %768 = vmatprep.mubr.f32.mxu0 0.0
      %769 = vmatmul.mubr.f32.gmra.mrb[0].mxu0 %v370
      %v770 = vpop.f32.mrb[0].mxu0
      %v771 = vadd.f32 %v546, %v770
      %v772 = vpop.f32.mrb[0].mxu0
      %773 = vmatprep.mubr.f32.mxu0 0.0
      %774 = vmatmul.mubr.f32.gmra.mrb[0].mxu0 %v371
      %v775 = vpop.f32.mrb[0].mxu0
      %v776 = vadd.f32 %v551, %v775
      %v777 = vpop.f32.mrb[0].mxu0
      %778 = vmatprep.mubr.f32.mxu0 0.0
      %779 = vmatmul.mubr.f32.gmra.mrb[0].mxu0 %v372
      %v780 = vpop.f32.mrb[0].mxu0
      %v781 = vadd.f32 %v556, %v780
      %v782 = vpop.f32.mrb[0].mxu0
      %783 = vmatprep.mubr.f32.mxu0 0.0
      %784 = vmatmul.mubr.f32.gmra.mrb[0].mxu0 %v373
      %v785 = vpop.f32.mrb[0].mxu0
      %v786 = vadd.f32 %v561, %v785
      %v787 = vpop.f32.mrb[0].mxu0
      %788 = vmatprep.mubr.f32.mxu0 0.0
      %789 = vmatmul.mubr.f32.gmra.mrb[0].mxu0 %v374
      %v790 = vpop.f32.mrb[0].mxu0
      %v791 = vadd.f32 %v566, %v790
      %v792 = vpop.f32.mrb[0].mxu0
      %793 = vmatprep.mubr.f32.mxu0 0.0
      %794 = vmatmul.mubr.f32.gmra.mrb[0].mxu0 %v375
      %v795 = vpop.f32.mrb[0].mxu0
      %v796 = vadd.f32 %v571, %v795
      %v797 = vpop.f32.mrb[0].mxu0
      %798 = vmatprep.mubr.f32.mxu0 0.0
      %799 = vmatmul.mubr.f32.gmra.mrb[0].mxu0 %v376
      %v800 = vpop.f32.mrb[0].mxu0
      %v801 = vadd.f32 %v576, %v800
      %v802 = vpop.f32.mrb[0].mxu0
      %803 = vmatprep.mubr.f32.mxu0 0.0
      %804 = vmatmul.mubr.f32.gmra.mrb[0].mxu0 %v377
      %v805 = vpop.f32.mrb[0].mxu0
      %v806 = vadd.f32 %v581, %v805
      %v807 = vpop.f32.mrb[0].mxu0
      %808 = vmatprep.mubr.f32.mxu0 0.0
      %809 = vmatmul.mubr.f32.gmra.mrb[0].mxu0 %v378
      %v810 = vpop.f32.mrb[0].mxu0
      %v811 = vadd.f32 %v586, %v810
      %v812 = vpop.f32.mrb[0].mxu0
      %813 = vmatprep.mubr.f32.mxu0 0.0
      %814 = vmatmul.mubr.f32.gmra.mrb[0].mxu0 %v379
      %v815 = vpop.f32.mrb[0].mxu0
      %v816 = vadd.f32 %v591, %v815
      %v817 = vpop.f32.mrb[0].mxu0
      %818 = vmatprep.mubr.f32.mxu0 0.0
      %819 = vmatmul.mubr.f32.gmra.mrb[0].mxu0 %v380
      %v820 = vpop.f32.mrb[0].mxu0
      %v821 = vadd.f32 %v596, %v820
      %v822 = vpop.f32.mrb[0].mxu0
      %823 = vmatprep.mubr.f32.mxu0 0.0
      %824 = vmatmul.mubr.f32.gmra.mrb[0].mxu0 %v381
      %v825 = vpop.f32.mrb[0].mxu0
      %v826 = vadd.f32 %v601, %v825
      %v827 = vpop.f32.mrb[0].mxu0
      %828 = vmatprep.mubr.f32.mxu0 0.0
      %829 = vmatmul.mubr.f32.gmra.mrb[0].mxu0 %v382
      %v830 = vpop.f32.mrb[0].mxu0
      %v831 = vadd.f32 %v606, %v830
      %v832 = vpop.f32.mrb[0].mxu0
      %833 = vmatprep.mubr.f32.mxu0 0.0
      %834 = vmatmul.mubr.f32.gmra.mrb[0].mxu0 %v383
      %v835 = vpop.f32.mrb[0].mxu0
      %v836 = vadd.f32 %v611, %v835
      %v837 = vpop.f32.mrb[0].mxu0
      %838 = vmatprep.mubr.f32.mxu0 0.0
      %839 = vmatmul.mubr.f32.gmra.mrb[0].mxu0 %v384
      %v840 = vpop.f32.mrb[0].mxu0
      %v841 = vadd.f32 %v616, %v840
      %v842 = vpop.f32.mrb[0].mxu0
      %843 = vmatprep.mubr.f32.mxu0 0.0
      %844 = vmatmul.mubr.f32.gmra.mrb[0].mxu0 %v385
      %v845 = vpop.f32.mrb[0].mxu0
      %v846 = vadd.f32 %v621, %v845
      %v847 = vpop.f32.mrb[0].mxu0
      %848 = vmatprep.mubr.f32.mxu0 0.0
      %849 = vmatmul.mubr.f32.gmra.mrb[0].mxu0 %v386
      %v850 = vpop.f32.mrb[0].mxu0
      %v851 = vadd.f32 %v626, %v850
      %v852 = vpop.f32.mrb[0].mxu0
      %853 = vmatprep.mubr.f32.mxu0 0.0
      %854 = vmatmul.mubr.f32.gmra.mrb[0].mxu0 %v387
      %v855 = vpop.f32.mrb[0].mxu0
      %v856 = vadd.f32 %v631, %v855
      %v857 = vpop.f32.mrb[0].mxu0
      %858 = vmatprep.mubr.f32.mxu0 0.0
      %859 = vmatmul.mubr.f32.gmra.mrb[0].mxu0 %v388
      %v860 = vpop.f32.mrb[0].mxu0
      %v861 = vadd.f32 %v636, %v860
      %v862 = vpop.f32.mrb[0].mxu0
      %863 = vmatprep.mubr.f32.mxu0 0.0
      %864 = vmatmul.mubr.f32.gmra.mrb[0].mxu0 %v389
      %v865 = vpop.f32.mrb[0].mxu0
      %v866 = vadd.f32 %v641, %v865
      %v867 = vpop.f32.mrb[0].mxu0
      %868 = vmatprep.mubr.f32.mxu0 0.0
      %869 = vmatmul.mubr.f32.gmra.mrb[0].mxu0 %v390
      %v870 = vpop.f32.mrb[0].mxu0
      %v871 = vadd.f32 %v646, %v870
      %v872 = vpop.f32.mrb[0].mxu0
      %873 = vmatprep.mubr.f32.mxu0 0.0
      %874 = vmatmul.mubr.f32.gmra.mrb[0].mxu0 %v391
      %v875 = vpop.f32.mrb[0].mxu0
      %v876 = vadd.f32 %v651, %v875
      %v877 = vpop.f32.mrb[0].mxu0
      %878 = vmatprep.mubr.f32.mxu0 0.0
      %879 = vmatmul.mubr.f32.gmra.mrb[0].mxu0 %v392
      %v880 = vpop.f32.mrb[0].mxu0
      %v881 = vadd.f32 %v656, %v880
      %v882 = vpop.f32.mrb[0].mxu0
      %883 = vmatprep.mubr.f32.mxu0 0.0
      %884 = vmatmul.mubr.f32.gmra.mrb[0].mxu0 %v393
      %v885 = vpop.f32.mrb[0].mxu0
      %v886 = vadd.f32 %v661, %v885
      %v887 = vpop.f32.mrb[0].mxu0
      %888 = vmatprep.mubr.f32.mxu0 0.0
      %889 = vmatmul.mubr.f32.gmra.mrb[0].mxu0 %v394
      %v890 = vpop.f32.mrb[0].mxu0
      %v891 = vadd.f32 %v666, %v890
      %v892 = vpop.f32.mrb[0].mxu0
      %893 = vmatprep.mubr.f32.mxu0 0.0
      %894 = vmatmul.mubr.f32.gmra.mrb[0].mxu0 %v395
      %v895 = vpop.f32.mrb[0].mxu0
      %v896 = vadd.f32 %v671, %v895
      %v897 = vpop.f32.mrb[0].mxu0
      %898 = vmatprep.mubr.f32.mxu0 0.0
      %899 = vmatmul.mubr.f32.gmra.mrb[0].mxu0 %v396
      %v900 = vpop.f32.mrb[0].mxu0
      %v901 = vadd.f32 %v676, %v900
      %v902 = vpop.f32.mrb[0].mxu0
      %903 = vmatprep.mubr.f32.mxu0 0.0
      %904 = vmatmul.mubr.f32.gmra.mrb[0].mxu0 %v397
      %v905 = vpop.f32.mrb[0].mxu0
      %v906 = vadd.f32 %v681, %v905
      %v907 = vpop.f32.mrb[0].mxu0
      %908 = vmatprep.mubr.f32.mxu0 0.0
      %909 = vmatmul.mubr.f32.gmra.mrb[0].mxu0 %v398
      %v910 = vpop.f32.mrb[0].mxu0
      %v911 = vadd.f32 %v686, %v910
      %v912 = vpop.f32.mrb[0].mxu0
      %913 = vdwg.mxu0
      %v914 = vld [vmem:[#allocation2 + $0x9] sm:$0xff]
      %v915 = vld [vmem:[#allocation2 + $0x11] sm:$0xff]
      %v916 = vld [vmem:[#allocation2 + $0x29] sm:$0xff]
      %v917 = vld [vmem:[#allocation2 + $0x31] sm:$0xff]
      %v918 = vld [vmem:[#allocation2 + $0x49] sm:$0xff]
      %v919 = vld [vmem:[#allocation2 + $0x51] sm:$0xff]
      %v920 = vld [vmem:[#allocation2 + $0x69] sm:$0xff]
      %v921 = vld [vmem:[#allocation2 + $0x71] sm:$0xff]
      %v922 = vld [vmem:[#allocation2 + $0x89] sm:$0xff]
      %v923 = vld [vmem:[#allocation2 + $0x91] sm:$0xff]
      %v924 = vld [vmem:[#allocation2 + $0xa9] sm:$0xff]
      %v925 = vld [vmem:[#allocation2 + $0xb1] sm:$0xff]
      %v926 = vld [vmem:[#allocation2 + $0xc9] sm:$0xff]
      %v927 = vld [vmem:[#allocation2 + $0xd1] sm:$0xff]
      %v928 = vld [vmem:[#allocation2 + $0xe9] sm:$0xff]
      %v929 = vld [vmem:[#allocation2 + $0xf1] sm:$0xff]
      %v930 = vld [vmem:[#allocation2 + $0x109] sm:$0xff]
      %v931 = vld [vmem:[#allocation2 + $0x111] sm:$0xff]
      %v932 = vld [vmem:[#allocation2 + $0x129] sm:$0xff]
      %v933 = vld [vmem:[#allocation2 + $0x131] sm:$0xff]
      %v934 = vld [vmem:[#allocation2 + $0x149] sm:$0xff]
      %v935 = vld [vmem:[#allocation2 + $0x151] sm:$0xff]
      %v936 = vld [vmem:[#allocation2 + $0x169] sm:$0xff]
      %v937 = vld [vmem:[#allocation2 + $0x171] sm:$0xff]
      %v938 = vld [vmem:[#allocation2 + $0x189] sm:$0xff]
      %v939 = vld [vmem:[#allocation2 + $0x191] sm:$0xff]
      %v940 = vld [vmem:[#allocation2 + $0x1a9] sm:$0xff]
      %v941 = vld [vmem:[#allocation2 + $0x1b1] sm:$0xff]
      %v942 = vld [vmem:[#allocation2 + $0x1c9] sm:$0xff]
      %v943 = vld [vmem:[#allocation2 + $0x1d1] sm:$0xff]
      %v944 = vld [vmem:[#allocation2 + $0x1e9] sm:$0xff]
      %v945 = vld [vmem:[#allocation2 + $0x1f1] sm:$0xff]
      %s946 = scalar_lea.vmem %s1, 256
      %v947 = vld [vmem:[%s946] sm:$0xff]
      %v948 = vld [vmem:[%s946 + $0x8] sm:$0xff]
      %v949 = vld [vmem:[%s946 + $0x10] sm:$0xff]
      %v950 = vld [vmem:[%s946 + $0x18] sm:$0xff]
      %v951 = vld [vmem:[%s946 + $0x20] sm:$0xff]
      %v952 = vld [vmem:[%s946 + $0x28] sm:$0xff]
      %v953 = vld [vmem:[%s946 + $0x30] sm:$0xff]
      %v954 = vld [vmem:[%s946 + $0x38] sm:$0xff]
      %v955 = vld [vmem:[%s946 + $0x40] sm:$0xff]
      %v956 = vld [vmem:[%s946 + $0x48] sm:$0xff]
      %v957 = vld [vmem:[%s946 + $0x50] sm:$0xff]
      %v958 = vld [vmem:[%s946 + $0x58] sm:$0xff]
      %v959 = vld [vmem:[%s946 + $0x60] sm:$0xff]
      %v960 = vld [vmem:[%s946 + $0x68] sm:$0xff]
      %v961 = vld [vmem:[%s946 + $0x70] sm:$0xff]
      %v962 = vld [vmem:[%s946 + $0x78] sm:$0xff]
      %963 = vmatprep.subr.mxu0 0.0
      %964 = vmatpush1.msra.mxu0 %v947
      %965 = vmatprep.subr.mxu0 0.0
      %966 = vmatpush1.msra.mxu0 %v948
      %967 = vmatprep.subr.mxu0 0.0
      %968 = vmatpush1.msra.mxu0 %v949
      %969 = vmatprep.subr.mxu0 0.0
      %970 = vmatpush1.msra.mxu0 %v950
      %971 = vmatprep.subr.mxu0 0.0
      %972 = vmatpush1.msra.mxu0 %v951
      %973 = vmatprep.subr.mxu0 0.0
      %974 = vmatpush1.msra.mxu0 %v952
      %975 = vmatprep.subr.mxu0 0.0
      %976 = vmatpush1.msra.mxu0 %v953
      %977 = vmatprep.subr.mxu0 0.0
      %978 = vmatpush1.msra.mxu0 %v954
      %979 = vmatprep.subr.mxu0 0.0
      %980 = vmatpush1.msra.mxu0 %v955
      %981 = vmatprep.subr.mxu0 0.0
      %982 = vmatpush1.msra.mxu0 %v956
      %983 = vmatprep.subr.mxu0 0.0
      %984 = vmatpush1.msra.mxu0 %v957
      %985 = vmatprep.subr.mxu0 0.0
      %986 = vmatpush1.msra.mxu0 %v958
      %987 = vmatprep.subr.mxu0 0.0
      %988 = vmatpush1.msra.mxu0 %v959
      %989 = vmatprep.subr.mxu0 0.0
      %990 = vmatpush1.msra.mxu0 %v960
      %991 = vmatprep.subr.mxu0 0.0
      %992 = vmatpush1.msra.mxu0 %v961
      %993 = vmatprep.subr.mxu0 0.0
      %994 = vmatpush1.msra.mxu0 %v962
      %995 = vmatprep.subr.mxu0 0.0
      %996 = vmatpush1.msra.mxu0 0.0
      %997 = vmatprep.subr.mxu0 0.0
      %998 = vmatpush1.msra.mxu0 0.0
      %999 = vmatprep.subr.mxu0 0.0
      %1000 = vmatpush1.msra.mxu0 0.0
      %1001 = vmatprep.subr.mxu0 0.0
      %1002 = vmatpush1.msra.mxu0 0.0
      %1003 = vmatprep.subr.mxu0 0.0
      %1004 = vmatpush1.msra.mxu0 0.0
      %1005 = vmatprep.subr.mxu0 0.0
      %1006 = vmatpush1.msra.mxu0 0.0
      %1007 = vmatprep.subr.mxu0 0.0
      %1008 = vmatpush1.msra.mxu0 0.0
      %1009 = vmatprep.subr.mxu0 0.0
      %1010 = vmatpush1.msra.mxu0 0.0
      %1011 = vmatprep.subr.mxu0 0.0
      %1012 = vmatpush1.msra.mxu0 0.0
      %1013 = vmatprep.subr.mxu0 0.0
      %1014 = vmatpush1.msra.mxu0 0.0
      %1015 = vmatprep.subr.mxu0 0.0
      %1016 = vmatpush1.msra.mxu0 0.0
      %1017 = vmatprep.subr.mxu0 0.0
      %1018 = vmatpush1.msra.mxu0 0.0
      %1019 = vmatprep.subr.mxu0 0.0
      %1020 = vmatpush1.msra.mxu0 0.0
      %1021 = vmatprep.subr.mxu0 0.0
      %1022 = vmatpush1.msra.mxu0 0.0
      %1023 = vmatprep.subr.mxu0 0.0
      %1024 = vmatpush1.msra.mxu0 0.0
      %1025 = vmatprep.subr.mxu0 0.0
      %1026 = vmatpush1.msra.mxu0 0.0
      %1027 = vmatprep.mubr.f32.mxu0 0.0
      %1028 = vmatmul.mubr.f32.gmra.mrb[0].mxu0 %v914
      %v1029 = vpop.f32.mrb[0].mxu0
      %v1030 = vadd.f32 0.0, %v1029
      %v1031 = vpop.f32.mrb[0].mxu0
      %1032 = vmatprep.mubr.f32.mxu0 0.0
      %1033 = vmatmul.mubr.f32.gmra.mrb[0].mxu0 %v915
      %v1034 = vpop.f32.mrb[0].mxu0
      %v1035 = vadd.f32 0.0, %v1034
      %v1036 = vpop.f32.mrb[0].mxu0
      %1037 = vmatprep.mubr.f32.mxu0 0.0
      %1038 = vmatmul.mubr.f32.gmra.mrb[0].mxu0 %v916
      %v1039 = vpop.f32.mrb[0].mxu0
      %v1040 = vadd.f32 0.0, %v1039
      %v1041 = vpop.f32.mrb[0].mxu0
      %1042 = vmatprep.mubr.f32.mxu0 0.0
      %1043 = vmatmul.mubr.f32.gmra.mrb[0].mxu0 %v917
      %v1044 = vpop.f32.mrb[0].mxu0
      %v1045 = vadd.f32 0.0, %v1044
      %v1046 = vpop.f32.mrb[0].mxu0
      %1047 = vmatprep.mubr.f32.mxu0 0.0
      %1048 = vmatmul.mubr.f32.gmra.mrb[0].mxu0 %v918
      %v1049 = vpop.f32.mrb[0].mxu0
      %v1050 = vadd.f32 0.0, %v1049
      %v1051 = vpop.f32.mrb[0].mxu0
      %1052 = vmatprep.mubr.f32.mxu0 0.0
      %1053 = vmatmul.mubr.f32.gmra.mrb[0].mxu0 %v919
      %v1054 = vpop.f32.mrb[0].mxu0
      %v1055 = vadd.f32 0.0, %v1054
      %v1056 = vpop.f32.mrb[0].mxu0
      %1057 = vmatprep.mubr.f32.mxu0 0.0
      %1058 = vmatmul.mubr.f32.gmra.mrb[0].mxu0 %v920
      %v1059 = vpop.f32.mrb[0].mxu0
      %v1060 = vadd.f32 0.0, %v1059
      %v1061 = vpop.f32.mrb[0].mxu0
      %1062 = vmatprep.mubr.f32.mxu0 0.0
      %1063 = vmatmul.mubr.f32.gmra.mrb[0].mxu0 %v921
      %v1064 = vpop.f32.mrb[0].mxu0
      %v1065 = vadd.f32 0.0, %v1064
      %v1066 = vpop.f32.mrb[0].mxu0
      %1067 = vmatprep.mubr.f32.mxu0 0.0
      %1068 = vmatmul.mubr.f32.gmra.mrb[0].mxu0 %v922
      %v1069 = vpop.f32.mrb[0].mxu0
      %v1070 = vadd.f32 0.0, %v1069
      %v1071 = vpop.f32.mrb[0].mxu0
      %1072 = vmatprep.mubr.f32.mxu0 0.0
      %1073 = vmatmul.mubr.f32.gmra.mrb[0].mxu0 %v923
      %v1074 = vpop.f32.mrb[0].mxu0
      %v1075 = vadd.f32 0.0, %v1074
      %v1076 = vpop.f32.mrb[0].mxu0
      %1077 = vmatprep.mubr.f32.mxu0 0.0
      %1078 = vmatmul.mubr.f32.gmra.mrb[0].mxu0 %v924
      %v1079 = vpop.f32.mrb[0].mxu0
      %v1080 = vadd.f32 0.0, %v1079
      %v1081 = vpop.f32.mrb[0].mxu0
      %1082 = vmatprep.mubr.f32.mxu0 0.0
      %1083 = vmatmul.mubr.f32.gmra.mrb[0].mxu0 %v925
      %v1084 = vpop.f32.mrb[0].mxu0
      %v1085 = vadd.f32 0.0, %v1084
      %v1086 = vpop.f32.mrb[0].mxu0
      %1087 = vmatprep.mubr.f32.mxu0 0.0
      %1088 = vmatmul.mubr.f32.gmra.mrb[0].mxu0 %v926
      %v1089 = vpop.f32.mrb[0].mxu0
      %v1090 = vadd.f32 0.0, %v1089
      %v1091 = vpop.f32.mrb[0].mxu0
      %1092 = vmatprep.mubr.f32.mxu0 0.0
      %1093 = vmatmul.mubr.f32.gmra.mrb[0].mxu0 %v927
      %v1094 = vpop.f32.mrb[0].mxu0
      %v1095 = vadd.f32 0.0, %v1094
      %v1096 = vpop.f32.mrb[0].mxu0
      %1097 = vmatprep.mubr.f32.mxu0 0.0
      %1098 = vmatmul.mubr.f32.gmra.mrb[0].mxu0 %v928
      %v1099 = vpop.f32.mrb[0].mxu0
      %v1100 = vadd.f32 0.0, %v1099
      %v1101 = vpop.f32.mrb[0].mxu0
      %1102 = vmatprep.mubr.f32.mxu0 0.0
      %1103 = vmatmul.mubr.f32.gmra.mrb[0].mxu0 %v929
      %v1104 = vpop.f32.mrb[0].mxu0
      %v1105 = vadd.f32 0.0, %v1104
      %v1106 = vpop.f32.mrb[0].mxu0
      %1107 = vmatprep.mubr.f32.mxu0 0.0
      %1108 = vmatmul.mubr.f32.gmra.mrb[0].mxu0 %v930
      %v1109 = vpop.f32.mrb[0].mxu0
      %v1110 = vadd.f32 0.0, %v1109
      %v1111 = vpop.f32.mrb[0].mxu0
      %1112 = vmatprep.mubr.f32.mxu0 0.0
      %1113 = vmatmul.mubr.f32.gmra.mrb[0].mxu0 %v931
      %v1114 = vpop.f32.mrb[0].mxu0
      %v1115 = vadd.f32 0.0, %v1114
      %v1116 = vpop.f32.mrb[0].mxu0
      %1117 = vmatprep.mubr.f32.mxu0 0.0
      %1118 = vmatmul.mubr.f32.gmra.mrb[0].mxu0 %v932
      %v1119 = vpop.f32.mrb[0].mxu0
      %v1120 = vadd.f32 0.0, %v1119
      %v1121 = vpop.f32.mrb[0].mxu0
      %1122 = vmatprep.mubr.f32.mxu0 0.0
      %1123 = vmatmul.mubr.f32.gmra.mrb[0].mxu0 %v933
      %v1124 = vpop.f32.mrb[0].mxu0
      %v1125 = vadd.f32 0.0, %v1124
      %v1126 = vpop.f32.mrb[0].mxu0
      %1127 = vmatprep.mubr.f32.mxu0 0.0
      %1128 = vmatmul.mubr.f32.gmra.mrb[0].mxu0 %v934
      %v1129 = vpop.f32.mrb[0].mxu0
      %v1130 = vadd.f32 0.0, %v1129
      %v1131 = vpop.f32.mrb[0].mxu0
      %1132 = vmatprep.mubr.f32.mxu0 0.0
      %1133 = vmatmul.mubr.f32.gmra.mrb[0].mxu0 %v935
      %v1134 = vpop.f32.mrb[0].mxu0
      %v1135 = vadd.f32 0.0, %v1134
      %v1136 = vpop.f32.mrb[0].mxu0
      %1137 = vmatprep.mubr.f32.mxu0 0.0
      %1138 = vmatmul.mubr.f32.gmra.mrb[0].mxu0 %v936
      %v1139 = vpop.f32.mrb[0].mxu0
      %v1140 = vadd.f32 0.0, %v1139
      %v1141 = vpop.f32.mrb[0].mxu0
      %1142 = vmatprep.mubr.f32.mxu0 0.0
      %1143 = vmatmul.mubr.f32.gmra.mrb[0].mxu0 %v937
      %v1144 = vpop.f32.mrb[0].mxu0
      %v1145 = vadd.f32 0.0, %v1144
      %v1146 = vpop.f32.mrb[0].mxu0
      %1147 = vmatprep.mubr.f32.mxu0 0.0
      %1148 = vmatmul.mubr.f32.gmra.mrb[0].mxu0 %v938
      %v1149 = vpop.f32.mrb[0].mxu0
      %v1150 = vadd.f32 0.0, %v1149
      %v1151 = vpop.f32.mrb[0].mxu0
      %1152 = vmatprep.mubr.f32.mxu0 0.0
      %1153 = vmatmul.mubr.f32.gmra.mrb[0].mxu0 %v939
      %v1154 = vpop.f32.mrb[0].mxu0
      %v1155 = vadd.f32 0.0, %v1154
      %v1156 = vpop.f32.mrb[0].mxu0
      %1157 = vmatprep.mubr.f32.mxu0 0.0
      %1158 = vmatmul.mubr.f32.gmra.mrb[0].mxu0 %v940
      %v1159 = vpop.f32.mrb[0].mxu0
      %v1160 = vadd.f32 0.0, %v1159
      %v1161 = vpop.f32.mrb[0].mxu0
      %1162 = vmatprep.mubr.f32.mxu0 0.0
      %1163 = vmatmul.mubr.f32.gmra.mrb[0].mxu0 %v941
      %v1164 = vpop.f32.mrb[0].mxu0
      %v1165 = vadd.f32 0.0, %v1164
      %v1166 = vpop.f32.mrb[0].mxu0
      %1167 = vmatprep.mubr.f32.mxu0 0.0
      %1168 = vmatmul.mubr.f32.gmra.mrb[0].mxu0 %v942
      %v1169 = vpop.f32.mrb[0].mxu0
      %v1170 = vadd.f32 0.0, %v1169
      %v1171 = vpop.f32.mrb[0].mxu0
      %1172 = vmatprep.mubr.f32.mxu0 0.0
      %1173 = vmatmul.mubr.f32.gmra.mrb[0].mxu0 %v943
      %v1174 = vpop.f32.mrb[0].mxu0
      %v1175 = vadd.f32 0.0, %v1174
      %v1176 = vpop.f32.mrb[0].mxu0
      %1177 = vmatprep.mubr.f32.mxu0 0.0
      %1178 = vmatmul.mubr.f32.gmra.mrb[0].mxu0 %v944
      %v1179 = vpop.f32.mrb[0].mxu0
      %v1180 = vadd.f32 0.0, %v1179
      %v1181 = vpop.f32.mrb[0].mxu0
      %1182 = vmatprep.mubr.f32.mxu0 0.0
      %1183 = vmatmul.mubr.f32.gmra.mrb[0].mxu0 %v945
      %v1184 = vpop.f32.mrb[0].mxu0
      %v1185 = vadd.f32 0.0, %v1184
      %v1186 = vpop.f32.mrb[0].mxu0
      %1187 = vdwg.mxu0
      %v1188 = vadd.f32 %v756, %v1030
      %v1189 = vadd.f32 %v761, %v1035
      %v1190 = vadd.f32 %v766, %v1040
      %v1191 = vadd.f32 %v771, %v1045
      %v1192 = vadd.f32 %v776, %v1050
      %v1193 = vadd.f32 %v781, %v1055
      %v1194 = vadd.f32 %v786, %v1060
      %v1195 = vadd.f32 %v791, %v1065
      %v1196 = vadd.f32 %v796, %v1070
      %v1197 = vadd.f32 %v801, %v1075
      %v1198 = vadd.f32 %v806, %v1080
      %v1199 = vadd.f32 %v811, %v1085
      %v1200 = vadd.f32 %v816, %v1090
      %v1201 = vadd.f32 %v821, %v1095
      %v1202 = vadd.f32 %v826, %v1100
      %v1203 = vadd.f32 %v831, %v1105
      %v1204 = vadd.f32 %v836, %v1110
      %v1205 = vadd.f32 %v841, %v1115
      %v1206 = vadd.f32 %v846, %v1120
      %v1207 = vadd.f32 %v851, %v1125
      %v1208 = vadd.f32 %v856, %v1130
      %v1209 = vadd.f32 %v861, %v1135
      %v1210 = vadd.f32 %v866, %v1140
      %v1211 = vadd.f32 %v871, %v1145
      %v1212 = vadd.f32 %v876, %v1150
      %v1213 = vadd.f32 %v881, %v1155
      %v1214 = vadd.f32 %v886, %v1160
      %v1215 = vadd.f32 %v891, %v1165
      %v1216 = vadd.f32 %v896, %v1170
      %v1217 = vadd.f32 %v901, %v1175
      %v1218 = vadd.f32 %v906, %v1180
      %v1219 = vadd.f32 %v911, %v1185
      %v1220 = vld [vmem:[%s257 + $0x7] sm:$0xff]
      %v1221 = vld [vmem:[%s257 + $0xf] sm:$0xff]
      %v1222 = vld [vmem:[%s257 + $0x27] sm:$0xff]
      %v1223 = vld [vmem:[%s257 + $0x2f] sm:$0xff]
      %v1224 = vld [vmem:[%s257 + $0x47] sm:$0xff]
      %v1225 = vld [vmem:[%s257 + $0x4f] sm:$0xff]
      %v1226 = vld [vmem:[%s257 + $0x67] sm:$0xff]
      %v1227 = vld [vmem:[%s257 + $0x6f] sm:$0xff]
      %v1228 = vld [vmem:[%s257 + $0x87] sm:$0xff]
      %v1229 = vld [vmem:[%s257 + $0x8f] sm:$0xff]
      %v1230 = vld [vmem:[%s257 + $0xa7] sm:$0xff]
      %v1231 = vld [vmem:[%s257 + $0xaf] sm:$0xff]
      %v1232 = vld [vmem:[%s257 + $0xc7] sm:$0xff]
      %v1233 = vld [vmem:[%s257 + $0xcf] sm:$0xff]
      %v1234 = vld [vmem:[%s257 + $0xe7] sm:$0xff]
      %v1235 = vld [vmem:[%s257 + $0xef] sm:$0xff]
      %v1236 = vld [vmem:[%s257 + $0x107] sm:$0xff]
      %v1237 = vld [vmem:[%s257 + $0x10f] sm:$0xff]
      %v1238 = vld [vmem:[%s257 + $0x127] sm:$0xff]
      %v1239 = vld [vmem:[%s257 + $0x12f] sm:$0xff]
      %v1240 = vld [vmem:[%s257 + $0x147] sm:$0xff]
      %v1241 = vld [vmem:[%s257 + $0x14f] sm:$0xff]
      %v1242 = vld [vmem:[%s257 + $0x167] sm:$0xff]
      %v1243 = vld [vmem:[%s257 + $0x16f] sm:$0xff]
      %v1244 = vld [vmem:[%s257 + $0x187] sm:$0xff]
      %v1245 = vld [vmem:[%s257 + $0x18f] sm:$0xff]
      %v1246 = vld [vmem:[%s257 + $0x1a7] sm:$0xff]
      %v1247 = vld [vmem:[%s257 + $0x1af] sm:$0xff]
      %v1248 = vld [vmem:[%s257 + $0x1c7] sm:$0xff]
      %v1249 = vld [vmem:[%s257 + $0x1cf] sm:$0xff]
      %v1250 = vld [vmem:[%s257 + $0x1e7] sm:$0xff]
      %v1251 = vld [vmem:[%s257 + $0x1ef] sm:$0xff]
      %s1252 = scalar_lea.vmem %s1, 384
      %v1253 = vld [vmem:[%s1252] sm:$0xff]
      %v1254 = vld [vmem:[%s1252 + $0x8] sm:$0xff]
      %v1255 = vld [vmem:[%s1252 + $0x10] sm:$0xff]
      %v1256 = vld [vmem:[%s1252 + $0x18] sm:$0xff]
      %v1257 = vld [vmem:[%s1252 + $0x20] sm:$0xff]
      %v1258 = vld [vmem:[%s1252 + $0x28] sm:$0xff]
      %v1259 = vld [vmem:[%s1252 + $0x30] sm:$0xff]
      %v1260 = vld [vmem:[%s1252 + $0x38] sm:$0xff]
      %v1261 = vld [vmem:[%s1252 + $0x40] sm:$0xff]
      %v1262 = vld [vmem:[%s1252 + $0x48] sm:$0xff]
      %v1263 = vld [vmem:[%s1252 + $0x50] sm:$0xff]
      %v1264 = vld [vmem:[%s1252 + $0x58] sm:$0xff]
      %v1265 = vld [vmem:[%s1252 + $0x60] sm:$0xff]
      %v1266 = vld [vmem:[%s1252 + $0x68] sm:$0xff]
      %v1267 = vld [vmem:[%s1252 + $0x70] sm:$0xff]
      %v1268 = vld [vmem:[%s1252 + $0x78] sm:$0xff]
      %1269 = vmatprep.subr.mxu0 0.0
      %1270 = vmatpush1.msra.mxu0 %v1253
      %1271 = vmatprep.subr.mxu0 0.0
      %1272 = vmatpush1.msra.mxu0 %v1254
      %1273 = vmatprep.subr.mxu0 0.0
      %1274 = vmatpush1.msra.mxu0 %v1255
      %1275 = vmatprep.subr.mxu0 0.0
      %1276 = vmatpush1.msra.mxu0 %v1256
      %1277 = vmatprep.subr.mxu0 0.0
      %1278 = vmatpush1.msra.mxu0 %v1257
      %1279 = vmatprep.subr.mxu0 0.0
      %1280 = vmatpush1.msra.mxu0 %v1258
      %1281 = vmatprep.subr.mxu0 0.0
      %1282 = vmatpush1.msra.mxu0 %v1259
      %1283 = vmatprep.subr.mxu0 0.0
      %1284 = vmatpush1.msra.mxu0 %v1260
      %1285 = vmatprep.subr.mxu0 0.0
      %1286 = vmatpush1.msra.mxu0 %v1261
      %1287 = vmatprep.subr.mxu0 0.0
      %1288 = vmatpush1.msra.mxu0 %v1262
      %1289 = vmatprep.subr.mxu0 0.0
      %1290 = vmatpush1.msra.mxu0 %v1263
      %1291 = vmatprep.subr.mxu0 0.0
      %1292 = vmatpush1.msra.mxu0 %v1264
      %1293 = vmatprep.subr.mxu0 0.0
      %1294 = vmatpush1.msra.mxu0 %v1265
      %1295 = vmatprep.subr.mxu0 0.0
      %1296 = vmatpush1.msra.mxu0 %v1266
      %1297 = vmatprep.subr.mxu0 0.0
      %1298 = vmatpush1.msra.mxu0 %v1267
      %1299 = vmatprep.subr.mxu0 0.0
      %1300 = vmatpush1.msra.mxu0 %v1268
      %1301 = vmatprep.subr.mxu0 0.0
      %1302 = vmatpush1.msra.mxu0 0.0
      %1303 = vmatprep.subr.mxu0 0.0
      %1304 = vmatpush1.msra.mxu0 0.0
      %1305 = vmatprep.subr.mxu0 0.0
      %1306 = vmatpush1.msra.mxu0 0.0
      %1307 = vmatprep.subr.mxu0 0.0
      %1308 = vmatpush1.msra.mxu0 0.0
      %1309 = vmatprep.subr.mxu0 0.0
      %1310 = vmatpush1.msra.mxu0 0.0
      %1311 = vmatprep.subr.mxu0 0.0
      %1312 = vmatpush1.msra.mxu0 0.0
      %1313 = vmatprep.subr.mxu0 0.0
      %1314 = vmatpush1.msra.mxu0 0.0
      %1315 = vmatprep.subr.mxu0 0.0
      %1316 = vmatpush1.msra.mxu0 0.0
      %1317 = vmatprep.subr.mxu0 0.0
      %1318 = vmatpush1.msra.mxu0 0.0
      %1319 = vmatprep.subr.mxu0 0.0
      %1320 = vmatpush1.msra.mxu0 0.0
      %1321 = vmatprep.subr.mxu0 0.0
      %1322 = vmatpush1.msra.mxu0 0.0
      %1323 = vmatprep.subr.mxu0 0.0
      %1324 = vmatpush1.msra.mxu0 0.0
      %1325 = vmatprep.subr.mxu0 0.0
      %1326 = vmatpush1.msra.mxu0 0.0
      %1327 = vmatprep.subr.mxu0 0.0
      %1328 = vmatpush1.msra.mxu0 0.0
      %1329 = vmatprep.subr.mxu0 0.0
      %1330 = vmatpush1.msra.mxu0 0.0
      %1331 = vmatprep.subr.mxu0 0.0
      %1332 = vmatpush1.msra.mxu0 0.0
      %1333 = vmatprep.mubr.f32.mxu0 0.0
      %1334 = vmatmul.mubr.f32.gmra.mrb[0].mxu0 %v1220
      %v1335 = vpop.f32.mrb[0].mxu0
      %v1336 = vadd.f32 0.0, %v1335
      %v1337 = vpop.f32.mrb[0].mxu0
      %1338 = vmatprep.mubr.f32.mxu0 0.0
      %1339 = vmatmul.mubr.f32.gmra.mrb[0].mxu0 %v1221
      %v1340 = vpop.f32.mrb[0].mxu0
      %v1341 = vadd.f32 0.0, %v1340
      %v1342 = vpop.f32.mrb[0].mxu0
      %1343 = vmatprep.mubr.f32.mxu0 0.0
      %1344 = vmatmul.mubr.f32.gmra.mrb[0].mxu0 %v1222
      %v1345 = vpop.f32.mrb[0].mxu0
      %v1346 = vadd.f32 0.0, %v1345
      %v1347 = vpop.f32.mrb[0].mxu0
      %1348 = vmatprep.mubr.f32.mxu0 0.0
      %1349 = vmatmul.mubr.f32.gmra.mrb[0].mxu0 %v1223
      %v1350 = vpop.f32.mrb[0].mxu0
      %v1351 = vadd.f32 0.0, %v1350
      %v1352 = vpop.f32.mrb[0].mxu0
      %1353 = vmatprep.mubr.f32.mxu0 0.0
      %1354 = vmatmul.mubr.f32.gmra.mrb[0].mxu0 %v1224
      %v1355 = vpop.f32.mrb[0].mxu0
      %v1356 = vadd.f32 0.0, %v1355
      %v1357 = vpop.f32.mrb[0].mxu0
      %1358 = vmatprep.mubr.f32.mxu0 0.0
      %1359 = vmatmul.mubr.f32.gmra.mrb[0].mxu0 %v1225
      %v1360 = vpop.f32.mrb[0].mxu0
      %v1361 = vadd.f32 0.0, %v1360
      %v1362 = vpop.f32.mrb[0].mxu0
      %1363 = vmatprep.mubr.f32.mxu0 0.0
      %1364 = vmatmul.mubr.f32.gmra.mrb[0].mxu0 %v1226
      %v1365 = vpop.f32.mrb[0].mxu0
      %v1366 = vadd.f32 0.0, %v1365
      %v1367 = vpop.f32.mrb[0].mxu0
      %1368 = vmatprep.mubr.f32.mxu0 0.0
      %1369 = vmatmul.mubr.f32.gmra.mrb[0].mxu0 %v1227
      %v1370 = vpop.f32.mrb[0].mxu0
      %v1371 = vadd.f32 0.0, %v1370
      %v1372 = vpop.f32.mrb[0].mxu0
      %1373 = vmatprep.mubr.f32.mxu0 0.0
      %1374 = vmatmul.mubr.f32.gmra.mrb[0].mxu0 %v1228
      %v1375 = vpop.f32.mrb[0].mxu0
      %v1376 = vadd.f32 0.0, %v1375
      %v1377 = vpop.f32.mrb[0].mxu0
      %1378 = vmatprep.mubr.f32.mxu0 0.0
      %1379 = vmatmul.mubr.f32.gmra.mrb[0].mxu0 %v1229
      %v1380 = vpop.f32.mrb[0].mxu0
      %v1381 = vadd.f32 0.0, %v1380
      %v1382 = vpop.f32.mrb[0].mxu0
      %1383 = vmatprep.mubr.f32.mxu0 0.0
      %1384 = vmatmul.mubr.f32.gmra.mrb[0].mxu0 %v1230
      %v1385 = vpop.f32.mrb[0].mxu0
      %v1386 = vadd.f32 0.0, %v1385
      %v1387 = vpop.f32.mrb[0].mxu0
      %1388 = vmatprep.mubr.f32.mxu0 0.0
      %1389 = vmatmul.mubr.f32.gmra.mrb[0].mxu0 %v1231
      %v1390 = vpop.f32.mrb[0].mxu0
      %v1391 = vadd.f32 0.0, %v1390
      %v1392 = vpop.f32.mrb[0].mxu0
      %1393 = vmatprep.mubr.f32.mxu0 0.0
      %1394 = vmatmul.mubr.f32.gmra.mrb[0].mxu0 %v1232
      %v1395 = vpop.f32.mrb[0].mxu0
      %v1396 = vadd.f32 0.0, %v1395
      %v1397 = vpop.f32.mrb[0].mxu0
      %1398 = vmatprep.mubr.f32.mxu0 0.0
      %1399 = vmatmul.mubr.f32.gmra.mrb[0].mxu0 %v1233
      %v1400 = vpop.f32.mrb[0].mxu0
      %v1401 = vadd.f32 0.0, %v1400
      %v1402 = vpop.f32.mrb[0].mxu0
      %1403 = vmatprep.mubr.f32.mxu0 0.0
      %1404 = vmatmul.mubr.f32.gmra.mrb[0].mxu0 %v1234
      %v1405 = vpop.f32.mrb[0].mxu0
      %v1406 = vadd.f32 0.0, %v1405
      %v1407 = vpop.f32.mrb[0].mxu0
      %1408 = vmatprep.mubr.f32.mxu0 0.0
      %1409 = vmatmul.mubr.f32.gmra.mrb[0].mxu0 %v1235
      %v1410 = vpop.f32.mrb[0].mxu0
      %v1411 = vadd.f32 0.0, %v1410
      %v1412 = vpop.f32.mrb[0].mxu0
      %1413 = vmatprep.mubr.f32.mxu0 0.0
      %1414 = vmatmul.mubr.f32.gmra.mrb[0].mxu0 %v1236
      %v1415 = vpop.f32.mrb[0].mxu0
      %v1416 = vadd.f32 0.0, %v1415
      %v1417 = vpop.f32.mrb[0].mxu0
      %1418 = vmatprep.mubr.f32.mxu0 0.0
      %1419 = vmatmul.mubr.f32.gmra.mrb[0].mxu0 %v1237
      %v1420 = vpop.f32.mrb[0].mxu0
      %v1421 = vadd.f32 0.0, %v1420
      %v1422 = vpop.f32.mrb[0].mxu0
      %1423 = vmatprep.mubr.f32.mxu0 0.0
      %1424 = vmatmul.mubr.f32.gmra.mrb[0].mxu0 %v1238
      %v1425 = vpop.f32.mrb[0].mxu0
      %v1426 = vadd.f32 0.0, %v1425
      %v1427 = vpop.f32.mrb[0].mxu0
      %1428 = vmatprep.mubr.f32.mxu0 0.0
      %1429 = vmatmul.mubr.f32.gmra.mrb[0].mxu0 %v1239
      %v1430 = vpop.f32.mrb[0].mxu0
      %v1431 = vadd.f32 0.0, %v1430
      %v1432 = vpop.f32.mrb[0].mxu0
      %1433 = vmatprep.mubr.f32.mxu0 0.0
      %1434 = vmatmul.mubr.f32.gmra.mrb[0].mxu0 %v1240
      %v1435 = vpop.f32.mrb[0].mxu0
      %v1436 = vadd.f32 0.0, %v1435
      %v1437 = vpop.f32.mrb[0].mxu0
      %1438 = vmatprep.mubr.f32.mxu0 0.0
      %1439 = vmatmul.mubr.f32.gmra.mrb[0].mxu0 %v1241
      %v1440 = vpop.f32.mrb[0].mxu0
      %v1441 = vadd.f32 0.0, %v1440
      %v1442 = vpop.f32.mrb[0].mxu0
      %1443 = vmatprep.mubr.f32.mxu0 0.0
      %1444 = vmatmul.mubr.f32.gmra.mrb[0].mxu0 %v1242
      %v1445 = vpop.f32.mrb[0].mxu0
      %v1446 = vadd.f32 0.0, %v1445
      %v1447 = vpop.f32.mrb[0].mxu0
      %1448 = vmatprep.mubr.f32.mxu0 0.0
      %1449 = vmatmul.mubr.f32.gmra.mrb[0].mxu0 %v1243
      %v1450 = vpop.f32.mrb[0].mxu0
      %v1451 = vadd.f32 0.0, %v1450
      %v1452 = vpop.f32.mrb[0].mxu0
      %1453 = vmatprep.mubr.f32.mxu0 0.0
      %1454 = vmatmul.mubr.f32.gmra.mrb[0].mxu0 %v1244
      %v1455 = vpop.f32.mrb[0].mxu0
      %v1456 = vadd.f32 0.0, %v1455
      %v1457 = vpop.f32.mrb[0].mxu0
      %1458 = vmatprep.mubr.f32.mxu0 0.0
      %1459 = vmatmul.mubr.f32.gmra.mrb[0].mxu0 %v1245
      %v1460 = vpop.f32.mrb[0].mxu0
      %v1461 = vadd.f32 0.0, %v1460
      %v1462 = vpop.f32.mrb[0].mxu0
      %1463 = vmatprep.mubr.f32.mxu0 0.0
      %1464 = vmatmul.mubr.f32.gmra.mrb[0].mxu0 %v1246
      %v1465 = vpop.f32.mrb[0].mxu0
      %v1466 = vadd.f32 0.0, %v1465
      %v1467 = vpop.f32.mrb[0].mxu0
      %1468 = vmatprep.mubr.f32.mxu0 0.0
      %1469 = vmatmul.mubr.f32.gmra.mrb[0].mxu0 %v1247
      %v1470 = vpop.f32.mrb[0].mxu0
      %v1471 = vadd.f32 0.0, %v1470
      %v1472 = vpop.f32.mrb[0].mxu0
      %1473 = vmatprep.mubr.f32.mxu0 0.0
      %1474 = vmatmul.mubr.f32.gmra.mrb[0].mxu0 %v1248
      %v1475 = vpop.f32.mrb[0].mxu0
      %v1476 = vadd.f32 0.0, %v1475
      %v1477 = vpop.f32.mrb[0].mxu0
      %1478 = vmatprep.mubr.f32.mxu0 0.0
      %1479 = vmatmul.mubr.f32.gmra.mrb[0].mxu0 %v1249
      %v1480 = vpop.f32.mrb[0].mxu0
      %v1481 = vadd.f32 0.0, %v1480
      %v1482 = vpop.f32.mrb[0].mxu0
      %1483 = vmatprep.mubr.f32.mxu0 0.0
      %1484 = vmatmul.mubr.f32.gmra.mrb[0].mxu0 %v1250
      %v1485 = vpop.f32.mrb[0].mxu0
      %v1486 = vadd.f32 0.0, %v1485
      %v1487 = vpop.f32.mrb[0].mxu0
      %1488 = vmatprep.mubr.f32.mxu0 0.0
      %1489 = vmatmul.mubr.f32.gmra.mrb[0].mxu0 %v1251
      %v1490 = vpop.f32.mrb[0].mxu0
      %v1491 = vadd.f32 0.0, %v1490
      %v1492 = vpop.f32.mrb[0].mxu0
      %1493 = vdwg.mxu0
      %v1494 = vadd.f32 %v1188, %v1336
      %v1495 = vadd.f32 %v1189, %v1341
      %v1496 = vadd.f32 %v1190, %v1346
      %v1497 = vadd.f32 %v1191, %v1351
      %v1498 = vadd.f32 %v1192, %v1356
      %v1499 = vadd.f32 %v1193, %v1361
      %v1500 = vadd.f32 %v1194, %v1366
      %v1501 = vadd.f32 %v1195, %v1371
      %v1502 = vadd.f32 %v1196, %v1376
      %v1503 = vadd.f32 %v1197, %v1381
      %v1504 = vadd.f32 %v1198, %v1386
      %v1505 = vadd.f32 %v1199, %v1391
      %v1506 = vadd.f32 %v1200, %v1396
      %v1507 = vadd.f32 %v1201, %v1401
      %v1508 = vadd.f32 %v1202, %v1406
      %v1509 = vadd.f32 %v1203, %v1411
      %v1510 = vadd.f32 %v1204, %v1416
      %v1511 = vadd.f32 %v1205, %v1421
      %v1512 = vadd.f32 %v1206, %v1426
      %v1513 = vadd.f32 %v1207, %v1431
      %v1514 = vadd.f32 %v1208, %v1436
      %v1515 = vadd.f32 %v1209, %v1441
      %v1516 = vadd.f32 %v1210, %v1446
      %v1517 = vadd.f32 %v1211, %v1451
      %v1518 = vadd.f32 %v1212, %v1456
      %v1519 = vadd.f32 %v1213, %v1461
      %v1520 = vadd.f32 %v1214, %v1466
      %v1521 = vadd.f32 %v1215, %v1471
      %v1522 = vadd.f32 %v1216, %v1476
      %v1523 = vadd.f32 %v1217, %v1481
      %v1524 = vadd.f32 %v1218, %v1486
      %v1525 = vadd.f32 %v1219, %v1491
      %v1526 = vld [vmem:[%s257 + $0x8] sm:$0xff]
      %v1527 = vld [vmem:[%s257 + $0x10] sm:$0xff]
      %v1528 = vld [vmem:[%s257 + $0x28] sm:$0xff]
      %v1529 = vld [vmem:[%s257 + $0x30] sm:$0xff]
      %v1530 = vld [vmem:[%s257 + $0x48] sm:$0xff]
      %v1531 = vld [vmem:[%s257 + $0x50] sm:$0xff]
      %v1532 = vld [vmem:[%s257 + $0x68] sm:$0xff]
      %v1533 = vld [vmem:[%s257 + $0x70] sm:$0xff]
      %v1534 = vld [vmem:[%s257 + $0x88] sm:$0xff]
      %v1535 = vld [vmem:[%s257 + $0x90] sm:$0xff]
      %v1536 = vld [vmem:[%s257 + $0xa8] sm:$0xff]
      %v1537 = vld [vmem:[%s257 + $0xb0] sm:$0xff]
      %v1538 = vld [vmem:[%s257 + $0xc8] sm:$0xff]
      %v1539 = vld [vmem:[%s257 + $0xd0] sm:$0xff]
      %v1540 = vld [vmem:[%s257 + $0xe8] sm:$0xff]
      %v1541 = vld [vmem:[%s257 + $0xf0] sm:$0xff]
      %v1542 = vld [vmem:[%s257 + $0x108] sm:$0xff]
      %v1543 = vld [vmem:[%s257 + $0x110] sm:$0xff]
      %v1544 = vld [vmem:[%s257 + $0x128] sm:$0xff]
      %v1545 = vld [vmem:[%s257 + $0x130] sm:$0xff]
      %v1546 = vld [vmem:[%s257 + $0x148] sm:$0xff]
      %v1547 = vld [vmem:[%s257 + $0x150] sm:$0xff]
      %v1548 = vld [vmem:[%s257 + $0x168] sm:$0xff]
      %v1549 = vld [vmem:[%s257 + $0x170] sm:$0xff]
      %v1550 = vld [vmem:[%s257 + $0x188] sm:$0xff]
      %v1551 = vld [vmem:[%s257 + $0x190] sm:$0xff]
      %v1552 = vld [vmem:[%s257 + $0x1a8] sm:$0xff]
      %v1553 = vld [vmem:[%s257 + $0x1b0] sm:$0xff]
      %v1554 = vld [vmem:[%s257 + $0x1c8] sm:$0xff]
      %v1555 = vld [vmem:[%s257 + $0x1d0] sm:$0xff]
      %v1556 = vld [vmem:[%s257 + $0x1e8] sm:$0xff]
      %v1557 = vld [vmem:[%s257 + $0x1f0] sm:$0xff]
      %s1558 = scalar_lea.vmem %s1, 512
      %v1559 = vld [vmem:[%s1558] sm:$0xff]
      %v1560 = vld [vmem:[%s1558 + $0x8] sm:$0xff]
      %v1561 = vld [vmem:[%s1558 + $0x10] sm:$0xff]
      %v1562 = vld [vmem:[%s1558 + $0x18] sm:$0xff]
      %v1563 = vld [vmem:[%s1558 + $0x20] sm:$0xff]
      %v1564 = vld [vmem:[%s1558 + $0x28] sm:$0xff]
      %v1565 = vld [vmem:[%s1558 + $0x30] sm:$0xff]
      %v1566 = vld [vmem:[%s1558 + $0x38] sm:$0xff]
      %v1567 = vld [vmem:[%s1558 + $0x40] sm:$0xff]
      %v1568 = vld [vmem:[%s1558 + $0x48] sm:$0xff]
      %v1569 = vld [vmem:[%s1558 + $0x50] sm:$0xff]
      %v1570 = vld [vmem:[%s1558 + $0x58] sm:$0xff]
      %v1571 = vld [vmem:[%s1558 + $0x60] sm:$0xff]
      %v1572 = vld [vmem:[%s1558 + $0x68] sm:$0xff]
      %v1573 = vld [vmem:[%s1558 + $0x70] sm:$0xff]
      %v1574 = vld [vmem:[%s1558 + $0x78] sm:$0xff]
      %1575 = vmatprep.subr.mxu0 0.0
      %1576 = vmatpush1.msra.mxu0 %v1559
      %1577 = vmatprep.subr.mxu0 0.0
      %1578 = vmatpush1.msra.mxu0 %v1560
      %1579 = vmatprep.subr.mxu0 0.0
      %1580 = vmatpush1.msra.mxu0 %v1561
      %1581 = vmatprep.subr.mxu0 0.0
      %1582 = vmatpush1.msra.mxu0 %v1562
      %1583 = vmatprep.subr.mxu0 0.0
      %1584 = vmatpush1.msra.mxu0 %v1563
      %1585 = vmatprep.subr.mxu0 0.0
      %1586 = vmatpush1.msra.mxu0 %v1564
      %1587 = vmatprep.subr.mxu0 0.0
      %1588 = vmatpush1.msra.mxu0 %v1565
      %1589 = vmatprep.subr.mxu0 0.0
      %1590 = vmatpush1.msra.mxu0 %v1566
      %1591 = vmatprep.subr.mxu0 0.0
      %1592 = vmatpush1.msra.mxu0 %v1567
      %1593 = vmatprep.subr.mxu0 0.0
      %1594 = vmatpush1.msra.mxu0 %v1568
      %1595 = vmatprep.subr.mxu0 0.0
      %1596 = vmatpush1.msra.mxu0 %v1569
      %1597 = vmatprep.subr.mxu0 0.0
      %1598 = vmatpush1.msra.mxu0 %v1570
      %1599 = vmatprep.subr.mxu0 0.0
      %1600 = vmatpush1.msra.mxu0 %v1571
      %1601 = vmatprep.subr.mxu0 0.0
      %1602 = vmatpush1.msra.mxu0 %v1572
      %1603 = vmatprep.subr.mxu0 0.0
      %1604 = vmatpush1.msra.mxu0 %v1573
      %1605 = vmatprep.subr.mxu0 0.0
      %1606 = vmatpush1.msra.mxu0 %v1574
      %1607 = vmatprep.subr.mxu0 0.0
      %1608 = vmatpush1.msra.mxu0 0.0
      %1609 = vmatprep.subr.mxu0 0.0
      %1610 = vmatpush1.msra.mxu0 0.0
      %1611 = vmatprep.subr.mxu0 0.0
      %1612 = vmatpush1.msra.mxu0 0.0
      %1613 = vmatprep.subr.mxu0 0.0
      %1614 = vmatpush1.msra.mxu0 0.0
      %1615 = vmatprep.subr.mxu0 0.0
      %1616 = vmatpush1.msra.mxu0 0.0
      %1617 = vmatprep.subr.mxu0 0.0
      %1618 = vmatpush1.msra.mxu0 0.0
      %1619 = vmatprep.subr.mxu0 0.0
      %1620 = vmatpush1.msra.mxu0 0.0
      %1621 = vmatprep.subr.mxu0 0.0
      %1622 = vmatpush1.msra.mxu0 0.0
      %1623 = vmatprep.subr.mxu0 0.0
      %1624 = vmatpush1.msra.mxu0 0.0
      %1625 = vmatprep.subr.mxu0 0.0
      %1626 = vmatpush1.msra.mxu0 0.0
      %1627 = vmatprep.subr.mxu0 0.0
      %1628 = vmatpush1.msra.mxu0 0.0
      %1629 = vmatprep.subr.mxu0 0.0
      %1630 = vmatpush1.msra.mxu0 0.0
      %1631 = vmatprep.subr.mxu0 0.0
      %1632 = vmatpush1.msra.mxu0 0.0
      %1633 = vmatprep.subr.mxu0 0.0
      %1634 = vmatpush1.msra.mxu0 0.0
      %1635 = vmatprep.subr.mxu0 0.0
      %1636 = vmatpush1.msra.mxu0 0.0
      %1637 = vmatprep.subr.mxu0 0.0
      %1638 = vmatpush1.msra.mxu0 0.0
      %1639 = vmatprep.mubr.f32.mxu0 0.0
      %1640 = vmatmul.mubr.f32.gmra.mrb[0].mxu0 %v1526
      %v1641 = vpop.f32.mrb[0].mxu0
      %v1642 = vadd.f32 0.0, %v1641
      %v1643 = vpop.f32.mrb[0].mxu0
      %1644 = vmatprep.mubr.f32.mxu0 0.0
      %1645 = vmatmul.mubr.f32.gmra.mrb[0].mxu0 %v1527
      %v1646 = vpop.f32.mrb[0].mxu0
      %v1647 = vadd.f32 0.0, %v1646
      %v1648 = vpop.f32.mrb[0].mxu0
      %1649 = vmatprep.mubr.f32.mxu0 0.0
      %1650 = vmatmul.mubr.f32.gmra.mrb[0].mxu0 %v1528
      %v1651 = vpop.f32.mrb[0].mxu0
      %v1652 = vadd.f32 0.0, %v1651
      %v1653 = vpop.f32.mrb[0].mxu0
      %1654 = vmatprep.mubr.f32.mxu0 0.0
      %1655 = vmatmul.mubr.f32.gmra.mrb[0].mxu0 %v1529
      %v1656 = vpop.f32.mrb[0].mxu0
      %v1657 = vadd.f32 0.0, %v1656
      %v1658 = vpop.f32.mrb[0].mxu0
      %1659 = vmatprep.mubr.f32.mxu0 0.0
      %1660 = vmatmul.mubr.f32.gmra.mrb[0].mxu0 %v1530
      %v1661 = vpop.f32.mrb[0].mxu0
      %v1662 = vadd.f32 0.0, %v1661
      %v1663 = vpop.f32.mrb[0].mxu0
      %1664 = vmatprep.mubr.f32.mxu0 0.0
      %1665 = vmatmul.mubr.f32.gmra.mrb[0].mxu0 %v1531
      %v1666 = vpop.f32.mrb[0].mxu0
      %v1667 = vadd.f32 0.0, %v1666
      %v1668 = vpop.f32.mrb[0].mxu0
      %1669 = vmatprep.mubr.f32.mxu0 0.0
      %1670 = vmatmul.mubr.f32.gmra.mrb[0].mxu0 %v1532
      %v1671 = vpop.f32.mrb[0].mxu0
      %v1672 = vadd.f32 0.0, %v1671
      %v1673 = vpop.f32.mrb[0].mxu0
      %1674 = vmatprep.mubr.f32.mxu0 0.0
      %1675 = vmatmul.mubr.f32.gmra.mrb[0].mxu0 %v1533
      %v1676 = vpop.f32.mrb[0].mxu0
      %v1677 = vadd.f32 0.0, %v1676
      %v1678 = vpop.f32.mrb[0].mxu0
      %1679 = vmatprep.mubr.f32.mxu0 0.0
      %1680 = vmatmul.mubr.f32.gmra.mrb[0].mxu0 %v1534
      %v1681 = vpop.f32.mrb[0].mxu0
      %v1682 = vadd.f32 0.0, %v1681
      %v1683 = vpop.f32.mrb[0].mxu0
      %1684 = vmatprep.mubr.f32.mxu0 0.0
      %1685 = vmatmul.mubr.f32.gmra.mrb[0].mxu0 %v1535
      %v1686 = vpop.f32.mrb[0].mxu0
      %v1687 = vadd.f32 0.0, %v1686
      %v1688 = vpop.f32.mrb[0].mxu0
      %1689 = vmatprep.mubr.f32.mxu0 0.0
      %1690 = vmatmul.mubr.f32.gmra.mrb[0].mxu0 %v1536
      %v1691 = vpop.f32.mrb[0].mxu0
      %v1692 = vadd.f32 0.0, %v1691
      %v1693 = vpop.f32.mrb[0].mxu0
      %1694 = vmatprep.mubr.f32.mxu0 0.0
      %1695 = vmatmul.mubr.f32.gmra.mrb[0].mxu0 %v1537
      %v1696 = vpop.f32.mrb[0].mxu0
      %v1697 = vadd.f32 0.0, %v1696
      %v1698 = vpop.f32.mrb[0].mxu0
      %1699 = vmatprep.mubr.f32.mxu0 0.0
      %1700 = vmatmul.mubr.f32.gmra.mrb[0].mxu0 %v1538
      %v1701 = vpop.f32.mrb[0].mxu0
      %v1702 = vadd.f32 0.0, %v1701
      %v1703 = vpop.f32.mrb[0].mxu0
      %1704 = vmatprep.mubr.f32.mxu0 0.0
      %1705 = vmatmul.mubr.f32.gmra.mrb[0].mxu0 %v1539
      %v1706 = vpop.f32.mrb[0].mxu0
      %v1707 = vadd.f32 0.0, %v1706
      %v1708 = vpop.f32.mrb[0].mxu0
      %1709 = vmatprep.mubr.f32.mxu0 0.0
      %1710 = vmatmul.mubr.f32.gmra.mrb[0].mxu0 %v1540
      %v1711 = vpop.f32.mrb[0].mxu0
      %v1712 = vadd.f32 0.0, %v1711
      %v1713 = vpop.f32.mrb[0].mxu0
      %1714 = vmatprep.mubr.f32.mxu0 0.0
      %1715 = vmatmul.mubr.f32.gmra.mrb[0].mxu0 %v1541
      %v1716 = vpop.f32.mrb[0].mxu0
      %v1717 = vadd.f32 0.0, %v1716
      %v1718 = vpop.f32.mrb[0].mxu0
      %1719 = vmatprep.mubr.f32.mxu0 0.0
      %1720 = vmatmul.mubr.f32.gmra.mrb[0].mxu0 %v1542
      %v1721 = vpop.f32.mrb[0].mxu0
      %v1722 = vadd.f32 0.0, %v1721
      %v1723 = vpop.f32.mrb[0].mxu0
      %1724 = vmatprep.mubr.f32.mxu0 0.0
      %1725 = vmatmul.mubr.f32.gmra.mrb[0].mxu0 %v1543
      %v1726 = vpop.f32.mrb[0].mxu0
      %v1727 = vadd.f32 0.0, %v1726
      %v1728 = vpop.f32.mrb[0].mxu0
      %1729 = vmatprep.mubr.f32.mxu0 0.0
      %1730 = vmatmul.mubr.f32.gmra.mrb[0].mxu0 %v1544
      %v1731 = vpop.f32.mrb[0].mxu0
      %v1732 = vadd.f32 0.0, %v1731
      %v1733 = vpop.f32.mrb[0].mxu0
      %1734 = vmatprep.mubr.f32.mxu0 0.0
      %1735 = vmatmul.mubr.f32.gmra.mrb[0].mxu0 %v1545
      %v1736 = vpop.f32.mrb[0].mxu0
      %v1737 = vadd.f32 0.0, %v1736
      %v1738 = vpop.f32.mrb[0].mxu0
      %1739 = vmatprep.mubr.f32.mxu0 0.0
      %1740 = vmatmul.mubr.f32.gmra.mrb[0].mxu0 %v1546
      %v1741 = vpop.f32.mrb[0].mxu0
      %v1742 = vadd.f32 0.0, %v1741
      %v1743 = vpop.f32.mrb[0].mxu0
      %1744 = vmatprep.mubr.f32.mxu0 0.0
      %1745 = vmatmul.mubr.f32.gmra.mrb[0].mxu0 %v1547
      %v1746 = vpop.f32.mrb[0].mxu0
      %v1747 = vadd.f32 0.0, %v1746
      %v1748 = vpop.f32.mrb[0].mxu0
      %1749 = vmatprep.mubr.f32.mxu0 0.0
      %1750 = vmatmul.mubr.f32.gmra.mrb[0].mxu0 %v1548
      %v1751 = vpop.f32.mrb[0].mxu0
      %v1752 = vadd.f32 0.0, %v1751
      %v1753 = vpop.f32.mrb[0].mxu0
      %1754 = vmatprep.mubr.f32.mxu0 0.0
      %1755 = vmatmul.mubr.f32.gmra.mrb[0].mxu0 %v1549
      %v1756 = vpop.f32.mrb[0].mxu0
      %v1757 = vadd.f32 0.0, %v1756
      %v1758 = vpop.f32.mrb[0].mxu0
      %1759 = vmatprep.mubr.f32.mxu0 0.0
      %1760 = vmatmul.mubr.f32.gmra.mrb[0].mxu0 %v1550
      %v1761 = vpop.f32.mrb[0].mxu0
      %v1762 = vadd.f32 0.0, %v1761
      %v1763 = vpop.f32.mrb[0].mxu0
      %1764 = vmatprep.mubr.f32.mxu0 0.0
      %1765 = vmatmul.mubr.f32.gmra.mrb[0].mxu0 %v1551
      %v1766 = vpop.f32.mrb[0].mxu0
      %v1767 = vadd.f32 0.0, %v1766
      %v1768 = vpop.f32.mrb[0].mxu0
      %1769 = vmatprep.mubr.f32.mxu0 0.0
      %1770 = vmatmul.mubr.f32.gmra.mrb[0].mxu0 %v1552
      %v1771 = vpop.f32.mrb[0].mxu0
      %v1772 = vadd.f32 0.0, %v1771
      %v1773 = vpop.f32.mrb[0].mxu0
      %1774 = vmatprep.mubr.f32.mxu0 0.0
      %1775 = vmatmul.mubr.f32.gmra.mrb[0].mxu0 %v1553
      %v1776 = vpop.f32.mrb[0].mxu0
      %v1777 = vadd.f32 0.0, %v1776
      %v1778 = vpop.f32.mrb[0].mxu0
      %1779 = vmatprep.mubr.f32.mxu0 0.0
      %1780 = vmatmul.mubr.f32.gmra.mrb[0].mxu0 %v1554
      %v1781 = vpop.f32.mrb[0].mxu0
      %v1782 = vadd.f32 0.0, %v1781
      %v1783 = vpop.f32.mrb[0].mxu0
      %1784 = vmatprep.mubr.f32.mxu0 0.0
      %1785 = vmatmul.mubr.f32.gmra.mrb[0].mxu0 %v1555
      %v1786 = vpop.f32.mrb[0].mxu0
      %v1787 = vadd.f32 0.0, %v1786
      %v1788 = vpop.f32.mrb[0].mxu0
      %1789 = vmatprep.mubr.f32.mxu0 0.0
      %1790 = vmatmul.mubr.f32.gmra.mrb[0].mxu0 %v1556
      %v1791 = vpop.f32.mrb[0].mxu0
      %v1792 = vadd.f32 0.0, %v1791
      %v1793 = vpop.f32.mrb[0].mxu0
      %1794 = vmatprep.mubr.f32.mxu0 0.0
      %1795 = vmatmul.mubr.f32.gmra.mrb[0].mxu0 %v1557
      %v1796 = vpop.f32.mrb[0].mxu0
      %v1797 = vadd.f32 0.0, %v1796
      %v1798 = vpop.f32.mrb[0].mxu0
      %1799 = vdwg.mxu0
      %v1800 = vadd.f32 %v1494, %v1642
      %v1801 = vadd.f32 %v1495, %v1647
      %v1802 = vadd.f32 %v1496, %v1652
      %v1803 = vadd.f32 %v1497, %v1657
      %v1804 = vadd.f32 %v1498, %v1662
      %v1805 = vadd.f32 %v1499, %v1667
      %v1806 = vadd.f32 %v1500, %v1672
      %v1807 = vadd.f32 %v1501, %v1677
      %v1808 = vadd.f32 %v1502, %v1682
      %v1809 = vadd.f32 %v1503, %v1687
      %v1810 = vadd.f32 %v1504, %v1692
      %v1811 = vadd.f32 %v1505, %v1697
      %v1812 = vadd.f32 %v1506, %v1702
      %v1813 = vadd.f32 %v1507, %v1707
      %v1814 = vadd.f32 %v1508, %v1712
      %v1815 = vadd.f32 %v1509, %v1717
      %v1816 = vadd.f32 %v1510, %v1722
      %v1817 = vadd.f32 %v1511, %v1727
      %v1818 = vadd.f32 %v1512, %v1732
      %v1819 = vadd.f32 %v1513, %v1737
      %v1820 = vadd.f32 %v1514, %v1742
      %v1821 = vadd.f32 %v1515, %v1747
      %v1822 = vadd.f32 %v1516, %v1752
      %v1823 = vadd.f32 %v1517, %v1757
      %v1824 = vadd.f32 %v1518, %v1762
      %v1825 = vadd.f32 %v1519, %v1767
      %v1826 = vadd.f32 %v1520, %v1772
      %v1827 = vadd.f32 %v1521, %v1777
      %v1828 = vadd.f32 %v1522, %v1782
      %v1829 = vadd.f32 %v1523, %v1787
      %v1830 = vadd.f32 %v1524, %v1792
      %v1831 = vadd.f32 %v1525, %v1797
      %v1832 = vld [vmem:[%s257 + $0x9] sm:$0xff]
      %v1833 = vld [vmem:[%s257 + $0x11] sm:$0xff]
      %v1834 = vld [vmem:[%s257 + $0x29] sm:$0xff]
      %v1835 = vld [vmem:[%s257 + $0x31] sm:$0xff]
      %v1836 = vld [vmem:[%s257 + $0x49] sm:$0xff]
      %v1837 = vld [vmem:[%s257 + $0x51] sm:$0xff]
      %v1838 = vld [vmem:[%s257 + $0x69] sm:$0xff]
      %v1839 = vld [vmem:[%s257 + $0x71] sm:$0xff]
      %v1840 = vld [vmem:[%s257 + $0x89] sm:$0xff]
      %v1841 = vld [vmem:[%s257 + $0x91] sm:$0xff]
      %v1842 = vld [vmem:[%s257 + $0xa9] sm:$0xff]
      %v1843 = vld [vmem:[%s257 + $0xb1] sm:$0xff]
      %v1844 = vld [vmem:[%s257 + $0xc9] sm:$0xff]
      %v1845 = vld [vmem:[%s257 + $0xd1] sm:$0xff]
      %v1846 = vld [vmem:[%s257 + $0xe9] sm:$0xff]
      %v1847 = vld [vmem:[%s257 + $0xf1] sm:$0xff]
      %v1848 = vld [vmem:[%s257 + $0x109] sm:$0xff]
      %v1849 = vld [vmem:[%s257 + $0x111] sm:$0xff]
      %v1850 = vld [vmem:[%s257 + $0x129] sm:$0xff]
      %v1851 = vld [vmem:[%s257 + $0x131] sm:$0xff]
      %v1852 = vld [vmem:[%s257 + $0x149] sm:$0xff]
      %v1853 = vld [vmem:[%s257 + $0x151] sm:$0xff]
      %v1854 = vld [vmem:[%s257 + $0x169] sm:$0xff]
      %v1855 = vld [vmem:[%s257 + $0x171] sm:$0xff]
      %v1856 = vld [vmem:[%s257 + $0x189] sm:$0xff]
      %v1857 = vld [vmem:[%s257 + $0x191] sm:$0xff]
      %v1858 = vld [vmem:[%s257 + $0x1a9] sm:$0xff]
      %v1859 = vld [vmem:[%s257 + $0x1b1] sm:$0xff]
      %v1860 = vld [vmem:[%s257 + $0x1c9] sm:$0xff]
      %v1861 = vld [vmem:[%s257 + $0x1d1] sm:$0xff]
      %v1862 = vld [vmem:[%s257 + $0x1e9] sm:$0xff]
      %v1863 = vld [vmem:[%s257 + $0x1f1] sm:$0xff]
      %s1864 = scalar_lea.vmem %s1, 640
      %v1865 = vld [vmem:[%s1864] sm:$0xff]
      %v1866 = vld [vmem:[%s1864 + $0x8] sm:$0xff]
      %v1867 = vld [vmem:[%s1864 + $0x10] sm:$0xff]
      %v1868 = vld [vmem:[%s1864 + $0x18] sm:$0xff]
      %v1869 = vld [vmem:[%s1864 + $0x20] sm:$0xff]
      %v1870 = vld [vmem:[%s1864 + $0x28] sm:$0xff]
      %v1871 = vld [vmem:[%s1864 + $0x30] sm:$0xff]
      %v1872 = vld [vmem:[%s1864 + $0x38] sm:$0xff]
      %v1873 = vld [vmem:[%s1864 + $0x40] sm:$0xff]
      %v1874 = vld [vmem:[%s1864 + $0x48] sm:$0xff]
      %v1875 = vld [vmem:[%s1864 + $0x50] sm:$0xff]
      %v1876 = vld [vmem:[%s1864 + $0x58] sm:$0xff]
      %v1877 = vld [vmem:[%s1864 + $0x60] sm:$0xff]
      %v1878 = vld [vmem:[%s1864 + $0x68] sm:$0xff]
      %v1879 = vld [vmem:[%s1864 + $0x70] sm:$0xff]
      %v1880 = vld [vmem:[%s1864 + $0x78] sm:$0xff]
      %1881 = vmatprep.subr.mxu0 0.0
      %1882 = vmatpush1.msra.mxu0 %v1865
      %1883 = vmatprep.subr.mxu0 0.0
      %1884 = vmatpush1.msra.mxu0 %v1866
      %1885 = vmatprep.subr.mxu0 0.0
      %1886 = vmatpush1.msra.mxu0 %v1867
      %1887 = vmatprep.subr.mxu0 0.0
      %1888 = vmatpush1.msra.mxu0 %v1868
      %1889 = vmatprep.subr.mxu0 0.0
      %1890 = vmatpush1.msra.mxu0 %v1869
      %1891 = vmatprep.subr.mxu0 0.0
      %1892 = vmatpush1.msra.mxu0 %v1870
      %1893 = vmatprep.subr.mxu0 0.0
      %1894 = vmatpush1.msra.mxu0 %v1871
      %1895 = vmatprep.subr.mxu0 0.0
      %1896 = vmatpush1.msra.mxu0 %v1872
      %1897 = vmatprep.subr.mxu0 0.0
      %1898 = vmatpush1.msra.mxu0 %v1873
      %1899 = vmatprep.subr.mxu0 0.0
      %1900 = vmatpush1.msra.mxu0 %v1874
      %1901 = vmatprep.subr.mxu0 0.0
      %1902 = vmatpush1.msra.mxu0 %v1875
      %1903 = vmatprep.subr.mxu0 0.0
      %1904 = vmatpush1.msra.mxu0 %v1876
      %1905 = vmatprep.subr.mxu0 0.0
      %1906 = vmatpush1.msra.mxu0 %v1877
      %1907 = vmatprep.subr.mxu0 0.0
      %1908 = vmatpush1.msra.mxu0 %v1878
      %1909 = vmatprep.subr.mxu0 0.0
      %1910 = vmatpush1.msra.mxu0 %v1879
      %1911 = vmatprep.subr.mxu0 0.0
      %1912 = vmatpush1.msra.mxu0 %v1880
      %1913 = vmatprep.subr.mxu0 0.0
      %1914 = vmatpush1.msra.mxu0 0.0
      %1915 = vmatprep.subr.mxu0 0.0
      %1916 = vmatpush1.msra.mxu0 0.0
      %1917 = vmatprep.subr.mxu0 0.0
      %1918 = vmatpush1.msra.mxu0 0.0
      %1919 = vmatprep.subr.mxu0 0.0
      %1920 = vmatpush1.msra.mxu0 0.0
      %1921 = vmatprep.subr.mxu0 0.0
      %1922 = vmatpush1.msra.mxu0 0.0
      %1923 = vmatprep.subr.mxu0 0.0
      %1924 = vmatpush1.msra.mxu0 0.0
      %1925 = vmatprep.subr.mxu0 0.0
      %1926 = vmatpush1.msra.mxu0 0.0
      %1927 = vmatprep.subr.mxu0 0.0
      %1928 = vmatpush1.msra.mxu0 0.0
      %1929 = vmatprep.subr.mxu0 0.0
      %1930 = vmatpush1.msra.mxu0 0.0
      %1931 = vmatprep.subr.mxu0 0.0
      %1932 = vmatpush1.msra.mxu0 0.0
      %1933 = vmatprep.subr.mxu0 0.0
      %1934 = vmatpush1.msra.mxu0 0.0
      %1935 = vmatprep.subr.mxu0 0.0
      %1936 = vmatpush1.msra.mxu0 0.0
      %1937 = vmatprep.subr.mxu0 0.0
      %1938 = vmatpush1.msra.mxu0 0.0
      %1939 = vmatprep.subr.mxu0 0.0
      %1940 = vmatpush1.msra.mxu0 0.0
      %1941 = vmatprep.subr.mxu0 0.0
      %1942 = vmatpush1.msra.mxu0 0.0
      %1943 = vmatprep.subr.mxu0 0.0
      %1944 = vmatpush1.msra.mxu0 0.0
      %1945 = vmatprep.mubr.f32.mxu0 0.0
      %1946 = vmatmul.mubr.f32.gmra.mrb[0].mxu0 %v1832
      %v1947 = vpop.f32.mrb[0].mxu0
      %v1948 = vadd.f32 0.0, %v1947
      %v1949 = vpop.f32.mrb[0].mxu0
      %1950 = vmatprep.mubr.f32.mxu0 0.0
      %1951 = vmatmul.mubr.f32.gmra.mrb[0].mxu0 %v1833
      %v1952 = vpop.f32.mrb[0].mxu0
      %v1953 = vadd.f32 0.0, %v1952
      %v1954 = vpop.f32.mrb[0].mxu0
      %1955 = vmatprep.mubr.f32.mxu0 0.0
      %1956 = vmatmul.mubr.f32.gmra.mrb[0].mxu0 %v1834
      %v1957 = vpop.f32.mrb[0].mxu0
      %v1958 = vadd.f32 0.0, %v1957
      %v1959 = vpop.f32.mrb[0].mxu0
      %1960 = vmatprep.mubr.f32.mxu0 0.0
      %1961 = vmatmul.mubr.f32.gmra.mrb[0].mxu0 %v1835
      %v1962 = vpop.f32.mrb[0].mxu0
      %v1963 = vadd.f32 0.0, %v1962
      %v1964 = vpop.f32.mrb[0].mxu0
      %1965 = vmatprep.mubr.f32.mxu0 0.0
      %1966 = vmatmul.mubr.f32.gmra.mrb[0].mxu0 %v1836
      %v1967 = vpop.f32.mrb[0].mxu0
      %v1968 = vadd.f32 0.0, %v1967
      %v1969 = vpop.f32.mrb[0].mxu0
      %1970 = vmatprep.mubr.f32.mxu0 0.0
      %1971 = vmatmul.mubr.f32.gmra.mrb[0].mxu0 %v1837
      %v1972 = vpop.f32.mrb[0].mxu0
      %v1973 = vadd.f32 0.0, %v1972
      %v1974 = vpop.f32.mrb[0].mxu0
      %1975 = vmatprep.mubr.f32.mxu0 0.0
      %1976 = vmatmul.mubr.f32.gmra.mrb[0].mxu0 %v1838
      %v1977 = vpop.f32.mrb[0].mxu0
      %v1978 = vadd.f32 0.0, %v1977
      %v1979 = vpop.f32.mrb[0].mxu0
      %1980 = vmatprep.mubr.f32.mxu0 0.0
      %1981 = vmatmul.mubr.f32.gmra.mrb[0].mxu0 %v1839
      %v1982 = vpop.f32.mrb[0].mxu0
      %v1983 = vadd.f32 0.0, %v1982
      %v1984 = vpop.f32.mrb[0].mxu0
      %1985 = vmatprep.mubr.f32.mxu0 0.0
      %1986 = vmatmul.mubr.f32.gmra.mrb[0].mxu0 %v1840
      %v1987 = vpop.f32.mrb[0].mxu0
      %v1988 = vadd.f32 0.0, %v1987
      %v1989 = vpop.f32.mrb[0].mxu0
      %1990 = vmatprep.mubr.f32.mxu0 0.0
      %1991 = vmatmul.mubr.f32.gmra.mrb[0].mxu0 %v1841
      %v1992 = vpop.f32.mrb[0].mxu0
      %v1993 = vadd.f32 0.0, %v1992
      %v1994 = vpop.f32.mrb[0].mxu0
      %1995 = vmatprep.mubr.f32.mxu0 0.0
      %1996 = vmatmul.mubr.f32.gmra.mrb[0].mxu0 %v1842
      %v1997 = vpop.f32.mrb[0].mxu0
      %v1998 = vadd.f32 0.0, %v1997
      %v1999 = vpop.f32.mrb[0].mxu0
      %2000 = vmatprep.mubr.f32.mxu0 0.0
      %2001 = vmatmul.mubr.f32.gmra.mrb[0].mxu0 %v1843
      %v2002 = vpop.f32.mrb[0].mxu0
      %v2003 = vadd.f32 0.0, %v2002
      %v2004 = vpop.f32.mrb[0].mxu0
      %2005 = vmatprep.mubr.f32.mxu0 0.0
      %2006 = vmatmul.mubr.f32.gmra.mrb[0].mxu0 %v1844
      %v2007 = vpop.f32.mrb[0].mxu0
      %v2008 = vadd.f32 0.0, %v2007
      %v2009 = vpop.f32.mrb[0].mxu0
      %2010 = vmatprep.mubr.f32.mxu0 0.0
      %2011 = vmatmul.mubr.f32.gmra.mrb[0].mxu0 %v1845
      %v2012 = vpop.f32.mrb[0].mxu0
      %v2013 = vadd.f32 0.0, %v2012
      %v2014 = vpop.f32.mrb[0].mxu0
      %2015 = vmatprep.mubr.f32.mxu0 0.0
      %2016 = vmatmul.mubr.f32.gmra.mrb[0].mxu0 %v1846
      %v2017 = vpop.f32.mrb[0].mxu0
      %v2018 = vadd.f32 0.0, %v2017
      %v2019 = vpop.f32.mrb[0].mxu0
      %2020 = vmatprep.mubr.f32.mxu0 0.0
      %2021 = vmatmul.mubr.f32.gmra.mrb[0].mxu0 %v1847
      %v2022 = vpop.f32.mrb[0].mxu0
      %v2023 = vadd.f32 0.0, %v2022
      %v2024 = vpop.f32.mrb[0].mxu0
      %2025 = vmatprep.mubr.f32.mxu0 0.0
      %2026 = vmatmul.mubr.f32.gmra.mrb[0].mxu0 %v1848
      %v2027 = vpop.f32.mrb[0].mxu0
      %v2028 = vadd.f32 0.0, %v2027
      %v2029 = vpop.f32.mrb[0].mxu0
      %2030 = vmatprep.mubr.f32.mxu0 0.0
      %2031 = vmatmul.mubr.f32.gmra.mrb[0].mxu0 %v1849
      %v2032 = vpop.f32.mrb[0].mxu0
      %v2033 = vadd.f32 0.0, %v2032
      %v2034 = vpop.f32.mrb[0].mxu0
      %2035 = vmatprep.mubr.f32.mxu0 0.0
      %2036 = vmatmul.mubr.f32.gmra.mrb[0].mxu0 %v1850
      %v2037 = vpop.f32.mrb[0].mxu0
      %v2038 = vadd.f32 0.0, %v2037
      %v2039 = vpop.f32.mrb[0].mxu0
      %2040 = vmatprep.mubr.f32.mxu0 0.0
      %2041 = vmatmul.mubr.f32.gmra.mrb[0].mxu0 %v1851
      %v2042 = vpop.f32.mrb[0].mxu0
      %v2043 = vadd.f32 0.0, %v2042
      %v2044 = vpop.f32.mrb[0].mxu0
      %2045 = vmatprep.mubr.f32.mxu0 0.0
      %2046 = vmatmul.mubr.f32.gmra.mrb[0].mxu0 %v1852
      %v2047 = vpop.f32.mrb[0].mxu0
      %v2048 = vadd.f32 0.0, %v2047
      %v2049 = vpop.f32.mrb[0].mxu0
      %2050 = vmatprep.mubr.f32.mxu0 0.0
      %2051 = vmatmul.mubr.f32.gmra.mrb[0].mxu0 %v1853
      %v2052 = vpop.f32.mrb[0].mxu0
      %v2053 = vadd.f32 0.0, %v2052
      %v2054 = vpop.f32.mrb[0].mxu0
      %2055 = vmatprep.mubr.f32.mxu0 0.0
      %2056 = vmatmul.mubr.f32.gmra.mrb[0].mxu0 %v1854
      %v2057 = vpop.f32.mrb[0].mxu0
      %v2058 = vadd.f32 0.0, %v2057
      %v2059 = vpop.f32.mrb[0].mxu0
      %2060 = vmatprep.mubr.f32.mxu0 0.0
      %2061 = vmatmul.mubr.f32.gmra.mrb[0].mxu0 %v1855
      %v2062 = vpop.f32.mrb[0].mxu0
      %v2063 = vadd.f32 0.0, %v2062
      %v2064 = vpop.f32.mrb[0].mxu0
      %2065 = vmatprep.mubr.f32.mxu0 0.0
      %2066 = vmatmul.mubr.f32.gmra.mrb[0].mxu0 %v1856
      %v2067 = vpop.f32.mrb[0].mxu0
      %v2068 = vadd.f32 0.0, %v2067
      %v2069 = vpop.f32.mrb[0].mxu0
      %2070 = vmatprep.mubr.f32.mxu0 0.0
      %2071 = vmatmul.mubr.f32.gmra.mrb[0].mxu0 %v1857
      %v2072 = vpop.f32.mrb[0].mxu0
      %v2073 = vadd.f32 0.0, %v2072
      %v2074 = vpop.f32.mrb[0].mxu0
      %2075 = vmatprep.mubr.f32.mxu0 0.0
      %2076 = vmatmul.mubr.f32.gmra.mrb[0].mxu0 %v1858
      %v2077 = vpop.f32.mrb[0].mxu0
      %v2078 = vadd.f32 0.0, %v2077
      %v2079 = vpop.f32.mrb[0].mxu0
      %2080 = vmatprep.mubr.f32.mxu0 0.0
      %2081 = vmatmul.mubr.f32.gmra.mrb[0].mxu0 %v1859
      %v2082 = vpop.f32.mrb[0].mxu0
      %v2083 = vadd.f32 0.0, %v2082
      %v2084 = vpop.f32.mrb[0].mxu0
      %2085 = vmatprep.mubr.f32.mxu0 0.0
      %2086 = vmatmul.mubr.f32.gmra.mrb[0].mxu0 %v1860
      %v2087 = vpop.f32.mrb[0].mxu0
      %v2088 = vadd.f32 0.0, %v2087
      %v2089 = vpop.f32.mrb[0].mxu0
      %2090 = vmatprep.mubr.f32.mxu0 0.0
      %2091 = vmatmul.mubr.f32.gmra.mrb[0].mxu0 %v1861
      %v2092 = vpop.f32.mrb[0].mxu0
      %v2093 = vadd.f32 0.0, %v2092
      %v2094 = vpop.f32.mrb[0].mxu0
      %2095 = vmatprep.mubr.f32.mxu0 0.0
      %2096 = vmatmul.mubr.f32.gmra.mrb[0].mxu0 %v1862
      %v2097 = vpop.f32.mrb[0].mxu0
      %v2098 = vadd.f32 0.0, %v2097
      %v2099 = vpop.f32.mrb[0].mxu0
      %2100 = vmatprep.mubr.f32.mxu0 0.0
      %2101 = vmatmul.mubr.f32.gmra.mrb[0].mxu0 %v1863
      %v2102 = vpop.f32.mrb[0].mxu0
      %v2103 = vadd.f32 0.0, %v2102
      %v2104 = vpop.f32.mrb[0].mxu0
      %2105 = vdwg.mxu0
      %v2106 = vadd.f32 %v1800, %v1948
      %v2107 = vadd.f32 %v1801, %v1953
      %v2108 = vadd.f32 %v1802, %v1958
      %v2109 = vadd.f32 %v1803, %v1963
      %v2110 = vadd.f32 %v1804, %v1968
      %v2111 = vadd.f32 %v1805, %v1973
      %v2112 = vadd.f32 %v1806, %v1978
      %v2113 = vadd.f32 %v1807, %v1983
      %v2114 = vadd.f32 %v1808, %v1988
      %v2115 = vadd.f32 %v1809, %v1993
      %v2116 = vadd.f32 %v1810, %v1998
      %v2117 = vadd.f32 %v1811, %v2003
      %v2118 = vadd.f32 %v1812, %v2008
      %v2119 = vadd.f32 %v1813, %v2013
      %v2120 = vadd.f32 %v1814, %v2018
      %v2121 = vadd.f32 %v1815, %v2023
      %v2122 = vadd.f32 %v1816, %v2028
      %v2123 = vadd.f32 %v1817, %v2033
      %v2124 = vadd.f32 %v1818, %v2038
      %v2125 = vadd.f32 %v1819, %v2043
      %v2126 = vadd.f32 %v1820, %v2048
      %v2127 = vadd.f32 %v1821, %v2053
      %v2128 = vadd.f32 %v1822, %v2058
      %v2129 = vadd.f32 %v1823, %v2063
      %v2130 = vadd.f32 %v1824, %v2068
      %v2131 = vadd.f32 %v1825, %v2073
      %v2132 = vadd.f32 %v1826, %v2078
      %v2133 = vadd.f32 %v1827, %v2083
      %v2134 = vadd.f32 %v1828, %v2088
      %v2135 = vadd.f32 %v1829, %v2093
      %v2136 = vadd.f32 %v1830, %v2098
      %v2137 = vadd.f32 %v1831, %v2103
      %s2138 = scalar_lea.vmem [#allocation2], 64
      %v2139 = vld [vmem:[%s2138 + $0x7] sm:$0xff]
      %v2140 = vld [vmem:[%s2138 + $0xf] sm:$0xff]
      %v2141 = vld [vmem:[%s2138 + $0x27] sm:$0xff]
      %v2142 = vld [vmem:[%s2138 + $0x2f] sm:$0xff]
      %v2143 = vld [vmem:[%s2138 + $0x47] sm:$0xff]
      %v2144 = vld [vmem:[%s2138 + $0x4f] sm:$0xff]
      %v2145 = vld [vmem:[%s2138 + $0x67] sm:$0xff]
      %v2146 = vld [vmem:[%s2138 + $0x6f] sm:$0xff]
      %v2147 = vld [vmem:[%s2138 + $0x87] sm:$0xff]
      %v2148 = vld [vmem:[%s2138 + $0x8f] sm:$0xff]
      %v2149 = vld [vmem:[%s2138 + $0xa7] sm:$0xff]
      %v2150 = vld [vmem:[%s2138 + $0xaf] sm:$0xff]
      %v2151 = vld [vmem:[%s2138 + $0xc7] sm:$0xff]
      %v2152 = vld [vmem:[%s2138 + $0xcf] sm:$0xff]
      %v2153 = vld [vmem:[%s2138 + $0xe7] sm:$0xff]
      %v2154 = vld [vmem:[%s2138 + $0xef] sm:$0xff]
      %v2155 = vld [vmem:[%s2138 + $0x107] sm:$0xff]
      %v2156 = vld [vmem:[%s2138 + $0x10f] sm:$0xff]
      %v2157 = vld [vmem:[%s2138 + $0x127] sm:$0xff]
      %v2158 = vld [vmem:[%s2138 + $0x12f] sm:$0xff]
      %v2159 = vld [vmem:[%s2138 + $0x147] sm:$0xff]
      %v2160 = vld [vmem:[%s2138 + $0x14f] sm:$0xff]
      %v2161 = vld [vmem:[%s2138 + $0x167] sm:$0xff]
      %v2162 = vld [vmem:[%s2138 + $0x16f] sm:$0xff]
      %v2163 = vld [vmem:[%s2138 + $0x187] sm:$0xff]
      %v2164 = vld [vmem:[%s2138 + $0x18f] sm:$0xff]
      %v2165 = vld [vmem:[%s2138 + $0x1a7] sm:$0xff]
      %v2166 = vld [vmem:[%s2138 + $0x1af] sm:$0xff]
      %v2167 = vld [vmem:[%s2138 + $0x1c7] sm:$0xff]
      %v2168 = vld [vmem:[%s2138 + $0x1cf] sm:$0xff]
      %v2169 = vld [vmem:[%s2138 + $0x1e7] sm:$0xff]
      %v2170 = vld [vmem:[%s2138 + $0x1ef] sm:$0xff]
      %s2171 = scalar_lea.vmem %s1, 768
      %v2172 = vld [vmem:[%s2171] sm:$0xff]
      %v2173 = vld [vmem:[%s2171 + $0x8] sm:$0xff]
      %v2174 = vld [vmem:[%s2171 + $0x10] sm:$0xff]
      %v2175 = vld [vmem:[%s2171 + $0x18] sm:$0xff]
      %v2176 = vld [vmem:[%s2171 + $0x20] sm:$0xff]
      %v2177 = vld [vmem:[%s2171 + $0x28] sm:$0xff]
      %v2178 = vld [vmem:[%s2171 + $0x30] sm:$0xff]
      %v2179 = vld [vmem:[%s2171 + $0x38] sm:$0xff]
      %v2180 = vld [vmem:[%s2171 + $0x40] sm:$0xff]
      %v2181 = vld [vmem:[%s2171 + $0x48] sm:$0xff]
      %v2182 = vld [vmem:[%s2171 + $0x50] sm:$0xff]
      %v2183 = vld [vmem:[%s2171 + $0x58] sm:$0xff]
      %v2184 = vld [vmem:[%s2171 + $0x60] sm:$0xff]
      %v2185 = vld [vmem:[%s2171 + $0x68] sm:$0xff]
      %v2186 = vld [vmem:[%s2171 + $0x70] sm:$0xff]
      %v2187 = vld [vmem:[%s2171 + $0x78] sm:$0xff]
      %2188 = vmatprep.subr.mxu0 0.0
      %2189 = vmatpush1.msra.mxu0 %v2172
      %2190 = vmatprep.subr.mxu0 0.0
      %2191 = vmatpush1.msra.mxu0 %v2173
      %2192 = vmatprep.subr.mxu0 0.0
      %2193 = vmatpush1.msra.mxu0 %v2174
      %2194 = vmatprep.subr.mxu0 0.0
      %2195 = vmatpush1.msra.mxu0 %v2175
      %2196 = vmatprep.subr.mxu0 0.0
      %2197 = vmatpush1.msra.mxu0 %v2176
      %2198 = vmatprep.subr.mxu0 0.0
      %2199 = vmatpush1.msra.mxu0 %v2177
      %2200 = vmatprep.subr.mxu0 0.0
      %2201 = vmatpush1.msra.mxu0 %v2178
      %2202 = vmatprep.subr.mxu0 0.0
      %2203 = vmatpush1.msra.mxu0 %v2179
      %2204 = vmatprep.subr.mxu0 0.0
      %2205 = vmatpush1.msra.mxu0 %v2180
      %2206 = vmatprep.subr.mxu0 0.0
      %2207 = vmatpush1.msra.mxu0 %v2181
      %2208 = vmatprep.subr.mxu0 0.0
      %2209 = vmatpush1.msra.mxu0 %v2182
      %2210 = vmatprep.subr.mxu0 0.0
      %2211 = vmatpush1.msra.mxu0 %v2183
      %2212 = vmatprep.subr.mxu0 0.0
      %2213 = vmatpush1.msra.mxu0 %v2184
      %2214 = vmatprep.subr.mxu0 0.0
      %2215 = vmatpush1.msra.mxu0 %v2185
      %2216 = vmatprep.subr.mxu0 0.0
      %2217 = vmatpush1.msra.mxu0 %v2186
      %2218 = vmatprep.subr.mxu0 0.0
      %2219 = vmatpush1.msra.mxu0 %v2187
      %2220 = vmatprep.subr.mxu0 0.0
      %2221 = vmatpush1.msra.mxu0 0.0
      %2222 = vmatprep.subr.mxu0 0.0
      %2223 = vmatpush1.msra.mxu0 0.0
      %2224 = vmatprep.subr.mxu0 0.0
      %2225 = vmatpush1.msra.mxu0 0.0
      %2226 = vmatprep.subr.mxu0 0.0
      %2227 = vmatpush1.msra.mxu0 0.0
      %2228 = vmatprep.subr.mxu0 0.0
      %2229 = vmatpush1.msra.mxu0 0.0
      %2230 = vmatprep.subr.mxu0 0.0
      %2231 = vmatpush1.msra.mxu0 0.0
      %2232 = vmatprep.subr.mxu0 0.0
      %2233 = vmatpush1.msra.mxu0 0.0
      %2234 = vmatprep.subr.mxu0 0.0
      %2235 = vmatpush1.msra.mxu0 0.0
      %2236 = vmatprep.subr.mxu0 0.0
      %2237 = vmatpush1.msra.mxu0 0.0
      %2238 = vmatprep.subr.mxu0 0.0
      %2239 = vmatpush1.msra.mxu0 0.0
      %2240 = vmatprep.subr.mxu0 0.0
      %2241 = vmatpush1.msra.mxu0 0.0
      %2242 = vmatprep.subr.mxu0 0.0
      %2243 = vmatpush1.msra.mxu0 0.0
      %2244 = vmatprep.subr.mxu0 0.0
      %2245 = vmatpush1.msra.mxu0 0.0
      %2246 = vmatprep.subr.mxu0 0.0
      %2247 = vmatpush1.msra.mxu0 0.0
      %2248 = vmatprep.subr.mxu0 0.0
      %2249 = vmatpush1.msra.mxu0 0.0
      %2250 = vmatprep.subr.mxu0 0.0
      %2251 = vmatpush1.msra.mxu0 0.0
      %2252 = vmatprep.mubr.f32.mxu0 0.0
      %2253 = vmatmul.mubr.f32.gmra.mrb[0].mxu0 %v2139
      %v2254 = vpop.f32.mrb[0].mxu0
      %v2255 = vadd.f32 0.0, %v2254
      %v2256 = vpop.f32.mrb[0].mxu0
      %2257 = vmatprep.mubr.f32.mxu0 0.0
      %2258 = vmatmul.mubr.f32.gmra.mrb[0].mxu0 %v2140
      %v2259 = vpop.f32.mrb[0].mxu0
      %v2260 = vadd.f32 0.0, %v2259
      %v2261 = vpop.f32.mrb[0].mxu0
      %2262 = vmatprep.mubr.f32.mxu0 0.0
      %2263 = vmatmul.mubr.f32.gmra.mrb[0].mxu0 %v2141
      %v2264 = vpop.f32.mrb[0].mxu0
      %v2265 = vadd.f32 0.0, %v2264
      %v2266 = vpop.f32.mrb[0].mxu0
      %2267 = vmatprep.mubr.f32.mxu0 0.0
      %2268 = vmatmul.mubr.f32.gmra.mrb[0].mxu0 %v2142
      %v2269 = vpop.f32.mrb[0].mxu0
      %v2270 = vadd.f32 0.0, %v2269
      %v2271 = vpop.f32.mrb[0].mxu0
      %2272 = vmatprep.mubr.f32.mxu0 0.0
      %2273 = vmatmul.mubr.f32.gmra.mrb[0].mxu0 %v2143
      %v2274 = vpop.f32.mrb[0].mxu0
      %v2275 = vadd.f32 0.0, %v2274
      %v2276 = vpop.f32.mrb[0].mxu0
      %2277 = vmatprep.mubr.f32.mxu0 0.0
      %2278 = vmatmul.mubr.f32.gmra.mrb[0].mxu0 %v2144
      %v2279 = vpop.f32.mrb[0].mxu0
      %v2280 = vadd.f32 0.0, %v2279
      %v2281 = vpop.f32.mrb[0].mxu0
      %2282 = vmatprep.mubr.f32.mxu0 0.0
      %2283 = vmatmul.mubr.f32.gmra.mrb[0].mxu0 %v2145
      %v2284 = vpop.f32.mrb[0].mxu0
      %v2285 = vadd.f32 0.0, %v2284
      %v2286 = vpop.f32.mrb[0].mxu0
      %2287 = vmatprep.mubr.f32.mxu0 0.0
      %2288 = vmatmul.mubr.f32.gmra.mrb[0].mxu0 %v2146
      %v2289 = vpop.f32.mrb[0].mxu0
      %v2290 = vadd.f32 0.0, %v2289
      %v2291 = vpop.f32.mrb[0].mxu0
      %2292 = vmatprep.mubr.f32.mxu0 0.0
      %2293 = vmatmul.mubr.f32.gmra.mrb[0].mxu0 %v2147
      %v2294 = vpop.f32.mrb[0].mxu0
      %v2295 = vadd.f32 0.0, %v2294
      %v2296 = vpop.f32.mrb[0].mxu0
      %2297 = vmatprep.mubr.f32.mxu0 0.0
      %2298 = vmatmul.mubr.f32.gmra.mrb[0].mxu0 %v2148
      %v2299 = vpop.f32.mrb[0].mxu0
      %v2300 = vadd.f32 0.0, %v2299
      %v2301 = vpop.f32.mrb[0].mxu0
      %2302 = vmatprep.mubr.f32.mxu0 0.0
      %2303 = vmatmul.mubr.f32.gmra.mrb[0].mxu0 %v2149
      %v2304 = vpop.f32.mrb[0].mxu0
      %v2305 = vadd.f32 0.0, %v2304
      %v2306 = vpop.f32.mrb[0].mxu0
      %2307 = vmatprep.mubr.f32.mxu0 0.0
      %2308 = vmatmul.mubr.f32.gmra.mrb[0].mxu0 %v2150
      %v2309 = vpop.f32.mrb[0].mxu0
      %v2310 = vadd.f32 0.0, %v2309
      %v2311 = vpop.f32.mrb[0].mxu0
      %2312 = vmatprep.mubr.f32.mxu0 0.0
      %2313 = vmatmul.mubr.f32.gmra.mrb[0].mxu0 %v2151
      %v2314 = vpop.f32.mrb[0].mxu0
      %v2315 = vadd.f32 0.0, %v2314
      %v2316 = vpop.f32.mrb[0].mxu0
      %2317 = vmatprep.mubr.f32.mxu0 0.0
      %2318 = vmatmul.mubr.f32.gmra.mrb[0].mxu0 %v2152
      %v2319 = vpop.f32.mrb[0].mxu0
      %v2320 = vadd.f32 0.0, %v2319
      %v2321 = vpop.f32.mrb[0].mxu0
      %2322 = vmatprep.mubr.f32.mxu0 0.0
      %2323 = vmatmul.mubr.f32.gmra.mrb[0].mxu0 %v2153
      %v2324 = vpop.f32.mrb[0].mxu0
      %v2325 = vadd.f32 0.0, %v2324
      %v2326 = vpop.f32.mrb[0].mxu0
      %2327 = vmatprep.mubr.f32.mxu0 0.0
      %2328 = vmatmul.mubr.f32.gmra.mrb[0].mxu0 %v2154
      %v2329 = vpop.f32.mrb[0].mxu0
      %v2330 = vadd.f32 0.0, %v2329
      %v2331 = vpop.f32.mrb[0].mxu0
      %2332 = vmatprep.mubr.f32.mxu0 0.0
      %2333 = vmatmul.mubr.f32.gmra.mrb[0].mxu0 %v2155
      %v2334 = vpop.f32.mrb[0].mxu0
      %v2335 = vadd.f32 0.0, %v2334
      %v2336 = vpop.f32.mrb[0].mxu0
      %2337 = vmatprep.mubr.f32.mxu0 0.0
      %2338 = vmatmul.mubr.f32.gmra.mrb[0].mxu0 %v2156
      %v2339 = vpop.f32.mrb[0].mxu0
      %v2340 = vadd.f32 0.0, %v2339
      %v2341 = vpop.f32.mrb[0].mxu0
      %2342 = vmatprep.mubr.f32.mxu0 0.0
      %2343 = vmatmul.mubr.f32.gmra.mrb[0].mxu0 %v2157
      %v2344 = vpop.f32.mrb[0].mxu0
      %v2345 = vadd.f32 0.0, %v2344
      %v2346 = vpop.f32.mrb[0].mxu0
      %2347 = vmatprep.mubr.f32.mxu0 0.0
      %2348 = vmatmul.mubr.f32.gmra.mrb[0].mxu0 %v2158
      %v2349 = vpop.f32.mrb[0].mxu0
      %v2350 = vadd.f32 0.0, %v2349
      %v2351 = vpop.f32.mrb[0].mxu0
      %2352 = vmatprep.mubr.f32.mxu0 0.0
      %2353 = vmatmul.mubr.f32.gmra.mrb[0].mxu0 %v2159
      %v2354 = vpop.f32.mrb[0].mxu0
      %v2355 = vadd.f32 0.0, %v2354
      %v2356 = vpop.f32.mrb[0].mxu0
      %2357 = vmatprep.mubr.f32.mxu0 0.0
      %2358 = vmatmul.mubr.f32.gmra.mrb[0].mxu0 %v2160
      %v2359 = vpop.f32.mrb[0].mxu0
      %v2360 = vadd.f32 0.0, %v2359
      %v2361 = vpop.f32.mrb[0].mxu0
      %2362 = vmatprep.mubr.f32.mxu0 0.0
      %2363 = vmatmul.mubr.f32.gmra.mrb[0].mxu0 %v2161
      %v2364 = vpop.f32.mrb[0].mxu0
      %v2365 = vadd.f32 0.0, %v2364
      %v2366 = vpop.f32.mrb[0].mxu0
      %2367 = vmatprep.mubr.f32.mxu0 0.0
      %2368 = vmatmul.mubr.f32.gmra.mrb[0].mxu0 %v2162
      %v2369 = vpop.f32.mrb[0].mxu0
      %v2370 = vadd.f32 0.0, %v2369
      %v2371 = vpop.f32.mrb[0].mxu0
      %2372 = vmatprep.mubr.f32.mxu0 0.0
      %2373 = vmatmul.mubr.f32.gmra.mrb[0].mxu0 %v2163
      %v2374 = vpop.f32.mrb[0].mxu0
      %v2375 = vadd.f32 0.0, %v2374
      %v2376 = vpop.f32.mrb[0].mxu0
      %2377 = vmatprep.mubr.f32.mxu0 0.0
      %2378 = vmatmul.mubr.f32.gmra.mrb[0].mxu0 %v2164
      %v2379 = vpop.f32.mrb[0].mxu0
      %v2380 = vadd.f32 0.0, %v2379
      %v2381 = vpop.f32.mrb[0].mxu0
      %2382 = vmatprep.mubr.f32.mxu0 0.0
      %2383 = vmatmul.mubr.f32.gmra.mrb[0].mxu0 %v2165
      %v2384 = vpop.f32.mrb[0].mxu0
      %v2385 = vadd.f32 0.0, %v2384
      %v2386 = vpop.f32.mrb[0].mxu0
      %2387 = vmatprep.mubr.f32.mxu0 0.0
      %2388 = vmatmul.mubr.f32.gmra.mrb[0].mxu0 %v2166
      %v2389 = vpop.f32.mrb[0].mxu0
      %v2390 = vadd.f32 0.0, %v2389
      %v2391 = vpop.f32.mrb[0].mxu0
      %2392 = vmatprep.mubr.f32.mxu0 0.0
      %2393 = vmatmul.mubr.f32.gmra.mrb[0].mxu0 %v2167
      %v2394 = vpop.f32.mrb[0].mxu0
      %v2395 = vadd.f32 0.0, %v2394
      %v2396 = vpop.f32.mrb[0].mxu0
      %2397 = vmatprep.mubr.f32.mxu0 0.0
      %2398 = vmatmul.mubr.f32.gmra.mrb[0].mxu0 %v2168
      %v2399 = vpop.f32.mrb[0].mxu0
      %v2400 = vadd.f32 0.0, %v2399
      %v2401 = vpop.f32.mrb[0].mxu0
      %2402 = vmatprep.mubr.f32.mxu0 0.0
      %2403 = vmatmul.mubr.f32.gmra.mrb[0].mxu0 %v2169
      %v2404 = vpop.f32.mrb[0].mxu0
      %v2405 = vadd.f32 0.0, %v2404
      %v2406 = vpop.f32.mrb[0].mxu0
      %2407 = vmatprep.mubr.f32.mxu0 0.0
      %2408 = vmatmul.mubr.f32.gmra.mrb[0].mxu0 %v2170
      %v2409 = vpop.f32.mrb[0].mxu0
      %v2410 = vadd.f32 0.0, %v2409
      %v2411 = vpop.f32.mrb[0].mxu0
      %2412 = vdwg.mxu0
      %v2413 = vadd.f32 %v2106, %v2255
      %v2414 = vadd.f32 %v2107, %v2260
      %v2415 = vadd.f32 %v2108, %v2265
      %v2416 = vadd.f32 %v2109, %v2270
      %v2417 = vadd.f32 %v2110, %v2275
      %v2418 = vadd.f32 %v2111, %v2280
      %v2419 = vadd.f32 %v2112, %v2285
      %v2420 = vadd.f32 %v2113, %v2290
      %v2421 = vadd.f32 %v2114, %v2295
      %v2422 = vadd.f32 %v2115, %v2300
      %v2423 = vadd.f32 %v2116, %v2305
      %v2424 = vadd.f32 %v2117, %v2310
      %v2425 = vadd.f32 %v2118, %v2315
      %v2426 = vadd.f32 %v2119, %v2320
      %v2427 = vadd.f32 %v2120, %v2325
      %v2428 = vadd.f32 %v2121, %v2330
      %v2429 = vadd.f32 %v2122, %v2335
      %v2430 = vadd.f32 %v2123, %v2340
      %v2431 = vadd.f32 %v2124, %v2345
      %v2432 = vadd.f32 %v2125, %v2350
      %v2433 = vadd.f32 %v2126, %v2355
      %v2434 = vadd.f32 %v2127, %v2360
      %v2435 = vadd.f32 %v2128, %v2365
      %v2436 = vadd.f32 %v2129, %v2370
      %v2437 = vadd.f32 %v2130, %v2375
      %v2438 = vadd.f32 %v2131, %v2380
      %v2439 = vadd.f32 %v2132, %v2385
      %v2440 = vadd.f32 %v2133, %v2390
      %v2441 = vadd.f32 %v2134, %v2395
      %v2442 = vadd.f32 %v2135, %v2400
      %v2443 = vadd.f32 %v2136, %v2405
      %v2444 = vadd.f32 %v2137, %v2410
      %v2445 = vld [vmem:[%s2138 + $0x8] sm:$0xff]
      %v2446 = vld [vmem:[%s2138 + $0x10] sm:$0xff]
      %v2447 = vld [vmem:[%s2138 + $0x28] sm:$0xff]
      %v2448 = vld [vmem:[%s2138 + $0x30] sm:$0xff]
      %v2449 = vld [vmem:[%s2138 + $0x48] sm:$0xff]
      %v2450 = vld [vmem:[%s2138 + $0x50] sm:$0xff]
      %v2451 = vld [vmem:[%s2138 + $0x68] sm:$0xff]
      %v2452 = vld [vmem:[%s2138 + $0x70] sm:$0xff]
      %v2453 = vld [vmem:[%s2138 + $0x88] sm:$0xff]
      %v2454 = vld [vmem:[%s2138 + $0x90] sm:$0xff]
      %v2455 = vld [vmem:[%s2138 + $0xa8] sm:$0xff]
      %v2456 = vld [vmem:[%s2138 + $0xb0] sm:$0xff]
      %v2457 = vld [vmem:[%s2138 + $0xc8] sm:$0xff]
      %v2458 = vld [vmem:[%s2138 + $0xd0] sm:$0xff]
      %v2459 = vld [vmem:[%s2138 + $0xe8] sm:$0xff]
      %v2460 = vld [vmem:[%s2138 + $0xf0] sm:$0xff]
      %v2461 = vld [vmem:[%s2138 + $0x108] sm:$0xff]
      %v2462 = vld [vmem:[%s2138 + $0x110] sm:$0xff]
      %v2463 = vld [vmem:[%s2138 + $0x128] sm:$0xff]
      %v2464 = vld [vmem:[%s2138 + $0x130] sm:$0xff]
      %v2465 = vld [vmem:[%s2138 + $0x148] sm:$0xff]
      %v2466 = vld [vmem:[%s2138 + $0x150] sm:$0xff]
      %v2467 = vld [vmem:[%s2138 + $0x168] sm:$0xff]
      %v2468 = vld [vmem:[%s2138 + $0x170] sm:$0xff]
      %v2469 = vld [vmem:[%s2138 + $0x188] sm:$0xff]
      %v2470 = vld [vmem:[%s2138 + $0x190] sm:$0xff]
      %v2471 = vld [vmem:[%s2138 + $0x1a8] sm:$0xff]
      %v2472 = vld [vmem:[%s2138 + $0x1b0] sm:$0xff]
      %v2473 = vld [vmem:[%s2138 + $0x1c8] sm:$0xff]
      %v2474 = vld [vmem:[%s2138 + $0x1d0] sm:$0xff]
      %v2475 = vld [vmem:[%s2138 + $0x1e8] sm:$0xff]
      %v2476 = vld [vmem:[%s2138 + $0x1f0] sm:$0xff]
      %s2477 = scalar_lea.vmem %s1, 896
      %v2478 = vld [vmem:[%s2477] sm:$0xff]
      %v2479 = vld [vmem:[%s2477 + $0x8] sm:$0xff]
      %v2480 = vld [vmem:[%s2477 + $0x10] sm:$0xff]
      %v2481 = vld [vmem:[%s2477 + $0x18] sm:$0xff]
      %v2482 = vld [vmem:[%s2477 + $0x20] sm:$0xff]
      %v2483 = vld [vmem:[%s2477 + $0x28] sm:$0xff]
      %v2484 = vld [vmem:[%s2477 + $0x30] sm:$0xff]
      %v2485 = vld [vmem:[%s2477 + $0x38] sm:$0xff]
      %v2486 = vld [vmem:[%s2477 + $0x40] sm:$0xff]
      %v2487 = vld [vmem:[%s2477 + $0x48] sm:$0xff]
      %v2488 = vld [vmem:[%s2477 + $0x50] sm:$0xff]
      %v2489 = vld [vmem:[%s2477 + $0x58] sm:$0xff]
      %v2490 = vld [vmem:[%s2477 + $0x60] sm:$0xff]
      %v2491 = vld [vmem:[%s2477 + $0x68] sm:$0xff]
      %v2492 = vld [vmem:[%s2477 + $0x70] sm:$0xff]
      %v2493 = vld [vmem:[%s2477 + $0x78] sm:$0xff]
      %2494 = vmatprep.subr.mxu0 0.0
      %2495 = vmatpush1.msra.mxu0 %v2478
      %2496 = vmatprep.subr.mxu0 0.0
      %2497 = vmatpush1.msra.mxu0 %v2479
      %2498 = vmatprep.subr.mxu0 0.0
      %2499 = vmatpush1.msra.mxu0 %v2480
      %2500 = vmatprep.subr.mxu0 0.0
      %2501 = vmatpush1.msra.mxu0 %v2481
      %2502 = vmatprep.subr.mxu0 0.0
      %2503 = vmatpush1.msra.mxu0 %v2482
      %2504 = vmatprep.subr.mxu0 0.0
      %2505 = vmatpush1.msra.mxu0 %v2483
      %2506 = vmatprep.subr.mxu0 0.0
      %2507 = vmatpush1.msra.mxu0 %v2484
      %2508 = vmatprep.subr.mxu0 0.0
      %2509 = vmatpush1.msra.mxu0 %v2485
      %2510 = vmatprep.subr.mxu0 0.0
      %2511 = vmatpush1.msra.mxu0 %v2486
      %2512 = vmatprep.subr.mxu0 0.0
      %2513 = vmatpush1.msra.mxu0 %v2487
      %2514 = vmatprep.subr.mxu0 0.0
      %2515 = vmatpush1.msra.mxu0 %v2488
      %2516 = vmatprep.subr.mxu0 0.0
      %2517 = vmatpush1.msra.mxu0 %v2489
      %2518 = vmatprep.subr.mxu0 0.0
      %2519 = vmatpush1.msra.mxu0 %v2490
      %2520 = vmatprep.subr.mxu0 0.0
      %2521 = vmatpush1.msra.mxu0 %v2491
      %2522 = vmatprep.subr.mxu0 0.0
      %2523 = vmatpush1.msra.mxu0 %v2492
      %2524 = vmatprep.subr.mxu0 0.0
      %2525 = vmatpush1.msra.mxu0 %v2493
      %2526 = vmatprep.subr.mxu0 0.0
      %2527 = vmatpush1.msra.mxu0 0.0
      %2528 = vmatprep.subr.mxu0 0.0
      %2529 = vmatpush1.msra.mxu0 0.0
      %2530 = vmatprep.subr.mxu0 0.0
      %2531 = vmatpush1.msra.mxu0 0.0
      %2532 = vmatprep.subr.mxu0 0.0
      %2533 = vmatpush1.msra.mxu0 0.0
      %2534 = vmatprep.subr.mxu0 0.0
      %2535 = vmatpush1.msra.mxu0 0.0
      %2536 = vmatprep.subr.mxu0 0.0
      %2537 = vmatpush1.msra.mxu0 0.0
      %2538 = vmatprep.subr.mxu0 0.0
      %2539 = vmatpush1.msra.mxu0 0.0
      %2540 = vmatprep.subr.mxu0 0.0
      %2541 = vmatpush1.msra.mxu0 0.0
      %2542 = vmatprep.subr.mxu0 0.0
      %2543 = vmatpush1.msra.mxu0 0.0
      %2544 = vmatprep.subr.mxu0 0.0
      %2545 = vmatpush1.msra.mxu0 0.0
      %2546 = vmatprep.subr.mxu0 0.0
      %2547 = vmatpush1.msra.mxu0 0.0
      %2548 = vmatprep.subr.mxu0 0.0
      %2549 = vmatpush1.msra.mxu0 0.0
      %2550 = vmatprep.subr.mxu0 0.0
      %2551 = vmatpush1.msra.mxu0 0.0
      %2552 = vmatprep.subr.mxu0 0.0
      %2553 = vmatpush1.msra.mxu0 0.0
      %2554 = vmatprep.subr.mxu0 0.0
      %2555 = vmatpush1.msra.mxu0 0.0
      %2556 = vmatprep.subr.mxu0 0.0
      %2557 = vmatpush1.msra.mxu0 0.0
      %2558 = vmatprep.mubr.f32.mxu0 0.0
      %2559 = vmatmul.mubr.f32.gmra.mrb[0].mxu0 %v2445
      %v2560 = vpop.f32.mrb[0].mxu0
      %v2561 = vadd.f32 0.0, %v2560
      %v2562 = vpop.f32.mrb[0].mxu0
      %2563 = vmatprep.mubr.f32.mxu0 0.0
      %2564 = vmatmul.mubr.f32.gmra.mrb[0].mxu0 %v2446
      %v2565 = vpop.f32.mrb[0].mxu0
      %v2566 = vadd.f32 0.0, %v2565
      %v2567 = vpop.f32.mrb[0].mxu0
      %2568 = vmatprep.mubr.f32.mxu0 0.0
      %2569 = vmatmul.mubr.f32.gmra.mrb[0].mxu0 %v2447
      %v2570 = vpop.f32.mrb[0].mxu0
      %v2571 = vadd.f32 0.0, %v2570
      %v2572 = vpop.f32.mrb[0].mxu0
      %2573 = vmatprep.mubr.f32.mxu0 0.0
      %2574 = vmatmul.mubr.f32.gmra.mrb[0].mxu0 %v2448
      %v2575 = vpop.f32.mrb[0].mxu0
      %v2576 = vadd.f32 0.0, %v2575
      %v2577 = vpop.f32.mrb[0].mxu0
      %2578 = vmatprep.mubr.f32.mxu0 0.0
      %2579 = vmatmul.mubr.f32.gmra.mrb[0].mxu0 %v2449
      %v2580 = vpop.f32.mrb[0].mxu0
      %v2581 = vadd.f32 0.0, %v2580
      %v2582 = vpop.f32.mrb[0].mxu0
      %2583 = vmatprep.mubr.f32.mxu0 0.0
      %2584 = vmatmul.mubr.f32.gmra.mrb[0].mxu0 %v2450
      %v2585 = vpop.f32.mrb[0].mxu0
      %v2586 = vadd.f32 0.0, %v2585
      %v2587 = vpop.f32.mrb[0].mxu0
      %2588 = vmatprep.mubr.f32.mxu0 0.0
      %2589 = vmatmul.mubr.f32.gmra.mrb[0].mxu0 %v2451
      %v2590 = vpop.f32.mrb[0].mxu0
      %v2591 = vadd.f32 0.0, %v2590
      %v2592 = vpop.f32.mrb[0].mxu0
      %2593 = vmatprep.mubr.f32.mxu0 0.0
      %2594 = vmatmul.mubr.f32.gmra.mrb[0].mxu0 %v2452
      %v2595 = vpop.f32.mrb[0].mxu0
      %v2596 = vadd.f32 0.0, %v2595
      %v2597 = vpop.f32.mrb[0].mxu0
      %2598 = vmatprep.mubr.f32.mxu0 0.0
      %2599 = vmatmul.mubr.f32.gmra.mrb[0].mxu0 %v2453
      %v2600 = vpop.f32.mrb[0].mxu0
      %v2601 = vadd.f32 0.0, %v2600
      %v2602 = vpop.f32.mrb[0].mxu0
      %2603 = vmatprep.mubr.f32.mxu0 0.0
      %2604 = vmatmul.mubr.f32.gmra.mrb[0].mxu0 %v2454
      %v2605 = vpop.f32.mrb[0].mxu0
      %v2606 = vadd.f32 0.0, %v2605
      %v2607 = vpop.f32.mrb[0].mxu0
      %2608 = vmatprep.mubr.f32.mxu0 0.0
      %2609 = vmatmul.mubr.f32.gmra.mrb[0].mxu0 %v2455
      %v2610 = vpop.f32.mrb[0].mxu0
      %v2611 = vadd.f32 0.0, %v2610
      %v2612 = vpop.f32.mrb[0].mxu0
      %2613 = vmatprep.mubr.f32.mxu0 0.0
      %2614 = vmatmul.mubr.f32.gmra.mrb[0].mxu0 %v2456
      %v2615 = vpop.f32.mrb[0].mxu0
      %v2616 = vadd.f32 0.0, %v2615
      %v2617 = vpop.f32.mrb[0].mxu0
      %2618 = vmatprep.mubr.f32.mxu0 0.0
      %2619 = vmatmul.mubr.f32.gmra.mrb[0].mxu0 %v2457
      %v2620 = vpop.f32.mrb[0].mxu0
      %v2621 = vadd.f32 0.0, %v2620
      %v2622 = vpop.f32.mrb[0].mxu0
      %2623 = vmatprep.mubr.f32.mxu0 0.0
      %2624 = vmatmul.mubr.f32.gmra.mrb[0].mxu0 %v2458
      %v2625 = vpop.f32.mrb[0].mxu0
      %v2626 = vadd.f32 0.0, %v2625
      %v2627 = vpop.f32.mrb[0].mxu0
      %2628 = vmatprep.mubr.f32.mxu0 0.0
      %2629 = vmatmul.mubr.f32.gmra.mrb[0].mxu0 %v2459
      %v2630 = vpop.f32.mrb[0].mxu0
      %v2631 = vadd.f32 0.0, %v2630
      %v2632 = vpop.f32.mrb[0].mxu0
      %2633 = vmatprep.mubr.f32.mxu0 0.0
      %2634 = vmatmul.mubr.f32.gmra.mrb[0].mxu0 %v2460
      %v2635 = vpop.f32.mrb[0].mxu0
      %v2636 = vadd.f32 0.0, %v2635
      %v2637 = vpop.f32.mrb[0].mxu0
      %2638 = vmatprep.mubr.f32.mxu0 0.0
      %2639 = vmatmul.mubr.f32.gmra.mrb[0].mxu0 %v2461
      %v2640 = vpop.f32.mrb[0].mxu0
      %v2641 = vadd.f32 0.0, %v2640
      %v2642 = vpop.f32.mrb[0].mxu0
      %2643 = vmatprep.mubr.f32.mxu0 0.0
      %2644 = vmatmul.mubr.f32.gmra.mrb[0].mxu0 %v2462
      %v2645 = vpop.f32.mrb[0].mxu0
      %v2646 = vadd.f32 0.0, %v2645
      %v2647 = vpop.f32.mrb[0].mxu0
      %2648 = vmatprep.mubr.f32.mxu0 0.0
      %2649 = vmatmul.mubr.f32.gmra.mrb[0].mxu0 %v2463
      %v2650 = vpop.f32.mrb[0].mxu0
      %v2651 = vadd.f32 0.0, %v2650
      %v2652 = vpop.f32.mrb[0].mxu0
      %2653 = vmatprep.mubr.f32.mxu0 0.0
      %2654 = vmatmul.mubr.f32.gmra.mrb[0].mxu0 %v2464
      %v2655 = vpop.f32.mrb[0].mxu0
      %v2656 = vadd.f32 0.0, %v2655
      %v2657 = vpop.f32.mrb[0].mxu0
      %2658 = vmatprep.mubr.f32.mxu0 0.0
      %2659 = vmatmul.mubr.f32.gmra.mrb[0].mxu0 %v2465
      %v2660 = vpop.f32.mrb[0].mxu0
      %v2661 = vadd.f32 0.0, %v2660
      %v2662 = vpop.f32.mrb[0].mxu0
      %2663 = vmatprep.mubr.f32.mxu0 0.0
      %2664 = vmatmul.mubr.f32.gmra.mrb[0].mxu0 %v2466
      %v2665 = vpop.f32.mrb[0].mxu0
      %v2666 = vadd.f32 0.0, %v2665
      %v2667 = vpop.f32.mrb[0].mxu0
      %2668 = vmatprep.mubr.f32.mxu0 0.0
      %2669 = vmatmul.mubr.f32.gmra.mrb[0].mxu0 %v2467
      %v2670 = vpop.f32.mrb[0].mxu0
      %v2671 = vadd.f32 0.0, %v2670
      %v2672 = vpop.f32.mrb[0].mxu0
      %2673 = vmatprep.mubr.f32.mxu0 0.0
      %2674 = vmatmul.mubr.f32.gmra.mrb[0].mxu0 %v2468
      %v2675 = vpop.f32.mrb[0].mxu0
      %v2676 = vadd.f32 0.0, %v2675
      %v2677 = vpop.f32.mrb[0].mxu0
      %2678 = vmatprep.mubr.f32.mxu0 0.0
      %2679 = vmatmul.mubr.f32.gmra.mrb[0].mxu0 %v2469
      %v2680 = vpop.f32.mrb[0].mxu0
      %v2681 = vadd.f32 0.0, %v2680
      %v2682 = vpop.f32.mrb[0].mxu0
      %2683 = vmatprep.mubr.f32.mxu0 0.0
      %2684 = vmatmul.mubr.f32.gmra.mrb[0].mxu0 %v2470
      %v2685 = vpop.f32.mrb[0].mxu0
      %v2686 = vadd.f32 0.0, %v2685
      %v2687 = vpop.f32.mrb[0].mxu0
      %2688 = vmatprep.mubr.f32.mxu0 0.0
      %2689 = vmatmul.mubr.f32.gmra.mrb[0].mxu0 %v2471
      %v2690 = vpop.f32.mrb[0].mxu0
      %v2691 = vadd.f32 0.0, %v2690
      %v2692 = vpop.f32.mrb[0].mxu0
      %2693 = vmatprep.mubr.f32.mxu0 0.0
      %2694 = vmatmul.mubr.f32.gmra.mrb[0].mxu0 %v2472
      %v2695 = vpop.f32.mrb[0].mxu0
      %v2696 = vadd.f32 0.0, %v2695
      %v2697 = vpop.f32.mrb[0].mxu0
      %2698 = vmatprep.mubr.f32.mxu0 0.0
      %2699 = vmatmul.mubr.f32.gmra.mrb[0].mxu0 %v2473
      %v2700 = vpop.f32.mrb[0].mxu0
      %v2701 = vadd.f32 0.0, %v2700
      %v2702 = vpop.f32.mrb[0].mxu0
      %2703 = vmatprep.mubr.f32.mxu0 0.0
      %2704 = vmatmul.mubr.f32.gmra.mrb[0].mxu0 %v2474
      %v2705 = vpop.f32.mrb[0].mxu0
      %v2706 = vadd.f32 0.0, %v2705
      %v2707 = vpop.f32.mrb[0].mxu0
      %2708 = vmatprep.mubr.f32.mxu0 0.0
      %2709 = vmatmul.mubr.f32.gmra.mrb[0].mxu0 %v2475
      %v2710 = vpop.f32.mrb[0].mxu0
      %v2711 = vadd.f32 0.0, %v2710
      %v2712 = vpop.f32.mrb[0].mxu0
      %2713 = vmatprep.mubr.f32.mxu0 0.0
      %2714 = vmatmul.mubr.f32.gmra.mrb[0].mxu0 %v2476
      %v2715 = vpop.f32.mrb[0].mxu0
      %v2716 = vadd.f32 0.0, %v2715
      %v2717 = vpop.f32.mrb[0].mxu0
      %2718 = vdwg.mxu0
      %v2719 = vadd.f32 %v2413, %v2561
      %v2720 = vadd.f32 %v2414, %v2566
      %v2721 = vadd.f32 %v2415, %v2571
      %v2722 = vadd.f32 %v2416, %v2576
      %v2723 = vadd.f32 %v2417, %v2581
      %v2724 = vadd.f32 %v2418, %v2586
      %v2725 = vadd.f32 %v2419, %v2591
      %v2726 = vadd.f32 %v2420, %v2596
      %v2727 = vadd.f32 %v2421, %v2601
      %v2728 = vadd.f32 %v2422, %v2606
      %v2729 = vadd.f32 %v2423, %v2611
      %v2730 = vadd.f32 %v2424, %v2616
      %v2731 = vadd.f32 %v2425, %v2621
      %v2732 = vadd.f32 %v2426, %v2626
      %v2733 = vadd.f32 %v2427, %v2631
      %v2734 = vadd.f32 %v2428, %v2636
      %v2735 = vadd.f32 %v2429, %v2641
      %v2736 = vadd.f32 %v2430, %v2646
      %v2737 = vadd.f32 %v2431, %v2651
      %v2738 = vadd.f32 %v2432, %v2656
      %v2739 = vadd.f32 %v2433, %v2661
      %v2740 = vadd.f32 %v2434, %v2666
      %v2741 = vadd.f32 %v2435, %v2671
      %v2742 = vadd.f32 %v2436, %v2676
      %v2743 = vadd.f32 %v2437, %v2681
      %v2744 = vadd.f32 %v2438, %v2686
      %v2745 = vadd.f32 %v2439, %v2691
      %v2746 = vadd.f32 %v2440, %v2696
      %v2747 = vadd.f32 %v2441, %v2701
      %v2748 = vadd.f32 %v2442, %v2706
      %v2749 = vadd.f32 %v2443, %v2711
      %v2750 = vadd.f32 %v2444, %v2716
      %v2751 = vld [vmem:[%s2138 + $0x9] sm:$0xff]
      %v2752 = vld [vmem:[%s2138 + $0x11] sm:$0xff]
      %v2753 = vld [vmem:[%s2138 + $0x29] sm:$0xff]
      %v2754 = vld [vmem:[%s2138 + $0x31] sm:$0xff]
      %v2755 = vld [vmem:[%s2138 + $0x49] sm:$0xff]
      %v2756 = vld [vmem:[%s2138 + $0x51] sm:$0xff]
      %v2757 = vld [vmem:[%s2138 + $0x69] sm:$0xff]
      %v2758 = vld [vmem:[%s2138 + $0x71] sm:$0xff]
      %v2759 = vld [vmem:[%s2138 + $0x89] sm:$0xff]
      %v2760 = vld [vmem:[%s2138 + $0x91] sm:$0xff]
      %v2761 = vld [vmem:[%s2138 + $0xa9] sm:$0xff]
      %v2762 = vld [vmem:[%s2138 + $0xb1] sm:$0xff]
      %v2763 = vld [vmem:[%s2138 + $0xc9] sm:$0xff]
      %v2764 = vld [vmem:[%s2138 + $0xd1] sm:$0xff]
      %v2765 = vld [vmem:[%s2138 + $0xe9] sm:$0xff]
      %v2766 = vld [vmem:[%s2138 + $0xf1] sm:$0xff]
      %v2767 = vld [vmem:[%s2138 + $0x109] sm:$0xff]
      %v2768 = vld [vmem:[%s2138 + $0x111] sm:$0xff]
      %v2769 = vld [vmem:[%s2138 + $0x129] sm:$0xff]
      %v2770 = vld [vmem:[%s2138 + $0x131] sm:$0xff]
      %v2771 = vld [vmem:[%s2138 + $0x149] sm:$0xff]
      %v2772 = vld [vmem:[%s2138 + $0x151] sm:$0xff]
      %v2773 = vld [vmem:[%s2138 + $0x169] sm:$0xff]
      %v2774 = vld [vmem:[%s2138 + $0x171] sm:$0xff]
      %v2775 = vld [vmem:[%s2138 + $0x189] sm:$0xff]
      %v2776 = vld [vmem:[%s2138 + $0x191] sm:$0xff]
      %v2777 = vld [vmem:[%s2138 + $0x1a9] sm:$0xff]
      %v2778 = vld [vmem:[%s2138 + $0x1b1] sm:$0xff]
      %v2779 = vld [vmem:[%s2138 + $0x1c9] sm:$0xff]
      %v2780 = vld [vmem:[%s2138 + $0x1d1] sm:$0xff]
      %v2781 = vld [vmem:[%s2138 + $0x1e9] sm:$0xff]
      %v2782 = vld [vmem:[%s2138 + $0x1f1] sm:$0xff]
      %s2783 = scalar_lea.vmem %s1, 1024
      %v2784 = vld [vmem:[%s2783] sm:$0xff]
      %v2785 = vld [vmem:[%s2783 + $0x8] sm:$0xff]
      %v2786 = vld [vmem:[%s2783 + $0x10] sm:$0xff]
      %v2787 = vld [vmem:[%s2783 + $0x18] sm:$0xff]
      %v2788 = vld [vmem:[%s2783 + $0x20] sm:$0xff]
      %v2789 = vld [vmem:[%s2783 + $0x28] sm:$0xff]
      %v2790 = vld [vmem:[%s2783 + $0x30] sm:$0xff]
      %v2791 = vld [vmem:[%s2783 + $0x38] sm:$0xff]
      %v2792 = vld [vmem:[%s2783 + $0x40] sm:$0xff]
      %v2793 = vld [vmem:[%s2783 + $0x48] sm:$0xff]
      %v2794 = vld [vmem:[%s2783 + $0x50] sm:$0xff]
      %v2795 = vld [vmem:[%s2783 + $0x58] sm:$0xff]
      %v2796 = vld [vmem:[%s2783 + $0x60] sm:$0xff]
      %v2797 = vld [vmem:[%s2783 + $0x68] sm:$0xff]
      %v2798 = vld [vmem:[%s2783 + $0x70] sm:$0xff]
      %v2799 = vld [vmem:[%s2783 + $0x78] sm:$0xff]
      %2800 = vmatprep.subr.mxu0 0.0
      %2801 = vmatpush1.msra.mxu0 %v2784
      %2802 = vmatprep.subr.mxu0 0.0
      %2803 = vmatpush1.msra.mxu0 %v2785
      %2804 = vmatprep.subr.mxu0 0.0
      %2805 = vmatpush1.msra.mxu0 %v2786
      %2806 = vmatprep.subr.mxu0 0.0
      %2807 = vmatpush1.msra.mxu0 %v2787
      %2808 = vmatprep.subr.mxu0 0.0
      %2809 = vmatpush1.msra.mxu0 %v2788
      %2810 = vmatprep.subr.mxu0 0.0
      %2811 = vmatpush1.msra.mxu0 %v2789
      %2812 = vmatprep.subr.mxu0 0.0
      %2813 = vmatpush1.msra.mxu0 %v2790
      %2814 = vmatprep.subr.mxu0 0.0
      %2815 = vmatpush1.msra.mxu0 %v2791
      %2816 = vmatprep.subr.mxu0 0.0
      %2817 = vmatpush1.msra.mxu0 %v2792
      %2818 = vmatprep.subr.mxu0 0.0
      %2819 = vmatpush1.msra.mxu0 %v2793
      %2820 = vmatprep.subr.mxu0 0.0
      %2821 = vmatpush1.msra.mxu0 %v2794
      %2822 = vmatprep.subr.mxu0 0.0
      %2823 = vmatpush1.msra.mxu0 %v2795
      %2824 = vmatprep.subr.mxu0 0.0
      %2825 = vmatpush1.msra.mxu0 %v2796
      %2826 = vmatprep.subr.mxu0 0.0
      %2827 = vmatpush1.msra.mxu0 %v2797
      %2828 = vmatprep.subr.mxu0 0.0
      %2829 = vmatpush1.msra.mxu0 %v2798
      %2830 = vmatprep.subr.mxu0 0.0
      %2831 = vmatpush1.msra.mxu0 %v2799
      %2832 = vmatprep.subr.mxu0 0.0
      %2833 = vmatpush1.msra.mxu0 0.0
      %2834 = vmatprep.subr.mxu0 0.0
      %2835 = vmatpush1.msra.mxu0 0.0
      %2836 = vmatprep.subr.mxu0 0.0
      %2837 = vmatpush1.msra.mxu0 0.0
      %2838 = vmatprep.subr.mxu0 0.0
      %2839 = vmatpush1.msra.mxu0 0.0
      %2840 = vmatprep.subr.mxu0 0.0
      %2841 = vmatpush1.msra.mxu0 0.0
      %2842 = vmatprep.subr.mxu0 0.0
      %2843 = vmatpush1.msra.mxu0 0.0
      %2844 = vmatprep.subr.mxu0 0.0
      %2845 = vmatpush1.msra.mxu0 0.0
      %2846 = vmatprep.subr.mxu0 0.0
      %2847 = vmatpush1.msra.mxu0 0.0
      %2848 = vmatprep.subr.mxu0 0.0
      %2849 = vmatpush1.msra.mxu0 0.0
      %2850 = vmatprep.subr.mxu0 0.0
      %2851 = vmatpush1.msra.mxu0 0.0
      %2852 = vmatprep.subr.mxu0 0.0
      %2853 = vmatpush1.msra.mxu0 0.0
      %2854 = vmatprep.subr.mxu0 0.0
      %2855 = vmatpush1.msra.mxu0 0.0
      %2856 = vmatprep.subr.mxu0 0.0
      %2857 = vmatpush1.msra.mxu0 0.0
      %2858 = vmatprep.subr.mxu0 0.0
      %2859 = vmatpush1.msra.mxu0 0.0
      %2860 = vmatprep.subr.mxu0 0.0
      %2861 = vmatpush1.msra.mxu0 0.0
      %2862 = vmatprep.subr.mxu0 0.0
      %2863 = vmatpush1.msra.mxu0 0.0
      %2864 = vmatprep.mubr.f32.mxu0 0.0
      %2865 = vmatmul.mubr.f32.gmra.mrb[0].mxu0 %v2751
      %v2866 = vpop.f32.mrb[0].mxu0
      %v2867 = vadd.f32 0.0, %v2866
      %v2868 = vpop.f32.mrb[0].mxu0
      %2869 = vmatprep.mubr.f32.mxu0 0.0
      %2870 = vmatmul.mubr.f32.gmra.mrb[0].mxu0 %v2752
      %v2871 = vpop.f32.mrb[0].mxu0
      %v2872 = vadd.f32 0.0, %v2871
      %v2873 = vpop.f32.mrb[0].mxu0
      %2874 = vmatprep.mubr.f32.mxu0 0.0
      %2875 = vmatmul.mubr.f32.gmra.mrb[0].mxu0 %v2753
      %v2876 = vpop.f32.mrb[0].mxu0
      %v2877 = vadd.f32 0.0, %v2876
      %v2878 = vpop.f32.mrb[0].mxu0
      %2879 = vmatprep.mubr.f32.mxu0 0.0
      %2880 = vmatmul.mubr.f32.gmra.mrb[0].mxu0 %v2754
      %v2881 = vpop.f32.mrb[0].mxu0
      %v2882 = vadd.f32 0.0, %v2881
      %v2883 = vpop.f32.mrb[0].mxu0
      %2884 = vmatprep.mubr.f32.mxu0 0.0
      %2885 = vmatmul.mubr.f32.gmra.mrb[0].mxu0 %v2755
      %v2886 = vpop.f32.mrb[0].mxu0
      %v2887 = vadd.f32 0.0, %v2886
      %v2888 = vpop.f32.mrb[0].mxu0
      %2889 = vmatprep.mubr.f32.mxu0 0.0
      %2890 = vmatmul.mubr.f32.gmra.mrb[0].mxu0 %v2756
      %v2891 = vpop.f32.mrb[0].mxu0
      %v2892 = vadd.f32 0.0, %v2891
      %v2893 = vpop.f32.mrb[0].mxu0
      %2894 = vmatprep.mubr.f32.mxu0 0.0
      %2895 = vmatmul.mubr.f32.gmra.mrb[0].mxu0 %v2757
      %v2896 = vpop.f32.mrb[0].mxu0
      %v2897 = vadd.f32 0.0, %v2896
      %v2898 = vpop.f32.mrb[0].mxu0
      %2899 = vmatprep.mubr.f32.mxu0 0.0
      %2900 = vmatmul.mubr.f32.gmra.mrb[0].mxu0 %v2758
      %v2901 = vpop.f32.mrb[0].mxu0
      %v2902 = vadd.f32 0.0, %v2901
      %v2903 = vpop.f32.mrb[0].mxu0
      %2904 = vmatprep.mubr.f32.mxu0 0.0
      %2905 = vmatmul.mubr.f32.gmra.mrb[0].mxu0 %v2759
      %v2906 = vpop.f32.mrb[0].mxu0
      %v2907 = vadd.f32 0.0, %v2906
      %v2908 = vpop.f32.mrb[0].mxu0
      %2909 = vmatprep.mubr.f32.mxu0 0.0
      %2910 = vmatmul.mubr.f32.gmra.mrb[0].mxu0 %v2760
      %v2911 = vpop.f32.mrb[0].mxu0
      %v2912 = vadd.f32 0.0, %v2911
      %v2913 = vpop.f32.mrb[0].mxu0
      %2914 = vmatprep.mubr.f32.mxu0 0.0
      %2915 = vmatmul.mubr.f32.gmra.mrb[0].mxu0 %v2761
      %v2916 = vpop.f32.mrb[0].mxu0
      %v2917 = vadd.f32 0.0, %v2916
      %v2918 = vpop.f32.mrb[0].mxu0
      %2919 = vmatprep.mubr.f32.mxu0 0.0
      %2920 = vmatmul.mubr.f32.gmra.mrb[0].mxu0 %v2762
      %v2921 = vpop.f32.mrb[0].mxu0
      %v2922 = vadd.f32 0.0, %v2921
      %v2923 = vpop.f32.mrb[0].mxu0
      %2924 = vmatprep.mubr.f32.mxu0 0.0
      %2925 = vmatmul.mubr.f32.gmra.mrb[0].mxu0 %v2763
      %v2926 = vpop.f32.mrb[0].mxu0
      %v2927 = vadd.f32 0.0, %v2926
      %v2928 = vpop.f32.mrb[0].mxu0
      %2929 = vmatprep.mubr.f32.mxu0 0.0
      %2930 = vmatmul.mubr.f32.gmra.mrb[0].mxu0 %v2764
      %v2931 = vpop.f32.mrb[0].mxu0
      %v2932 = vadd.f32 0.0, %v2931
      %v2933 = vpop.f32.mrb[0].mxu0
      %2934 = vmatprep.mubr.f32.mxu0 0.0
      %2935 = vmatmul.mubr.f32.gmra.mrb[0].mxu0 %v2765
      %v2936 = vpop.f32.mrb[0].mxu0
      %v2937 = vadd.f32 0.0, %v2936
      %v2938 = vpop.f32.mrb[0].mxu0
      %2939 = vmatprep.mubr.f32.mxu0 0.0
      %2940 = vmatmul.mubr.f32.gmra.mrb[0].mxu0 %v2766
      %v2941 = vpop.f32.mrb[0].mxu0
      %v2942 = vadd.f32 0.0, %v2941
      %v2943 = vpop.f32.mrb[0].mxu0
      %2944 = vmatprep.mubr.f32.mxu0 0.0
      %2945 = vmatmul.mubr.f32.gmra.mrb[0].mxu0 %v2767
      %v2946 = vpop.f32.mrb[0].mxu0
      %v2947 = vadd.f32 0.0, %v2946
      %v2948 = vpop.f32.mrb[0].mxu0
      %2949 = vmatprep.mubr.f32.mxu0 0.0
      %2950 = vmatmul.mubr.f32.gmra.mrb[0].mxu0 %v2768
      %v2951 = vpop.f32.mrb[0].mxu0
      %v2952 = vadd.f32 0.0, %v2951
      %v2953 = vpop.f32.mrb[0].mxu0
      %2954 = vmatprep.mubr.f32.mxu0 0.0
      %2955 = vmatmul.mubr.f32.gmra.mrb[0].mxu0 %v2769
      %v2956 = vpop.f32.mrb[0].mxu0
      %v2957 = vadd.f32 0.0, %v2956
      %v2958 = vpop.f32.mrb[0].mxu0
      %2959 = vmatprep.mubr.f32.mxu0 0.0
      %2960 = vmatmul.mubr.f32.gmra.mrb[0].mxu0 %v2770
      %v2961 = vpop.f32.mrb[0].mxu0
      %v2962 = vadd.f32 0.0, %v2961
      %v2963 = vpop.f32.mrb[0].mxu0
      %2964 = vmatprep.mubr.f32.mxu0 0.0
      %2965 = vmatmul.mubr.f32.gmra.mrb[0].mxu0 %v2771
      %v2966 = vpop.f32.mrb[0].mxu0
      %v2967 = vadd.f32 0.0, %v2966
      %v2968 = vpop.f32.mrb[0].mxu0
      %2969 = vmatprep.mubr.f32.mxu0 0.0
      %2970 = vmatmul.mubr.f32.gmra.mrb[0].mxu0 %v2772
      %v2971 = vpop.f32.mrb[0].mxu0
      %v2972 = vadd.f32 0.0, %v2971
      %v2973 = vpop.f32.mrb[0].mxu0
      %2974 = vmatprep.mubr.f32.mxu0 0.0
      %2975 = vmatmul.mubr.f32.gmra.mrb[0].mxu0 %v2773
      %v2976 = vpop.f32.mrb[0].mxu0
      %v2977 = vadd.f32 0.0, %v2976
      %v2978 = vpop.f32.mrb[0].mxu0
      %2979 = vmatprep.mubr.f32.mxu0 0.0
      %2980 = vmatmul.mubr.f32.gmra.mrb[0].mxu0 %v2774
      %v2981 = vpop.f32.mrb[0].mxu0
      %v2982 = vadd.f32 0.0, %v2981
      %v2983 = vpop.f32.mrb[0].mxu0
      %2984 = vmatprep.mubr.f32.mxu0 0.0
      %2985 = vmatmul.mubr.f32.gmra.mrb[0].mxu0 %v2775
      %v2986 = vpop.f32.mrb[0].mxu0
      %v2987 = vadd.f32 0.0, %v2986
      %v2988 = vpop.f32.mrb[0].mxu0
      %2989 = vmatprep.mubr.f32.mxu0 0.0
      %2990 = vmatmul.mubr.f32.gmra.mrb[0].mxu0 %v2776
      %v2991 = vpop.f32.mrb[0].mxu0
      %v2992 = vadd.f32 0.0, %v2991
      %v2993 = vpop.f32.mrb[0].mxu0
      %2994 = vmatprep.mubr.f32.mxu0 0.0
      %2995 = vmatmul.mubr.f32.gmra.mrb[0].mxu0 %v2777
      %v2996 = vpop.f32.mrb[0].mxu0
      %v2997 = vadd.f32 0.0, %v2996
      %v2998 = vpop.f32.mrb[0].mxu0
      %2999 = vmatprep.mubr.f32.mxu0 0.0
      %3000 = vmatmul.mubr.f32.gmra.mrb[0].mxu0 %v2778
      %v3001 = vpop.f32.mrb[0].mxu0
      %v3002 = vadd.f32 0.0, %v3001
      %v3003 = vpop.f32.mrb[0].mxu0
      %3004 = vmatprep.mubr.f32.mxu0 0.0
      %3005 = vmatmul.mubr.f32.gmra.mrb[0].mxu0 %v2779
      %v3006 = vpop.f32.mrb[0].mxu0
      %v3007 = vadd.f32 0.0, %v3006
      %v3008 = vpop.f32.mrb[0].mxu0
      %3009 = vmatprep.mubr.f32.mxu0 0.0
      %3010 = vmatmul.mubr.f32.gmra.mrb[0].mxu0 %v2780
      %v3011 = vpop.f32.mrb[0].mxu0
      %v3012 = vadd.f32 0.0, %v3011
      %v3013 = vpop.f32.mrb[0].mxu0
      %3014 = vmatprep.mubr.f32.mxu0 0.0
      %3015 = vmatmul.mubr.f32.gmra.mrb[0].mxu0 %v2781
      %v3016 = vpop.f32.mrb[0].mxu0
      %v3017 = vadd.f32 0.0, %v3016
      %v3018 = vpop.f32.mrb[0].mxu0
      %3019 = vmatprep.mubr.f32.mxu0 0.0
      %3020 = vmatmul.mubr.f32.gmra.mrb[0].mxu0 %v2782
      %v3021 = vpop.f32.mrb[0].mxu0
      %v3022 = vadd.f32 0.0, %v3021
      %v3023 = vpop.f32.mrb[0].mxu0
      %3024 = vdwg.mxu0
      %v3025 = vadd.f32 %v2719, %v2867
      %v3026 = vadd.f32 %v2720, %v2872
      %v3027 = vadd.f32 %v2721, %v2877
      %v3028 = vadd.f32 %v2722, %v2882
      %v3029 = vadd.f32 %v2723, %v2887
      %v3030 = vadd.f32 %v2724, %v2892
      %v3031 = vadd.f32 %v2725, %v2897
      %v3032 = vadd.f32 %v2726, %v2902
      %v3033 = vadd.f32 %v2727, %v2907
      %v3034 = vadd.f32 %v2728, %v2912
      %v3035 = vadd.f32 %v2729, %v2917
      %v3036 = vadd.f32 %v2730, %v2922
      %v3037 = vadd.f32 %v2731, %v2927
      %v3038 = vadd.f32 %v2732, %v2932
      %v3039 = vadd.f32 %v2733, %v2937
      %v3040 = vadd.f32 %v2734, %v2942
      %v3041 = vadd.f32 %v2735, %v2947
      %v3042 = vadd.f32 %v2736, %v2952
      %v3043 = vadd.f32 %v2737, %v2957
      %v3044 = vadd.f32 %v2738, %v2962
      %v3045 = vadd.f32 %v2739, %v2967
      %v3046 = vadd.f32 %v2740, %v2972
      %v3047 = vadd.f32 %v2741, %v2977
      %v3048 = vadd.f32 %v2742, %v2982
      %v3049 = vadd.f32 %v2743, %v2987
      %v3050 = vadd.f32 %v2744, %v2992
      %v3051 = vadd.f32 %v2745, %v2997
      %v3052 = vadd.f32 %v2746, %v3002
      %v3053 = vadd.f32 %v2747, %v3007
      %v3054 = vadd.f32 %v2748, %v3012
      %v3055 = vadd.f32 %v2749, %v3017
      %v3056 = vadd.f32 %v2750, %v3022
      %v3057 = vld [vmem:[%s2] sm:$0x1]
      %v3059 = vlaneseq
      %v3060 = vshrl.u32 %v3059, 7
      %v3061 = vsub.s32 0, %v3060
      %v3062 = vrot.slane %v3057, %v3061
      %v3064 = vadd.f32 %v3025, %v3062
      %v3065 = vadd.f32 %v3026, %v3062
      %v3066 = vadd.f32 %v3027, %v3062
      %v3067 = vadd.f32 %v3028, %v3062
      %v3068 = vadd.f32 %v3029, %v3062
      %v3069 = vadd.f32 %v3030, %v3062
      %v3070 = vadd.f32 %v3031, %v3062
      %v3071 = vadd.f32 %v3032, %v3062
      %v3072 = vadd.f32 %v3033, %v3062
      %v3073 = vadd.f32 %v3034, %v3062
      %v3074 = vadd.f32 %v3035, %v3062
      %v3075 = vadd.f32 %v3036, %v3062
      %v3076 = vadd.f32 %v3037, %v3062
      %v3077 = vadd.f32 %v3038, %v3062
      %v3078 = vadd.f32 %v3039, %v3062
      %v3079 = vadd.f32 %v3040, %v3062
      %v3080 = vadd.f32 %v3041, %v3062
      %v3081 = vadd.f32 %v3042, %v3062
      %v3082 = vadd.f32 %v3043, %v3062
      %v3083 = vadd.f32 %v3044, %v3062
      %v3084 = vadd.f32 %v3045, %v3062
      %v3085 = vadd.f32 %v3046, %v3062
      %v3086 = vadd.f32 %v3047, %v3062
      %v3087 = vadd.f32 %v3048, %v3062
      %v3088 = vadd.f32 %v3049, %v3062
      %v3089 = vadd.f32 %v3050, %v3062
      %v3090 = vadd.f32 %v3051, %v3062
      %v3091 = vadd.f32 %v3052, %v3062
      %v3092 = vadd.f32 %v3053, %v3062
      %v3093 = vadd.f32 %v3054, %v3062
      %v3094 = vadd.f32 %v3055, %v3062
      %v3095 = vadd.f32 %v3056, %v3062
      %v3096 = vadd.f32 %v3064, %v3065
      %v3097 = vadd.f32 %v3096, %v3066
      %v3098 = vadd.f32 %v3097, %v3067
      %v3099 = vadd.f32 %v3098, %v3068
      %v3100 = vadd.f32 %v3099, %v3069
      %v3101 = vadd.f32 %v3100, %v3070
      %v3102 = vadd.f32 %v3101, %v3071
      %v3103 = vadd.f32 %v3102, %v3072
      %v3104 = vadd.f32 %v3103, %v3073
      %v3105 = vadd.f32 %v3104, %v3074
      %v3106 = vadd.f32 %v3105, %v3075
      %v3107 = vadd.f32 %v3106, %v3076
      %v3108 = vadd.f32 %v3107, %v3077
      %v3109 = vadd.f32 %v3108, %v3078
      %v3110 = vadd.f32 %v3109, %v3079
      %v3111 = vadd.f32 %v3110, %v3080
      %v3112 = vadd.f32 %v3111, %v3081
      %v3113 = vadd.f32 %v3112, %v3082
      %v3114 = vadd.f32 %v3113, %v3083
      %v3115 = vadd.f32 %v3114, %v3084
      %v3116 = vadd.f32 %v3115, %v3085
      %v3117 = vadd.f32 %v3116, %v3086
      %v3118 = vadd.f32 %v3117, %v3087
      %v3119 = vadd.f32 %v3118, %v3088
      %v3120 = vadd.f32 %v3119, %v3089
      %v3121 = vadd.f32 %v3120, %v3090
      %v3122 = vadd.f32 %v3121, %v3091
      %v3123 = vadd.f32 %v3122, %v3092
      %v3124 = vadd.f32 %v3123, %v3093
      %v3125 = vadd.f32 %v3124, %v3094
      %v3126 = vadd.f32 %v3125, %v3095
      %v3127 = vrot.slane %v3126, 4
      %v3128 = vadd.f32 %v3126, %v3127
      %v3129 = vrot.slane %v3128, 2
      %v3130 = vadd.f32 %v3128, %v3129
      %v3131 = vrot.slane %v3130, 1
      %v3132 = vadd.f32 %v3130, %v3131
      %v3133 = vmul.f32 %v3064, %v3064
      %v3134 = vmul.f32 %v3065, %v3065
      %v3135 = vmul.f32 %v3066, %v3066
      %v3136 = vmul.f32 %v3067, %v3067
      %v3137 = vmul.f32 %v3068, %v3068
      %v3138 = vmul.f32 %v3069, %v3069
      %v3139 = vmul.f32 %v3070, %v3070
      %v3140 = vmul.f32 %v3071, %v3071
      %v3141 = vmul.f32 %v3072, %v3072
      %v3142 = vmul.f32 %v3073, %v3073
      %v3143 = vmul.f32 %v3074, %v3074
      %v3144 = vmul.f32 %v3075, %v3075
      %v3145 = vmul.f32 %v3076, %v3076
      %v3146 = vmul.f32 %v3077, %v3077
      %v3147 = vmul.f32 %v3078, %v3078
      %v3148 = vmul.f32 %v3079, %v3079
      %v3149 = vmul.f32 %v3080, %v3080
      %v3150 = vmul.f32 %v3081, %v3081
      %v3151 = vmul.f32 %v3082, %v3082
      %v3152 = vmul.f32 %v3083, %v3083
      %v3153 = vmul.f32 %v3084, %v3084
      %v3154 = vmul.f32 %v3085, %v3085
      %v3155 = vmul.f32 %v3086, %v3086
      %v3156 = vmul.f32 %v3087, %v3087
      %v3157 = vmul.f32 %v3088, %v3088
      %v3158 = vmul.f32 %v3089, %v3089
      %v3159 = vmul.f32 %v3090, %v3090
      %v3160 = vmul.f32 %v3091, %v3091
      %v3161 = vmul.f32 %v3092, %v3092
      %v3162 = vmul.f32 %v3093, %v3093
      %v3163 = vmul.f32 %v3094, %v3094
      %v3164 = vmul.f32 %v3095, %v3095
      %v3165 = vadd.f32 %v3133, %v3134
      %v3166 = vadd.f32 %v3165, %v3135
      %v3167 = vadd.f32 %v3166, %v3136
      %v3168 = vadd.f32 %v3167, %v3137
      %v3169 = vadd.f32 %v3168, %v3138
      %v3170 = vadd.f32 %v3169, %v3139
      %v3171 = vadd.f32 %v3170, %v3140
      %v3172 = vadd.f32 %v3171, %v3141
      %v3173 = vadd.f32 %v3172, %v3142
      %v3174 = vadd.f32 %v3173, %v3143
      %v3175 = vadd.f32 %v3174, %v3144
      %v3176 = vadd.f32 %v3175, %v3145
      %v3177 = vadd.f32 %v3176, %v3146
      %v3178 = vadd.f32 %v3177, %v3147
      %v3179 = vadd.f32 %v3178, %v3148
      %v3180 = vadd.f32 %v3179, %v3149
      %v3181 = vadd.f32 %v3180, %v3150
      %v3182 = vadd.f32 %v3181, %v3151
      %v3183 = vadd.f32 %v3182, %v3152
      %v3184 = vadd.f32 %v3183, %v3153
      %v3185 = vadd.f32 %v3184, %v3154
      %v3186 = vadd.f32 %v3185, %v3155
      %v3187 = vadd.f32 %v3186, %v3156
      %v3188 = vadd.f32 %v3187, %v3157
      %v3189 = vadd.f32 %v3188, %v3158
      %v3190 = vadd.f32 %v3189, %v3159
      %v3191 = vadd.f32 %v3190, %v3160
      %v3192 = vadd.f32 %v3191, %v3161
      %v3193 = vadd.f32 %v3192, %v3162
      %v3194 = vadd.f32 %v3193, %v3163
      %v3195 = vadd.f32 %v3194, %v3164
      %v3196 = vrot.slane %v3195, 4
      %v3197 = vadd.f32 %v3195, %v3196
      %v3198 = vrot.slane %v3197, 2
      %v3199 = vadd.f32 %v3197, %v3198
      %v3200 = vrot.slane %v3199, 1
      %v3201 = vadd.f32 %v3199, %v3200
      %v3202 = vmul.f32 %v3132, 0.00390625
      %v3203 = vmul.f32 %v3201, 0.00390625
      %v3204 = vmul.f32 %v3202, %v3202
      %v3205 = vsub.f32 %v3203, %v3204
      %v3206 = vsub.f32 %v3064, %v3202
      %v3207 = vsub.f32 %v3065, %v3202
      %v3208 = vsub.f32 %v3066, %v3202
      %v3209 = vsub.f32 %v3067, %v3202
      %v3210 = vsub.f32 %v3068, %v3202
      %v3211 = vsub.f32 %v3069, %v3202
      %v3212 = vsub.f32 %v3070, %v3202
      %v3213 = vsub.f32 %v3071, %v3202
      %v3214 = vsub.f32 %v3072, %v3202
      %v3215 = vsub.f32 %v3073, %v3202
      %v3216 = vsub.f32 %v3074, %v3202
      %v3217 = vsub.f32 %v3075, %v3202
      %v3218 = vsub.f32 %v3076, %v3202
      %v3219 = vsub.f32 %v3077, %v3202
      %v3220 = vsub.f32 %v3078, %v3202
      %v3221 = vsub.f32 %v3079, %v3202
      %v3222 = vsub.f32 %v3080, %v3202
      %v3223 = vsub.f32 %v3081, %v3202
      %v3224 = vsub.f32 %v3082, %v3202
      %v3225 = vsub.f32 %v3083, %v3202
      %v3226 = vsub.f32 %v3084, %v3202
      %v3227 = vsub.f32 %v3085, %v3202
      %v3228 = vsub.f32 %v3086, %v3202
      %v3229 = vsub.f32 %v3087, %v3202
      %v3230 = vsub.f32 %v3088, %v3202
      %v3231 = vsub.f32 %v3089, %v3202
      %v3232 = vsub.f32 %v3090, %v3202
      %v3233 = vsub.f32 %v3091, %v3202
      %v3234 = vsub.f32 %v3092, %v3202
      %v3235 = vsub.f32 %v3093, %v3202
      %v3236 = vsub.f32 %v3094, %v3202
      %v3237 = vsub.f32 %v3095, %v3202
      %v3238 = vadd.f32 %v3205, 1e-05
      %v3239 = vrsqrt.pop %v3238
      %v3240 = vmul.f32 %v3206, %v3239
      %v3241 = vmul.f32 %v3207, %v3239
      %v3242 = vmul.f32 %v3208, %v3239
      %v3243 = vmul.f32 %v3209, %v3239
      %v3244 = vmul.f32 %v3210, %v3239
      %v3245 = vmul.f32 %v3211, %v3239
      %v3246 = vmul.f32 %v3212, %v3239
      %v3247 = vmul.f32 %v3213, %v3239
      %v3248 = vmul.f32 %v3214, %v3239
      %v3249 = vmul.f32 %v3215, %v3239
      %v3250 = vmul.f32 %v3216, %v3239
      %v3251 = vmul.f32 %v3217, %v3239
      %v3252 = vmul.f32 %v3218, %v3239
      %v3253 = vmul.f32 %v3219, %v3239
      %v3254 = vmul.f32 %v3220, %v3239
      %v3255 = vmul.f32 %v3221, %v3239
      %v3256 = vmul.f32 %v3222, %v3239
      %v3257 = vmul.f32 %v3223, %v3239
      %v3258 = vmul.f32 %v3224, %v3239
      %v3259 = vmul.f32 %v3225, %v3239
      %v3260 = vmul.f32 %v3226, %v3239
      %v3261 = vmul.f32 %v3227, %v3239
      %v3262 = vmul.f32 %v3228, %v3239
      %v3263 = vmul.f32 %v3229, %v3239
      %v3264 = vmul.f32 %v3230, %v3239
      %v3265 = vmul.f32 %v3231, %v3239
      %v3266 = vmul.f32 %v3232, %v3239
      %v3267 = vmul.f32 %v3233, %v3239
      %v3268 = vmul.f32 %v3234, %v3239
      %v3269 = vmul.f32 %v3235, %v3239
      %v3270 = vmul.f32 %v3236, %v3239
      %v3271 = vmul.f32 %v3237, %v3239
      %v3272 = vmax.f32 %v3240, 0.0
      %v3273 = vmax.f32 %v3241, 0.0
      %v3274 = vmax.f32 %v3242, 0.0
      %v3275 = vmax.f32 %v3243, 0.0
      %v3276 = vmax.f32 %v3244, 0.0
      %v3277 = vmax.f32 %v3245, 0.0
      %v3278 = vmax.f32 %v3246, 0.0
      %v3279 = vmax.f32 %v3247, 0.0
      %v3280 = vmax.f32 %v3248, 0.0
      %v3281 = vmax.f32 %v3249, 0.0
      %v3282 = vmax.f32 %v3250, 0.0
      %v3283 = vmax.f32 %v3251, 0.0
      %v3284 = vmax.f32 %v3252, 0.0
      %v3285 = vmax.f32 %v3253, 0.0
      %v3286 = vmax.f32 %v3254, 0.0
      %v3287 = vmax.f32 %v3255, 0.0
      %v3288 = vmax.f32 %v3256, 0.0
      %v3289 = vmax.f32 %v3257, 0.0
      %v3290 = vmax.f32 %v3258, 0.0
      %v3291 = vmax.f32 %v3259, 0.0
      %v3292 = vmax.f32 %v3260, 0.0
      %v3293 = vmax.f32 %v3261, 0.0
      %v3294 = vmax.f32 %v3262, 0.0
      %v3295 = vmax.f32 %v3263, 0.0
      %v3296 = vmax.f32 %v3264, 0.0
      %v3297 = vmax.f32 %v3265, 0.0
      %v3298 = vmax.f32 %v3266, 0.0
      %v3299 = vmax.f32 %v3267, 0.0
      %v3300 = vmax.f32 %v3268, 0.0
      %v3301 = vmax.f32 %v3269, 0.0
      %v3302 = vmax.f32 %v3270, 0.0
      %v3303 = vmax.f32 %v3271, 0.0
      %3304 = vst [vmem:[%s257 + $0x8] sm:$0xff] %v3272
      %3305 = vst [vmem:[%s257 + $0x10] sm:$0xff] %v3273
      %3306 = vst [vmem:[%s257 + $0x28] sm:$0xff] %v3274
      %3307 = vst [vmem:[%s257 + $0x30] sm:$0xff] %v3275
      %3308 = vst [vmem:[%s257 + $0x48] sm:$0xff] %v3276
      %3309 = vst [vmem:[%s257 + $0x50] sm:$0xff] %v3277
      %3310 = vst [vmem:[%s257 + $0x68] sm:$0xff] %v3278
      %3311 = vst [vmem:[%s257 + $0x70] sm:$0xff] %v3279
      %3312 = vst [vmem:[%s257 + $0x88] sm:$0xff] %v3280
      %3313 = vst [vmem:[%s257 + $0x90] sm:$0xff] %v3281
      %3314 = vst [vmem:[%s257 + $0xa8] sm:$0xff] %v3282
      %3315 = vst [vmem:[%s257 + $0xb0] sm:$0xff] %v3283
      %3316 = vst [vmem:[%s257 + $0xc8] sm:$0xff] %v3284
      %3317 = vst [vmem:[%s257 + $0xd0] sm:$0xff] %v3285
      %3318 = vst [vmem:[%s257 + $0xe8] sm:$0xff] %v3286
      %3319 = vst [vmem:[%s257 + $0xf0] sm:$0xff] %v3287
      %3320 = vst [vmem:[%s257 + $0x108] sm:$0xff] %v3288
      %3321 = vst [vmem:[%s257 + $0x110] sm:$0xff] %v3289
      %3322 = vst [vmem:[%s257 + $0x128] sm:$0xff] %v3290
      %3323 = vst [vmem:[%s257 + $0x130] sm:$0xff] %v3291
      %3324 = vst [vmem:[%s257 + $0x148] sm:$0xff] %v3292
      %3325 = vst [vmem:[%s257 + $0x150] sm:$0xff] %v3293
      %3326 = vst [vmem:[%s257 + $0x168] sm:$0xff] %v3294
      %3327 = vst [vmem:[%s257 + $0x170] sm:$0xff] %v3295
      %3328 = vst [vmem:[%s257 + $0x188] sm:$0xff] %v3296
      %3329 = vst [vmem:[%s257 + $0x190] sm:$0xff] %v3297
      %3330 = vst [vmem:[%s257 + $0x1a8] sm:$0xff] %v3298
      %3331 = vst [vmem:[%s257 + $0x1b0] sm:$0xff] %v3299
      %3332 = vst [vmem:[%s257 + $0x1c8] sm:$0xff] %v3300
      %3333 = vst [vmem:[%s257 + $0x1d0] sm:$0xff] %v3301
      %3334 = vst [vmem:[%s257 + $0x1e8] sm:$0xff] %v3302
      %3335 = vst [vmem:[%s257 + $0x1f0] sm:$0xff] %v3303
      %3336 = vst [vmem:[#allocation2 + $0x8] sm:$0xff] %v3274
      %3337 = vst [vmem:[#allocation2 + $0x10] sm:$0xff] %v3275
      %3338 = vst [vmem:[%s292 + $0x8] sm:$0xff] %v3300
      %3339 = vst [vmem:[%s292 + $0x10] sm:$0xff] %v3301
      %v3340 = vld [vmem:[#allocation2 + $0x9] sm:$0x1]
      %v3341 = vld [vmem:[#allocation2 + $0x29] sm:$0x1]
      %v3342 = vld [vmem:[#allocation2 + $0x49] sm:$0x1]
      %v3343 = vld [vmem:[#allocation2 + $0x69] sm:$0x1]
      %v3344 = vld [vmem:[#allocation2 + $0x89] sm:$0x1]
      %v3345 = vld [vmem:[#allocation2 + $0xa9] sm:$0x1]
      %v3346 = vld [vmem:[#allocation2 + $0xc9] sm:$0x1]
      %v3347 = vld [vmem:[#allocation2 + $0xe9] sm:$0x1]
      %v3348 = vld [vmem:[#allocation2 + $0x109] sm:$0x1]
      %v3349 = vld [vmem:[#allocation2 + $0x129] sm:$0x1]
      %v3350 = vld [vmem:[#allocation2 + $0x149] sm:$0x1]
      %v3351 = vld [vmem:[#allocation2 + $0x169] sm:$0x1]
      %v3352 = vld [vmem:[#allocation2 + $0x189] sm:$0x1]
      %v3353 = vld [vmem:[#allocation2 + $0x1a9] sm:$0x1]
      %v3354 = vld [vmem:[#allocation2 + $0x1c9] sm:$0x1]
      %v3355 = vld [vmem:[#allocation2 + $0x1e9] sm:$0x1]
      %v3356 = vld [vmem:[#allocation2 + $0x209] sm:$0x1]
      %v3357 = vld [vmem:[#allocation2 + $0x229] sm:$0x1]
      %3358 = vst [vmem:[#allocation2 + $0x7] sm:$0x1] %v3340
      %3359 = vst [vmem:[#allocation2 + $0x27] sm:$0x1] %v3341
      %3360 = vst [vmem:[#allocation2 + $0x47] sm:$0x1] %v3342
      %3361 = vst [vmem:[#allocation2 + $0x67] sm:$0x1] %v3343
      %3362 = vst [vmem:[#allocation2 + $0x87] sm:$0x1] %v3344
      %3363 = vst [vmem:[#allocation2 + $0xa7] sm:$0x1] %v3345
      %3364 = vst [vmem:[#allocation2 + $0xc7] sm:$0x1] %v3346
      %3365 = vst [vmem:[#allocation2 + $0xe7] sm:$0x1] %v3347
      %3366 = vst [vmem:[#allocation2 + $0x107] sm:$0x1] %v3348
      %3367 = vst [vmem:[#allocation2 + $0x127] sm:$0x1] %v3349
      %3368 = vst [vmem:[#allocation2 + $0x147] sm:$0x1] %v3350
      %3369 = vst [vmem:[#allocation2 + $0x167] sm:$0x1] %v3351
      %3370 = vst [vmem:[#allocation2 + $0x187] sm:$0x1] %v3352
      %3371 = vst [vmem:[#allocation2 + $0x1a7] sm:$0x1] %v3353
      %3372 = vst [vmem:[#allocation2 + $0x1c7] sm:$0x1] %v3354
      %3373 = vst [vmem:[#allocation2 + $0x1e7] sm:$0x1] %v3355
      %3374 = vst [vmem:[#allocation2 + $0x207] sm:$0x1] %v3356
      %3375 = vst [vmem:[#allocation2 + $0x227] sm:$0x1] %v3357
      %v3376 = vld [vmem:[#allocation2 + $0x16] sm:$0x1]
      %v3377 = vld [vmem:[#allocation2 + $0x36] sm:$0x1]
      %v3378 = vld [vmem:[#allocation2 + $0x56] sm:$0x1]
      %v3379 = vld [vmem:[#allocation2 + $0x76] sm:$0x1]
      %v3380 = vld [vmem:[#allocation2 + $0x96] sm:$0x1]
      %v3381 = vld [vmem:[#allocation2 + $0xb6] sm:$0x1]
      %v3382 = vld [vmem:[#allocation2 + $0xd6] sm:$0x1]
      %v3383 = vld [vmem:[#allocation2 + $0xf6] sm:$0x1]
      %v3384 = vld [vmem:[#allocation2 + $0x116] sm:$0x1]
      %v3385 = vld [vmem:[#allocation2 + $0x136] sm:$0x1]
      %v3386 = vld [vmem:[#allocation2 + $0x156] sm:$0x1]
      %v3387 = vld [vmem:[#allocation2 + $0x176] sm:$0x1]
      %v3388 = vld [vmem:[#allocation2 + $0x196] sm:$0x1]
      %v3389 = vld [vmem:[#allocation2 + $0x1b6] sm:$0x1]
      %v3390 = vld [vmem:[#allocation2 + $0x1d6] sm:$0x1]
      %v3391 = vld [vmem:[#allocation2 + $0x1f6] sm:$0x1]
      %v3392 = vld [vmem:[#allocation2 + $0x216] sm:$0x1]
      %v3393 = vld [vmem:[#allocation2 + $0x236] sm:$0x1]
      %3394 = vst [vmem:[#allocation2 + $0x18] sm:$0x1] %v3376
      %3395 = vst [vmem:[#allocation2 + $0x38] sm:$0x1] %v3377
      %3396 = vst [vmem:[#allocation2 + $0x58] sm:$0x1] %v3378
      %3397 = vst [vmem:[#allocation2 + $0x78] sm:$0x1] %v3379
      %3398 = vst [vmem:[#allocation2 + $0x98] sm:$0x1] %v3380
      %3399 = vst [vmem:[#allocation2 + $0xb8] sm:$0x1] %v3381
      %3400 = vst [vmem:[#allocation2 + $0xd8] sm:$0x1] %v3382
      %3401 = vst [vmem:[#allocation2 + $0xf8] sm:$0x1] %v3383
      %3402 = vst [vmem:[#allocation2 + $0x118] sm:$0x1] %v3384
      %3403 = vst [vmem:[#allocation2 + $0x138] sm:$0x1] %v3385
      %3404 = vst [vmem:[#allocation2 + $0x158] sm:$0x1] %v3386
      %3405 = vst [vmem:[#allocation2 + $0x178] sm:$0x1] %v3387
      %3406 = vst [vmem:[#allocation2 + $0x198] sm:$0x1] %v3388
      %3407 = vst [vmem:[#allocation2 + $0x1b8] sm:$0x1] %v3389
      %3408 = vst [vmem:[#allocation2 + $0x1d8] sm:$0x1] %v3390
      %3409 = vst [vmem:[#allocation2 + $0x1f8] sm:$0x1] %v3391
      %3410 = vst [vmem:[#allocation2 + $0x218] sm:$0x1] %v3392
      %3411 = vst [vmem:[#allocation2 + $0x238] sm:$0x1] %v3393
      %v3412 = vld [vmem:[#allocation2 + $0x7] sm:$0xff]
      %v3413 = vld [vmem:[#allocation2 + $0xf] sm:$0xff]
      %v3414 = vld [vmem:[#allocation2 + $0x27] sm:$0xff]
      %v3415 = vld [vmem:[#allocation2 + $0x2f] sm:$0xff]
      %v3416 = vld [vmem:[#allocation2 + $0x47] sm:$0xff]
      %v3417 = vld [vmem:[#allocation2 + $0x4f] sm:$0xff]
      %v3418 = vld [vmem:[#allocation2 + $0x67] sm:$0xff]
      %v3419 = vld [vmem:[#allocation2 + $0x6f] sm:$0xff]
      %v3420 = vld [vmem:[#allocation2 + $0x87] sm:$0xff]
      %v3421 = vld [vmem:[#allocation2 + $0x8f] sm:$0xff]
      %v3422 = vld [vmem:[#allocation2 + $0xa7] sm:$0xff]
      %v3423 = vld [vmem:[#allocation2 + $0xaf] sm:$0xff]
      %v3424 = vld [vmem:[#allocation2 + $0xc7] sm:$0xff]
      %v3425 = vld [vmem:[#allocation2 + $0xcf] sm:$0xff]
      %v3426 = vld [vmem:[#allocation2 + $0xe7] sm:$0xff]
      %v3427 = vld [vmem:[#allocation2 + $0xef] sm:$0xff]
      %v3428 = vld [vmem:[#allocation2 + $0x107] sm:$0xff]
      %v3429 = vld [vmem:[#allocation2 + $0x10f] sm:$0xff]
      %v3430 = vld [vmem:[#allocation2 + $0x127] sm:$0xff]
      %v3431 = vld [vmem:[#allocation2 + $0x12f] sm:$0xff]
      %v3432 = vld [vmem:[#allocation2 + $0x147] sm:$0xff]
      %v3433 = vld [vmem:[#allocation2 + $0x14f] sm:$0xff]
      %v3434 = vld [vmem:[#allocation2 + $0x167] sm:$0xff]
      %v3435 = vld [vmem:[#allocation2 + $0x16f] sm:$0xff]
      %v3436 = vld [vmem:[#allocation2 + $0x187] sm:$0xff]
      %v3437 = vld [vmem:[#allocation2 + $0x18f] sm:$0xff]
      %v3438 = vld [vmem:[#allocation2 + $0x1a7] sm:$0xff]
      %v3439 = vld [vmem:[#allocation2 + $0x1af] sm:$0xff]
      %v3440 = vld [vmem:[#allocation2 + $0x1c7] sm:$0xff]
      %v3441 = vld [vmem:[#allocation2 + $0x1cf] sm:$0xff]
      %v3442 = vld [vmem:[#allocation2 + $0x1e7] sm:$0xff]
      %v3443 = vld [vmem:[#allocation2 + $0x1ef] sm:$0xff]
      %v3444 = vld [vmem:[%s3] sm:$0xff]
      %v3445 = vld [vmem:[%s3 + $0x8] sm:$0xff]
      %v3446 = vld [vmem:[%s3 + $0x10] sm:$0xff]
      %v3447 = vld [vmem:[%s3 + $0x18] sm:$0xff]
      %v3448 = vld [vmem:[%s3 + $0x20] sm:$0xff]
      %v3449 = vld [vmem:[%s3 + $0x28] sm:$0xff]
      %v3450 = vld [vmem:[%s3 + $0x30] sm:$0xff]
      %v3451 = vld [vmem:[%s3 + $0x38] sm:$0xff]
      %v3452 = vld [vmem:[%s3 + $0x40] sm:$0xff]
      %v3453 = vld [vmem:[%s3 + $0x48] sm:$0xff]
      %v3454 = vld [vmem:[%s3 + $0x50] sm:$0xff]
      %v3455 = vld [vmem:[%s3 + $0x58] sm:$0xff]
      %v3456 = vld [vmem:[%s3 + $0x60] sm:$0xff]
      %v3457 = vld [vmem:[%s3 + $0x68] sm:$0xff]
      %v3458 = vld [vmem:[%s3 + $0x70] sm:$0xff]
      %v3459 = vld [vmem:[%s3 + $0x78] sm:$0xff]
      %v3460 = vld [vmem:[#allocation2 + $0x8] sm:$0xff]
      %v3461 = vld [vmem:[#allocation2 + $0x10] sm:$0xff]
      %v3462 = vld [vmem:[#allocation2 + $0x28] sm:$0xff]
      %v3463 = vld [vmem:[#allocation2 + $0x30] sm:$0xff]
      %v3464 = vld [vmem:[#allocation2 + $0x48] sm:$0xff]
      %v3465 = vld [vmem:[#allocation2 + $0x50] sm:$0xff]
      %v3466 = vld [vmem:[#allocation2 + $0x68] sm:$0xff]
      %v3467 = vld [vmem:[#allocation2 + $0x70] sm:$0xff]
      %v3468 = vld [vmem:[#allocation2 + $0x88] sm:$0xff]
      %v3469 = vld [vmem:[#allocation2 + $0x90] sm:$0xff]
      %v3470 = vld [vmem:[#allocation2 + $0xa8] sm:$0xff]
      %v3471 = vld [vmem:[#allocation2 + $0xb0] sm:$0xff]
      %v3472 = vld [vmem:[#allocation2 + $0xc8] sm:$0xff]
      %v3473 = vld [vmem:[#allocation2 + $0xd0] sm:$0xff]
      %v3474 = vld [vmem:[#allocation2 + $0xe8] sm:$0xff]
      %v3475 = vld [vmem:[#allocation2 + $0xf0] sm:$0xff]
      %v3476 = vld [vmem:[#allocation2 + $0x108] sm:$0xff]
      %v3477 = vld [vmem:[#allocation2 + $0x110] sm:$0xff]
      %v3478 = vld [vmem:[#allocation2 + $0x128] sm:$0xff]
      %v3479 = vld [vmem:[#allocation2 + $0x130] sm:$0xff]
      %v3480 = vld [vmem:[#allocation2 + $0x148] sm:$0xff]
      %v3481 = vld [vmem:[#allocation2 + $0x150] sm:$0xff]
      %v3482 = vld [vmem:[#allocation2 + $0x168] sm:$0xff]
      %v3483 = vld [vmem:[#allocation2 + $0x170] sm:$0xff]
      %v3484 = vld [vmem:[#allocation2 + $0x188] sm:$0xff]
      %v3485 = vld [vmem:[#allocation2 + $0x190] sm:$0xff]
      %v3486 = vld [vmem:[#allocation2 + $0x1a8] sm:$0xff]
      %v3487 = vld [vmem:[#allocation2 + $0x1b0] sm:$0xff]
      %v3488 = vld [vmem:[#allocation2 + $0x1c8] sm:$0xff]
      %v3489 = vld [vmem:[#allocation2 + $0x1d0] sm:$0xff]
      %v3490 = vld [vmem:[#allocation2 + $0x1e8] sm:$0xff]
      %v3491 = vld [vmem:[#allocation2 + $0x1f0] sm:$0xff]
      %s3492 = scalar_lea.vmem %s3, 128
      %v3493 = vld [vmem:[%s3492] sm:$0xff]
      %v3494 = vld [vmem:[%s3492 + $0x8] sm:$0xff]
      %v3495 = vld [vmem:[%s3492 + $0x10] sm:$0xff]
      %v3496 = vld [vmem:[%s3492 + $0x18] sm:$0xff]
      %v3497 = vld [vmem:[%s3492 + $0x20] sm:$0xff]
      %v3498 = vld [vmem:[%s3492 + $0x28] sm:$0xff]
      %v3499 = vld [vmem:[%s3492 + $0x30] sm:$0xff]
      %v3500 = vld [vmem:[%s3492 + $0x38] sm:$0xff]
      %v3501 = vld [vmem:[%s3492 + $0x40] sm:$0xff]
      %v3502 = vld [vmem:[%s3492 + $0x48] sm:$0xff]
      %v3503 = vld [vmem:[%s3492 + $0x50] sm:$0xff]
      %v3504 = vld [vmem:[%s3492 + $0x58] sm:$0xff]
      %v3505 = vld [vmem:[%s3492 + $0x60] sm:$0xff]
      %v3506 = vld [vmem:[%s3492 + $0x68] sm:$0xff]
      %v3507 = vld [vmem:[%s3492 + $0x70] sm:$0xff]
      %v3508 = vld [vmem:[%s3492 + $0x78] sm:$0xff]
      %3509 = vmatprep.subr.mxu0 0.0
      %3510 = vmatpush1.msra.mxu0 %v3493
      %3511 = vmatprep.subr.mxu0 0.0
      %3512 = vmatpush1.msra.mxu0 %v3494
      %3513 = vmatprep.subr.mxu0 0.0
      %3514 = vmatpush1.msra.mxu0 %v3495
      %3515 = vmatprep.subr.mxu0 0.0
      %3516 = vmatpush1.msra.mxu0 %v3496
      %3517 = vmatprep.subr.mxu0 0.0
      %3518 = vmatpush1.msra.mxu0 %v3497
      %3519 = vmatprep.subr.mxu0 0.0
      %3520 = vmatpush1.msra.mxu0 %v3498
      %3521 = vmatprep.subr.mxu0 0.0
      %3522 = vmatpush1.msra.mxu0 %v3499
      %3523 = vmatprep.subr.mxu0 0.0
      %3524 = vmatpush1.msra.mxu0 %v3500
      %3525 = vmatprep.subr.mxu0 0.0
      %3526 = vmatpush1.msra.mxu0 %v3501
      %3527 = vmatprep.subr.mxu0 0.0
      %3528 = vmatpush1.msra.mxu0 %v3502
      %3529 = vmatprep.subr.mxu0 0.0
      %3530 = vmatpush1.msra.mxu0 %v3503
      %3531 = vmatprep.subr.mxu0 0.0
      %3532 = vmatpush1.msra.mxu0 %v3504
      %3533 = vmatprep.subr.mxu0 0.0
      %3534 = vmatpush1.msra.mxu0 %v3505
      %3535 = vmatprep.subr.mxu0 0.0
      %3536 = vmatpush1.msra.mxu0 %v3506
      %3537 = vmatprep.subr.mxu0 0.0
      %3538 = vmatpush1.msra.mxu0 %v3507
      %3539 = vmatprep.subr.mxu0 0.0
      %3540 = vmatpush1.msra.mxu0 %v3508
      %3541 = vmatprep.subr.mxu0 0.0
      %3542 = vmatpush1.msra.mxu0 0.0
      %3543 = vmatprep.subr.mxu0 0.0
      %3544 = vmatpush1.msra.mxu0 0.0
      %3545 = vmatprep.subr.mxu0 0.0
      %3546 = vmatpush1.msra.mxu0 0.0
      %3547 = vmatprep.subr.mxu0 0.0
      %3548 = vmatpush1.msra.mxu0 0.0
      %3549 = vmatprep.subr.mxu0 0.0
      %3550 = vmatpush1.msra.mxu0 0.0
      %3551 = vmatprep.subr.mxu0 0.0
      %3552 = vmatpush1.msra.mxu0 0.0
      %3553 = vmatprep.subr.mxu0 0.0
      %3554 = vmatpush1.msra.mxu0 0.0
      %3555 = vmatprep.subr.mxu0 0.0
      %3556 = vmatpush1.msra.mxu0 0.0
      %3557 = vmatprep.subr.mxu0 0.0
      %3558 = vmatpush1.msra.mxu0 0.0
      %3559 = vmatprep.subr.mxu0 0.0
      %3560 = vmatpush1.msra.mxu0 0.0
      %3561 = vmatprep.subr.mxu0 0.0
      %3562 = vmatpush1.msra.mxu0 0.0
      %3563 = vmatprep.subr.mxu0 0.0
      %3564 = vmatpush1.msra.mxu0 0.0
      %3565 = vmatprep.subr.mxu0 0.0
      %3566 = vmatpush1.msra.mxu0 0.0
      %3567 = vmatprep.subr.mxu0 0.0
      %3568 = vmatpush1.msra.mxu0 0.0
      %3569 = vmatprep.subr.mxu0 0.0
      %3570 = vmatpush1.msra.mxu0 0.0
      %3571 = vmatprep.subr.mxu0 0.0
      %3572 = vmatpush1.msra.mxu0 0.0
      %3573 = vmatprep.mubr.f32.mxu0 0.0
      %3574 = vmatmul.mubr.f32.gmra.mrb[0].mxu0 %v3460
      %v3575 = vpop.f32.mrb[0].mxu0
      %v3576 = vadd.f32 0.0, %v3575
      %v3577 = vpop.f32.mrb[0].mxu0
      %3578 = vmatprep.mubr.f32.mxu0 0.0
      %3579 = vmatmul.mubr.f32.gmra.mrb[0].mxu0 %v3461
      %v3580 = vpop.f32.mrb[0].mxu0
      %v3581 = vadd.f32 0.0, %v3580
      %v3582 = vpop.f32.mrb[0].mxu0
      %3583 = vmatprep.mubr.f32.mxu0 0.0
      %3584 = vmatmul.mubr.f32.gmra.mrb[0].mxu0 %v3462
      %v3585 = vpop.f32.mrb[0].mxu0
      %v3586 = vadd.f32 0.0, %v3585
      %v3587 = vpop.f32.mrb[0].mxu0
      %3588 = vmatprep.mubr.f32.mxu0 0.0
      %3589 = vmatmul.mubr.f32.gmra.mrb[0].mxu0 %v3463
      %v3590 = vpop.f32.mrb[0].mxu0
      %v3591 = vadd.f32 0.0, %v3590
      %v3592 = vpop.f32.mrb[0].mxu0
      %3593 = vmatprep.mubr.f32.mxu0 0.0
      %3594 = vmatmul.mubr.f32.gmra.mrb[0].mxu0 %v3464
      %v3595 = vpop.f32.mrb[0].mxu0
      %v3596 = vadd.f32 0.0, %v3595
      %v3597 = vpop.f32.mrb[0].mxu0
      %3598 = vmatprep.mubr.f32.mxu0 0.0
      %3599 = vmatmul.mubr.f32.gmra.mrb[0].mxu0 %v3465
      %v3600 = vpop.f32.mrb[0].mxu0
      %v3601 = vadd.f32 0.0, %v3600
      %v3602 = vpop.f32.mrb[0].mxu0
      %3603 = vmatprep.mubr.f32.mxu0 0.0
      %3604 = vmatmul.mubr.f32.gmra.mrb[0].mxu0 %v3466
      %v3605 = vpop.f32.mrb[0].mxu0
      %v3606 = vadd.f32 0.0, %v3605
      %v3607 = vpop.f32.mrb[0].mxu0
      %3608 = vmatprep.mubr.f32.mxu0 0.0
      %3609 = vmatmul.mubr.f32.gmra.mrb[0].mxu0 %v3467
      %v3610 = vpop.f32.mrb[0].mxu0
      %v3611 = vadd.f32 0.0, %v3610
      %v3612 = vpop.f32.mrb[0].mxu0
      %3613 = vmatprep.mubr.f32.mxu0 0.0
      %3614 = vmatmul.mubr.f32.gmra.mrb[0].mxu0 %v3468
      %v3615 = vpop.f32.mrb[0].mxu0
      %v3616 = vadd.f32 0.0, %v3615
      %v3617 = vpop.f32.mrb[0].mxu0
      %3618 = vmatprep.mubr.f32.mxu0 0.0
      %3619 = vmatmul.mubr.f32.gmra.mrb[0].mxu0 %v3469
      %v3620 = vpop.f32.mrb[0].mxu0
      %v3621 = vadd.f32 0.0, %v3620
      %v3622 = vpop.f32.mrb[0].mxu0
      %3623 = vmatprep.mubr.f32.mxu0 0.0
      %3624 = vmatmul.mubr.f32.gmra.mrb[0].mxu0 %v3470
      %v3625 = vpop.f32.mrb[0].mxu0
      %v3626 = vadd.f32 0.0, %v3625
      %v3627 = vpop.f32.mrb[0].mxu0
      %3628 = vmatprep.mubr.f32.mxu0 0.0
      %3629 = vmatmul.mubr.f32.gmra.mrb[0].mxu0 %v3471
      %v3630 = vpop.f32.mrb[0].mxu0
      %v3631 = vadd.f32 0.0, %v3630
      %v3632 = vpop.f32.mrb[0].mxu0
      %3633 = vmatprep.mubr.f32.mxu0 0.0
      %3634 = vmatmul.mubr.f32.gmra.mrb[0].mxu0 %v3472
      %v3635 = vpop.f32.mrb[0].mxu0
      %v3636 = vadd.f32 0.0, %v3635
      %v3637 = vpop.f32.mrb[0].mxu0
      %3638 = vmatprep.mubr.f32.mxu0 0.0
      %3639 = vmatmul.mubr.f32.gmra.mrb[0].mxu0 %v3473
      %v3640 = vpop.f32.mrb[0].mxu0
      %v3641 = vadd.f32 0.0, %v3640
      %v3642 = vpop.f32.mrb[0].mxu0
      %3643 = vmatprep.mubr.f32.mxu0 0.0
      %3644 = vmatmul.mubr.f32.gmra.mrb[0].mxu0 %v3474
      %v3645 = vpop.f32.mrb[0].mxu0
      %v3646 = vadd.f32 0.0, %v3645
      %v3647 = vpop.f32.mrb[0].mxu0
      %3648 = vmatprep.mubr.f32.mxu0 0.0
      %3649 = vmatmul.mubr.f32.gmra.mrb[0].mxu0 %v3475
      %v3650 = vpop.f32.mrb[0].mxu0
      %v3651 = vadd.f32 0.0, %v3650
      %v3652 = vpop.f32.mrb[0].mxu0
      %3653 = vmatprep.mubr.f32.mxu0 0.0
      %3654 = vmatmul.mubr.f32.gmra.mrb[0].mxu0 %v3476
      %v3655 = vpop.f32.mrb[0].mxu0
      %v3656 = vadd.f32 0.0, %v3655
      %v3657 = vpop.f32.mrb[0].mxu0
      %3658 = vmatprep.mubr.f32.mxu0 0.0
      %3659 = vmatmul.mubr.f32.gmra.mrb[0].mxu0 %v3477
      %v3660 = vpop.f32.mrb[0].mxu0
      %v3661 = vadd.f32 0.0, %v3660
      %v3662 = vpop.f32.mrb[0].mxu0
      %3663 = vmatprep.mubr.f32.mxu0 0.0
      %3664 = vmatmul.mubr.f32.gmra.mrb[0].mxu0 %v3478
      %v3665 = vpop.f32.mrb[0].mxu0
      %v3666 = vadd.f32 0.0, %v3665
      %v3667 = vpop.f32.mrb[0].mxu0
      %3668 = vmatprep.mubr.f32.mxu0 0.0
      %3669 = vmatmul.mubr.f32.gmra.mrb[0].mxu0 %v3479
      %v3670 = vpop.f32.mrb[0].mxu0
      %v3671 = vadd.f32 0.0, %v3670
      %v3672 = vpop.f32.mrb[0].mxu0
      %3673 = vmatprep.mubr.f32.mxu0 0.0
      %3674 = vmatmul.mubr.f32.gmra.mrb[0].mxu0 %v3480
      %v3675 = vpop.f32.mrb[0].mxu0
      %v3676 = vadd.f32 0.0, %v3675
      %v3677 = vpop.f32.mrb[0].mxu0
      %3678 = vmatprep.mubr.f32.mxu0 0.0
      %3679 = vmatmul.mubr.f32.gmra.mrb[0].mxu0 %v3481
      %v3680 = vpop.f32.mrb[0].mxu0
      %v3681 = vadd.f32 0.0, %v3680
      %v3682 = vpop.f32.mrb[0].mxu0
      %3683 = vmatprep.mubr.f32.mxu0 0.0
      %3684 = vmatmul.mubr.f32.gmra.mrb[0].mxu0 %v3482
      %v3685 = vpop.f32.mrb[0].mxu0
      %v3686 = vadd.f32 0.0, %v3685
      %v3687 = vpop.f32.mrb[0].mxu0
      %3688 = vmatprep.mubr.f32.mxu0 0.0
      %3689 = vmatmul.mubr.f32.gmra.mrb[0].mxu0 %v3483
      %v3690 = vpop.f32.mrb[0].mxu0
      %v3691 = vadd.f32 0.0, %v3690
      %v3692 = vpop.f32.mrb[0].mxu0
      %3693 = vmatprep.mubr.f32.mxu0 0.0
      %3694 = vmatmul.mubr.f32.gmra.mrb[0].mxu0 %v3484
      %v3695 = vpop.f32.mrb[0].mxu0
      %v3696 = vadd.f32 0.0, %v3695
      %v3697 = vpop.f32.mrb[0].mxu0
      %3698 = vmatprep.mubr.f32.mxu0 0.0
      %3699 = vmatmul.mubr.f32.gmra.mrb[0].mxu0 %v3485
      %v3700 = vpop.f32.mrb[0].mxu0
      %v3701 = vadd.f32 0.0, %v3700
      %v3702 = vpop.f32.mrb[0].mxu0
      %3703 = vmatprep.mubr.f32.mxu0 0.0
      %3704 = vmatmul.mubr.f32.gmra.mrb[0].mxu0 %v3486
      %v3705 = vpop.f32.mrb[0].mxu0
      %v3706 = vadd.f32 0.0, %v3705
      %v3707 = vpop.f32.mrb[0].mxu0
      %3708 = vmatprep.mubr.f32.mxu0 0.0
      %3709 = vmatmul.mubr.f32.gmra.mrb[0].mxu0 %v3487
      %v3710 = vpop.f32.mrb[0].mxu0
      %v3711 = vadd.f32 0.0, %v3710
      %v3712 = vpop.f32.mrb[0].mxu0
      %3713 = vmatprep.mubr.f32.mxu0 0.0
      %3714 = vmatmul.mubr.f32.gmra.mrb[0].mxu0 %v3488
      %v3715 = vpop.f32.mrb[0].mxu0
      %v3716 = vadd.f32 0.0, %v3715
      %v3717 = vpop.f32.mrb[0].mxu0
      %3718 = vmatprep.mubr.f32.mxu0 0.0
      %3719 = vmatmul.mubr.f32.gmra.mrb[0].mxu0 %v3489
      %v3720 = vpop.f32.mrb[0].mxu0
      %v3721 = vadd.f32 0.0, %v3720
      %v3722 = vpop.f32.mrb[0].mxu0
      %3723 = vmatprep.mubr.f32.mxu0 0.0
      %3724 = vmatmul.mubr.f32.gmra.mrb[0].mxu0 %v3490
      %v3725 = vpop.f32.mrb[0].mxu0
      %v3726 = vadd.f32 0.0, %v3725
      %v3727 = vpop.f32.mrb[0].mxu0
      %3728 = vmatprep.mubr.f32.mxu0 0.0
      %3729 = vmatmul.mubr.f32.gmra.mrb[0].mxu0 %v3491
      %v3730 = vpop.f32.mrb[0].mxu0
      %v3731 = vadd.f32 0.0, %v3730
      %v3732 = vpop.f32.mrb[0].mxu0
      %3733 = vdwg.mxu0
      %3734 = vmatprep.subr.mxu0 0.0
      %3735 = vmatpush1.msra.mxu0 %v3444
      %3736 = vmatprep.subr.mxu0 0.0
      %3737 = vmatpush1.msra.mxu0 %v3445
      %3738 = vmatprep.subr.mxu0 0.0
      %3739 = vmatpush1.msra.mxu0 %v3446
      %3740 = vmatprep.subr.mxu0 0.0
      %3741 = vmatpush1.msra.mxu0 %v3447
      %3742 = vmatprep.subr.mxu0 0.0
      %3743 = vmatpush1.msra.mxu0 %v3448
      %3744 = vmatprep.subr.mxu0 0.0
      %3745 = vmatpush1.msra.mxu0 %v3449
      %3746 = vmatprep.subr.mxu0 0.0
      %3747 = vmatpush1.msra.mxu0 %v3450
      %3748 = vmatprep.subr.mxu0 0.0
      %3749 = vmatpush1.msra.mxu0 %v3451
      %3750 = vmatprep.subr.mxu0 0.0
      %3751 = vmatpush1.msra.mxu0 %v3452
      %3752 = vmatprep.subr.mxu0 0.0
      %3753 = vmatpush1.msra.mxu0 %v3453
      %3754 = vmatprep.subr.mxu0 0.0
      %3755 = vmatpush1.msra.mxu0 %v3454
      %3756 = vmatprep.subr.mxu0 0.0
      %3757 = vmatpush1.msra.mxu0 %v3455
      %3758 = vmatprep.subr.mxu0 0.0
      %3759 = vmatpush1.msra.mxu0 %v3456
      %3760 = vmatprep.subr.mxu0 0.0
      %3761 = vmatpush1.msra.mxu0 %v3457
      %3762 = vmatprep.subr.mxu0 0.0
      %3763 = vmatpush1.msra.mxu0 %v3458
      %3764 = vmatprep.subr.mxu0 0.0
      %3765 = vmatpush1.msra.mxu0 %v3459
      %3766 = vmatprep.subr.mxu0 0.0
      %3767 = vmatpush1.msra.mxu0 0.0
      %3768 = vmatprep.subr.mxu0 0.0
      %3769 = vmatpush1.msra.mxu0 0.0
      %3770 = vmatprep.subr.mxu0 0.0
      %3771 = vmatpush1.msra.mxu0 0.0
      %3772 = vmatprep.subr.mxu0 0.0
      %3773 = vmatpush1.msra.mxu0 0.0
      %3774 = vmatprep.subr.mxu0 0.0
      %3775 = vmatpush1.msra.mxu0 0.0
      %3776 = vmatprep.subr.mxu0 0.0
      %3777 = vmatpush1.msra.mxu0 0.0
      %3778 = vmatprep.subr.mxu0 0.0
      %3779 = vmatpush1.msra.mxu0 0.0
      %3780 = vmatprep.subr.mxu0 0.0
      %3781 = vmatpush1.msra.mxu0 0.0
      %3782 = vmatprep.subr.mxu0 0.0
      %3783 = vmatpush1.msra.mxu0 0.0
      %3784 = vmatprep.subr.mxu0 0.0
      %3785 = vmatpush1.msra.mxu0 0.0
      %3786 = vmatprep.subr.mxu0 0.0
      %3787 = vmatpush1.msra.mxu0 0.0
      %3788 = vmatprep.subr.mxu0 0.0
      %3789 = vmatpush1.msra.mxu0 0.0
      %3790 = vmatprep.subr.mxu0 0.0
      %3791 = vmatpush1.msra.mxu0 0.0
      %3792 = vmatprep.subr.mxu0 0.0
      %3793 = vmatpush1.msra.mxu0 0.0
      %3794 = vmatprep.subr.mxu0 0.0
      %3795 = vmatpush1.msra.mxu0 0.0
      %3796 = vmatprep.subr.mxu0 0.0
      %3797 = vmatpush1.msra.mxu0 0.0
      %3798 = vmatprep.mubr.f32.mxu0 0.0
      %3799 = vmatmul.mubr.f32.gmra.mrb[0].mxu0 %v3412
      %v3800 = vpop.f32.mrb[0].mxu0
      %v3801 = vadd.f32 %v3576, %v3800
      %v3802 = vpop.f32.mrb[0].mxu0
      %3803 = vmatprep.mubr.f32.mxu0 0.0
      %3804 = vmatmul.mubr.f32.gmra.mrb[0].mxu0 %v3413
      %v3805 = vpop.f32.mrb[0].mxu0
      %v3806 = vadd.f32 %v3581, %v3805
      %v3807 = vpop.f32.mrb[0].mxu0
      %3808 = vmatprep.mubr.f32.mxu0 0.0
      %3809 = vmatmul.mubr.f32.gmra.mrb[0].mxu0 %v3414
      %v3810 = vpop.f32.mrb[0].mxu0
      %v3811 = vadd.f32 %v3586, %v3810
      %v3812 = vpop.f32.mrb[0].mxu0
      %3813 = vmatprep.mubr.f32.mxu0 0.0
      %3814 = vmatmul.mubr.f32.gmra.mrb[0].mxu0 %v3415
      %v3815 = vpop.f32.mrb[0].mxu0
      %v3816 = vadd.f32 %v3591, %v3815
      %v3817 = vpop.f32.mrb[0].mxu0
      %3818 = vmatprep.mubr.f32.mxu0 0.0
      %3819 = vmatmul.mubr.f32.gmra.mrb[0].mxu0 %v3416
      %v3820 = vpop.f32.mrb[0].mxu0
      %v3821 = vadd.f32 %v3596, %v3820
      %v3822 = vpop.f32.mrb[0].mxu0
      %3823 = vmatprep.mubr.f32.mxu0 0.0
      %3824 = vmatmul.mubr.f32.gmra.mrb[0].mxu0 %v3417
      %v3825 = vpop.f32.mrb[0].mxu0
      %v3826 = vadd.f32 %v3601, %v3825
      %v3827 = vpop.f32.mrb[0].mxu0
      %3828 = vmatprep.mubr.f32.mxu0 0.0
      %3829 = vmatmul.mubr.f32.gmra.mrb[0].mxu0 %v3418
      %v3830 = vpop.f32.mrb[0].mxu0
      %v3831 = vadd.f32 %v3606, %v3830
      %v3832 = vpop.f32.mrb[0].mxu0
      %3833 = vmatprep.mubr.f32.mxu0 0.0
      %3834 = vmatmul.mubr.f32.gmra.mrb[0].mxu0 %v3419
      %v3835 = vpop.f32.mrb[0].mxu0
      %v3836 = vadd.f32 %v3611, %v3835
      %v3837 = vpop.f32.mrb[0].mxu0
      %3838 = vmatprep.mubr.f32.mxu0 0.0
      %3839 = vmatmul.mubr.f32.gmra.mrb[0].mxu0 %v3420
      %v3840 = vpop.f32.mrb[0].mxu0
      %v3841 = vadd.f32 %v3616, %v3840
      %v3842 = vpop.f32.mrb[0].mxu0
      %3843 = vmatprep.mubr.f32.mxu0 0.0
      %3844 = vmatmul.mubr.f32.gmra.mrb[0].mxu0 %v3421
      %v3845 = vpop.f32.mrb[0].mxu0
      %v3846 = vadd.f32 %v3621, %v3845
      %v3847 = vpop.f32.mrb[0].mxu0
      %3848 = vmatprep.mubr.f32.mxu0 0.0
      %3849 = vmatmul.mubr.f32.gmra.mrb[0].mxu0 %v3422
      %v3850 = vpop.f32.mrb[0].mxu0
      %v3851 = vadd.f32 %v3626, %v3850
      %v3852 = vpop.f32.mrb[0].mxu0
      %3853 = vmatprep.mubr.f32.mxu0 0.0
      %3854 = vmatmul.mubr.f32.gmra.mrb[0].mxu0 %v3423
      %v3855 = vpop.f32.mrb[0].mxu0
      %v3856 = vadd.f32 %v3631, %v3855
      %v3857 = vpop.f32.mrb[0].mxu0
      %3858 = vmatprep.mubr.f32.mxu0 0.0
      %3859 = vmatmul.mubr.f32.gmra.mrb[0].mxu0 %v3424
      %v3860 = vpop.f32.mrb[0].mxu0
      %v3861 = vadd.f32 %v3636, %v3860
      %v3862 = vpop.f32.mrb[0].mxu0
      %3863 = vmatprep.mubr.f32.mxu0 0.0
      %3864 = vmatmul.mubr.f32.gmra.mrb[0].mxu0 %v3425
      %v3865 = vpop.f32.mrb[0].mxu0
      %v3866 = vadd.f32 %v3641, %v3865
      %v3867 = vpop.f32.mrb[0].mxu0
      %3868 = vmatprep.mubr.f32.mxu0 0.0
      %3869 = vmatmul.mubr.f32.gmra.mrb[0].mxu0 %v3426
      %v3870 = vpop.f32.mrb[0].mxu0
      %v3871 = vadd.f32 %v3646, %v3870
      %v3872 = vpop.f32.mrb[0].mxu0
      %3873 = vmatprep.mubr.f32.mxu0 0.0
      %3874 = vmatmul.mubr.f32.gmra.mrb[0].mxu0 %v3427
      %v3875 = vpop.f32.mrb[0].mxu0
      %v3876 = vadd.f32 %v3651, %v3875
      %v3877 = vpop.f32.mrb[0].mxu0
      %3878 = vmatprep.mubr.f32.mxu0 0.0
      %3879 = vmatmul.mubr.f32.gmra.mrb[0].mxu0 %v3428
      %v3880 = vpop.f32.mrb[0].mxu0
      %v3881 = vadd.f32 %v3656, %v3880
      %v3882 = vpop.f32.mrb[0].mxu0
      %3883 = vmatprep.mubr.f32.mxu0 0.0
      %3884 = vmatmul.mubr.f32.gmra.mrb[0].mxu0 %v3429
      %v3885 = vpop.f32.mrb[0].mxu0
      %v3886 = vadd.f32 %v3661, %v3885
      %v3887 = vpop.f32.mrb[0].mxu0
      %3888 = vmatprep.mubr.f32.mxu0 0.0
      %3889 = vmatmul.mubr.f32.gmra.mrb[0].mxu0 %v3430
      %v3890 = vpop.f32.mrb[0].mxu0
      %v3891 = vadd.f32 %v3666, %v3890
      %v3892 = vpop.f32.mrb[0].mxu0
      %3893 = vmatprep.mubr.f32.mxu0 0.0
      %3894 = vmatmul.mubr.f32.gmra.mrb[0].mxu0 %v3431
      %v3895 = vpop.f32.mrb[0].mxu0
      %v3896 = vadd.f32 %v3671, %v3895
      %v3897 = vpop.f32.mrb[0].mxu0
      %3898 = vmatprep.mubr.f32.mxu0 0.0
      %3899 = vmatmul.mubr.f32.gmra.mrb[0].mxu0 %v3432
      %v3900 = vpop.f32.mrb[0].mxu0
      %v3901 = vadd.f32 %v3676, %v3900
      %v3902 = vpop.f32.mrb[0].mxu0
      %3903 = vmatprep.mubr.f32.mxu0 0.0
      %3904 = vmatmul.mubr.f32.gmra.mrb[0].mxu0 %v3433
      %v3905 = vpop.f32.mrb[0].mxu0
      %v3906 = vadd.f32 %v3681, %v3905
      %v3907 = vpop.f32.mrb[0].mxu0
      %3908 = vmatprep.mubr.f32.mxu0 0.0
      %3909 = vmatmul.mubr.f32.gmra.mrb[0].mxu0 %v3434
      %v3910 = vpop.f32.mrb[0].mxu0
      %v3911 = vadd.f32 %v3686, %v3910
      %v3912 = vpop.f32.mrb[0].mxu0
      %3913 = vmatprep.mubr.f32.mxu0 0.0
      %3914 = vmatmul.mubr.f32.gmra.mrb[0].mxu0 %v3435
      %v3915 = vpop.f32.mrb[0].mxu0
      %v3916 = vadd.f32 %v3691, %v3915
      %v3917 = vpop.f32.mrb[0].mxu0
      %3918 = vmatprep.mubr.f32.mxu0 0.0
      %3919 = vmatmul.mubr.f32.gmra.mrb[0].mxu0 %v3436
      %v3920 = vpop.f32.mrb[0].mxu0
      %v3921 = vadd.f32 %v3696, %v3920
      %v3922 = vpop.f32.mrb[0].mxu0
      %3923 = vmatprep.mubr.f32.mxu0 0.0
      %3924 = vmatmul.mubr.f32.gmra.mrb[0].mxu0 %v3437
      %v3925 = vpop.f32.mrb[0].mxu0
      %v3926 = vadd.f32 %v3701, %v3925
      %v3927 = vpop.f32.mrb[0].mxu0
      %3928 = vmatprep.mubr.f32.mxu0 0.0
      %3929 = vmatmul.mubr.f32.gmra.mrb[0].mxu0 %v3438
      %v3930 = vpop.f32.mrb[0].mxu0
      %v3931 = vadd.f32 %v3706, %v3930
      %v3932 = vpop.f32.mrb[0].mxu0
      %3933 = vmatprep.mubr.f32.mxu0 0.0
      %3934 = vmatmul.mubr.f32.gmra.mrb[0].mxu0 %v3439
      %v3935 = vpop.f32.mrb[0].mxu0
      %v3936 = vadd.f32 %v3711, %v3935
      %v3937 = vpop.f32.mrb[0].mxu0
      %3938 = vmatprep.mubr.f32.mxu0 0.0
      %3939 = vmatmul.mubr.f32.gmra.mrb[0].mxu0 %v3440
      %v3940 = vpop.f32.mrb[0].mxu0
      %v3941 = vadd.f32 %v3716, %v3940
      %v3942 = vpop.f32.mrb[0].mxu0
      %3943 = vmatprep.mubr.f32.mxu0 0.0
      %3944 = vmatmul.mubr.f32.gmra.mrb[0].mxu0 %v3441
      %v3945 = vpop.f32.mrb[0].mxu0
      %v3946 = vadd.f32 %v3721, %v3945
      %v3947 = vpop.f32.mrb[0].mxu0
      %3948 = vmatprep.mubr.f32.mxu0 0.0
      %3949 = vmatmul.mubr.f32.gmra.mrb[0].mxu0 %v3442
      %v3950 = vpop.f32.mrb[0].mxu0
      %v3951 = vadd.f32 %v3726, %v3950
      %v3952 = vpop.f32.mrb[0].mxu0
      %3953 = vmatprep.mubr.f32.mxu0 0.0
      %3954 = vmatmul.mubr.f32.gmra.mrb[0].mxu0 %v3443
      %v3955 = vpop.f32.mrb[0].mxu0
      %v3956 = vadd.f32 %v3731, %v3955
      %v3957 = vpop.f32.mrb[0].mxu0
      %3958 = vdwg.mxu0
      %v3959 = vld [vmem:[#allocation2 + $0x9] sm:$0xff]
      %v3960 = vld [vmem:[#allocation2 + $0x11] sm:$0xff]
      %v3961 = vld [vmem:[#allocation2 + $0x29] sm:$0xff]
      %v3962 = vld [vmem:[#allocation2 + $0x31] sm:$0xff]
      %v3963 = vld [vmem:[#allocation2 + $0x49] sm:$0xff]
      %v3964 = vld [vmem:[#allocation2 + $0x51] sm:$0xff]
      %v3965 = vld [vmem:[#allocation2 + $0x69] sm:$0xff]
      %v3966 = vld [vmem:[#allocation2 + $0x71] sm:$0xff]
      %v3967 = vld [vmem:[#allocation2 + $0x89] sm:$0xff]
      %v3968 = vld [vmem:[#allocation2 + $0x91] sm:$0xff]
      %v3969 = vld [vmem:[#allocation2 + $0xa9] sm:$0xff]
      %v3970 = vld [vmem:[#allocation2 + $0xb1] sm:$0xff]
      %v3971 = vld [vmem:[#allocation2 + $0xc9] sm:$0xff]
      %v3972 = vld [vmem:[#allocation2 + $0xd1] sm:$0xff]
      %v3973 = vld [vmem:[#allocation2 + $0xe9] sm:$0xff]
      %v3974 = vld [vmem:[#allocation2 + $0xf1] sm:$0xff]
      %v3975 = vld [vmem:[#allocation2 + $0x109] sm:$0xff]
      %v3976 = vld [vmem:[#allocation2 + $0x111] sm:$0xff]
      %v3977 = vld [vmem:[#allocation2 + $0x129] sm:$0xff]
      %v3978 = vld [vmem:[#allocation2 + $0x131] sm:$0xff]
      %v3979 = vld [vmem:[#allocation2 + $0x149] sm:$0xff]
      %v3980 = vld [vmem:[#allocation2 + $0x151] sm:$0xff]
      %v3981 = vld [vmem:[#allocation2 + $0x169] sm:$0xff]
      %v3982 = vld [vmem:[#allocation2 + $0x171] sm:$0xff]
      %v3983 = vld [vmem:[#allocation2 + $0x189] sm:$0xff]
      %v3984 = vld [vmem:[#allocation2 + $0x191] sm:$0xff]
      %v3985 = vld [vmem:[#allocation2 + $0x1a9] sm:$0xff]
      %v3986 = vld [vmem:[#allocation2 + $0x1b1] sm:$0xff]
      %v3987 = vld [vmem:[#allocation2 + $0x1c9] sm:$0xff]
      %v3988 = vld [vmem:[#allocation2 + $0x1d1] sm:$0xff]
      %v3989 = vld [vmem:[#allocation2 + $0x1e9] sm:$0xff]
      %v3990 = vld [vmem:[#allocation2 + $0x1f1] sm:$0xff]
      %s3991 = scalar_lea.vmem %s3, 256
      %v3992 = vld [vmem:[%s3991] sm:$0xff]
      %v3993 = vld [vmem:[%s3991 + $0x8] sm:$0xff]
      %v3994 = vld [vmem:[%s3991 + $0x10] sm:$0xff]
      %v3995 = vld [vmem:[%s3991 + $0x18] sm:$0xff]
      %v3996 = vld [vmem:[%s3991 + $0x20] sm:$0xff]
      %v3997 = vld [vmem:[%s3991 + $0x28] sm:$0xff]
      %v3998 = vld [vmem:[%s3991 + $0x30] sm:$0xff]
      %v3999 = vld [vmem:[%s3991 + $0x38] sm:$0xff]
      %v4000 = vld [vmem:[%s3991 + $0x40] sm:$0xff]
      %v4001 = vld [vmem:[%s3991 + $0x48] sm:$0xff]
      %v4002 = vld [vmem:[%s3991 + $0x50] sm:$0xff]
      %v4003 = vld [vmem:[%s3991 + $0x58] sm:$0xff]
      %v4004 = vld [vmem:[%s3991 + $0x60] sm:$0xff]
      %v4005 = vld [vmem:[%s3991 + $0x68] sm:$0xff]
      %v4006 = vld [vmem:[%s3991 + $0x70] sm:$0xff]
      %v4007 = vld [vmem:[%s3991 + $0x78] sm:$0xff]
      %4008 = vmatprep.subr.mxu0 0.0
      %4009 = vmatpush1.msra.mxu0 %v3992
      %4010 = vmatprep.subr.mxu0 0.0
      %4011 = vmatpush1.msra.mxu0 %v3993
      %4012 = vmatprep.subr.mxu0 0.0
      %4013 = vmatpush1.msra.mxu0 %v3994
      %4014 = vmatprep.subr.mxu0 0.0
      %4015 = vmatpush1.msra.mxu0 %v3995
      %4016 = vmatprep.subr.mxu0 0.0
      %4017 = vmatpush1.msra.mxu0 %v3996
      %4018 = vmatprep.subr.mxu0 0.0
      %4019 = vmatpush1.msra.mxu0 %v3997
      %4020 = vmatprep.subr.mxu0 0.0
      %4021 = vmatpush1.msra.mxu0 %v3998
      %4022 = vmatprep.subr.mxu0 0.0
      %4023 = vmatpush1.msra.mxu0 %v3999
      %4024 = vmatprep.subr.mxu0 0.0
      %4025 = vmatpush1.msra.mxu0 %v4000
      %4026 = vmatprep.subr.mxu0 0.0
      %4027 = vmatpush1.msra.mxu0 %v4001
      %4028 = vmatprep.subr.mxu0 0.0
      %4029 = vmatpush1.msra.mxu0 %v4002
      %4030 = vmatprep.subr.mxu0 0.0
      %4031 = vmatpush1.msra.mxu0 %v4003
      %4032 = vmatprep.subr.mxu0 0.0
      %4033 = vmatpush1.msra.mxu0 %v4004
      %4034 = vmatprep.subr.mxu0 0.0
      %4035 = vmatpush1.msra.mxu0 %v4005
      %4036 = vmatprep.subr.mxu0 0.0
      %4037 = vmatpush1.msra.mxu0 %v4006
      %4038 = vmatprep.subr.mxu0 0.0
      %4039 = vmatpush1.msra.mxu0 %v4007
      %4040 = vmatprep.subr.mxu0 0.0
      %4041 = vmatpush1.msra.mxu0 0.0
      %4042 = vmatprep.subr.mxu0 0.0
      %4043 = vmatpush1.msra.mxu0 0.0
      %4044 = vmatprep.subr.mxu0 0.0
      %4045 = vmatpush1.msra.mxu0 0.0
      %4046 = vmatprep.subr.mxu0 0.0
      %4047 = vmatpush1.msra.mxu0 0.0
      %4048 = vmatprep.subr.mxu0 0.0
      %4049 = vmatpush1.msra.mxu0 0.0
      %4050 = vmatprep.subr.mxu0 0.0
      %4051 = vmatpush1.msra.mxu0 0.0
      %4052 = vmatprep.subr.mxu0 0.0
      %4053 = vmatpush1.msra.mxu0 0.0
      %4054 = vmatprep.subr.mxu0 0.0
      %4055 = vmatpush1.msra.mxu0 0.0
      %4056 = vmatprep.subr.mxu0 0.0
      %4057 = vmatpush1.msra.mxu0 0.0
      %4058 = vmatprep.subr.mxu0 0.0
      %4059 = vmatpush1.msra.mxu0 0.0
      %4060 = vmatprep.subr.mxu0 0.0
      %4061 = vmatpush1.msra.mxu0 0.0
      %4062 = vmatprep.subr.mxu0 0.0
      %4063 = vmatpush1.msra.mxu0 0.0
      %4064 = vmatprep.subr.mxu0 0.0
      %4065 = vmatpush1.msra.mxu0 0.0
      %4066 = vmatprep.subr.mxu0 0.0
      %4067 = vmatpush1.msra.mxu0 0.0
      %4068 = vmatprep.subr.mxu0 0.0
      %4069 = vmatpush1.msra.mxu0 0.0
      %4070 = vmatprep.subr.mxu0 0.0
      %4071 = vmatpush1.msra.mxu0 0.0
      %4072 = vmatprep.mubr.f32.mxu0 0.0
      %4073 = vmatmul.mubr.f32.gmra.mrb[0].mxu0 %v3959
      %v4074 = vpop.f32.mrb[0].mxu0
      %v4075 = vadd.f32 0.0, %v4074
      %v4076 = vpop.f32.mrb[0].mxu0
      %4077 = vmatprep.mubr.f32.mxu0 0.0
      %4078 = vmatmul.mubr.f32.gmra.mrb[0].mxu0 %v3960
      %v4079 = vpop.f32.mrb[0].mxu0
      %v4080 = vadd.f32 0.0, %v4079
      %v4081 = vpop.f32.mrb[0].mxu0
      %4082 = vmatprep.mubr.f32.mxu0 0.0
      %4083 = vmatmul.mubr.f32.gmra.mrb[0].mxu0 %v3961
      %v4084 = vpop.f32.mrb[0].mxu0
      %v4085 = vadd.f32 0.0, %v4084
      %v4086 = vpop.f32.mrb[0].mxu0
      %4087 = vmatprep.mubr.f32.mxu0 0.0
      %4088 = vmatmul.mubr.f32.gmra.mrb[0].mxu0 %v3962
      %v4089 = vpop.f32.mrb[0].mxu0
      %v4090 = vadd.f32 0.0, %v4089
      %v4091 = vpop.f32.mrb[0].mxu0
      %4092 = vmatprep.mubr.f32.mxu0 0.0
      %4093 = vmatmul.mubr.f32.gmra.mrb[0].mxu0 %v3963
      %v4094 = vpop.f32.mrb[0].mxu0
      %v4095 = vadd.f32 0.0, %v4094
      %v4096 = vpop.f32.mrb[0].mxu0
      %4097 = vmatprep.mubr.f32.mxu0 0.0
      %4098 = vmatmul.mubr.f32.gmra.mrb[0].mxu0 %v3964
      %v4099 = vpop.f32.mrb[0].mxu0
      %v4100 = vadd.f32 0.0, %v4099
      %v4101 = vpop.f32.mrb[0].mxu0
      %4102 = vmatprep.mubr.f32.mxu0 0.0
      %4103 = vmatmul.mubr.f32.gmra.mrb[0].mxu0 %v3965
      %v4104 = vpop.f32.mrb[0].mxu0
      %v4105 = vadd.f32 0.0, %v4104
      %v4106 = vpop.f32.mrb[0].mxu0
      %4107 = vmatprep.mubr.f32.mxu0 0.0
      %4108 = vmatmul.mubr.f32.gmra.mrb[0].mxu0 %v3966
      %v4109 = vpop.f32.mrb[0].mxu0
      %v4110 = vadd.f32 0.0, %v4109
      %v4111 = vpop.f32.mrb[0].mxu0
      %4112 = vmatprep.mubr.f32.mxu0 0.0
      %4113 = vmatmul.mubr.f32.gmra.mrb[0].mxu0 %v3967
      %v4114 = vpop.f32.mrb[0].mxu0
      %v4115 = vadd.f32 0.0, %v4114
      %v4116 = vpop.f32.mrb[0].mxu0
      %4117 = vmatprep.mubr.f32.mxu0 0.0
      %4118 = vmatmul.mubr.f32.gmra.mrb[0].mxu0 %v3968
      %v4119 = vpop.f32.mrb[0].mxu0
      %v4120 = vadd.f32 0.0, %v4119
      %v4121 = vpop.f32.mrb[0].mxu0
      %4122 = vmatprep.mubr.f32.mxu0 0.0
      %4123 = vmatmul.mubr.f32.gmra.mrb[0].mxu0 %v3969
      %v4124 = vpop.f32.mrb[0].mxu0
      %v4125 = vadd.f32 0.0, %v4124
      %v4126 = vpop.f32.mrb[0].mxu0
      %4127 = vmatprep.mubr.f32.mxu0 0.0
      %4128 = vmatmul.mubr.f32.gmra.mrb[0].mxu0 %v3970
      %v4129 = vpop.f32.mrb[0].mxu0
      %v4130 = vadd.f32 0.0, %v4129
      %v4131 = vpop.f32.mrb[0].mxu0
      %4132 = vmatprep.mubr.f32.mxu0 0.0
      %4133 = vmatmul.mubr.f32.gmra.mrb[0].mxu0 %v3971
      %v4134 = vpop.f32.mrb[0].mxu0
      %v4135 = vadd.f32 0.0, %v4134
      %v4136 = vpop.f32.mrb[0].mxu0
      %4137 = vmatprep.mubr.f32.mxu0 0.0
      %4138 = vmatmul.mubr.f32.gmra.mrb[0].mxu0 %v3972
      %v4139 = vpop.f32.mrb[0].mxu0
      %v4140 = vadd.f32 0.0, %v4139
      %v4141 = vpop.f32.mrb[0].mxu0
      %4142 = vmatprep.mubr.f32.mxu0 0.0
      %4143 = vmatmul.mubr.f32.gmra.mrb[0].mxu0 %v3973
      %v4144 = vpop.f32.mrb[0].mxu0
      %v4145 = vadd.f32 0.0, %v4144
      %v4146 = vpop.f32.mrb[0].mxu0
      %4147 = vmatprep.mubr.f32.mxu0 0.0
      %4148 = vmatmul.mubr.f32.gmra.mrb[0].mxu0 %v3974
      %v4149 = vpop.f32.mrb[0].mxu0
      %v4150 = vadd.f32 0.0, %v4149
      %v4151 = vpop.f32.mrb[0].mxu0
      %4152 = vmatprep.mubr.f32.mxu0 0.0
      %4153 = vmatmul.mubr.f32.gmra.mrb[0].mxu0 %v3975
      %v4154 = vpop.f32.mrb[0].mxu0
      %v4155 = vadd.f32 0.0, %v4154
      %v4156 = vpop.f32.mrb[0].mxu0
      %4157 = vmatprep.mubr.f32.mxu0 0.0
      %4158 = vmatmul.mubr.f32.gmra.mrb[0].mxu0 %v3976
      %v4159 = vpop.f32.mrb[0].mxu0
      %v4160 = vadd.f32 0.0, %v4159
      %v4161 = vpop.f32.mrb[0].mxu0
      %4162 = vmatprep.mubr.f32.mxu0 0.0
      %4163 = vmatmul.mubr.f32.gmra.mrb[0].mxu0 %v3977
      %v4164 = vpop.f32.mrb[0].mxu0
      %v4165 = vadd.f32 0.0, %v4164
      %v4166 = vpop.f32.mrb[0].mxu0
      %4167 = vmatprep.mubr.f32.mxu0 0.0
      %4168 = vmatmul.mubr.f32.gmra.mrb[0].mxu0 %v3978
      %v4169 = vpop.f32.mrb[0].mxu0
      %v4170 = vadd.f32 0.0, %v4169
      %v4171 = vpop.f32.mrb[0].mxu0
      %4172 = vmatprep.mubr.f32.mxu0 0.0
      %4173 = vmatmul.mubr.f32.gmra.mrb[0].mxu0 %v3979
      %v4174 = vpop.f32.mrb[0].mxu0
      %v4175 = vadd.f32 0.0, %v4174
      %v4176 = vpop.f32.mrb[0].mxu0
      %4177 = vmatprep.mubr.f32.mxu0 0.0
      %4178 = vmatmul.mubr.f32.gmra.mrb[0].mxu0 %v3980
      %v4179 = vpop.f32.mrb[0].mxu0
      %v4180 = vadd.f32 0.0, %v4179
      %v4181 = vpop.f32.mrb[0].mxu0
      %4182 = vmatprep.mubr.f32.mxu0 0.0
      %4183 = vmatmul.mubr.f32.gmra.mrb[0].mxu0 %v3981
      %v4184 = vpop.f32.mrb[0].mxu0
      %v4185 = vadd.f32 0.0, %v4184
      %v4186 = vpop.f32.mrb[0].mxu0
      %4187 = vmatprep.mubr.f32.mxu0 0.0
      %4188 = vmatmul.mubr.f32.gmra.mrb[0].mxu0 %v3982
      %v4189 = vpop.f32.mrb[0].mxu0
      %v4190 = vadd.f32 0.0, %v4189
      %v4191 = vpop.f32.mrb[0].mxu0
      %4192 = vmatprep.mubr.f32.mxu0 0.0
      %4193 = vmatmul.mubr.f32.gmra.mrb[0].mxu0 %v3983
      %v4194 = vpop.f32.mrb[0].mxu0
      %v4195 = vadd.f32 0.0, %v4194
      %v4196 = vpop.f32.mrb[0].mxu0
      %4197 = vmatprep.mubr.f32.mxu0 0.0
      %4198 = vmatmul.mubr.f32.gmra.mrb[0].mxu0 %v3984
      %v4199 = vpop.f32.mrb[0].mxu0
      %v4200 = vadd.f32 0.0, %v4199
      %v4201 = vpop.f32.mrb[0].mxu0
      %4202 = vmatprep.mubr.f32.mxu0 0.0
      %4203 = vmatmul.mubr.f32.gmra.mrb[0].mxu0 %v3985
      %v4204 = vpop.f32.mrb[0].mxu0
      %v4205 = vadd.f32 0.0, %v4204
      %v4206 = vpop.f32.mrb[0].mxu0
      %4207 = vmatprep.mubr.f32.mxu0 0.0
      %4208 = vmatmul.mubr.f32.gmra.mrb[0].mxu0 %v3986
      %v4209 = vpop.f32.mrb[0].mxu0
      %v4210 = vadd.f32 0.0, %v4209
      %v4211 = vpop.f32.mrb[0].mxu0
      %4212 = vmatprep.mubr.f32.mxu0 0.0
      %4213 = vmatmul.mubr.f32.gmra.mrb[0].mxu0 %v3987
      %v4214 = vpop.f32.mrb[0].mxu0
      %v4215 = vadd.f32 0.0, %v4214
      %v4216 = vpop.f32.mrb[0].mxu0
      %4217 = vmatprep.mubr.f32.mxu0 0.0
      %4218 = vmatmul.mubr.f32.gmra.mrb[0].mxu0 %v3988
      %v4219 = vpop.f32.mrb[0].mxu0
      %v4220 = vadd.f32 0.0, %v4219
      %v4221 = vpop.f32.mrb[0].mxu0
      %4222 = vmatprep.mubr.f32.mxu0 0.0
      %4223 = vmatmul.mubr.f32.gmra.mrb[0].mxu0 %v3989
      %v4224 = vpop.f32.mrb[0].mxu0
      %v4225 = vadd.f32 0.0, %v4224
      %v4226 = vpop.f32.mrb[0].mxu0
      %4227 = vmatprep.mubr.f32.mxu0 0.0
      %4228 = vmatmul.mubr.f32.gmra.mrb[0].mxu0 %v3990
      %v4229 = vpop.f32.mrb[0].mxu0
      %v4230 = vadd.f32 0.0, %v4229
      %v4231 = vpop.f32.mrb[0].mxu0
      %4232 = vdwg.mxu0
      %v4233 = vadd.f32 %v3801, %v4075
      %v4234 = vadd.f32 %v3806, %v4080
      %v4235 = vadd.f32 %v3811, %v4085
      %v4236 = vadd.f32 %v3816, %v4090
      %v4237 = vadd.f32 %v3821, %v4095
      %v4238 = vadd.f32 %v3826, %v4100
      %v4239 = vadd.f32 %v3831, %v4105
      %v4240 = vadd.f32 %v3836, %v4110
      %v4241 = vadd.f32 %v3841, %v4115
      %v4242 = vadd.f32 %v3846, %v4120
      %v4243 = vadd.f32 %v3851, %v4125
      %v4244 = vadd.f32 %v3856, %v4130
      %v4245 = vadd.f32 %v3861, %v4135
      %v4246 = vadd.f32 %v3866, %v4140
      %v4247 = vadd.f32 %v3871, %v4145
      %v4248 = vadd.f32 %v3876, %v4150
      %v4249 = vadd.f32 %v3881, %v4155
      %v4250 = vadd.f32 %v3886, %v4160
      %v4251 = vadd.f32 %v3891, %v4165
      %v4252 = vadd.f32 %v3896, %v4170
      %v4253 = vadd.f32 %v3901, %v4175
      %v4254 = vadd.f32 %v3906, %v4180
      %v4255 = vadd.f32 %v3911, %v4185
      %v4256 = vadd.f32 %v3916, %v4190
      %v4257 = vadd.f32 %v3921, %v4195
      %v4258 = vadd.f32 %v3926, %v4200
      %v4259 = vadd.f32 %v3931, %v4205
      %v4260 = vadd.f32 %v3936, %v4210
      %v4261 = vadd.f32 %v3941, %v4215
      %v4262 = vadd.f32 %v3946, %v4220
      %v4263 = vadd.f32 %v3951, %v4225
      %v4264 = vadd.f32 %v3956, %v4230
      %v4265 = vld [vmem:[%s257 + $0x7] sm:$0xff]
      %v4266 = vld [vmem:[%s257 + $0xf] sm:$0xff]
      %v4267 = vld [vmem:[%s257 + $0x27] sm:$0xff]
      %v4268 = vld [vmem:[%s257 + $0x2f] sm:$0xff]
      %v4269 = vld [vmem:[%s257 + $0x47] sm:$0xff]
      %v4270 = vld [vmem:[%s257 + $0x4f] sm:$0xff]
      %v4271 = vld [vmem:[%s257 + $0x67] sm:$0xff]
      %v4272 = vld [vmem:[%s257 + $0x6f] sm:$0xff]
      %v4273 = vld [vmem:[%s257 + $0x87] sm:$0xff]
      %v4274 = vld [vmem:[%s257 + $0x8f] sm:$0xff]
      %v4275 = vld [vmem:[%s257 + $0xa7] sm:$0xff]
      %v4276 = vld [vmem:[%s257 + $0xaf] sm:$0xff]
      %v4277 = vld [vmem:[%s257 + $0xc7] sm:$0xff]
      %v4278 = vld [vmem:[%s257 + $0xcf] sm:$0xff]
      %v4279 = vld [vmem:[%s257 + $0xe7] sm:$0xff]
      %v4280 = vld [vmem:[%s257 + $0xef] sm:$0xff]
      %v4281 = vld [vmem:[%s257 + $0x107] sm:$0xff]
      %v4282 = vld [vmem:[%s257 + $0x10f] sm:$0xff]
      %v4283 = vld [vmem:[%s257 + $0x127] sm:$0xff]
      %v4284 = vld [vmem:[%s257 + $0x12f] sm:$0xff]
      %v4285 = vld [vmem:[%s257 + $0x147] sm:$0xff]
      %v4286 = vld [vmem:[%s257 + $0x14f] sm:$0xff]
      %v4287 = vld [vmem:[%s257 + $0x167] sm:$0xff]
      %v4288 = vld [vmem:[%s257 + $0x16f] sm:$0xff]
      %v4289 = vld [vmem:[%s257 + $0x187] sm:$0xff]
      %v4290 = vld [vmem:[%s257 + $0x18f] sm:$0xff]
      %v4291 = vld [vmem:[%s257 + $0x1a7] sm:$0xff]
      %v4292 = vld [vmem:[%s257 + $0x1af] sm:$0xff]
      %v4293 = vld [vmem:[%s257 + $0x1c7] sm:$0xff]
      %v4294 = vld [vmem:[%s257 + $0x1cf] sm:$0xff]
      %v4295 = vld [vmem:[%s257 + $0x1e7] sm:$0xff]
      %v4296 = vld [vmem:[%s257 + $0x1ef] sm:$0xff]
      %s4297 = scalar_lea.vmem %s3, 384
      %v4298 = vld [vmem:[%s4297] sm:$0xff]
      %v4299 = vld [vmem:[%s4297 + $0x8] sm:$0xff]
      %v4300 = vld [vmem:[%s4297 + $0x10] sm:$0xff]
      %v4301 = vld [vmem:[%s4297 + $0x18] sm:$0xff]
      %v4302 = vld [vmem:[%s4297 + $0x20] sm:$0xff]
      %v4303 = vld [vmem:[%s4297 + $0x28] sm:$0xff]
      %v4304 = vld [vmem:[%s4297 + $0x30] sm:$0xff]
      %v4305 = vld [vmem:[%s4297 + $0x38] sm:$0xff]
      %v4306 = vld [vmem:[%s4297 + $0x40] sm:$0xff]
      %v4307 = vld [vmem:[%s4297 + $0x48] sm:$0xff]
      %v4308 = vld [vmem:[%s4297 + $0x50] sm:$0xff]
      %v4309 = vld [vmem:[%s4297 + $0x58] sm:$0xff]
      %v4310 = vld [vmem:[%s4297 + $0x60] sm:$0xff]
      %v4311 = vld [vmem:[%s4297 + $0x68] sm:$0xff]
      %v4312 = vld [vmem:[%s4297 + $0x70] sm:$0xff]
      %v4313 = vld [vmem:[%s4297 + $0x78] sm:$0xff]
      %4314 = vmatprep.subr.mxu0 0.0
      %4315 = vmatpush1.msra.mxu0 %v4298
      %4316 = vmatprep.subr.mxu0 0.0
      %4317 = vmatpush1.msra.mxu0 %v4299
      %4318 = vmatprep.subr.mxu0 0.0
      %4319 = vmatpush1.msra.mxu0 %v4300
      %4320 = vmatprep.subr.mxu0 0.0
      %4321 = vmatpush1.msra.mxu0 %v4301
      %4322 = vmatprep.subr.mxu0 0.0
      %4323 = vmatpush1.msra.mxu0 %v4302
      %4324 = vmatprep.subr.mxu0 0.0
      %4325 = vmatpush1.msra.mxu0 %v4303
      %4326 = vmatprep.subr.mxu0 0.0
      %4327 = vmatpush1.msra.mxu0 %v4304
      %4328 = vmatprep.subr.mxu0 0.0
      %4329 = vmatpush1.msra.mxu0 %v4305
      %4330 = vmatprep.subr.mxu0 0.0
      %4331 = vmatpush1.msra.mxu0 %v4306
      %4332 = vmatprep.subr.mxu0 0.0
      %4333 = vmatpush1.msra.mxu0 %v4307
      %4334 = vmatprep.subr.mxu0 0.0
      %4335 = vmatpush1.msra.mxu0 %v4308
      %4336 = vmatprep.subr.mxu0 0.0
      %4337 = vmatpush1.msra.mxu0 %v4309
      %4338 = vmatprep.subr.mxu0 0.0
      %4339 = vmatpush1.msra.mxu0 %v4310
      %4340 = vmatprep.subr.mxu0 0.0
      %4341 = vmatpush1.msra.mxu0 %v4311
      %4342 = vmatprep.subr.mxu0 0.0
      %4343 = vmatpush1.msra.mxu0 %v4312
      %4344 = vmatprep.subr.mxu0 0.0
      %4345 = vmatpush1.msra.mxu0 %v4313
      %4346 = vmatprep.subr.mxu0 0.0
      %4347 = vmatpush1.msra.mxu0 0.0
      %4348 = vmatprep.subr.mxu0 0.0
      %4349 = vmatpush1.msra.mxu0 0.0
      %4350 = vmatprep.subr.mxu0 0.0
      %4351 = vmatpush1.msra.mxu0 0.0
      %4352 = vmatprep.subr.mxu0 0.0
      %4353 = vmatpush1.msra.mxu0 0.0
      %4354 = vmatprep.subr.mxu0 0.0
      %4355 = vmatpush1.msra.mxu0 0.0
      %4356 = vmatprep.subr.mxu0 0.0
      %4357 = vmatpush1.msra.mxu0 0.0
      %4358 = vmatprep.subr.mxu0 0.0
      %4359 = vmatpush1.msra.mxu0 0.0
      %4360 = vmatprep.subr.mxu0 0.0
      %4361 = vmatpush1.msra.mxu0 0.0
      %4362 = vmatprep.subr.mxu0 0.0
      %4363 = vmatpush1.msra.mxu0 0.0
      %4364 = vmatprep.subr.mxu0 0.0
      %4365 = vmatpush1.msra.mxu0 0.0
      %4366 = vmatprep.subr.mxu0 0.0
      %4367 = vmatpush1.msra.mxu0 0.0
      %4368 = vmatprep.subr.mxu0 0.0
      %4369 = vmatpush1.msra.mxu0 0.0
      %4370 = vmatprep.subr.mxu0 0.0
      %4371 = vmatpush1.msra.mxu0 0.0
      %4372 = vmatprep.subr.mxu0 0.0
      %4373 = vmatpush1.msra.mxu0 0.0
      %4374 = vmatprep.subr.mxu0 0.0
      %4375 = vmatpush1.msra.mxu0 0.0
      %4376 = vmatprep.subr.mxu0 0.0
      %4377 = vmatpush1.msra.mxu0 0.0
      %4378 = vmatprep.mubr.f32.mxu0 0.0
      %4379 = vmatmul.mubr.f32.gmra.mrb[0].mxu0 %v4265
      %v4380 = vpop.f32.mrb[0].mxu0
      %v4381 = vadd.f32 0.0, %v4380
      %v4382 = vpop.f32.mrb[0].mxu0
      %4383 = vmatprep.mubr.f32.mxu0 0.0
      %4384 = vmatmul.mubr.f32.gmra.mrb[0].mxu0 %v4266
      %v4385 = vpop.f32.mrb[0].mxu0
      %v4386 = vadd.f32 0.0, %v4385
      %v4387 = vpop.f32.mrb[0].mxu0
      %4388 = vmatprep.mubr.f32.mxu0 0.0
      %4389 = vmatmul.mubr.f32.gmra.mrb[0].mxu0 %v4267
      %v4390 = vpop.f32.mrb[0].mxu0
      %v4391 = vadd.f32 0.0, %v4390
      %v4392 = vpop.f32.mrb[0].mxu0
      %4393 = vmatprep.mubr.f32.mxu0 0.0
      %4394 = vmatmul.mubr.f32.gmra.mrb[0].mxu0 %v4268
      %v4395 = vpop.f32.mrb[0].mxu0
      %v4396 = vadd.f32 0.0, %v4395
      %v4397 = vpop.f32.mrb[0].mxu0
      %4398 = vmatprep.mubr.f32.mxu0 0.0
      %4399 = vmatmul.mubr.f32.gmra.mrb[0].mxu0 %v4269
      %v4400 = vpop.f32.mrb[0].mxu0
      %v4401 = vadd.f32 0.0, %v4400
      %v4402 = vpop.f32.mrb[0].mxu0
      %4403 = vmatprep.mubr.f32.mxu0 0.0
      %4404 = vmatmul.mubr.f32.gmra.mrb[0].mxu0 %v4270
      %v4405 = vpop.f32.mrb[0].mxu0
      %v4406 = vadd.f32 0.0, %v4405
      %v4407 = vpop.f32.mrb[0].mxu0
      %4408 = vmatprep.mubr.f32.mxu0 0.0
      %4409 = vmatmul.mubr.f32.gmra.mrb[0].mxu0 %v4271
      %v4410 = vpop.f32.mrb[0].mxu0
      %v4411 = vadd.f32 0.0, %v4410
      %v4412 = vpop.f32.mrb[0].mxu0
      %4413 = vmatprep.mubr.f32.mxu0 0.0
      %4414 = vmatmul.mubr.f32.gmra.mrb[0].mxu0 %v4272
      %v4415 = vpop.f32.mrb[0].mxu0
      %v4416 = vadd.f32 0.0, %v4415
      %v4417 = vpop.f32.mrb[0].mxu0
      %4418 = vmatprep.mubr.f32.mxu0 0.0
      %4419 = vmatmul.mubr.f32.gmra.mrb[0].mxu0 %v4273
      %v4420 = vpop.f32.mrb[0].mxu0
      %v4421 = vadd.f32 0.0, %v4420
      %v4422 = vpop.f32.mrb[0].mxu0
      %4423 = vmatprep.mubr.f32.mxu0 0.0
      %4424 = vmatmul.mubr.f32.gmra.mrb[0].mxu0 %v4274
      %v4425 = vpop.f32.mrb[0].mxu0
      %v4426 = vadd.f32 0.0, %v4425
      %v4427 = vpop.f32.mrb[0].mxu0
      %4428 = vmatprep.mubr.f32.mxu0 0.0
      %4429 = vmatmul.mubr.f32.gmra.mrb[0].mxu0 %v4275
      %v4430 = vpop.f32.mrb[0].mxu0
      %v4431 = vadd.f32 0.0, %v4430
      %v4432 = vpop.f32.mrb[0].mxu0
      %4433 = vmatprep.mubr.f32.mxu0 0.0
      %4434 = vmatmul.mubr.f32.gmra.mrb[0].mxu0 %v4276
      %v4435 = vpop.f32.mrb[0].mxu0
      %v4436 = vadd.f32 0.0, %v4435
      %v4437 = vpop.f32.mrb[0].mxu0
      %4438 = vmatprep.mubr.f32.mxu0 0.0
      %4439 = vmatmul.mubr.f32.gmra.mrb[0].mxu0 %v4277
      %v4440 = vpop.f32.mrb[0].mxu0
      %v4441 = vadd.f32 0.0, %v4440
      %v4442 = vpop.f32.mrb[0].mxu0
      %4443 = vmatprep.mubr.f32.mxu0 0.0
      %4444 = vmatmul.mubr.f32.gmra.mrb[0].mxu0 %v4278
      %v4445 = vpop.f32.mrb[0].mxu0
      %v4446 = vadd.f32 0.0, %v4445
      %v4447 = vpop.f32.mrb[0].mxu0
      %4448 = vmatprep.mubr.f32.mxu0 0.0
      %4449 = vmatmul.mubr.f32.gmra.mrb[0].mxu0 %v4279
      %v4450 = vpop.f32.mrb[0].mxu0
      %v4451 = vadd.f32 0.0, %v4450
      %v4452 = vpop.f32.mrb[0].mxu0
      %4453 = vmatprep.mubr.f32.mxu0 0.0
      %4454 = vmatmul.mubr.f32.gmra.mrb[0].mxu0 %v4280
      %v4455 = vpop.f32.mrb[0].mxu0
      %v4456 = vadd.f32 0.0, %v4455
      %v4457 = vpop.f32.mrb[0].mxu0
      %4458 = vmatprep.mubr.f32.mxu0 0.0
      %4459 = vmatmul.mubr.f32.gmra.mrb[0].mxu0 %v4281
      %v4460 = vpop.f32.mrb[0].mxu0
      %v4461 = vadd.f32 0.0, %v4460
      %v4462 = vpop.f32.mrb[0].mxu0
      %4463 = vmatprep.mubr.f32.mxu0 0.0
      %4464 = vmatmul.mubr.f32.gmra.mrb[0].mxu0 %v4282
      %v4465 = vpop.f32.mrb[0].mxu0
      %v4466 = vadd.f32 0.0, %v4465
      %v4467 = vpop.f32.mrb[0].mxu0
      %4468 = vmatprep.mubr.f32.mxu0 0.0
      %4469 = vmatmul.mubr.f32.gmra.mrb[0].mxu0 %v4283
      %v4470 = vpop.f32.mrb[0].mxu0
      %v4471 = vadd.f32 0.0, %v4470
      %v4472 = vpop.f32.mrb[0].mxu0
      %4473 = vmatprep.mubr.f32.mxu0 0.0
      %4474 = vmatmul.mubr.f32.gmra.mrb[0].mxu0 %v4284
      %v4475 = vpop.f32.mrb[0].mxu0
      %v4476 = vadd.f32 0.0, %v4475
      %v4477 = vpop.f32.mrb[0].mxu0
      %4478 = vmatprep.mubr.f32.mxu0 0.0
      %4479 = vmatmul.mubr.f32.gmra.mrb[0].mxu0 %v4285
      %v4480 = vpop.f32.mrb[0].mxu0
      %v4481 = vadd.f32 0.0, %v4480
      %v4482 = vpop.f32.mrb[0].mxu0
      %4483 = vmatprep.mubr.f32.mxu0 0.0
      %4484 = vmatmul.mubr.f32.gmra.mrb[0].mxu0 %v4286
      %v4485 = vpop.f32.mrb[0].mxu0
      %v4486 = vadd.f32 0.0, %v4485
      %v4487 = vpop.f32.mrb[0].mxu0
      %4488 = vmatprep.mubr.f32.mxu0 0.0
      %4489 = vmatmul.mubr.f32.gmra.mrb[0].mxu0 %v4287
      %v4490 = vpop.f32.mrb[0].mxu0
      %v4491 = vadd.f32 0.0, %v4490
      %v4492 = vpop.f32.mrb[0].mxu0
      %4493 = vmatprep.mubr.f32.mxu0 0.0
      %4494 = vmatmul.mubr.f32.gmra.mrb[0].mxu0 %v4288
      %v4495 = vpop.f32.mrb[0].mxu0
      %v4496 = vadd.f32 0.0, %v4495
      %v4497 = vpop.f32.mrb[0].mxu0
      %4498 = vmatprep.mubr.f32.mxu0 0.0
      %4499 = vmatmul.mubr.f32.gmra.mrb[0].mxu0 %v4289
      %v4500 = vpop.f32.mrb[0].mxu0
      %v4501 = vadd.f32 0.0, %v4500
      %v4502 = vpop.f32.mrb[0].mxu0
      %4503 = vmatprep.mubr.f32.mxu0 0.0
      %4504 = vmatmul.mubr.f32.gmra.mrb[0].mxu0 %v4290
      %v4505 = vpop.f32.mrb[0].mxu0
      %v4506 = vadd.f32 0.0, %v4505
      %v4507 = vpop.f32.mrb[0].mxu0
      %4508 = vmatprep.mubr.f32.mxu0 0.0
      %4509 = vmatmul.mubr.f32.gmra.mrb[0].mxu0 %v4291
      %v4510 = vpop.f32.mrb[0].mxu0
      %v4511 = vadd.f32 0.0, %v4510
      %v4512 = vpop.f32.mrb[0].mxu0
      %4513 = vmatprep.mubr.f32.mxu0 0.0
      %4514 = vmatmul.mubr.f32.gmra.mrb[0].mxu0 %v4292
      %v4515 = vpop.f32.mrb[0].mxu0
      %v4516 = vadd.f32 0.0, %v4515
      %v4517 = vpop.f32.mrb[0].mxu0
      %4518 = vmatprep.mubr.f32.mxu0 0.0
      %4519 = vmatmul.mubr.f32.gmra.mrb[0].mxu0 %v4293
      %v4520 = vpop.f32.mrb[0].mxu0
      %v4521 = vadd.f32 0.0, %v4520
      %v4522 = vpop.f32.mrb[0].mxu0
      %4523 = vmatprep.mubr.f32.mxu0 0.0
      %4524 = vmatmul.mubr.f32.gmra.mrb[0].mxu0 %v4294
      %v4525 = vpop.f32.mrb[0].mxu0
      %v4526 = vadd.f32 0.0, %v4525
      %v4527 = vpop.f32.mrb[0].mxu0
      %4528 = vmatprep.mubr.f32.mxu0 0.0
      %4529 = vmatmul.mubr.f32.gmra.mrb[0].mxu0 %v4295
      %v4530 = vpop.f32.mrb[0].mxu0
      %v4531 = vadd.f32 0.0, %v4530
      %v4532 = vpop.f32.mrb[0].mxu0
      %4533 = vmatprep.mubr.f32.mxu0 0.0
      %4534 = vmatmul.mubr.f32.gmra.mrb[0].mxu0 %v4296
      %v4535 = vpop.f32.mrb[0].mxu0
      %v4536 = vadd.f32 0.0, %v4535
      %v4537 = vpop.f32.mrb[0].mxu0
      %4538 = vdwg.mxu0
      %v4539 = vadd.f32 %v4233, %v4381
      %v4540 = vadd.f32 %v4234, %v4386
      %v4541 = vadd.f32 %v4235, %v4391
      %v4542 = vadd.f32 %v4236, %v4396
      %v4543 = vadd.f32 %v4237, %v4401
      %v4544 = vadd.f32 %v4238, %v4406
      %v4545 = vadd.f32 %v4239, %v4411
      %v4546 = vadd.f32 %v4240, %v4416
      %v4547 = vadd.f32 %v4241, %v4421
      %v4548 = vadd.f32 %v4242, %v4426
      %v4549 = vadd.f32 %v4243, %v4431
      %v4550 = vadd.f32 %v4244, %v4436
      %v4551 = vadd.f32 %v4245, %v4441
      %v4552 = vadd.f32 %v4246, %v4446
      %v4553 = vadd.f32 %v4247, %v4451
      %v4554 = vadd.f32 %v4248, %v4456
      %v4555 = vadd.f32 %v4249, %v4461
      %v4556 = vadd.f32 %v4250, %v4466
      %v4557 = vadd.f32 %v4251, %v4471
      %v4558 = vadd.f32 %v4252, %v4476
      %v4559 = vadd.f32 %v4253, %v4481
      %v4560 = vadd.f32 %v4254, %v4486
      %v4561 = vadd.f32 %v4255, %v4491
      %v4562 = vadd.f32 %v4256, %v4496
      %v4563 = vadd.f32 %v4257, %v4501
      %v4564 = vadd.f32 %v4258, %v4506
      %v4565 = vadd.f32 %v4259, %v4511
      %v4566 = vadd.f32 %v4260, %v4516
      %v4567 = vadd.f32 %v4261, %v4521
      %v4568 = vadd.f32 %v4262, %v4526
      %v4569 = vadd.f32 %v4263, %v4531
      %v4570 = vadd.f32 %v4264, %v4536
      %v4571 = vld [vmem:[%s257 + $0x8] sm:$0xff]
      %v4572 = vld [vmem:[%s257 + $0x10] sm:$0xff]
      %v4573 = vld [vmem:[%s257 + $0x28] sm:$0xff]
      %v4574 = vld [vmem:[%s257 + $0x30] sm:$0xff]
      %v4575 = vld [vmem:[%s257 + $0x48] sm:$0xff]
      %v4576 = vld [vmem:[%s257 + $0x50] sm:$0xff]
      %v4577 = vld [vmem:[%s257 + $0x68] sm:$0xff]
      %v4578 = vld [vmem:[%s257 + $0x70] sm:$0xff]
      %v4579 = vld [vmem:[%s257 + $0x88] sm:$0xff]
      %v4580 = vld [vmem:[%s257 + $0x90] sm:$0xff]
      %v4581 = vld [vmem:[%s257 + $0xa8] sm:$0xff]
      %v4582 = vld [vmem:[%s257 + $0xb0] sm:$0xff]
      %v4583 = vld [vmem:[%s257 + $0xc8] sm:$0xff]
      %v4584 = vld [vmem:[%s257 + $0xd0] sm:$0xff]
      %v4585 = vld [vmem:[%s257 + $0xe8] sm:$0xff]
      %v4586 = vld [vmem:[%s257 + $0xf0] sm:$0xff]
      %v4587 = vld [vmem:[%s257 + $0x108] sm:$0xff]
      %v4588 = vld [vmem:[%s257 + $0x110] sm:$0xff]
      %v4589 = vld [vmem:[%s257 + $0x128] sm:$0xff]
      %v4590 = vld [vmem:[%s257 + $0x130] sm:$0xff]
      %v4591 = vld [vmem:[%s257 + $0x148] sm:$0xff]
      %v4592 = vld [vmem:[%s257 + $0x150] sm:$0xff]
      %v4593 = vld [vmem:[%s257 + $0x168] sm:$0xff]
      %v4594 = vld [vmem:[%s257 + $0x170] sm:$0xff]
      %v4595 = vld [vmem:[%s257 + $0x188] sm:$0xff]
      %v4596 = vld [vmem:[%s257 + $0x190] sm:$0xff]
      %v4597 = vld [vmem:[%s257 + $0x1a8] sm:$0xff]
      %v4598 = vld [vmem:[%s257 + $0x1b0] sm:$0xff]
      %v4599 = vld [vmem:[%s257 + $0x1c8] sm:$0xff]
      %v4600 = vld [vmem:[%s257 + $0x1d0] sm:$0xff]
      %v4601 = vld [vmem:[%s257 + $0x1e8] sm:$0xff]
      %v4602 = vld [vmem:[%s257 + $0x1f0] sm:$0xff]
      %s4603 = scalar_lea.vmem %s3, 512
      %v4604 = vld [vmem:[%s4603] sm:$0xff]
      %v4605 = vld [vmem:[%s4603 + $0x8] sm:$0xff]
      %v4606 = vld [vmem:[%s4603 + $0x10] sm:$0xff]
      %v4607 = vld [vmem:[%s4603 + $0x18] sm:$0xff]
      %v4608 = vld [vmem:[%s4603 + $0x20] sm:$0xff]
      %v4609 = vld [vmem:[%s4603 + $0x28] sm:$0xff]
      %v4610 = vld [vmem:[%s4603 + $0x30] sm:$0xff]
      %v4611 = vld [vmem:[%s4603 + $0x38] sm:$0xff]
      %v4612 = vld [vmem:[%s4603 + $0x40] sm:$0xff]
      %v4613 = vld [vmem:[%s4603 + $0x48] sm:$0xff]
      %v4614 = vld [vmem:[%s4603 + $0x50] sm:$0xff]
      %v4615 = vld [vmem:[%s4603 + $0x58] sm:$0xff]
      %v4616 = vld [vmem:[%s4603 + $0x60] sm:$0xff]
      %v4617 = vld [vmem:[%s4603 + $0x68] sm:$0xff]
      %v4618 = vld [vmem:[%s4603 + $0x70] sm:$0xff]
      %v4619 = vld [vmem:[%s4603 + $0x78] sm:$0xff]
      %4620 = vmatprep.subr.mxu0 0.0
      %4621 = vmatpush1.msra.mxu0 %v4604
      %4622 = vmatprep.subr.mxu0 0.0
      %4623 = vmatpush1.msra.mxu0 %v4605
      %4624 = vmatprep.subr.mxu0 0.0
      %4625 = vmatpush1.msra.mxu0 %v4606
      %4626 = vmatprep.subr.mxu0 0.0
      %4627 = vmatpush1.msra.mxu0 %v4607
      %4628 = vmatprep.subr.mxu0 0.0
      %4629 = vmatpush1.msra.mxu0 %v4608
      %4630 = vmatprep.subr.mxu0 0.0
      %4631 = vmatpush1.msra.mxu0 %v4609
      %4632 = vmatprep.subr.mxu0 0.0
      %4633 = vmatpush1.msra.mxu0 %v4610
      %4634 = vmatprep.subr.mxu0 0.0
      %4635 = vmatpush1.msra.mxu0 %v4611
      %4636 = vmatprep.subr.mxu0 0.0
      %4637 = vmatpush1.msra.mxu0 %v4612
      %4638 = vmatprep.subr.mxu0 0.0
      %4639 = vmatpush1.msra.mxu0 %v4613
      %4640 = vmatprep.subr.mxu0 0.0
      %4641 = vmatpush1.msra.mxu0 %v4614
      %4642 = vmatprep.subr.mxu0 0.0
      %4643 = vmatpush1.msra.mxu0 %v4615
      %4644 = vmatprep.subr.mxu0 0.0
      %4645 = vmatpush1.msra.mxu0 %v4616
      %4646 = vmatprep.subr.mxu0 0.0
      %4647 = vmatpush1.msra.mxu0 %v4617
      %4648 = vmatprep.subr.mxu0 0.0
      %4649 = vmatpush1.msra.mxu0 %v4618
      %4650 = vmatprep.subr.mxu0 0.0
      %4651 = vmatpush1.msra.mxu0 %v4619
      %4652 = vmatprep.subr.mxu0 0.0
      %4653 = vmatpush1.msra.mxu0 0.0
      %4654 = vmatprep.subr.mxu0 0.0
      %4655 = vmatpush1.msra.mxu0 0.0
      %4656 = vmatprep.subr.mxu0 0.0
      %4657 = vmatpush1.msra.mxu0 0.0
      %4658 = vmatprep.subr.mxu0 0.0
      %4659 = vmatpush1.msra.mxu0 0.0
      %4660 = vmatprep.subr.mxu0 0.0
      %4661 = vmatpush1.msra.mxu0 0.0
      %4662 = vmatprep.subr.mxu0 0.0
      %4663 = vmatpush1.msra.mxu0 0.0
      %4664 = vmatprep.subr.mxu0 0.0
      %4665 = vmatpush1.msra.mxu0 0.0
      %4666 = vmatprep.subr.mxu0 0.0
      %4667 = vmatpush1.msra.mxu0 0.0
      %4668 = vmatprep.subr.mxu0 0.0
      %4669 = vmatpush1.msra.mxu0 0.0
      %4670 = vmatprep.subr.mxu0 0.0
      %4671 = vmatpush1.msra.mxu0 0.0
      %4672 = vmatprep.subr.mxu0 0.0
      %4673 = vmatpush1.msra.mxu0 0.0
      %4674 = vmatprep.subr.mxu0 0.0
      %4675 = vmatpush1.msra.mxu0 0.0
      %4676 = vmatprep.subr.mxu0 0.0
      %4677 = vmatpush1.msra.mxu0 0.0
      %4678 = vmatprep.subr.mxu0 0.0
      %4679 = vmatpush1.msra.mxu0 0.0
      %4680 = vmatprep.subr.mxu0 0.0
      %4681 = vmatpush1.msra.mxu0 0.0
      %4682 = vmatprep.subr.mxu0 0.0
      %4683 = vmatpush1.msra.mxu0 0.0
      %4684 = vmatprep.mubr.f32.mxu0 0.0
      %4685 = vmatmul.mubr.f32.gmra.mrb[0].mxu0 %v4571
      %v4686 = vpop.f32.mrb[0].mxu0
      %v4687 = vadd.f32 0.0, %v4686
      %v4688 = vpop.f32.mrb[0].mxu0
      %4689 = vmatprep.mubr.f32.mxu0 0.0
      %4690 = vmatmul.mubr.f32.gmra.mrb[0].mxu0 %v4572
      %v4691 = vpop.f32.mrb[0].mxu0
      %v4692 = vadd.f32 0.0, %v4691
      %v4693 = vpop.f32.mrb[0].mxu0
      %4694 = vmatprep.mubr.f32.mxu0 0.0
      %4695 = vmatmul.mubr.f32.gmra.mrb[0].mxu0 %v4573
      %v4696 = vpop.f32.mrb[0].mxu0
      %v4697 = vadd.f32 0.0, %v4696
      %v4698 = vpop.f32.mrb[0].mxu0
      %4699 = vmatprep.mubr.f32.mxu0 0.0
      %4700 = vmatmul.mubr.f32.gmra.mrb[0].mxu0 %v4574
      %v4701 = vpop.f32.mrb[0].mxu0
      %v4702 = vadd.f32 0.0, %v4701
      %v4703 = vpop.f32.mrb[0].mxu0
      %4704 = vmatprep.mubr.f32.mxu0 0.0
      %4705 = vmatmul.mubr.f32.gmra.mrb[0].mxu0 %v4575
      %v4706 = vpop.f32.mrb[0].mxu0
      %v4707 = vadd.f32 0.0, %v4706
      %v4708 = vpop.f32.mrb[0].mxu0
      %4709 = vmatprep.mubr.f32.mxu0 0.0
      %4710 = vmatmul.mubr.f32.gmra.mrb[0].mxu0 %v4576
      %v4711 = vpop.f32.mrb[0].mxu0
      %v4712 = vadd.f32 0.0, %v4711
      %v4713 = vpop.f32.mrb[0].mxu0
      %4714 = vmatprep.mubr.f32.mxu0 0.0
      %4715 = vmatmul.mubr.f32.gmra.mrb[0].mxu0 %v4577
      %v4716 = vpop.f32.mrb[0].mxu0
      %v4717 = vadd.f32 0.0, %v4716
      %v4718 = vpop.f32.mrb[0].mxu0
      %4719 = vmatprep.mubr.f32.mxu0 0.0
      %4720 = vmatmul.mubr.f32.gmra.mrb[0].mxu0 %v4578
      %v4721 = vpop.f32.mrb[0].mxu0
      %v4722 = vadd.f32 0.0, %v4721
      %v4723 = vpop.f32.mrb[0].mxu0
      %4724 = vmatprep.mubr.f32.mxu0 0.0
      %4725 = vmatmul.mubr.f32.gmra.mrb[0].mxu0 %v4579
      %v4726 = vpop.f32.mrb[0].mxu0
      %v4727 = vadd.f32 0.0, %v4726
      %v4728 = vpop.f32.mrb[0].mxu0
      %4729 = vmatprep.mubr.f32.mxu0 0.0
      %4730 = vmatmul.mubr.f32.gmra.mrb[0].mxu0 %v4580
      %v4731 = vpop.f32.mrb[0].mxu0
      %v4732 = vadd.f32 0.0, %v4731
      %v4733 = vpop.f32.mrb[0].mxu0
      %4734 = vmatprep.mubr.f32.mxu0 0.0
      %4735 = vmatmul.mubr.f32.gmra.mrb[0].mxu0 %v4581
      %v4736 = vpop.f32.mrb[0].mxu0
      %v4737 = vadd.f32 0.0, %v4736
      %v4738 = vpop.f32.mrb[0].mxu0
      %4739 = vmatprep.mubr.f32.mxu0 0.0
      %4740 = vmatmul.mubr.f32.gmra.mrb[0].mxu0 %v4582
      %v4741 = vpop.f32.mrb[0].mxu0
      %v4742 = vadd.f32 0.0, %v4741
      %v4743 = vpop.f32.mrb[0].mxu0
      %4744 = vmatprep.mubr.f32.mxu0 0.0
      %4745 = vmatmul.mubr.f32.gmra.mrb[0].mxu0 %v4583
      %v4746 = vpop.f32.mrb[0].mxu0
      %v4747 = vadd.f32 0.0, %v4746
      %v4748 = vpop.f32.mrb[0].mxu0
      %4749 = vmatprep.mubr.f32.mxu0 0.0
      %4750 = vmatmul.mubr.f32.gmra.mrb[0].mxu0 %v4584
      %v4751 = vpop.f32.mrb[0].mxu0
      %v4752 = vadd.f32 0.0, %v4751
      %v4753 = vpop.f32.mrb[0].mxu0
      %4754 = vmatprep.mubr.f32.mxu0 0.0
      %4755 = vmatmul.mubr.f32.gmra.mrb[0].mxu0 %v4585
      %v4756 = vpop.f32.mrb[0].mxu0
      %v4757 = vadd.f32 0.0, %v4756
      %v4758 = vpop.f32.mrb[0].mxu0
      %4759 = vmatprep.mubr.f32.mxu0 0.0
      %4760 = vmatmul.mubr.f32.gmra.mrb[0].mxu0 %v4586
      %v4761 = vpop.f32.mrb[0].mxu0
      %v4762 = vadd.f32 0.0, %v4761
      %v4763 = vpop.f32.mrb[0].mxu0
      %4764 = vmatprep.mubr.f32.mxu0 0.0
      %4765 = vmatmul.mubr.f32.gmra.mrb[0].mxu0 %v4587
      %v4766 = vpop.f32.mrb[0].mxu0
      %v4767 = vadd.f32 0.0, %v4766
      %v4768 = vpop.f32.mrb[0].mxu0
      %4769 = vmatprep.mubr.f32.mxu0 0.0
      %4770 = vmatmul.mubr.f32.gmra.mrb[0].mxu0 %v4588
      %v4771 = vpop.f32.mrb[0].mxu0
      %v4772 = vadd.f32 0.0, %v4771
      %v4773 = vpop.f32.mrb[0].mxu0
      %4774 = vmatprep.mubr.f32.mxu0 0.0
      %4775 = vmatmul.mubr.f32.gmra.mrb[0].mxu0 %v4589
      %v4776 = vpop.f32.mrb[0].mxu0
      %v4777 = vadd.f32 0.0, %v4776
      %v4778 = vpop.f32.mrb[0].mxu0
      %4779 = vmatprep.mubr.f32.mxu0 0.0
      %4780 = vmatmul.mubr.f32.gmra.mrb[0].mxu0 %v4590
      %v4781 = vpop.f32.mrb[0].mxu0
      %v4782 = vadd.f32 0.0, %v4781
      %v4783 = vpop.f32.mrb[0].mxu0
      %4784 = vmatprep.mubr.f32.mxu0 0.0
      %4785 = vmatmul.mubr.f32.gmra.mrb[0].mxu0 %v4591
      %v4786 = vpop.f32.mrb[0].mxu0
      %v4787 = vadd.f32 0.0, %v4786
      %v4788 = vpop.f32.mrb[0].mxu0
      %4789 = vmatprep.mubr.f32.mxu0 0.0
      %4790 = vmatmul.mubr.f32.gmra.mrb[0].mxu0 %v4592
      %v4791 = vpop.f32.mrb[0].mxu0
      %v4792 = vadd.f32 0.0, %v4791
      %v4793 = vpop.f32.mrb[0].mxu0
      %4794 = vmatprep.mubr.f32.mxu0 0.0
      %4795 = vmatmul.mubr.f32.gmra.mrb[0].mxu0 %v4593
      %v4796 = vpop.f32.mrb[0].mxu0
      %v4797 = vadd.f32 0.0, %v4796
      %v4798 = vpop.f32.mrb[0].mxu0
      %4799 = vmatprep.mubr.f32.mxu0 0.0
      %4800 = vmatmul.mubr.f32.gmra.mrb[0].mxu0 %v4594
      %v4801 = vpop.f32.mrb[0].mxu0
      %v4802 = vadd.f32 0.0, %v4801
      %v4803 = vpop.f32.mrb[0].mxu0
      %4804 = vmatprep.mubr.f32.mxu0 0.0
      %4805 = vmatmul.mubr.f32.gmra.mrb[0].mxu0 %v4595
      %v4806 = vpop.f32.mrb[0].mxu0
      %v4807 = vadd.f32 0.0, %v4806
      %v4808 = vpop.f32.mrb[0].mxu0
      %4809 = vmatprep.mubr.f32.mxu0 0.0
      %4810 = vmatmul.mubr.f32.gmra.mrb[0].mxu0 %v4596
      %v4811 = vpop.f32.mrb[0].mxu0
      %v4812 = vadd.f32 0.0, %v4811
      %v4813 = vpop.f32.mrb[0].mxu0
      %4814 = vmatprep.mubr.f32.mxu0 0.0
      %4815 = vmatmul.mubr.f32.gmra.mrb[0].mxu0 %v4597
      %v4816 = vpop.f32.mrb[0].mxu0
      %v4817 = vadd.f32 0.0, %v4816
      %v4818 = vpop.f32.mrb[0].mxu0
      %4819 = vmatprep.mubr.f32.mxu0 0.0
      %4820 = vmatmul.mubr.f32.gmra.mrb[0].mxu0 %v4598
      %v4821 = vpop.f32.mrb[0].mxu0
      %v4822 = vadd.f32 0.0, %v4821
      %v4823 = vpop.f32.mrb[0].mxu0
      %4824 = vmatprep.mubr.f32.mxu0 0.0
      %4825 = vmatmul.mubr.f32.gmra.mrb[0].mxu0 %v4599
      %v4826 = vpop.f32.mrb[0].mxu0
      %v4827 = vadd.f32 0.0, %v4826
      %v4828 = vpop.f32.mrb[0].mxu0
      %4829 = vmatprep.mubr.f32.mxu0 0.0
      %4830 = vmatmul.mubr.f32.gmra.mrb[0].mxu0 %v4600
      %v4831 = vpop.f32.mrb[0].mxu0
      %v4832 = vadd.f32 0.0, %v4831
      %v4833 = vpop.f32.mrb[0].mxu0
      %4834 = vmatprep.mubr.f32.mxu0 0.0
      %4835 = vmatmul.mubr.f32.gmra.mrb[0].mxu0 %v4601
      %v4836 = vpop.f32.mrb[0].mxu0
      %v4837 = vadd.f32 0.0, %v4836
      %v4838 = vpop.f32.mrb[0].mxu0
      %4839 = vmatprep.mubr.f32.mxu0 0.0
      %4840 = vmatmul.mubr.f32.gmra.mrb[0].mxu0 %v4602
      %v4841 = vpop.f32.mrb[0].mxu0
      %v4842 = vadd.f32 0.0, %v4841
      %v4843 = vpop.f32.mrb[0].mxu0
      %4844 = vdwg.mxu0
      %v4845 = vadd.f32 %v4539, %v4687
      %v4846 = vadd.f32 %v4540, %v4692
      %v4847 = vadd.f32 %v4541, %v4697
      %v4848 = vadd.f32 %v4542, %v4702
      %v4849 = vadd.f32 %v4543, %v4707
      %v4850 = vadd.f32 %v4544, %v4712
      %v4851 = vadd.f32 %v4545, %v4717
      %v4852 = vadd.f32 %v4546, %v4722
      %v4853 = vadd.f32 %v4547, %v4727
      %v4854 = vadd.f32 %v4548, %v4732
      %v4855 = vadd.f32 %v4549, %v4737
      %v4856 = vadd.f32 %v4550, %v4742
      %v4857 = vadd.f32 %v4551, %v4747
      %v4858 = vadd.f32 %v4552, %v4752
      %v4859 = vadd.f32 %v4553, %v4757
      %v4860 = vadd.f32 %v4554, %v4762
      %v4861 = vadd.f32 %v4555, %v4767
      %v4862 = vadd.f32 %v4556, %v4772
      %v4863 = vadd.f32 %v4557, %v4777
      %v4864 = vadd.f32 %v4558, %v4782
      %v4865 = vadd.f32 %v4559, %v4787
      %v4866 = vadd.f32 %v4560, %v4792
      %v4867 = vadd.f32 %v4561, %v4797
      %v4868 = vadd.f32 %v4562, %v4802
      %v4869 = vadd.f32 %v4563, %v4807
      %v4870 = vadd.f32 %v4564, %v4812
      %v4871 = vadd.f32 %v4565, %v4817
      %v4872 = vadd.f32 %v4566, %v4822
      %v4873 = vadd.f32 %v4567, %v4827
      %v4874 = vadd.f32 %v4568, %v4832
      %v4875 = vadd.f32 %v4569, %v4837
      %v4876 = vadd.f32 %v4570, %v4842
      %v4877 = vld [vmem:[%s257 + $0x9] sm:$0xff]
      %v4878 = vld [vmem:[%s257 + $0x11] sm:$0xff]
      %v4879 = vld [vmem:[%s257 + $0x29] sm:$0xff]
      %v4880 = vld [vmem:[%s257 + $0x31] sm:$0xff]
      %v4881 = vld [vmem:[%s257 + $0x49] sm:$0xff]
      %v4882 = vld [vmem:[%s257 + $0x51] sm:$0xff]
      %v4883 = vld [vmem:[%s257 + $0x69] sm:$0xff]
      %v4884 = vld [vmem:[%s257 + $0x71] sm:$0xff]
      %v4885 = vld [vmem:[%s257 + $0x89] sm:$0xff]
      %v4886 = vld [vmem:[%s257 + $0x91] sm:$0xff]
      %v4887 = vld [vmem:[%s257 + $0xa9] sm:$0xff]
      %v4888 = vld [vmem:[%s257 + $0xb1] sm:$0xff]
      %v4889 = vld [vmem:[%s257 + $0xc9] sm:$0xff]
      %v4890 = vld [vmem:[%s257 + $0xd1] sm:$0xff]
      %v4891 = vld [vmem:[%s257 + $0xe9] sm:$0xff]
      %v4892 = vld [vmem:[%s257 + $0xf1] sm:$0xff]
      %v4893 = vld [vmem:[%s257 + $0x109] sm:$0xff]
      %v4894 = vld [vmem:[%s257 + $0x111] sm:$0xff]
      %v4895 = vld [vmem:[%s257 + $0x129] sm:$0xff]
      %v4896 = vld [vmem:[%s257 + $0x131] sm:$0xff]
      %v4897 = vld [vmem:[%s257 + $0x149] sm:$0xff]
      %v4898 = vld [vmem:[%s257 + $0x151] sm:$0xff]
      %v4899 = vld [vmem:[%s257 + $0x169] sm:$0xff]
      %v4900 = vld [vmem:[%s257 + $0x171] sm:$0xff]
      %v4901 = vld [vmem:[%s257 + $0x189] sm:$0xff]
      %v4902 = vld [vmem:[%s257 + $0x191] sm:$0xff]
      %v4903 = vld [vmem:[%s257 + $0x1a9] sm:$0xff]
      %v4904 = vld [vmem:[%s257 + $0x1b1] sm:$0xff]
      %v4905 = vld [vmem:[%s257 + $0x1c9] sm:$0xff]
      %v4906 = vld [vmem:[%s257 + $0x1d1] sm:$0xff]
      %v4907 = vld [vmem:[%s257 + $0x1e9] sm:$0xff]
      %v4908 = vld [vmem:[%s257 + $0x1f1] sm:$0xff]
      %s4909 = scalar_lea.vmem %s3, 640
      %v4910 = vld [vmem:[%s4909] sm:$0xff]
      %v4911 = vld [vmem:[%s4909 + $0x8] sm:$0xff]
      %v4912 = vld [vmem:[%s4909 + $0x10] sm:$0xff]
      %v4913 = vld [vmem:[%s4909 + $0x18] sm:$0xff]
      %v4914 = vld [vmem:[%s4909 + $0x20] sm:$0xff]
      %v4915 = vld [vmem:[%s4909 + $0x28] sm:$0xff]
      %v4916 = vld [vmem:[%s4909 + $0x30] sm:$0xff]
      %v4917 = vld [vmem:[%s4909 + $0x38] sm:$0xff]
      %v4918 = vld [vmem:[%s4909 + $0x40] sm:$0xff]
      %v4919 = vld [vmem:[%s4909 + $0x48] sm:$0xff]
      %v4920 = vld [vmem:[%s4909 + $0x50] sm:$0xff]
      %v4921 = vld [vmem:[%s4909 + $0x58] sm:$0xff]
      %v4922 = vld [vmem:[%s4909 + $0x60] sm:$0xff]
      %v4923 = vld [vmem:[%s4909 + $0x68] sm:$0xff]
      %v4924 = vld [vmem:[%s4909 + $0x70] sm:$0xff]
      %v4925 = vld [vmem:[%s4909 + $0x78] sm:$0xff]
      %4926 = vmatprep.subr.mxu0 0.0
      %4927 = vmatpush1.msra.mxu0 %v4910
      %4928 = vmatprep.subr.mxu0 0.0
      %4929 = vmatpush1.msra.mxu0 %v4911
      %4930 = vmatprep.subr.mxu0 0.0
      %4931 = vmatpush1.msra.mxu0 %v4912
      %4932 = vmatprep.subr.mxu0 0.0
      %4933 = vmatpush1.msra.mxu0 %v4913
      %4934 = vmatprep.subr.mxu0 0.0
      %4935 = vmatpush1.msra.mxu0 %v4914
      %4936 = vmatprep.subr.mxu0 0.0
      %4937 = vmatpush1.msra.mxu0 %v4915
      %4938 = vmatprep.subr.mxu0 0.0
      %4939 = vmatpush1.msra.mxu0 %v4916
      %4940 = vmatprep.subr.mxu0 0.0
      %4941 = vmatpush1.msra.mxu0 %v4917
      %4942 = vmatprep.subr.mxu0 0.0
      %4943 = vmatpush1.msra.mxu0 %v4918
      %4944 = vmatprep.subr.mxu0 0.0
      %4945 = vmatpush1.msra.mxu0 %v4919
      %4946 = vmatprep.subr.mxu0 0.0
      %4947 = vmatpush1.msra.mxu0 %v4920
      %4948 = vmatprep.subr.mxu0 0.0
      %4949 = vmatpush1.msra.mxu0 %v4921
      %4950 = vmatprep.subr.mxu0 0.0
      %4951 = vmatpush1.msra.mxu0 %v4922
      %4952 = vmatprep.subr.mxu0 0.0
      %4953 = vmatpush1.msra.mxu0 %v4923
      %4954 = vmatprep.subr.mxu0 0.0
      %4955 = vmatpush1.msra.mxu0 %v4924
      %4956 = vmatprep.subr.mxu0 0.0
      %4957 = vmatpush1.msra.mxu0 %v4925
      %4958 = vmatprep.subr.mxu0 0.0
      %4959 = vmatpush1.msra.mxu0 0.0
      %4960 = vmatprep.subr.mxu0 0.0
      %4961 = vmatpush1.msra.mxu0 0.0
      %4962 = vmatprep.subr.mxu0 0.0
      %4963 = vmatpush1.msra.mxu0 0.0
      %4964 = vmatprep.subr.mxu0 0.0
      %4965 = vmatpush1.msra.mxu0 0.0
      %4966 = vmatprep.subr.mxu0 0.0
      %4967 = vmatpush1.msra.mxu0 0.0
      %4968 = vmatprep.subr.mxu0 0.0
      %4969 = vmatpush1.msra.mxu0 0.0
      %4970 = vmatprep.subr.mxu0 0.0
      %4971 = vmatpush1.msra.mxu0 0.0
      %4972 = vmatprep.subr.mxu0 0.0
      %4973 = vmatpush1.msra.mxu0 0.0
      %4974 = vmatprep.subr.mxu0 0.0
      %4975 = vmatpush1.msra.mxu0 0.0
      %4976 = vmatprep.subr.mxu0 0.0
      %4977 = vmatpush1.msra.mxu0 0.0
      %4978 = vmatprep.subr.mxu0 0.0
      %4979 = vmatpush1.msra.mxu0 0.0
      %4980 = vmatprep.subr.mxu0 0.0
      %4981 = vmatpush1.msra.mxu0 0.0
      %4982 = vmatprep.subr.mxu0 0.0
      %4983 = vmatpush1.msra.mxu0 0.0
      %4984 = vmatprep.subr.mxu0 0.0
      %4985 = vmatpush1.msra.mxu0 0.0
      %4986 = vmatprep.subr.mxu0 0.0
      %4987 = vmatpush1.msra.mxu0 0.0
      %4988 = vmatprep.subr.mxu0 0.0
      %4989 = vmatpush1.msra.mxu0 0.0
      %4990 = vmatprep.mubr.f32.mxu0 0.0
      %4991 = vmatmul.mubr.f32.gmra.mrb[0].mxu0 %v4877
      %v4992 = vpop.f32.mrb[0].mxu0
      %v4993 = vadd.f32 0.0, %v4992
      %v4994 = vpop.f32.mrb[0].mxu0
      %4995 = vmatprep.mubr.f32.mxu0 0.0
      %4996 = vmatmul.mubr.f32.gmra.mrb[0].mxu0 %v4878
      %v4997 = vpop.f32.mrb[0].mxu0
      %v4998 = vadd.f32 0.0, %v4997
      %v4999 = vpop.f32.mrb[0].mxu0
      %5000 = vmatprep.mubr.f32.mxu0 0.0
      %5001 = vmatmul.mubr.f32.gmra.mrb[0].mxu0 %v4879
      %v5002 = vpop.f32.mrb[0].mxu0
      %v5003 = vadd.f32 0.0, %v5002
      %v5004 = vpop.f32.mrb[0].mxu0
      %5005 = vmatprep.mubr.f32.mxu0 0.0
      %5006 = vmatmul.mubr.f32.gmra.mrb[0].mxu0 %v4880
      %v5007 = vpop.f32.mrb[0].mxu0
      %v5008 = vadd.f32 0.0, %v5007
      %v5009 = vpop.f32.mrb[0].mxu0
      %5010 = vmatprep.mubr.f32.mxu0 0.0
      %5011 = vmatmul.mubr.f32.gmra.mrb[0].mxu0 %v4881
      %v5012 = vpop.f32.mrb[0].mxu0
      %v5013 = vadd.f32 0.0, %v5012
      %v5014 = vpop.f32.mrb[0].mxu0
      %5015 = vmatprep.mubr.f32.mxu0 0.0
      %5016 = vmatmul.mubr.f32.gmra.mrb[0].mxu0 %v4882
      %v5017 = vpop.f32.mrb[0].mxu0
      %v5018 = vadd.f32 0.0, %v5017
      %v5019 = vpop.f32.mrb[0].mxu0
      %5020 = vmatprep.mubr.f32.mxu0 0.0
      %5021 = vmatmul.mubr.f32.gmra.mrb[0].mxu0 %v4883
      %v5022 = vpop.f32.mrb[0].mxu0
      %v5023 = vadd.f32 0.0, %v5022
      %v5024 = vpop.f32.mrb[0].mxu0
      %5025 = vmatprep.mubr.f32.mxu0 0.0
      %5026 = vmatmul.mubr.f32.gmra.mrb[0].mxu0 %v4884
      %v5027 = vpop.f32.mrb[0].mxu0
      %v5028 = vadd.f32 0.0, %v5027
      %v5029 = vpop.f32.mrb[0].mxu0
      %5030 = vmatprep.mubr.f32.mxu0 0.0
      %5031 = vmatmul.mubr.f32.gmra.mrb[0].mxu0 %v4885
      %v5032 = vpop.f32.mrb[0].mxu0
      %v5033 = vadd.f32 0.0, %v5032
      %v5034 = vpop.f32.mrb[0].mxu0
      %5035 = vmatprep.mubr.f32.mxu0 0.0
      %5036 = vmatmul.mubr.f32.gmra.mrb[0].mxu0 %v4886
      %v5037 = vpop.f32.mrb[0].mxu0
      %v5038 = vadd.f32 0.0, %v5037
      %v5039 = vpop.f32.mrb[0].mxu0
      %5040 = vmatprep.mubr.f32.mxu0 0.0
      %5041 = vmatmul.mubr.f32.gmra.mrb[0].mxu0 %v4887
      %v5042 = vpop.f32.mrb[0].mxu0
      %v5043 = vadd.f32 0.0, %v5042
      %v5044 = vpop.f32.mrb[0].mxu0
      %5045 = vmatprep.mubr.f32.mxu0 0.0
      %5046 = vmatmul.mubr.f32.gmra.mrb[0].mxu0 %v4888
      %v5047 = vpop.f32.mrb[0].mxu0
      %v5048 = vadd.f32 0.0, %v5047
      %v5049 = vpop.f32.mrb[0].mxu0
      %5050 = vmatprep.mubr.f32.mxu0 0.0
      %5051 = vmatmul.mubr.f32.gmra.mrb[0].mxu0 %v4889
      %v5052 = vpop.f32.mrb[0].mxu0
      %v5053 = vadd.f32 0.0, %v5052
      %v5054 = vpop.f32.mrb[0].mxu0
      %5055 = vmatprep.mubr.f32.mxu0 0.0
      %5056 = vmatmul.mubr.f32.gmra.mrb[0].mxu0 %v4890
      %v5057 = vpop.f32.mrb[0].mxu0
      %v5058 = vadd.f32 0.0, %v5057
      %v5059 = vpop.f32.mrb[0].mxu0
      %5060 = vmatprep.mubr.f32.mxu0 0.0
      %5061 = vmatmul.mubr.f32.gmra.mrb[0].mxu0 %v4891
      %v5062 = vpop.f32.mrb[0].mxu0
      %v5063 = vadd.f32 0.0, %v5062
      %v5064 = vpop.f32.mrb[0].mxu0
      %5065 = vmatprep.mubr.f32.mxu0 0.0
      %5066 = vmatmul.mubr.f32.gmra.mrb[0].mxu0 %v4892
      %v5067 = vpop.f32.mrb[0].mxu0
      %v5068 = vadd.f32 0.0, %v5067
      %v5069 = vpop.f32.mrb[0].mxu0
      %5070 = vmatprep.mubr.f32.mxu0 0.0
      %5071 = vmatmul.mubr.f32.gmra.mrb[0].mxu0 %v4893
      %v5072 = vpop.f32.mrb[0].mxu0
      %v5073 = vadd.f32 0.0, %v5072
      %v5074 = vpop.f32.mrb[0].mxu0
      %5075 = vmatprep.mubr.f32.mxu0 0.0
      %5076 = vmatmul.mubr.f32.gmra.mrb[0].mxu0 %v4894
      %v5077 = vpop.f32.mrb[0].mxu0
      %v5078 = vadd.f32 0.0, %v5077
      %v5079 = vpop.f32.mrb[0].mxu0
      %5080 = vmatprep.mubr.f32.mxu0 0.0
      %5081 = vmatmul.mubr.f32.gmra.mrb[0].mxu0 %v4895
      %v5082 = vpop.f32.mrb[0].mxu0
      %v5083 = vadd.f32 0.0, %v5082
      %v5084 = vpop.f32.mrb[0].mxu0
      %5085 = vmatprep.mubr.f32.mxu0 0.0
      %5086 = vmatmul.mubr.f32.gmra.mrb[0].mxu0 %v4896
      %v5087 = vpop.f32.mrb[0].mxu0
      %v5088 = vadd.f32 0.0, %v5087
      %v5089 = vpop.f32.mrb[0].mxu0
      %5090 = vmatprep.mubr.f32.mxu0 0.0
      %5091 = vmatmul.mubr.f32.gmra.mrb[0].mxu0 %v4897
      %v5092 = vpop.f32.mrb[0].mxu0
      %v5093 = vadd.f32 0.0, %v5092
      %v5094 = vpop.f32.mrb[0].mxu0
      %5095 = vmatprep.mubr.f32.mxu0 0.0
      %5096 = vmatmul.mubr.f32.gmra.mrb[0].mxu0 %v4898
      %v5097 = vpop.f32.mrb[0].mxu0
      %v5098 = vadd.f32 0.0, %v5097
      %v5099 = vpop.f32.mrb[0].mxu0
      %5100 = vmatprep.mubr.f32.mxu0 0.0
      %5101 = vmatmul.mubr.f32.gmra.mrb[0].mxu0 %v4899
      %v5102 = vpop.f32.mrb[0].mxu0
      %v5103 = vadd.f32 0.0, %v5102
      %v5104 = vpop.f32.mrb[0].mxu0
      %5105 = vmatprep.mubr.f32.mxu0 0.0
      %5106 = vmatmul.mubr.f32.gmra.mrb[0].mxu0 %v4900
      %v5107 = vpop.f32.mrb[0].mxu0
      %v5108 = vadd.f32 0.0, %v5107
      %v5109 = vpop.f32.mrb[0].mxu0
      %5110 = vmatprep.mubr.f32.mxu0 0.0
      %5111 = vmatmul.mubr.f32.gmra.mrb[0].mxu0 %v4901
      %v5112 = vpop.f32.mrb[0].mxu0
      %v5113 = vadd.f32 0.0, %v5112
      %v5114 = vpop.f32.mrb[0].mxu0
      %5115 = vmatprep.mubr.f32.mxu0 0.0
      %5116 = vmatmul.mubr.f32.gmra.mrb[0].mxu0 %v4902
      %v5117 = vpop.f32.mrb[0].mxu0
      %v5118 = vadd.f32 0.0, %v5117
      %v5119 = vpop.f32.mrb[0].mxu0
      %5120 = vmatprep.mubr.f32.mxu0 0.0
      %5121 = vmatmul.mubr.f32.gmra.mrb[0].mxu0 %v4903
      %v5122 = vpop.f32.mrb[0].mxu0
      %v5123 = vadd.f32 0.0, %v5122
      %v5124 = vpop.f32.mrb[0].mxu0
      %5125 = vmatprep.mubr.f32.mxu0 0.0
      %5126 = vmatmul.mubr.f32.gmra.mrb[0].mxu0 %v4904
      %v5127 = vpop.f32.mrb[0].mxu0
      %v5128 = vadd.f32 0.0, %v5127
      %v5129 = vpop.f32.mrb[0].mxu0
      %5130 = vmatprep.mubr.f32.mxu0 0.0
      %5131 = vmatmul.mubr.f32.gmra.mrb[0].mxu0 %v4905
      %v5132 = vpop.f32.mrb[0].mxu0
      %v5133 = vadd.f32 0.0, %v5132
      %v5134 = vpop.f32.mrb[0].mxu0
      %5135 = vmatprep.mubr.f32.mxu0 0.0
      %5136 = vmatmul.mubr.f32.gmra.mrb[0].mxu0 %v4906
      %v5137 = vpop.f32.mrb[0].mxu0
      %v5138 = vadd.f32 0.0, %v5137
      %v5139 = vpop.f32.mrb[0].mxu0
      %5140 = vmatprep.mubr.f32.mxu0 0.0
      %5141 = vmatmul.mubr.f32.gmra.mrb[0].mxu0 %v4907
      %v5142 = vpop.f32.mrb[0].mxu0
      %v5143 = vadd.f32 0.0, %v5142
      %v5144 = vpop.f32.mrb[0].mxu0
      %5145 = vmatprep.mubr.f32.mxu0 0.0
      %5146 = vmatmul.mubr.f32.gmra.mrb[0].mxu0 %v4908
      %v5147 = vpop.f32.mrb[0].mxu0
      %v5148 = vadd.f32 0.0, %v5147
      %v5149 = vpop.f32.mrb[0].mxu0
      %5150 = vdwg.mxu0
      %v5151 = vadd.f32 %v4845, %v4993
      %v5152 = vadd.f32 %v4846, %v4998
      %v5153 = vadd.f32 %v4847, %v5003
      %v5154 = vadd.f32 %v4848, %v5008
      %v5155 = vadd.f32 %v4849, %v5013
      %v5156 = vadd.f32 %v4850, %v5018
      %v5157 = vadd.f32 %v4851, %v5023
      %v5158 = vadd.f32 %v4852, %v5028
      %v5159 = vadd.f32 %v4853, %v5033
      %v5160 = vadd.f32 %v4854, %v5038
      %v5161 = vadd.f32 %v4855, %v5043
      %v5162 = vadd.f32 %v4856, %v5048
      %v5163 = vadd.f32 %v4857, %v5053
      %v5164 = vadd.f32 %v4858, %v5058
      %v5165 = vadd.f32 %v4859, %v5063
      %v5166 = vadd.f32 %v4860, %v5068
      %v5167 = vadd.f32 %v4861, %v5073
      %v5168 = vadd.f32 %v4862, %v5078
      %v5169 = vadd.f32 %v4863, %v5083
      %v5170 = vadd.f32 %v4864, %v5088
      %v5171 = vadd.f32 %v4865, %v5093
      %v5172 = vadd.f32 %v4866, %v5098
      %v5173 = vadd.f32 %v4867, %v5103
      %v5174 = vadd.f32 %v4868, %v5108
      %v5175 = vadd.f32 %v4869, %v5113
      %v5176 = vadd.f32 %v4870, %v5118
      %v5177 = vadd.f32 %v4871, %v5123
      %v5178 = vadd.f32 %v4872, %v5128
      %v5179 = vadd.f32 %v4873, %v5133
      %v5180 = vadd.f32 %v4874, %v5138
      %v5181 = vadd.f32 %v4875, %v5143
      %v5182 = vadd.f32 %v4876, %v5148
      %v5183 = vld [vmem:[%s2138 + $0x7] sm:$0xff]
      %v5184 = vld [vmem:[%s2138 + $0xf] sm:$0xff]
      %v5185 = vld [vmem:[%s2138 + $0x27] sm:$0xff]
      %v5186 = vld [vmem:[%s2138 + $0x2f] sm:$0xff]
      %v5187 = vld [vmem:[%s2138 + $0x47] sm:$0xff]
      %v5188 = vld [vmem:[%s2138 + $0x4f] sm:$0xff]
      %v5189 = vld [vmem:[%s2138 + $0x67] sm:$0xff]
      %v5190 = vld [vmem:[%s2138 + $0x6f] sm:$0xff]
      %v5191 = vld [vmem:[%s2138 + $0x87] sm:$0xff]
      %v5192 = vld [vmem:[%s2138 + $0x8f] sm:$0xff]
      %v5193 = vld [vmem:[%s2138 + $0xa7] sm:$0xff]
      %v5194 = vld [vmem:[%s2138 + $0xaf] sm:$0xff]
      %v5195 = vld [vmem:[%s2138 + $0xc7] sm:$0xff]
      %v5196 = vld [vmem:[%s2138 + $0xcf] sm:$0xff]
      %v5197 = vld [vmem:[%s2138 + $0xe7] sm:$0xff]
      %v5198 = vld [vmem:[%s2138 + $0xef] sm:$0xff]
      %v5199 = vld [vmem:[%s2138 + $0x107] sm:$0xff]
      %v5200 = vld [vmem:[%s2138 + $0x10f] sm:$0xff]
      %v5201 = vld [vmem:[%s2138 + $0x127] sm:$0xff]
      %v5202 = vld [vmem:[%s2138 + $0x12f] sm:$0xff]
      %v5203 = vld [vmem:[%s2138 + $0x147] sm:$0xff]
      %v5204 = vld [vmem:[%s2138 + $0x14f] sm:$0xff]
      %v5205 = vld [vmem:[%s2138 + $0x167] sm:$0xff]
      %v5206 = vld [vmem:[%s2138 + $0x16f] sm:$0xff]
      %v5207 = vld [vmem:[%s2138 + $0x187] sm:$0xff]
      %v5208 = vld [vmem:[%s2138 + $0x18f] sm:$0xff]
      %v5209 = vld [vmem:[%s2138 + $0x1a7] sm:$0xff]
      %v5210 = vld [vmem:[%s2138 + $0x1af] sm:$0xff]
      %v5211 = vld [vmem:[%s2138 + $0x1c7] sm:$0xff]
      %v5212 = vld [vmem:[%s2138 + $0x1cf] sm:$0xff]
      %v5213 = vld [vmem:[%s2138 + $0x1e7] sm:$0xff]
      %v5214 = vld [vmem:[%s2138 + $0x1ef] sm:$0xff]
      %s5215 = scalar_lea.vmem %s3, 768
      %v5216 = vld [vmem:[%s5215] sm:$0xff]
      %v5217 = vld [vmem:[%s5215 + $0x8] sm:$0xff]
      %v5218 = vld [vmem:[%s5215 + $0x10] sm:$0xff]
      %v5219 = vld [vmem:[%s5215 + $0x18] sm:$0xff]
      %v5220 = vld [vmem:[%s5215 + $0x20] sm:$0xff]
      %v5221 = vld [vmem:[%s5215 + $0x28] sm:$0xff]
      %v5222 = vld [vmem:[%s5215 + $0x30] sm:$0xff]
      %v5223 = vld [vmem:[%s5215 + $0x38] sm:$0xff]
      %v5224 = vld [vmem:[%s5215 + $0x40] sm:$0xff]
      %v5225 = vld [vmem:[%s5215 + $0x48] sm:$0xff]
      %v5226 = vld [vmem:[%s5215 + $0x50] sm:$0xff]
      %v5227 = vld [vmem:[%s5215 + $0x58] sm:$0xff]
      %v5228 = vld [vmem:[%s5215 + $0x60] sm:$0xff]
      %v5229 = vld [vmem:[%s5215 + $0x68] sm:$0xff]
      %v5230 = vld [vmem:[%s5215 + $0x70] sm:$0xff]
      %v5231 = vld [vmem:[%s5215 + $0x78] sm:$0xff]
      %5232 = vmatprep.subr.mxu0 0.0
      %5233 = vmatpush1.msra.mxu0 %v5216
      %5234 = vmatprep.subr.mxu0 0.0
      %5235 = vmatpush1.msra.mxu0 %v5217
      %5236 = vmatprep.subr.mxu0 0.0
      %5237 = vmatpush1.msra.mxu0 %v5218
      %5238 = vmatprep.subr.mxu0 0.0
      %5239 = vmatpush1.msra.mxu0 %v5219
      %5240 = vmatprep.subr.mxu0 0.0
      %5241 = vmatpush1.msra.mxu0 %v5220
      %5242 = vmatprep.subr.mxu0 0.0
      %5243 = vmatpush1.msra.mxu0 %v5221
      %5244 = vmatprep.subr.mxu0 0.0
      %5245 = vmatpush1.msra.mxu0 %v5222
      %5246 = vmatprep.subr.mxu0 0.0
      %5247 = vmatpush1.msra.mxu0 %v5223
      %5248 = vmatprep.subr.mxu0 0.0
      %5249 = vmatpush1.msra.mxu0 %v5224
      %5250 = vmatprep.subr.mxu0 0.0
      %5251 = vmatpush1.msra.mxu0 %v5225
      %5252 = vmatprep.subr.mxu0 0.0
      %5253 = vmatpush1.msra.mxu0 %v5226
      %5254 = vmatprep.subr.mxu0 0.0
      %5255 = vmatpush1.msra.mxu0 %v5227
      %5256 = vmatprep.subr.mxu0 0.0
      %5257 = vmatpush1.msra.mxu0 %v5228
      %5258 = vmatprep.subr.mxu0 0.0
      %5259 = vmatpush1.msra.mxu0 %v5229
      %5260 = vmatprep.subr.mxu0 0.0
      %5261 = vmatpush1.msra.mxu0 %v5230
      %5262 = vmatprep.subr.mxu0 0.0
      %5263 = vmatpush1.msra.mxu0 %v5231
      %5264 = vmatprep.subr.mxu0 0.0
      %5265 = vmatpush1.msra.mxu0 0.0
      %5266 = vmatprep.subr.mxu0 0.0
      %5267 = vmatpush1.msra.mxu0 0.0
      %5268 = vmatprep.subr.mxu0 0.0
      %5269 = vmatpush1.msra.mxu0 0.0
      %5270 = vmatprep.subr.mxu0 0.0
      %5271 = vmatpush1.msra.mxu0 0.0
      %5272 = vmatprep.subr.mxu0 0.0
      %5273 = vmatpush1.msra.mxu0 0.0
      %5274 = vmatprep.subr.mxu0 0.0
      %5275 = vmatpush1.msra.mxu0 0.0
      %5276 = vmatprep.subr.mxu0 0.0
      %5277 = vmatpush1.msra.mxu0 0.0
      %5278 = vmatprep.subr.mxu0 0.0
      %5279 = vmatpush1.msra.mxu0 0.0
      %5280 = vmatprep.subr.mxu0 0.0
      %5281 = vmatpush1.msra.mxu0 0.0
      %5282 = vmatprep.subr.mxu0 0.0
      %5283 = vmatpush1.msra.mxu0 0.0
      %5284 = vmatprep.subr.mxu0 0.0
      %5285 = vmatpush1.msra.mxu0 0.0
      %5286 = vmatprep.subr.mxu0 0.0
      %5287 = vmatpush1.msra.mxu0 0.0
      %5288 = vmatprep.subr.mxu0 0.0
      %5289 = vmatpush1.msra.mxu0 0.0
      %5290 = vmatprep.subr.mxu0 0.0
      %5291 = vmatpush1.msra.mxu0 0.0
      %5292 = vmatprep.subr.mxu0 0.0
      %5293 = vmatpush1.msra.mxu0 0.0
      %5294 = vmatprep.subr.mxu0 0.0
      %5295 = vmatpush1.msra.mxu0 0.0
      %5296 = vmatprep.mubr.f32.mxu0 0.0
      %5297 = vmatmul.mubr.f32.gmra.mrb[0].mxu0 %v5183
      %v5298 = vpop.f32.mrb[0].mxu0
      %v5299 = vadd.f32 0.0, %v5298
      %v5300 = vpop.f32.mrb[0].mxu0
      %5301 = vmatprep.mubr.f32.mxu0 0.0
      %5302 = vmatmul.mubr.f32.gmra.mrb[0].mxu0 %v5184
      %v5303 = vpop.f32.mrb[0].mxu0
      %v5304 = vadd.f32 0.0, %v5303
      %v5305 = vpop.f32.mrb[0].mxu0
      %5306 = vmatprep.mubr.f32.mxu0 0.0
      %5307 = vmatmul.mubr.f32.gmra.mrb[0].mxu0 %v5185
      %v5308 = vpop.f32.mrb[0].mxu0
      %v5309 = vadd.f32 0.0, %v5308
      %v5310 = vpop.f32.mrb[0].mxu0
      %5311 = vmatprep.mubr.f32.mxu0 0.0
      %5312 = vmatmul.mubr.f32.gmra.mrb[0].mxu0 %v5186
      %v5313 = vpop.f32.mrb[0].mxu0
      %v5314 = vadd.f32 0.0, %v5313
      %v5315 = vpop.f32.mrb[0].mxu0
      %5316 = vmatprep.mubr.f32.mxu0 0.0
      %5317 = vmatmul.mubr.f32.gmra.mrb[0].mxu0 %v5187
      %v5318 = vpop.f32.mrb[0].mxu0
      %v5319 = vadd.f32 0.0, %v5318
      %v5320 = vpop.f32.mrb[0].mxu0
      %5321 = vmatprep.mubr.f32.mxu0 0.0
      %5322 = vmatmul.mubr.f32.gmra.mrb[0].mxu0 %v5188
      %v5323 = vpop.f32.mrb[0].mxu0
      %v5324 = vadd.f32 0.0, %v5323
      %v5325 = vpop.f32.mrb[0].mxu0
      %5326 = vmatprep.mubr.f32.mxu0 0.0
      %5327 = vmatmul.mubr.f32.gmra.mrb[0].mxu0 %v5189
      %v5328 = vpop.f32.mrb[0].mxu0
      %v5329 = vadd.f32 0.0, %v5328
      %v5330 = vpop.f32.mrb[0].mxu0
      %5331 = vmatprep.mubr.f32.mxu0 0.0
      %5332 = vmatmul.mubr.f32.gmra.mrb[0].mxu0 %v5190
      %v5333 = vpop.f32.mrb[0].mxu0
      %v5334 = vadd.f32 0.0, %v5333
      %v5335 = vpop.f32.mrb[0].mxu0
      %5336 = vmatprep.mubr.f32.mxu0 0.0
      %5337 = vmatmul.mubr.f32.gmra.mrb[0].mxu0 %v5191
      %v5338 = vpop.f32.mrb[0].mxu0
      %v5339 = vadd.f32 0.0, %v5338
      %v5340 = vpop.f32.mrb[0].mxu0
      %5341 = vmatprep.mubr.f32.mxu0 0.0
      %5342 = vmatmul.mubr.f32.gmra.mrb[0].mxu0 %v5192
      %v5343 = vpop.f32.mrb[0].mxu0
      %v5344 = vadd.f32 0.0, %v5343
      %v5345 = vpop.f32.mrb[0].mxu0
      %5346 = vmatprep.mubr.f32.mxu0 0.0
      %5347 = vmatmul.mubr.f32.gmra.mrb[0].mxu0 %v5193
      %v5348 = vpop.f32.mrb[0].mxu0
      %v5349 = vadd.f32 0.0, %v5348
      %v5350 = vpop.f32.mrb[0].mxu0
      %5351 = vmatprep.mubr.f32.mxu0 0.0
      %5352 = vmatmul.mubr.f32.gmra.mrb[0].mxu0 %v5194
      %v5353 = vpop.f32.mrb[0].mxu0
      %v5354 = vadd.f32 0.0, %v5353
      %v5355 = vpop.f32.mrb[0].mxu0
      %5356 = vmatprep.mubr.f32.mxu0 0.0
      %5357 = vmatmul.mubr.f32.gmra.mrb[0].mxu0 %v5195
      %v5358 = vpop.f32.mrb[0].mxu0
      %v5359 = vadd.f32 0.0, %v5358
      %v5360 = vpop.f32.mrb[0].mxu0
      %5361 = vmatprep.mubr.f32.mxu0 0.0
      %5362 = vmatmul.mubr.f32.gmra.mrb[0].mxu0 %v5196
      %v5363 = vpop.f32.mrb[0].mxu0
      %v5364 = vadd.f32 0.0, %v5363
      %v5365 = vpop.f32.mrb[0].mxu0
      %5366 = vmatprep.mubr.f32.mxu0 0.0
      %5367 = vmatmul.mubr.f32.gmra.mrb[0].mxu0 %v5197
      %v5368 = vpop.f32.mrb[0].mxu0
      %v5369 = vadd.f32 0.0, %v5368
      %v5370 = vpop.f32.mrb[0].mxu0
      %5371 = vmatprep.mubr.f32.mxu0 0.0
      %5372 = vmatmul.mubr.f32.gmra.mrb[0].mxu0 %v5198
      %v5373 = vpop.f32.mrb[0].mxu0
      %v5374 = vadd.f32 0.0, %v5373
      %v5375 = vpop.f32.mrb[0].mxu0
      %5376 = vmatprep.mubr.f32.mxu0 0.0
      %5377 = vmatmul.mubr.f32.gmra.mrb[0].mxu0 %v5199
      %v5378 = vpop.f32.mrb[0].mxu0
      %v5379 = vadd.f32 0.0, %v5378
      %v5380 = vpop.f32.mrb[0].mxu0
      %5381 = vmatprep.mubr.f32.mxu0 0.0
      %5382 = vmatmul.mubr.f32.gmra.mrb[0].mxu0 %v5200
      %v5383 = vpop.f32.mrb[0].mxu0
      %v5384 = vadd.f32 0.0, %v5383
      %v5385 = vpop.f32.mrb[0].mxu0
      %5386 = vmatprep.mubr.f32.mxu0 0.0
      %5387 = vmatmul.mubr.f32.gmra.mrb[0].mxu0 %v5201
      %v5388 = vpop.f32.mrb[0].mxu0
      %v5389 = vadd.f32 0.0, %v5388
      %v5390 = vpop.f32.mrb[0].mxu0
      %5391 = vmatprep.mubr.f32.mxu0 0.0
      %5392 = vmatmul.mubr.f32.gmra.mrb[0].mxu0 %v5202
      %v5393 = vpop.f32.mrb[0].mxu0
      %v5394 = vadd.f32 0.0, %v5393
      %v5395 = vpop.f32.mrb[0].mxu0
      %5396 = vmatprep.mubr.f32.mxu0 0.0
      %5397 = vmatmul.mubr.f32.gmra.mrb[0].mxu0 %v5203
      %v5398 = vpop.f32.mrb[0].mxu0
      %v5399 = vadd.f32 0.0, %v5398
      %v5400 = vpop.f32.mrb[0].mxu0
      %5401 = vmatprep.mubr.f32.mxu0 0.0
      %5402 = vmatmul.mubr.f32.gmra.mrb[0].mxu0 %v5204
      %v5403 = vpop.f32.mrb[0].mxu0
      %v5404 = vadd.f32 0.0, %v5403
      %v5405 = vpop.f32.mrb[0].mxu0
      %5406 = vmatprep.mubr.f32.mxu0 0.0
      %5407 = vmatmul.mubr.f32.gmra.mrb[0].mxu0 %v5205
      %v5408 = vpop.f32.mrb[0].mxu0
      %v5409 = vadd.f32 0.0, %v5408
      %v5410 = vpop.f32.mrb[0].mxu0
      %5411 = vmatprep.mubr.f32.mxu0 0.0
      %5412 = vmatmul.mubr.f32.gmra.mrb[0].mxu0 %v5206
      %v5413 = vpop.f32.mrb[0].mxu0
      %v5414 = vadd.f32 0.0, %v5413
      %v5415 = vpop.f32.mrb[0].mxu0
      %5416 = vmatprep.mubr.f32.mxu0 0.0
      %5417 = vmatmul.mubr.f32.gmra.mrb[0].mxu0 %v5207
      %v5418 = vpop.f32.mrb[0].mxu0
      %v5419 = vadd.f32 0.0, %v5418
      %v5420 = vpop.f32.mrb[0].mxu0
      %5421 = vmatprep.mubr.f32.mxu0 0.0
      %5422 = vmatmul.mubr.f32.gmra.mrb[0].mxu0 %v5208
      %v5423 = vpop.f32.mrb[0].mxu0
      %v5424 = vadd.f32 0.0, %v5423
      %v5425 = vpop.f32.mrb[0].mxu0
      %5426 = vmatprep.mubr.f32.mxu0 0.0
      %5427 = vmatmul.mubr.f32.gmra.mrb[0].mxu0 %v5209
      %v5428 = vpop.f32.mrb[0].mxu0
      %v5429 = vadd.f32 0.0, %v5428
      %v5430 = vpop.f32.mrb[0].mxu0
      %5431 = vmatprep.mubr.f32.mxu0 0.0
      %5432 = vmatmul.mubr.f32.gmra.mrb[0].mxu0 %v5210
      %v5433 = vpop.f32.mrb[0].mxu0
      %v5434 = vadd.f32 0.0, %v5433
      %v5435 = vpop.f32.mrb[0].mxu0
      %5436 = vmatprep.mubr.f32.mxu0 0.0
      %5437 = vmatmul.mubr.f32.gmra.mrb[0].mxu0 %v5211
      %v5438 = vpop.f32.mrb[0].mxu0
      %v5439 = vadd.f32 0.0, %v5438
      %v5440 = vpop.f32.mrb[0].mxu0
      %5441 = vmatprep.mubr.f32.mxu0 0.0
      %5442 = vmatmul.mubr.f32.gmra.mrb[0].mxu0 %v5212
      %v5443 = vpop.f32.mrb[0].mxu0
      %v5444 = vadd.f32 0.0, %v5443
      %v5445 = vpop.f32.mrb[0].mxu0
      %5446 = vmatprep.mubr.f32.mxu0 0.0
      %5447 = vmatmul.mubr.f32.gmra.mrb[0].mxu0 %v5213
      %v5448 = vpop.f32.mrb[0].mxu0
      %v5449 = vadd.f32 0.0, %v5448
      %v5450 = vpop.f32.mrb[0].mxu0
      %5451 = vmatprep.mubr.f32.mxu0 0.0
      %5452 = vmatmul.mubr.f32.gmra.mrb[0].mxu0 %v5214
      %v5453 = vpop.f32.mrb[0].mxu0
      %v5454 = vadd.f32 0.0, %v5453
      %v5455 = vpop.f32.mrb[0].mxu0
      %5456 = vdwg.mxu0
      %v5457 = vadd.f32 %v5151, %v5299
      %v5458 = vadd.f32 %v5152, %v5304
      %v5459 = vadd.f32 %v5153, %v5309
      %v5460 = vadd.f32 %v5154, %v5314
      %v5461 = vadd.f32 %v5155, %v5319
      %v5462 = vadd.f32 %v5156, %v5324
      %v5463 = vadd.f32 %v5157, %v5329
      %v5464 = vadd.f32 %v5158, %v5334
      %v5465 = vadd.f32 %v5159, %v5339
      %v5466 = vadd.f32 %v5160, %v5344
      %v5467 = vadd.f32 %v5161, %v5349
      %v5468 = vadd.f32 %v5162, %v5354
      %v5469 = vadd.f32 %v5163, %v5359
      %v5470 = vadd.f32 %v5164, %v5364
      %v5471 = vadd.f32 %v5165, %v5369
      %v5472 = vadd.f32 %v5166, %v5374
      %v5473 = vadd.f32 %v5167, %v5379
      %v5474 = vadd.f32 %v5168, %v5384
      %v5475 = vadd.f32 %v5169, %v5389
      %v5476 = vadd.f32 %v5170, %v5394
      %v5477 = vadd.f32 %v5171, %v5399
      %v5478 = vadd.f32 %v5172, %v5404
      %v5479 = vadd.f32 %v5173, %v5409
      %v5480 = vadd.f32 %v5174, %v5414
      %v5481 = vadd.f32 %v5175, %v5419
      %v5482 = vadd.f32 %v5176, %v5424
      %v5483 = vadd.f32 %v5177, %v5429
      %v5484 = vadd.f32 %v5178, %v5434
      %v5485 = vadd.f32 %v5179, %v5439
      %v5486 = vadd.f32 %v5180, %v5444
      %v5487 = vadd.f32 %v5181, %v5449
      %v5488 = vadd.f32 %v5182, %v5454
      %v5489 = vld [vmem:[%s2138 + $0x8] sm:$0xff]
      %v5490 = vld [vmem:[%s2138 + $0x10] sm:$0xff]
      %v5491 = vld [vmem:[%s2138 + $0x28] sm:$0xff]
      %v5492 = vld [vmem:[%s2138 + $0x30] sm:$0xff]
      %v5493 = vld [vmem:[%s2138 + $0x48] sm:$0xff]
      %v5494 = vld [vmem:[%s2138 + $0x50] sm:$0xff]
      %v5495 = vld [vmem:[%s2138 + $0x68] sm:$0xff]
      %v5496 = vld [vmem:[%s2138 + $0x70] sm:$0xff]
      %v5497 = vld [vmem:[%s2138 + $0x88] sm:$0xff]
      %v5498 = vld [vmem:[%s2138 + $0x90] sm:$0xff]
      %v5499 = vld [vmem:[%s2138 + $0xa8] sm:$0xff]
      %v5500 = vld [vmem:[%s2138 + $0xb0] sm:$0xff]
      %v5501 = vld [vmem:[%s2138 + $0xc8] sm:$0xff]
      %v5502 = vld [vmem:[%s2138 + $0xd0] sm:$0xff]
      %v5503 = vld [vmem:[%s2138 + $0xe8] sm:$0xff]
      %v5504 = vld [vmem:[%s2138 + $0xf0] sm:$0xff]
      %v5505 = vld [vmem:[%s2138 + $0x108] sm:$0xff]
      %v5506 = vld [vmem:[%s2138 + $0x110] sm:$0xff]
      %v5507 = vld [vmem:[%s2138 + $0x128] sm:$0xff]
      %v5508 = vld [vmem:[%s2138 + $0x130] sm:$0xff]
      %v5509 = vld [vmem:[%s2138 + $0x148] sm:$0xff]
      %v5510 = vld [vmem:[%s2138 + $0x150] sm:$0xff]
      %v5511 = vld [vmem:[%s2138 + $0x168] sm:$0xff]
      %v5512 = vld [vmem:[%s2138 + $0x170] sm:$0xff]
      %v5513 = vld [vmem:[%s2138 + $0x188] sm:$0xff]
      %v5514 = vld [vmem:[%s2138 + $0x190] sm:$0xff]
      %v5515 = vld [vmem:[%s2138 + $0x1a8] sm:$0xff]
      %v5516 = vld [vmem:[%s2138 + $0x1b0] sm:$0xff]
      %v5517 = vld [vmem:[%s2138 + $0x1c8] sm:$0xff]
      %v5518 = vld [vmem:[%s2138 + $0x1d0] sm:$0xff]
      %v5519 = vld [vmem:[%s2138 + $0x1e8] sm:$0xff]
      %v5520 = vld [vmem:[%s2138 + $0x1f0] sm:$0xff]
      %s5521 = scalar_lea.vmem %s3, 896
      %v5522 = vld [vmem:[%s5521] sm:$0xff]
      %v5523 = vld [vmem:[%s5521 + $0x8] sm:$0xff]
      %v5524 = vld [vmem:[%s5521 + $0x10] sm:$0xff]
      %v5525 = vld [vmem:[%s5521 + $0x18] sm:$0xff]
      %v5526 = vld [vmem:[%s5521 + $0x20] sm:$0xff]
      %v5527 = vld [vmem:[%s5521 + $0x28] sm:$0xff]
      %v5528 = vld [vmem:[%s5521 + $0x30] sm:$0xff]
      %v5529 = vld [vmem:[%s5521 + $0x38] sm:$0xff]
      %v5530 = vld [vmem:[%s5521 + $0x40] sm:$0xff]
      %v5531 = vld [vmem:[%s5521 + $0x48] sm:$0xff]
      %v5532 = vld [vmem:[%s5521 + $0x50] sm:$0xff]
      %v5533 = vld [vmem:[%s5521 + $0x58] sm:$0xff]
      %v5534 = vld [vmem:[%s5521 + $0x60] sm:$0xff]
      %v5535 = vld [vmem:[%s5521 + $0x68] sm:$0xff]
      %v5536 = vld [vmem:[%s5521 + $0x70] sm:$0xff]
      %v5537 = vld [vmem:[%s5521 + $0x78] sm:$0xff]
      %5538 = vmatprep.subr.mxu0 0.0
      %5539 = vmatpush1.msra.mxu0 %v5522
      %5540 = vmatprep.subr.mxu0 0.0
      %5541 = vmatpush1.msra.mxu0 %v5523
      %5542 = vmatprep.subr.mxu0 0.0
      %5543 = vmatpush1.msra.mxu0 %v5524
      %5544 = vmatprep.subr.mxu0 0.0
      %5545 = vmatpush1.msra.mxu0 %v5525
      %5546 = vmatprep.subr.mxu0 0.0
      %5547 = vmatpush1.msra.mxu0 %v5526
      %5548 = vmatprep.subr.mxu0 0.0
      %5549 = vmatpush1.msra.mxu0 %v5527
      %5550 = vmatprep.subr.mxu0 0.0
      %5551 = vmatpush1.msra.mxu0 %v5528
      %5552 = vmatprep.subr.mxu0 0.0
      %5553 = vmatpush1.msra.mxu0 %v5529
      %5554 = vmatprep.subr.mxu0 0.0
      %5555 = vmatpush1.msra.mxu0 %v5530
      %5556 = vmatprep.subr.mxu0 0.0
      %5557 = vmatpush1.msra.mxu0 %v5531
      %5558 = vmatprep.subr.mxu0 0.0
      %5559 = vmatpush1.msra.mxu0 %v5532
      %5560 = vmatprep.subr.mxu0 0.0
      %5561 = vmatpush1.msra.mxu0 %v5533
      %5562 = vmatprep.subr.mxu0 0.0
      %5563 = vmatpush1.msra.mxu0 %v5534
      %5564 = vmatprep.subr.mxu0 0.0
      %5565 = vmatpush1.msra.mxu0 %v5535
      %5566 = vmatprep.subr.mxu0 0.0
      %5567 = vmatpush1.msra.mxu0 %v5536
      %5568 = vmatprep.subr.mxu0 0.0
      %5569 = vmatpush1.msra.mxu0 %v5537
      %5570 = vmatprep.subr.mxu0 0.0
      %5571 = vmatpush1.msra.mxu0 0.0
      %5572 = vmatprep.subr.mxu0 0.0
      %5573 = vmatpush1.msra.mxu0 0.0
      %5574 = vmatprep.subr.mxu0 0.0
      %5575 = vmatpush1.msra.mxu0 0.0
      %5576 = vmatprep.subr.mxu0 0.0
      %5577 = vmatpush1.msra.mxu0 0.0
      %5578 = vmatprep.subr.mxu0 0.0
      %5579 = vmatpush1.msra.mxu0 0.0
      %5580 = vmatprep.subr.mxu0 0.0
      %5581 = vmatpush1.msra.mxu0 0.0
      %5582 = vmatprep.subr.mxu0 0.0
      %5583 = vmatpush1.msra.mxu0 0.0
      %5584 = vmatprep.subr.mxu0 0.0
      %5585 = vmatpush1.msra.mxu0 0.0
      %5586 = vmatprep.subr.mxu0 0.0
      %5587 = vmatpush1.msra.mxu0 0.0
      %5588 = vmatprep.subr.mxu0 0.0
      %5589 = vmatpush1.msra.mxu0 0.0
      %5590 = vmatprep.subr.mxu0 0.0
      %5591 = vmatpush1.msra.mxu0 0.0
      %5592 = vmatprep.subr.mxu0 0.0
      %5593 = vmatpush1.msra.mxu0 0.0
      %5594 = vmatprep.subr.mxu0 0.0
      %5595 = vmatpush1.msra.mxu0 0.0
      %5596 = vmatprep.subr.mxu0 0.0
      %5597 = vmatpush1.msra.mxu0 0.0
      %5598 = vmatprep.subr.mxu0 0.0
      %5599 = vmatpush1.msra.mxu0 0.0
      %5600 = vmatprep.subr.mxu0 0.0
      %5601 = vmatpush1.msra.mxu0 0.0
      %5602 = vmatprep.mubr.f32.mxu0 0.0
      %5603 = vmatmul.mubr.f32.gmra.mrb[0].mxu0 %v5489
      %v5604 = vpop.f32.mrb[0].mxu0
      %v5605 = vadd.f32 0.0, %v5604
      %v5606 = vpop.f32.mrb[0].mxu0
      %5607 = vmatprep.mubr.f32.mxu0 0.0
      %5608 = vmatmul.mubr.f32.gmra.mrb[0].mxu0 %v5490
      %v5609 = vpop.f32.mrb[0].mxu0
      %v5610 = vadd.f32 0.0, %v5609
      %v5611 = vpop.f32.mrb[0].mxu0
      %5612 = vmatprep.mubr.f32.mxu0 0.0
      %5613 = vmatmul.mubr.f32.gmra.mrb[0].mxu0 %v5491
      %v5614 = vpop.f32.mrb[0].mxu0
      %v5615 = vadd.f32 0.0, %v5614
      %v5616 = vpop.f32.mrb[0].mxu0
      %5617 = vmatprep.mubr.f32.mxu0 0.0
      %5618 = vmatmul.mubr.f32.gmra.mrb[0].mxu0 %v5492
      %v5619 = vpop.f32.mrb[0].mxu0
      %v5620 = vadd.f32 0.0, %v5619
      %v5621 = vpop.f32.mrb[0].mxu0
      %5622 = vmatprep.mubr.f32.mxu0 0.0
      %5623 = vmatmul.mubr.f32.gmra.mrb[0].mxu0 %v5493
      %v5624 = vpop.f32.mrb[0].mxu0
      %v5625 = vadd.f32 0.0, %v5624
      %v5626 = vpop.f32.mrb[0].mxu0
      %5627 = vmatprep.mubr.f32.mxu0 0.0
      %5628 = vmatmul.mubr.f32.gmra.mrb[0].mxu0 %v5494
      %v5629 = vpop.f32.mrb[0].mxu0
      %v5630 = vadd.f32 0.0, %v5629
      %v5631 = vpop.f32.mrb[0].mxu0
      %5632 = vmatprep.mubr.f32.mxu0 0.0
      %5633 = vmatmul.mubr.f32.gmra.mrb[0].mxu0 %v5495
      %v5634 = vpop.f32.mrb[0].mxu0
      %v5635 = vadd.f32 0.0, %v5634
      %v5636 = vpop.f32.mrb[0].mxu0
      %5637 = vmatprep.mubr.f32.mxu0 0.0
      %5638 = vmatmul.mubr.f32.gmra.mrb[0].mxu0 %v5496
      %v5639 = vpop.f32.mrb[0].mxu0
      %v5640 = vadd.f32 0.0, %v5639
      %v5641 = vpop.f32.mrb[0].mxu0
      %5642 = vmatprep.mubr.f32.mxu0 0.0
      %5643 = vmatmul.mubr.f32.gmra.mrb[0].mxu0 %v5497
      %v5644 = vpop.f32.mrb[0].mxu0
      %v5645 = vadd.f32 0.0, %v5644
      %v5646 = vpop.f32.mrb[0].mxu0
      %5647 = vmatprep.mubr.f32.mxu0 0.0
      %5648 = vmatmul.mubr.f32.gmra.mrb[0].mxu0 %v5498
      %v5649 = vpop.f32.mrb[0].mxu0
      %v5650 = vadd.f32 0.0, %v5649
      %v5651 = vpop.f32.mrb[0].mxu0
      %5652 = vmatprep.mubr.f32.mxu0 0.0
      %5653 = vmatmul.mubr.f32.gmra.mrb[0].mxu0 %v5499
      %v5654 = vpop.f32.mrb[0].mxu0
      %v5655 = vadd.f32 0.0, %v5654
      %v5656 = vpop.f32.mrb[0].mxu0
      %5657 = vmatprep.mubr.f32.mxu0 0.0
      %5658 = vmatmul.mubr.f32.gmra.mrb[0].mxu0 %v5500
      %v5659 = vpop.f32.mrb[0].mxu0
      %v5660 = vadd.f32 0.0, %v5659
      %v5661 = vpop.f32.mrb[0].mxu0
      %5662 = vmatprep.mubr.f32.mxu0 0.0
      %5663 = vmatmul.mubr.f32.gmra.mrb[0].mxu0 %v5501
      %v5664 = vpop.f32.mrb[0].mxu0
      %v5665 = vadd.f32 0.0, %v5664
      %v5666 = vpop.f32.mrb[0].mxu0
      %5667 = vmatprep.mubr.f32.mxu0 0.0
      %5668 = vmatmul.mubr.f32.gmra.mrb[0].mxu0 %v5502
      %v5669 = vpop.f32.mrb[0].mxu0
      %v5670 = vadd.f32 0.0, %v5669
      %v5671 = vpop.f32.mrb[0].mxu0
      %5672 = vmatprep.mubr.f32.mxu0 0.0
      %5673 = vmatmul.mubr.f32.gmra.mrb[0].mxu0 %v5503
      %v5674 = vpop.f32.mrb[0].mxu0
      %v5675 = vadd.f32 0.0, %v5674
      %v5676 = vpop.f32.mrb[0].mxu0
      %5677 = vmatprep.mubr.f32.mxu0 0.0
      %5678 = vmatmul.mubr.f32.gmra.mrb[0].mxu0 %v5504
      %v5679 = vpop.f32.mrb[0].mxu0
      %v5680 = vadd.f32 0.0, %v5679
      %v5681 = vpop.f32.mrb[0].mxu0
      %5682 = vmatprep.mubr.f32.mxu0 0.0
      %5683 = vmatmul.mubr.f32.gmra.mrb[0].mxu0 %v5505
      %v5684 = vpop.f32.mrb[0].mxu0
      %v5685 = vadd.f32 0.0, %v5684
      %v5686 = vpop.f32.mrb[0].mxu0
      %5687 = vmatprep.mubr.f32.mxu0 0.0
      %5688 = vmatmul.mubr.f32.gmra.mrb[0].mxu0 %v5506
      %v5689 = vpop.f32.mrb[0].mxu0
      %v5690 = vadd.f32 0.0, %v5689
      %v5691 = vpop.f32.mrb[0].mxu0
      %5692 = vmatprep.mubr.f32.mxu0 0.0
      %5693 = vmatmul.mubr.f32.gmra.mrb[0].mxu0 %v5507
      %v5694 = vpop.f32.mrb[0].mxu0
      %v5695 = vadd.f32 0.0, %v5694
      %v5696 = vpop.f32.mrb[0].mxu0
      %5697 = vmatprep.mubr.f32.mxu0 0.0
      %5698 = vmatmul.mubr.f32.gmra.mrb[0].mxu0 %v5508
      %v5699 = vpop.f32.mrb[0].mxu0
      %v5700 = vadd.f32 0.0, %v5699
      %v5701 = vpop.f32.mrb[0].mxu0
      %5702 = vmatprep.mubr.f32.mxu0 0.0
      %5703 = vmatmul.mubr.f32.gmra.mrb[0].mxu0 %v5509
      %v5704 = vpop.f32.mrb[0].mxu0
      %v5705 = vadd.f32 0.0, %v5704
      %v5706 = vpop.f32.mrb[0].mxu0
      %5707 = vmatprep.mubr.f32.mxu0 0.0
      %5708 = vmatmul.mubr.f32.gmra.mrb[0].mxu0 %v5510
      %v5709 = vpop.f32.mrb[0].mxu0
      %v5710 = vadd.f32 0.0, %v5709
      %v5711 = vpop.f32.mrb[0].mxu0
      %5712 = vmatprep.mubr.f32.mxu0 0.0
      %5713 = vmatmul.mubr.f32.gmra.mrb[0].mxu0 %v5511
      %v5714 = vpop.f32.mrb[0].mxu0
      %v5715 = vadd.f32 0.0, %v5714
      %v5716 = vpop.f32.mrb[0].mxu0
      %5717 = vmatprep.mubr.f32.mxu0 0.0
      %5718 = vmatmul.mubr.f32.gmra.mrb[0].mxu0 %v5512
      %v5719 = vpop.f32.mrb[0].mxu0
      %v5720 = vadd.f32 0.0, %v5719
      %v5721 = vpop.f32.mrb[0].mxu0
      %5722 = vmatprep.mubr.f32.mxu0 0.0
      %5723 = vmatmul.mubr.f32.gmra.mrb[0].mxu0 %v5513
      %v5724 = vpop.f32.mrb[0].mxu0
      %v5725 = vadd.f32 0.0, %v5724
      %v5726 = vpop.f32.mrb[0].mxu0
      %5727 = vmatprep.mubr.f32.mxu0 0.0
      %5728 = vmatmul.mubr.f32.gmra.mrb[0].mxu0 %v5514
      %v5729 = vpop.f32.mrb[0].mxu0
      %v5730 = vadd.f32 0.0, %v5729
      %v5731 = vpop.f32.mrb[0].mxu0
      %5732 = vmatprep.mubr.f32.mxu0 0.0
      %5733 = vmatmul.mubr.f32.gmra.mrb[0].mxu0 %v5515
      %v5734 = vpop.f32.mrb[0].mxu0
      %v5735 = vadd.f32 0.0, %v5734
      %v5736 = vpop.f32.mrb[0].mxu0
      %5737 = vmatprep.mubr.f32.mxu0 0.0
      %5738 = vmatmul.mubr.f32.gmra.mrb[0].mxu0 %v5516
      %v5739 = vpop.f32.mrb[0].mxu0
      %v5740 = vadd.f32 0.0, %v5739
      %v5741 = vpop.f32.mrb[0].mxu0
      %5742 = vmatprep.mubr.f32.mxu0 0.0
      %5743 = vmatmul.mubr.f32.gmra.mrb[0].mxu0 %v5517
      %v5744 = vpop.f32.mrb[0].mxu0
      %v5745 = vadd.f32 0.0, %v5744
      %v5746 = vpop.f32.mrb[0].mxu0
      %5747 = vmatprep.mubr.f32.mxu0 0.0
      %5748 = vmatmul.mubr.f32.gmra.mrb[0].mxu0 %v5518
      %v5749 = vpop.f32.mrb[0].mxu0
      %v5750 = vadd.f32 0.0, %v5749
      %v5751 = vpop.f32.mrb[0].mxu0
      %5752 = vmatprep.mubr.f32.mxu0 0.0
      %5753 = vmatmul.mubr.f32.gmra.mrb[0].mxu0 %v5519
      %v5754 = vpop.f32.mrb[0].mxu0
      %v5755 = vadd.f32 0.0, %v5754
      %v5756 = vpop.f32.mrb[0].mxu0
      %5757 = vmatprep.mubr.f32.mxu0 0.0
      %5758 = vmatmul.mubr.f32.gmra.mrb[0].mxu0 %v5520
      %v5759 = vpop.f32.mrb[0].mxu0
      %v5760 = vadd.f32 0.0, %v5759
      %v5761 = vpop.f32.mrb[0].mxu0
      %5762 = vdwg.mxu0
      %v5763 = vadd.f32 %v5457, %v5605
      %v5764 = vadd.f32 %v5458, %v5610
      %v5765 = vadd.f32 %v5459, %v5615
      %v5766 = vadd.f32 %v5460, %v5620
      %v5767 = vadd.f32 %v5461, %v5625
      %v5768 = vadd.f32 %v5462, %v5630
      %v5769 = vadd.f32 %v5463, %v5635
      %v5770 = vadd.f32 %v5464, %v5640
      %v5771 = vadd.f32 %v5465, %v5645
      %v5772 = vadd.f32 %v5466, %v5650
      %v5773 = vadd.f32 %v5467, %v5655
      %v5774 = vadd.f32 %v5468, %v5660
      %v5775 = vadd.f32 %v5469, %v5665
      %v5776 = vadd.f32 %v5470, %v5670
      %v5777 = vadd.f32 %v5471, %v5675
      %v5778 = vadd.f32 %v5472, %v5680
      %v5779 = vadd.f32 %v5473, %v5685
      %v5780 = vadd.f32 %v5474, %v5690
      %v5781 = vadd.f32 %v5475, %v5695
      %v5782 = vadd.f32 %v5476, %v5700
      %v5783 = vadd.f32 %v5477, %v5705
      %v5784 = vadd.f32 %v5478, %v5710
      %v5785 = vadd.f32 %v5479, %v5715
      %v5786 = vadd.f32 %v5480, %v5720
      %v5787 = vadd.f32 %v5481, %v5725
      %v5788 = vadd.f32 %v5482, %v5730
      %v5789 = vadd.f32 %v5483, %v5735
      %v5790 = vadd.f32 %v5484, %v5740
      %v5791 = vadd.f32 %v5485, %v5745
      %v5792 = vadd.f32 %v5486, %v5750
      %v5793 = vadd.f32 %v5487, %v5755
      %v5794 = vadd.f32 %v5488, %v5760
      %v5795 = vld [vmem:[%s2138 + $0x9] sm:$0xff]
      %v5796 = vld [vmem:[%s2138 + $0x11] sm:$0xff]
      %v5797 = vld [vmem:[%s2138 + $0x29] sm:$0xff]
      %v5798 = vld [vmem:[%s2138 + $0x31] sm:$0xff]
      %v5799 = vld [vmem:[%s2138 + $0x49] sm:$0xff]
      %v5800 = vld [vmem:[%s2138 + $0x51] sm:$0xff]
      %v5801 = vld [vmem:[%s2138 + $0x69] sm:$0xff]
      %v5802 = vld [vmem:[%s2138 + $0x71] sm:$0xff]
      %v5803 = vld [vmem:[%s2138 + $0x89] sm:$0xff]
      %v5804 = vld [vmem:[%s2138 + $0x91] sm:$0xff]
      %v5805 = vld [vmem:[%s2138 + $0xa9] sm:$0xff]
      %v5806 = vld [vmem:[%s2138 + $0xb1] sm:$0xff]
      %v5807 = vld [vmem:[%s2138 + $0xc9] sm:$0xff]
      %v5808 = vld [vmem:[%s2138 + $0xd1] sm:$0xff]
      %v5809 = vld [vmem:[%s2138 + $0xe9] sm:$0xff]
      %v5810 = vld [vmem:[%s2138 + $0xf1] sm:$0xff]
      %v5811 = vld [vmem:[%s2138 + $0x109] sm:$0xff]
      %v5812 = vld [vmem:[%s2138 + $0x111] sm:$0xff]
      %v5813 = vld [vmem:[%s2138 + $0x129] sm:$0xff]
      %v5814 = vld [vmem:[%s2138 + $0x131] sm:$0xff]
      %v5815 = vld [vmem:[%s2138 + $0x149] sm:$0xff]
      %v5816 = vld [vmem:[%s2138 + $0x151] sm:$0xff]
      %v5817 = vld [vmem:[%s2138 + $0x169] sm:$0xff]
      %v5818 = vld [vmem:[%s2138 + $0x171] sm:$0xff]
      %v5819 = vld [vmem:[%s2138 + $0x189] sm:$0xff]
      %v5820 = vld [vmem:[%s2138 + $0x191] sm:$0xff]
      %v5821 = vld [vmem:[%s2138 + $0x1a9] sm:$0xff]
      %v5822 = vld [vmem:[%s2138 + $0x1b1] sm:$0xff]
      %v5823 = vld [vmem:[%s2138 + $0x1c9] sm:$0xff]
      %v5824 = vld [vmem:[%s2138 + $0x1d1] sm:$0xff]
      %v5825 = vld [vmem:[%s2138 + $0x1e9] sm:$0xff]
      %v5826 = vld [vmem:[%s2138 + $0x1f1] sm:$0xff]
      %s5827 = scalar_lea.vmem %s3, 1024
      %v5828 = vld [vmem:[%s5827] sm:$0xff]
      %v5829 = vld [vmem:[%s5827 + $0x8] sm:$0xff]
      %v5830 = vld [vmem:[%s5827 + $0x10] sm:$0xff]
      %v5831 = vld [vmem:[%s5827 + $0x18] sm:$0xff]
      %v5832 = vld [vmem:[%s5827 + $0x20] sm:$0xff]
      %v5833 = vld [vmem:[%s5827 + $0x28] sm:$0xff]
      %v5834 = vld [vmem:[%s5827 + $0x30] sm:$0xff]
      %v5835 = vld [vmem:[%s5827 + $0x38] sm:$0xff]
      %v5836 = vld [vmem:[%s5827 + $0x40] sm:$0xff]
      %v5837 = vld [vmem:[%s5827 + $0x48] sm:$0xff]
      %v5838 = vld [vmem:[%s5827 + $0x50] sm:$0xff]
      %v5839 = vld [vmem:[%s5827 + $0x58] sm:$0xff]
      %v5840 = vld [vmem:[%s5827 + $0x60] sm:$0xff]
      %v5841 = vld [vmem:[%s5827 + $0x68] sm:$0xff]
      %v5842 = vld [vmem:[%s5827 + $0x70] sm:$0xff]
      %v5843 = vld [vmem:[%s5827 + $0x78] sm:$0xff]
      %5844 = vmatprep.subr.mxu0 0.0
      %5845 = vmatpush1.msra.mxu0 %v5828
      %5846 = vmatprep.subr.mxu0 0.0
      %5847 = vmatpush1.msra.mxu0 %v5829
      %5848 = vmatprep.subr.mxu0 0.0
      %5849 = vmatpush1.msra.mxu0 %v5830
      %5850 = vmatprep.subr.mxu0 0.0
      %5851 = vmatpush1.msra.mxu0 %v5831
      %5852 = vmatprep.subr.mxu0 0.0
      %5853 = vmatpush1.msra.mxu0 %v5832
      %5854 = vmatprep.subr.mxu0 0.0
      %5855 = vmatpush1.msra.mxu0 %v5833
      %5856 = vmatprep.subr.mxu0 0.0
      %5857 = vmatpush1.msra.mxu0 %v5834
      %5858 = vmatprep.subr.mxu0 0.0
      %5859 = vmatpush1.msra.mxu0 %v5835
      %5860 = vmatprep.subr.mxu0 0.0
      %5861 = vmatpush1.msra.mxu0 %v5836
      %5862 = vmatprep.subr.mxu0 0.0
      %5863 = vmatpush1.msra.mxu0 %v5837
      %5864 = vmatprep.subr.mxu0 0.0
      %5865 = vmatpush1.msra.mxu0 %v5838
      %5866 = vmatprep.subr.mxu0 0.0
      %5867 = vmatpush1.msra.mxu0 %v5839
      %5868 = vmatprep.subr.mxu0 0.0
      %5869 = vmatpush1.msra.mxu0 %v5840
      %5870 = vmatprep.subr.mxu0 0.0
      %5871 = vmatpush1.msra.mxu0 %v5841
      %5872 = vmatprep.subr.mxu0 0.0
      %5873 = vmatpush1.msra.mxu0 %v5842
      %5874 = vmatprep.subr.mxu0 0.0
      %5875 = vmatpush1.msra.mxu0 %v5843
      %5876 = vmatprep.subr.mxu0 0.0
      %5877 = vmatpush1.msra.mxu0 0.0
      %5878 = vmatprep.subr.mxu0 0.0
      %5879 = vmatpush1.msra.mxu0 0.0
      %5880 = vmatprep.subr.mxu0 0.0
      %5881 = vmatpush1.msra.mxu0 0.0
      %5882 = vmatprep.subr.mxu0 0.0
      %5883 = vmatpush1.msra.mxu0 0.0
      %5884 = vmatprep.subr.mxu0 0.0
      %5885 = vmatpush1.msra.mxu0 0.0
      %5886 = vmatprep.subr.mxu0 0.0
      %5887 = vmatpush1.msra.mxu0 0.0
      %5888 = vmatprep.subr.mxu0 0.0
      %5889 = vmatpush1.msra.mxu0 0.0
      %5890 = vmatprep.subr.mxu0 0.0
      %5891 = vmatpush1.msra.mxu0 0.0
      %5892 = vmatprep.subr.mxu0 0.0
      %5893 = vmatpush1.msra.mxu0 0.0
      %5894 = vmatprep.subr.mxu0 0.0
      %5895 = vmatpush1.msra.mxu0 0.0
      %5896 = vmatprep.subr.mxu0 0.0
      %5897 = vmatpush1.msra.mxu0 0.0
      %5898 = vmatprep.subr.mxu0 0.0
      %5899 = vmatpush1.msra.mxu0 0.0
      %5900 = vmatprep.subr.mxu0 0.0
      %5901 = vmatpush1.msra.mxu0 0.0
      %5902 = vmatprep.subr.mxu0 0.0
      %5903 = vmatpush1.msra.mxu0 0.0
      %5904 = vmatprep.subr.mxu0 0.0
      %5905 = vmatpush1.msra.mxu0 0.0
      %5906 = vmatprep.subr.mxu0 0.0
      %5907 = vmatpush1.msra.mxu0 0.0
      %5908 = vmatprep.mubr.f32.mxu0 0.0
      %5909 = vmatmul.mubr.f32.gmra.mrb[0].mxu0 %v5795
      %v5910 = vpop.f32.mrb[0].mxu0
      %v5911 = vadd.f32 0.0, %v5910
      %v5912 = vpop.f32.mrb[0].mxu0
      %5913 = vmatprep.mubr.f32.mxu0 0.0
      %5914 = vmatmul.mubr.f32.gmra.mrb[0].mxu0 %v5796
      %v5915 = vpop.f32.mrb[0].mxu0
      %v5916 = vadd.f32 0.0, %v5915
      %v5917 = vpop.f32.mrb[0].mxu0
      %5918 = vmatprep.mubr.f32.mxu0 0.0
      %5919 = vmatmul.mubr.f32.gmra.mrb[0].mxu0 %v5797
      %v5920 = vpop.f32.mrb[0].mxu0
      %v5921 = vadd.f32 0.0, %v5920
      %v5922 = vpop.f32.mrb[0].mxu0
      %5923 = vmatprep.mubr.f32.mxu0 0.0
      %5924 = vmatmul.mubr.f32.gmra.mrb[0].mxu0 %v5798
      %v5925 = vpop.f32.mrb[0].mxu0
      %v5926 = vadd.f32 0.0, %v5925
      %v5927 = vpop.f32.mrb[0].mxu0
      %5928 = vmatprep.mubr.f32.mxu0 0.0
      %5929 = vmatmul.mubr.f32.gmra.mrb[0].mxu0 %v5799
      %v5930 = vpop.f32.mrb[0].mxu0
      %v5931 = vadd.f32 0.0, %v5930
      %v5932 = vpop.f32.mrb[0].mxu0
      %5933 = vmatprep.mubr.f32.mxu0 0.0
      %5934 = vmatmul.mubr.f32.gmra.mrb[0].mxu0 %v5800
      %v5935 = vpop.f32.mrb[0].mxu0
      %v5936 = vadd.f32 0.0, %v5935
      %v5937 = vpop.f32.mrb[0].mxu0
      %5938 = vmatprep.mubr.f32.mxu0 0.0
      %5939 = vmatmul.mubr.f32.gmra.mrb[0].mxu0 %v5801
      %v5940 = vpop.f32.mrb[0].mxu0
      %v5941 = vadd.f32 0.0, %v5940
      %v5942 = vpop.f32.mrb[0].mxu0
      %5943 = vmatprep.mubr.f32.mxu0 0.0
      %5944 = vmatmul.mubr.f32.gmra.mrb[0].mxu0 %v5802
      %v5945 = vpop.f32.mrb[0].mxu0
      %v5946 = vadd.f32 0.0, %v5945
      %v5947 = vpop.f32.mrb[0].mxu0
      %5948 = vmatprep.mubr.f32.mxu0 0.0
      %5949 = vmatmul.mubr.f32.gmra.mrb[0].mxu0 %v5803
      %v5950 = vpop.f32.mrb[0].mxu0
      %v5951 = vadd.f32 0.0, %v5950
      %v5952 = vpop.f32.mrb[0].mxu0
      %5953 = vmatprep.mubr.f32.mxu0 0.0
      %5954 = vmatmul.mubr.f32.gmra.mrb[0].mxu0 %v5804
      %v5955 = vpop.f32.mrb[0].mxu0
      %v5956 = vadd.f32 0.0, %v5955
      %v5957 = vpop.f32.mrb[0].mxu0
      %5958 = vmatprep.mubr.f32.mxu0 0.0
      %5959 = vmatmul.mubr.f32.gmra.mrb[0].mxu0 %v5805
      %v5960 = vpop.f32.mrb[0].mxu0
      %v5961 = vadd.f32 0.0, %v5960
      %v5962 = vpop.f32.mrb[0].mxu0
      %5963 = vmatprep.mubr.f32.mxu0 0.0
      %5964 = vmatmul.mubr.f32.gmra.mrb[0].mxu0 %v5806
      %v5965 = vpop.f32.mrb[0].mxu0
      %v5966 = vadd.f32 0.0, %v5965
      %v5967 = vpop.f32.mrb[0].mxu0
      %5968 = vmatprep.mubr.f32.mxu0 0.0
      %5969 = vmatmul.mubr.f32.gmra.mrb[0].mxu0 %v5807
      %v5970 = vpop.f32.mrb[0].mxu0
      %v5971 = vadd.f32 0.0, %v5970
      %v5972 = vpop.f32.mrb[0].mxu0
      %5973 = vmatprep.mubr.f32.mxu0 0.0
      %5974 = vmatmul.mubr.f32.gmra.mrb[0].mxu0 %v5808
      %v5975 = vpop.f32.mrb[0].mxu0
      %v5976 = vadd.f32 0.0, %v5975
      %v5977 = vpop.f32.mrb[0].mxu0
      %5978 = vmatprep.mubr.f32.mxu0 0.0
      %5979 = vmatmul.mubr.f32.gmra.mrb[0].mxu0 %v5809
      %v5980 = vpop.f32.mrb[0].mxu0
      %v5981 = vadd.f32 0.0, %v5980
      %v5982 = vpop.f32.mrb[0].mxu0
      %5983 = vmatprep.mubr.f32.mxu0 0.0
      %5984 = vmatmul.mubr.f32.gmra.mrb[0].mxu0 %v5810
      %v5985 = vpop.f32.mrb[0].mxu0
      %v5986 = vadd.f32 0.0, %v5985
      %v5987 = vpop.f32.mrb[0].mxu0
      %5988 = vmatprep.mubr.f32.mxu0 0.0
      %5989 = vmatmul.mubr.f32.gmra.mrb[0].mxu0 %v5811
      %v5990 = vpop.f32.mrb[0].mxu0
      %v5991 = vadd.f32 0.0, %v5990
      %v5992 = vpop.f32.mrb[0].mxu0
      %5993 = vmatprep.mubr.f32.mxu0 0.0
      %5994 = vmatmul.mubr.f32.gmra.mrb[0].mxu0 %v5812
      %v5995 = vpop.f32.mrb[0].mxu0
      %v5996 = vadd.f32 0.0, %v5995
      %v5997 = vpop.f32.mrb[0].mxu0
      %5998 = vmatprep.mubr.f32.mxu0 0.0
      %5999 = vmatmul.mubr.f32.gmra.mrb[0].mxu0 %v5813
      %v6000 = vpop.f32.mrb[0].mxu0
      %v6001 = vadd.f32 0.0, %v6000
      %v6002 = vpop.f32.mrb[0].mxu0
      %6003 = vmatprep.mubr.f32.mxu0 0.0
      %6004 = vmatmul.mubr.f32.gmra.mrb[0].mxu0 %v5814
      %v6005 = vpop.f32.mrb[0].mxu0
      %v6006 = vadd.f32 0.0, %v6005
      %v6007 = vpop.f32.mrb[0].mxu0
      %6008 = vmatprep.mubr.f32.mxu0 0.0
      %6009 = vmatmul.mubr.f32.gmra.mrb[0].mxu0 %v5815
      %v6010 = vpop.f32.mrb[0].mxu0
      %v6011 = vadd.f32 0.0, %v6010
      %v6012 = vpop.f32.mrb[0].mxu0
      %6013 = vmatprep.mubr.f32.mxu0 0.0
      %6014 = vmatmul.mubr.f32.gmra.mrb[0].mxu0 %v5816
      %v6015 = vpop.f32.mrb[0].mxu0
      %v6016 = vadd.f32 0.0, %v6015
      %v6017 = vpop.f32.mrb[0].mxu0
      %6018 = vmatprep.mubr.f32.mxu0 0.0
      %6019 = vmatmul.mubr.f32.gmra.mrb[0].mxu0 %v5817
      %v6020 = vpop.f32.mrb[0].mxu0
      %v6021 = vadd.f32 0.0, %v6020
      %v6022 = vpop.f32.mrb[0].mxu0
      %6023 = vmatprep.mubr.f32.mxu0 0.0
      %6024 = vmatmul.mubr.f32.gmra.mrb[0].mxu0 %v5818
      %v6025 = vpop.f32.mrb[0].mxu0
      %v6026 = vadd.f32 0.0, %v6025
      %v6027 = vpop.f32.mrb[0].mxu0
      %6028 = vmatprep.mubr.f32.mxu0 0.0
      %6029 = vmatmul.mubr.f32.gmra.mrb[0].mxu0 %v5819
      %v6030 = vpop.f32.mrb[0].mxu0
      %v6031 = vadd.f32 0.0, %v6030
      %v6032 = vpop.f32.mrb[0].mxu0
      %6033 = vmatprep.mubr.f32.mxu0 0.0
      %6034 = vmatmul.mubr.f32.gmra.mrb[0].mxu0 %v5820
      %v6035 = vpop.f32.mrb[0].mxu0
      %v6036 = vadd.f32 0.0, %v6035
      %v6037 = vpop.f32.mrb[0].mxu0
      %6038 = vmatprep.mubr.f32.mxu0 0.0
      %6039 = vmatmul.mubr.f32.gmra.mrb[0].mxu0 %v5821
      %v6040 = vpop.f32.mrb[0].mxu0
      %v6041 = vadd.f32 0.0, %v6040
      %v6042 = vpop.f32.mrb[0].mxu0
      %6043 = vmatprep.mubr.f32.mxu0 0.0
      %6044 = vmatmul.mubr.f32.gmra.mrb[0].mxu0 %v5822
      %v6045 = vpop.f32.mrb[0].mxu0
      %v6046 = vadd.f32 0.0, %v6045
      %v6047 = vpop.f32.mrb[0].mxu0
      %6048 = vmatprep.mubr.f32.mxu0 0.0
      %6049 = vmatmul.mubr.f32.gmra.mrb[0].mxu0 %v5823
      %v6050 = vpop.f32.mrb[0].mxu0
      %v6051 = vadd.f32 0.0, %v6050
      %v6052 = vpop.f32.mrb[0].mxu0
      %6053 = vmatprep.mubr.f32.mxu0 0.0
      %6054 = vmatmul.mubr.f32.gmra.mrb[0].mxu0 %v5824
      %v6055 = vpop.f32.mrb[0].mxu0
      %v6056 = vadd.f32 0.0, %v6055
      %v6057 = vpop.f32.mrb[0].mxu0
      %6058 = vmatprep.mubr.f32.mxu0 0.0
      %6059 = vmatmul.mubr.f32.gmra.mrb[0].mxu0 %v5825
      %v6060 = vpop.f32.mrb[0].mxu0
      %v6061 = vadd.f32 0.0, %v6060
      %v6062 = vpop.f32.mrb[0].mxu0
      %6063 = vmatprep.mubr.f32.mxu0 0.0
      %6064 = vmatmul.mubr.f32.gmra.mrb[0].mxu0 %v5826
      %v6065 = vpop.f32.mrb[0].mxu0
      %v6066 = vadd.f32 0.0, %v6065
      %v6067 = vpop.f32.mrb[0].mxu0
      %6068 = vdwg.mxu0
      %v6069 = vadd.f32 %v5763, %v5911
      %v6070 = vadd.f32 %v5764, %v5916
      %v6071 = vadd.f32 %v5765, %v5921
      %v6072 = vadd.f32 %v5766, %v5926
      %v6073 = vadd.f32 %v5767, %v5931
      %v6074 = vadd.f32 %v5768, %v5936
      %v6075 = vadd.f32 %v5769, %v5941
      %v6076 = vadd.f32 %v5770, %v5946
      %v6077 = vadd.f32 %v5771, %v5951
      %v6078 = vadd.f32 %v5772, %v5956
      %v6079 = vadd.f32 %v5773, %v5961
      %v6080 = vadd.f32 %v5774, %v5966
      %v6081 = vadd.f32 %v5775, %v5971
      %v6082 = vadd.f32 %v5776, %v5976
      %v6083 = vadd.f32 %v5777, %v5981
      %v6084 = vadd.f32 %v5778, %v5986
      %v6085 = vadd.f32 %v5779, %v5991
      %v6086 = vadd.f32 %v5780, %v5996
      %v6087 = vadd.f32 %v5781, %v6001
      %v6088 = vadd.f32 %v5782, %v6006
      %v6089 = vadd.f32 %v5783, %v6011
      %v6090 = vadd.f32 %v5784, %v6016
      %v6091 = vadd.f32 %v5785, %v6021
      %v6092 = vadd.f32 %v5786, %v6026
      %v6093 = vadd.f32 %v5787, %v6031
      %v6094 = vadd.f32 %v5788, %v6036
      %v6095 = vadd.f32 %v5789, %v6041
      %v6096 = vadd.f32 %v5790, %v6046
      %v6097 = vadd.f32 %v5791, %v6051
      %v6098 = vadd.f32 %v5792, %v6056
      %v6099 = vadd.f32 %v5793, %v6061
      %v6100 = vadd.f32 %v5794, %v6066
      %v6101 = vld [vmem:[%s4] sm:$0x1]
      %v6103 = vlaneseq
      %v6104 = vshrl.u32 %v6103, 7
      %v6105 = vsub.s32 0, %v6104
      %v6106 = vrot.slane %v6101, %v6105
      %v6108 = vadd.f32 %v6069, %v6106
      %v6109 = vadd.f32 %v6070, %v6106
      %v6110 = vadd.f32 %v6071, %v6106
      %v6111 = vadd.f32 %v6072, %v6106
      %v6112 = vadd.f32 %v6073, %v6106
      %v6113 = vadd.f32 %v6074, %v6106
      %v6114 = vadd.f32 %v6075, %v6106
      %v6115 = vadd.f32 %v6076, %v6106
      %v6116 = vadd.f32 %v6077, %v6106
      %v6117 = vadd.f32 %v6078, %v6106
      %v6118 = vadd.f32 %v6079, %v6106
      %v6119 = vadd.f32 %v6080, %v6106
      %v6120 = vadd.f32 %v6081, %v6106
      %v6121 = vadd.f32 %v6082, %v6106
      %v6122 = vadd.f32 %v6083, %v6106
      %v6123 = vadd.f32 %v6084, %v6106
      %v6124 = vadd.f32 %v6085, %v6106
      %v6125 = vadd.f32 %v6086, %v6106
      %v6126 = vadd.f32 %v6087, %v6106
      %v6127 = vadd.f32 %v6088, %v6106
      %v6128 = vadd.f32 %v6089, %v6106
      %v6129 = vadd.f32 %v6090, %v6106
      %v6130 = vadd.f32 %v6091, %v6106
      %v6131 = vadd.f32 %v6092, %v6106
      %v6132 = vadd.f32 %v6093, %v6106
      %v6133 = vadd.f32 %v6094, %v6106
      %v6134 = vadd.f32 %v6095, %v6106
      %v6135 = vadd.f32 %v6096, %v6106
      %v6136 = vadd.f32 %v6097, %v6106
      %v6137 = vadd.f32 %v6098, %v6106
      %v6138 = vadd.f32 %v6099, %v6106
      %v6139 = vadd.f32 %v6100, %v6106
      %v6140 = vadd.f32 %v6108, %v6109
      %v6141 = vadd.f32 %v6140, %v6110
      %v6142 = vadd.f32 %v6141, %v6111
      %v6143 = vadd.f32 %v6142, %v6112
      %v6144 = vadd.f32 %v6143, %v6113
      %v6145 = vadd.f32 %v6144, %v6114
      %v6146 = vadd.f32 %v6145, %v6115
      %v6147 = vadd.f32 %v6146, %v6116
      %v6148 = vadd.f32 %v6147, %v6117
      %v6149 = vadd.f32 %v6148, %v6118
      %v6150 = vadd.f32 %v6149, %v6119
      %v6151 = vadd.f32 %v6150, %v6120
      %v6152 = vadd.f32 %v6151, %v6121
      %v6153 = vadd.f32 %v6152, %v6122
      %v6154 = vadd.f32 %v6153, %v6123
      %v6155 = vadd.f32 %v6154, %v6124
      %v6156 = vadd.f32 %v6155, %v6125
      %v6157 = vadd.f32 %v6156, %v6126
      %v6158 = vadd.f32 %v6157, %v6127
      %v6159 = vadd.f32 %v6158, %v6128
      %v6160 = vadd.f32 %v6159, %v6129
      %v6161 = vadd.f32 %v6160, %v6130
      %v6162 = vadd.f32 %v6161, %v6131
      %v6163 = vadd.f32 %v6162, %v6132
      %v6164 = vadd.f32 %v6163, %v6133
      %v6165 = vadd.f32 %v6164, %v6134
      %v6166 = vadd.f32 %v6165, %v6135
      %v6167 = vadd.f32 %v6166, %v6136
      %v6168 = vadd.f32 %v6167, %v6137
      %v6169 = vadd.f32 %v6168, %v6138
      %v6170 = vadd.f32 %v6169, %v6139
      %v6171 = vrot.slane %v6170, 4
      %v6172 = vadd.f32 %v6170, %v6171
      %v6173 = vrot.slane %v6172, 2
      %v6174 = vadd.f32 %v6172, %v6173
      %v6175 = vrot.slane %v6174, 1
      %v6176 = vadd.f32 %v6174, %v6175
      %v6177 = vmul.f32 %v6108, %v6108
      %v6178 = vmul.f32 %v6109, %v6109
      %v6179 = vmul.f32 %v6110, %v6110
      %v6180 = vmul.f32 %v6111, %v6111
      %v6181 = vmul.f32 %v6112, %v6112
      %v6182 = vmul.f32 %v6113, %v6113
      %v6183 = vmul.f32 %v6114, %v6114
      %v6184 = vmul.f32 %v6115, %v6115
      %v6185 = vmul.f32 %v6116, %v6116
      %v6186 = vmul.f32 %v6117, %v6117
      %v6187 = vmul.f32 %v6118, %v6118
      %v6188 = vmul.f32 %v6119, %v6119
      %v6189 = vmul.f32 %v6120, %v6120
      %v6190 = vmul.f32 %v6121, %v6121
      %v6191 = vmul.f32 %v6122, %v6122
      %v6192 = vmul.f32 %v6123, %v6123
      %v6193 = vmul.f32 %v6124, %v6124
      %v6194 = vmul.f32 %v6125, %v6125
      %v6195 = vmul.f32 %v6126, %v6126
      %v6196 = vmul.f32 %v6127, %v6127
      %v6197 = vmul.f32 %v6128, %v6128
      %v6198 = vmul.f32 %v6129, %v6129
      %v6199 = vmul.f32 %v6130, %v6130
      %v6200 = vmul.f32 %v6131, %v6131
      %v6201 = vmul.f32 %v6132, %v6132
      %v6202 = vmul.f32 %v6133, %v6133
      %v6203 = vmul.f32 %v6134, %v6134
      %v6204 = vmul.f32 %v6135, %v6135
      %v6205 = vmul.f32 %v6136, %v6136
      %v6206 = vmul.f32 %v6137, %v6137
      %v6207 = vmul.f32 %v6138, %v6138
      %v6208 = vmul.f32 %v6139, %v6139
      %v6209 = vadd.f32 %v6177, %v6178
      %v6210 = vadd.f32 %v6209, %v6179
      %v6211 = vadd.f32 %v6210, %v6180
      %v6212 = vadd.f32 %v6211, %v6181
      %v6213 = vadd.f32 %v6212, %v6182
      %v6214 = vadd.f32 %v6213, %v6183
      %v6215 = vadd.f32 %v6214, %v6184
      %v6216 = vadd.f32 %v6215, %v6185
      %v6217 = vadd.f32 %v6216, %v6186
      %v6218 = vadd.f32 %v6217, %v6187
      %v6219 = vadd.f32 %v6218, %v6188
      %v6220 = vadd.f32 %v6219, %v6189
      %v6221 = vadd.f32 %v6220, %v6190
      %v6222 = vadd.f32 %v6221, %v6191
      %v6223 = vadd.f32 %v6222, %v6192
      %v6224 = vadd.f32 %v6223, %v6193
      %v6225 = vadd.f32 %v6224, %v6194
      %v6226 = vadd.f32 %v6225, %v6195
      %v6227 = vadd.f32 %v6226, %v6196
      %v6228 = vadd.f32 %v6227, %v6197
      %v6229 = vadd.f32 %v6228, %v6198
      %v6230 = vadd.f32 %v6229, %v6199
      %v6231 = vadd.f32 %v6230, %v6200
      %v6232 = vadd.f32 %v6231, %v6201
      %v6233 = vadd.f32 %v6232, %v6202
      %v6234 = vadd.f32 %v6233, %v6203
      %v6235 = vadd.f32 %v6234, %v6204
      %v6236 = vadd.f32 %v6235, %v6205
      %v6237 = vadd.f32 %v6236, %v6206
      %v6238 = vadd.f32 %v6237, %v6207
      %v6239 = vadd.f32 %v6238, %v6208
      %v6240 = vrot.slane %v6239, 4
      %v6241 = vadd.f32 %v6239, %v6240
      %v6242 = vrot.slane %v6241, 2
      %v6243 = vadd.f32 %v6241, %v6242
      %v6244 = vrot.slane %v6243, 1
      %v6245 = vadd.f32 %v6243, %v6244
      %v6246 = vmul.f32 %v6176, 0.00390625
      %v6247 = vmul.f32 %v6245, 0.00390625
      %v6248 = vmul.f32 %v6246, %v6246
      %v6249 = vsub.f32 %v6247, %v6248
      %v6250 = vsub.f32 %v6108, %v6246
      %v6251 = vsub.f32 %v6109, %v6246
      %v6252 = vsub.f32 %v6110, %v6246
      %v6253 = vsub.f32 %v6111, %v6246
      %v6254 = vsub.f32 %v6112, %v6246
      %v6255 = vsub.f32 %v6113, %v6246
      %v6256 = vsub.f32 %v6114, %v6246
      %v6257 = vsub.f32 %v6115, %v6246
      %v6258 = vsub.f32 %v6116, %v6246
      %v6259 = vsub.f32 %v6117, %v6246
      %v6260 = vsub.f32 %v6118, %v6246
      %v6261 = vsub.f32 %v6119, %v6246
      %v6262 = vsub.f32 %v6120, %v6246
      %v6263 = vsub.f32 %v6121, %v6246
      %v6264 = vsub.f32 %v6122, %v6246
      %v6265 = vsub.f32 %v6123, %v6246
      %v6266 = vsub.f32 %v6124, %v6246
      %v6267 = vsub.f32 %v6125, %v6246
      %v6268 = vsub.f32 %v6126, %v6246
      %v6269 = vsub.f32 %v6127, %v6246
      %v6270 = vsub.f32 %v6128, %v6246
      %v6271 = vsub.f32 %v6129, %v6246
      %v6272 = vsub.f32 %v6130, %v6246
      %v6273 = vsub.f32 %v6131, %v6246
      %v6274 = vsub.f32 %v6132, %v6246
      %v6275 = vsub.f32 %v6133, %v6246
      %v6276 = vsub.f32 %v6134, %v6246
      %v6277 = vsub.f32 %v6135, %v6246
      %v6278 = vsub.f32 %v6136, %v6246
      %v6279 = vsub.f32 %v6137, %v6246
      %v6280 = vsub.f32 %v6138, %v6246
      %v6281 = vsub.f32 %v6139, %v6246
      %v6282 = vadd.f32 %v6249, 1e-05
      %v6283 = vrsqrt.pop %v6282
      %v6284 = vmul.f32 %v6250, %v6283
      %v6285 = vmul.f32 %v6251, %v6283
      %v6286 = vmul.f32 %v6252, %v6283
      %v6287 = vmul.f32 %v6253, %v6283
      %v6288 = vmul.f32 %v6254, %v6283
      %v6289 = vmul.f32 %v6255, %v6283
      %v6290 = vmul.f32 %v6256, %v6283
      %v6291 = vmul.f32 %v6257, %v6283
      %v6292 = vmul.f32 %v6258, %v6283
      %v6293 = vmul.f32 %v6259, %v6283
      %v6294 = vmul.f32 %v6260, %v6283
      %v6295 = vmul.f32 %v6261, %v6283
      %v6296 = vmul.f32 %v6262, %v6283
      %v6297 = vmul.f32 %v6263, %v6283
      %v6298 = vmul.f32 %v6264, %v6283
      %v6299 = vmul.f32 %v6265, %v6283
      %v6300 = vmul.f32 %v6266, %v6283
      %v6301 = vmul.f32 %v6267, %v6283
      %v6302 = vmul.f32 %v6268, %v6283
      %v6303 = vmul.f32 %v6269, %v6283
      %v6304 = vmul.f32 %v6270, %v6283
      %v6305 = vmul.f32 %v6271, %v6283
      %v6306 = vmul.f32 %v6272, %v6283
      %v6307 = vmul.f32 %v6273, %v6283
      %v6308 = vmul.f32 %v6274, %v6283
      %v6309 = vmul.f32 %v6275, %v6283
      %v6310 = vmul.f32 %v6276, %v6283
      %v6311 = vmul.f32 %v6277, %v6283
      %v6312 = vmul.f32 %v6278, %v6283
      %v6313 = vmul.f32 %v6279, %v6283
      %v6314 = vmul.f32 %v6280, %v6283
      %v6315 = vmul.f32 %v6281, %v6283
      %v6316 = vld [vmem:[%s219] sm:$0xff]
      %v6317 = vld [vmem:[%s219 + $0x8] sm:$0xff]
      %v6318 = vld [vmem:[%s219 + $0x10] sm:$0xff]
      %v6319 = vld [vmem:[%s219 + $0x18] sm:$0xff]
      %v6320 = vld [vmem:[%s219 + $0x20] sm:$0xff]
      %v6321 = vld [vmem:[%s219 + $0x28] sm:$0xff]
      %v6322 = vld [vmem:[%s219 + $0x30] sm:$0xff]
      %v6323 = vld [vmem:[%s219 + $0x38] sm:$0xff]
      %v6324 = vld [vmem:[%s219 + $0x40] sm:$0xff]
      %v6325 = vld [vmem:[%s219 + $0x48] sm:$0xff]
      %v6326 = vld [vmem:[%s219 + $0x50] sm:$0xff]
      %v6327 = vld [vmem:[%s219 + $0x58] sm:$0xff]
      %v6328 = vld [vmem:[%s219 + $0x60] sm:$0xff]
      %v6329 = vld [vmem:[%s219 + $0x68] sm:$0xff]
      %v6330 = vld [vmem:[%s219 + $0x70] sm:$0xff]
      %v6331 = vld [vmem:[%s219 + $0x78] sm:$0xff]
      %v6332 = vld [vmem:[%s219 + $0x80] sm:$0xff]
      %v6333 = vld [vmem:[%s219 + $0x88] sm:$0xff]
      %v6334 = vld [vmem:[%s219 + $0x90] sm:$0xff]
      %v6335 = vld [vmem:[%s219 + $0x98] sm:$0xff]
      %v6336 = vld [vmem:[%s219 + $0xa0] sm:$0xff]
      %v6337 = vld [vmem:[%s219 + $0xa8] sm:$0xff]
      %v6338 = vld [vmem:[%s219 + $0xb0] sm:$0xff]
      %v6339 = vld [vmem:[%s219 + $0xb8] sm:$0xff]
      %v6340 = vld [vmem:[%s219 + $0xc0] sm:$0xff]
      %v6341 = vld [vmem:[%s219 + $0xc8] sm:$0xff]
      %v6342 = vld [vmem:[%s219 + $0xd0] sm:$0xff]
      %v6343 = vld [vmem:[%s219 + $0xd8] sm:$0xff]
      %v6344 = vld [vmem:[%s219 + $0xe0] sm:$0xff]
      %v6345 = vld [vmem:[%s219 + $0xe8] sm:$0xff]
      %v6346 = vld [vmem:[%s219 + $0xf0] sm:$0xff]
      %v6347 = vld [vmem:[%s219 + $0xf8] sm:$0xff]
      %v6348 = vadd.f32 %v6316, %v6284
      %v6349 = vadd.f32 %v6317, %v6285
      %v6350 = vadd.f32 %v6318, %v6286
      %v6351 = vadd.f32 %v6319, %v6287
      %v6352 = vadd.f32 %v6320, %v6288
      %v6353 = vadd.f32 %v6321, %v6289
      %v6354 = vadd.f32 %v6322, %v6290
      %v6355 = vadd.f32 %v6323, %v6291
      %v6356 = vadd.f32 %v6324, %v6292
      %v6357 = vadd.f32 %v6325, %v6293
      %v6358 = vadd.f32 %v6326, %v6294
      %v6359 = vadd.f32 %v6327, %v6295
      %v6360 = vadd.f32 %v6328, %v6296
      %v6361 = vadd.f32 %v6329, %v6297
      %v6362 = vadd.f32 %v6330, %v6298
      %v6363 = vadd.f32 %v6331, %v6299
      %v6364 = vadd.f32 %v6332, %v6300
      %v6365 = vadd.f32 %v6333, %v6301
      %v6366 = vadd.f32 %v6334, %v6302
      %v6367 = vadd.f32 %v6335, %v6303
      %v6368 = vadd.f32 %v6336, %v6304
      %v6369 = vadd.f32 %v6337, %v6305
      %v6370 = vadd.f32 %v6338, %v6306
      %v6371 = vadd.f32 %v6339, %v6307
      %v6372 = vadd.f32 %v6340, %v6308
      %v6373 = vadd.f32 %v6341, %v6309
      %v6374 = vadd.f32 %v6342, %v6310
      %v6375 = vadd.f32 %v6343, %v6311
      %v6376 = vadd.f32 %v6344, %v6312
      %v6377 = vadd.f32 %v6345, %v6313
      %v6378 = vadd.f32 %v6346, %v6314
      %v6379 = vadd.f32 %v6347, %v6315
      %6380 = vst [vmem:[%s224] sm:$0xff] %v6348
      %6381 = vst [vmem:[%s224 + $0x8] sm:$0xff] %v6349
      %6382 = vst [vmem:[%s224 + $0x10] sm:$0xff] %v6350
      %6383 = vst [vmem:[%s224 + $0x18] sm:$0xff] %v6351
      %6384 = vst [vmem:[%s224 + $0x20] sm:$0xff] %v6352
      %6385 = vst [vmem:[%s224 + $0x28] sm:$0xff] %v6353
      %6386 = vst [vmem:[%s224 + $0x30] sm:$0xff] %v6354
      %6387 = vst [vmem:[%s224 + $0x38] sm:$0xff] %v6355
      %6388 = vst [vmem:[%s224 + $0x40] sm:$0xff] %v6356
      %6389 = vst [vmem:[%s224 + $0x48] sm:$0xff] %v6357
      %6390 = vst [vmem:[%s224 + $0x50] sm:$0xff] %v6358
      %6391 = vst [vmem:[%s224 + $0x58] sm:$0xff] %v6359
      %6392 = vst [vmem:[%s224 + $0x60] sm:$0xff] %v6360
      %6393 = vst [vmem:[%s224 + $0x68] sm:$0xff] %v6361
      %6394 = vst [vmem:[%s224 + $0x70] sm:$0xff] %v6362
      %6395 = vst [vmem:[%s224 + $0x78] sm:$0xff] %v6363
      %6396 = vst [vmem:[%s224 + $0x80] sm:$0xff] %v6364
      %6397 = vst [vmem:[%s224 + $0x88] sm:$0xff] %v6365
      %6398 = vst [vmem:[%s224 + $0x90] sm:$0xff] %v6366
      %6399 = vst [vmem:[%s224 + $0x98] sm:$0xff] %v6367
      %6400 = vst [vmem:[%s224 + $0xa0] sm:$0xff] %v6368
      %6401 = vst [vmem:[%s224 + $0xa8] sm:$0xff] %v6369
      %6402 = vst [vmem:[%s224 + $0xb0] sm:$0xff] %v6370
      %6403 = vst [vmem:[%s224 + $0xb8] sm:$0xff] %v6371
      %6404 = vst [vmem:[%s224 + $0xc0] sm:$0xff] %v6372
      %6405 = vst [vmem:[%s224 + $0xc8] sm:$0xff] %v6373
      %6406 = vst [vmem:[%s224 + $0xd0] sm:$0xff] %v6374
      %6407 = vst [vmem:[%s224 + $0xd8] sm:$0xff] %v6375
      %6408 = vst [vmem:[%s224 + $0xe0] sm:$0xff] %v6376
      %6409 = vst [vmem:[%s224 + $0xe8] sm:$0xff] %v6377
      %6410 = vst [vmem:[%s224 + $0xf0] sm:$0xff] %v6378
      %6411 = vst [vmem:[%s224 + $0xf8] sm:$0xff] %v6379
      %p6412 = scmp.lt.s32.totalorder %s16, 1
      %s6413 = scalar_select %p6412, %s16, 1
      %s6414 = smul.addr %s6413, 32
      %s6415 = smul.addr %s6414, 8
      %s6416 = scalar_lea.vmem %s5, %s6415
      // Predicated region
      $region41: #{residual_block.1} parent=39 // pred_check
        %p6417 = pneg %p144
      $region42: #{residual_block.1} parent=39 // pred_check_branch
        %6419 = sbr.rel (%p6417) target = $region44
      $region43: #{residual_block.1} parent=39 // pred_region
        _
      $region44: #{residual_block.1} parent=39 // pred_fallthru
        _
    $region40: #{residual_block.1} parent=5 // pred_fallthru
      _
    %p6420 = scmp.le.s32.totalorder 2, %s11
    // Predicated region
    $region45: #{residual_block.1} parent=5 // pred_check
      %p6421 = pneg %p6420
    $region46: #{residual_block.1} parent=5 // pred_check_branch
      %6423 = sbr.rel (%p6421) target = $region48
    $region47: #{residual_block.1} parent=5 // pred_region
      %s6424 = ssub.s32 %s11, 2
      // Predicated region
      $region49: #{residual_block.1} parent=47 // pred_check
        %p6425 = pneg %p150
      $region50: #{residual_block.1} parent=47 // pred_check_branch
        %6427 = sbr.rel (%p6425) target = $region52
      $region51: #{residual_block.1} parent=47 // pred_region
        %p6428 = scmp.lt.s32.totalorder %s17, 1
        %s6429 = scalar_select %p6428, %s17, 1
        %s6430 = smul.addr %s6429, 32
        %s6431 = smul.addr %s6430, 8
        %s6432 = scalar_lea.vmem %s5, %s6431
      $region52: #{residual_block.1} parent=47 // pred_fallthru
        _
    $region48: #{residual_block.1} parent=5 // pred_fallthru
      _
  $region6: #{residual_block.1} parent=0 // loop_footer
    %s15 = sadd.s32 1, %s11
  $region7: #{residual_block.1} parent=0 // loop_footer_branch
    %10 = sbr.rel target = $region3
  $region8: #{residual_block.1} parent=0 // loop_exit
    _

</llo_original>
